<compile_context>
chip_gen: v7x
topology: tpu7x:2x2x1
jax: 0.10.0
libtpu: 0.0.40
codegen_flags: <defaults>
</compile_context>

<pallas_src>
import functools
import math

import jax
import jax.numpy as jnp
from jax import lax
from jax.experimental import pallas as pl
from jax.experimental.pallas import tpu as pltpu

# ----- small, CryoFold-consistent hyper-parameters -----
IMG = 16          # img_shape = (16, 16, 16)
PATCH = 8         # patch_size
IN_DIM = 1        # input_dim
EMBED_DIM = 32    # embed_dim
NUM_HEADS = 4     # num_heads
NUM_LAYERS = 8    # CryoFold hard-codes self.num_layers = 8
DIM_FF = 64       # dim_linear_block
DEC_DIM = 16      # decoder_dim
OUT_ATOMS = 12    # self.out = nn.Linear(embed_dim, 12)
N_PATCH = (IMG // PATCH) ** 3          # 8
PATCH_VOL = IN_DIM * PATCH ** 3        # 512
HEAD_DIM = EMBED_DIM // NUM_HEADS      # 8
VEC_LANES = 128                        # packed bias / LayerNorm tile width

# rows of the per-layer packed (8, 128) bias/LN tile
_R_BQKV, _R_BO, _R_B1, _R_B2, _R_G1, _R_BE1, _R_G2, _R_BE2 = range(8)


# ---------------- in-kernel helpers (operate on VMEM *values*) ----------------
def _layer_norm_v(x, g, b, eps=1e-5):
    mu = jnp.mean(x, axis=-1, keepdims=True)
    var = jnp.mean(jnp.square(x - mu), axis=-1, keepdims=True)
    return (x - mu) * lax.rsqrt(var + eps) * g + b


def _attention_core(q, kv, wo, bo, mask_rows, B, Lq, Lk):
    """q: (B*Lq, E); kv: (B*Lk, 2E) laid out [K | V]; mask_rows: None or (B, Lk) in {0,1}."""
    E, H, Dh = EMBED_DIM, NUM_HEADS, HEAD_DIM
    scale = 1.0 / math.sqrt(Dh)
    batch_out = []
    for b in range(B):                                  # static loops: B*H tiny MXU ops, 1 launch
        q_b = q[b * Lq:(b + 1) * Lq, :]
        kv_b = kv[b * Lk:(b + 1) * Lk, :]
        bias_b = None
        if mask_rows is not None:
            bias_b = (1.0 - mask_rows[b:b + 1, :]) * (-1e9)          # (1, Lk) key-padding bias
        head_out = []
        for h in range(H):
            qh = q_b[:, h * Dh:(h + 1) * Dh]
            kh = kv_b[:, h * Dh:(h + 1) * Dh]
            vh = kv_b[:, E + h * Dh:E + (h + 1) * Dh]
            # contract last axes directly (no k.T materialization)
            s = lax.dot_general(qh, kh, (((1,), (1,)), ((), ())),
                                preferred_element_type=jnp.float32) * scale
            if bias_b is not None:
                s = s + bias_b
            s = s - jnp.max(s, axis=-1, keepdims=True)
            p = jnp.exp(s)
            p = p * pl.reciprocal(jnp.sum(p, axis=-1, keepdims=True), approx=True)
            head_out.append(jnp.dot(p, vh, preferred_element_type=jnp.float32))
        batch_out.append(jnp.concatenate(head_out, axis=-1))         # (Lq, E)
    y = jnp.concatenate(batch_out, axis=0)                           # (B*Lq, E)
    return jnp.dot(y, wo, preferred_element_type=jnp.float32) + bo


def _encoder_stream(x, wqkv, wo, w1, w2, vec, mask_rows, B, L):
    """One post-norm transformer block applied to a flattened (B*L, E) stream."""
    E, FF = EMBED_DIM, DIM_FF
    bqkv = vec[_R_BQKV:_R_BQKV + 1, 0:3 * E]
    bo = vec[_R_BO:_R_BO + 1, 0:E]
    b1 = vec[_R_B1:_R_B1 + 1, 0:FF]
    b2 = vec[_R_B2:_R_B2 + 1, 0:E]
    g1 = vec[_R_G1:_R_G1 + 1, 0:E]
    be1 = vec[_R_BE1:_R_BE1 + 1, 0:E]
    g2 = vec[_R_G2:_R_G2 + 1, 0:E]
    be2 = vec[_R_BE2:_R_BE2 + 1, 0:E]

    # fused Q|K|V projection (lane-dense N=96)
    qkv = jnp.dot(x, wqkv, preferred_element_type=jnp.float32) + bqkv
    a = _attention_core(qkv[:, 0:E], qkv[:, E:3 * E], wo, bo, mask_rows, B, L, L)
    x = _layer_norm_v(x + a, g1, be1)

    # FFN stays entirely in VMEM
    h = jnp.dot(x, w1, preferred_element_type=jnp.float32) + b1
    # TODO(synk): PyTorch nn.GELU() defaults to the exact erf form; tanh approximation used here.
    h = jax.nn.gelu(h, approximate=True)
    f = jnp.dot(h, w2, preferred_element_type=jnp.float32) + b2
    return _layer_norm_v(x + f, g2, be2)


# ---------------- kernel 1: fused 8-layer dual-stream transformer encoder ----------------
def _encoder_kernel(xp_ref, xs_ref, mask_ref,
                    xwqkv_ref, xwo_ref, xw1_ref, xw2_ref, xvec_ref,
                    swqkv_ref, swo_ref, sw1_ref, sw2_ref, svec_ref,
                    xp_out, xs_out, xp_acc, xs_acc, *, B, Lp, Ls):
    # TODO(synk): TransformerBlock source not provided; modeled as parallel post-norm
    # self-attention + GELU FFN on the protein-patch stream and the sequence stream.
    l = pl.program_id(0)

    @pl.when(l == 0)
    def _():
        xp_acc[...] = xp_ref[...]
        xs_acc[...] = xs_ref[...]

    xp_acc[...] = _encoder_stream(xp_acc[...], xwqkv_ref[...], xwo_ref[...],
                                  xw1_ref[...], xw2_ref[...], xvec_ref[...],
                                  None, B, Lp)
    xs_acc[...] = _encoder_stream(xs_acc[...], swqkv_ref[...], swo_ref[...],
                                  sw1_ref[...], sw2_ref[...], svec_ref[...],
                                  mask_ref[...], B, Ls)

    @pl.when(l == pl.num_programs(0) - 1)
    def _():
        xp_out[...] = xp_acc[...]
        xs_out[...] = xs_acc[...]


def transformer_encoder(xp_flat, xs_flat, mask_f, enc, B, Lp, Ls):
    E, FF, NL = EMBED_DIM, DIM_FF, NUM_LAYERS
    kern = functools.partial(_encoder_kernel, B=B, Lp=Lp, Ls=Ls)

    def wspec(shape):                       # per-layer weight slice (layer axis squeezed)
        return pl.BlockSpec((None,) + shape, lambda l: (l, 0, 0))

    return pl.pallas_call(
        kern,
        out_shape=(jax.ShapeDtypeStruct((B * Lp, E), jnp.float32),
                   jax.ShapeDtypeStruct((B * Ls, E), jnp.float32)),
        grid=(NL,),
        in_specs=[
            pl.BlockSpec((B * Lp, E), lambda l: (0, 0)),
            pl.BlockSpec((B * Ls, E), lambda l: (0, 0)),
            pl.BlockSpec((B, Ls), lambda l: (0, 0)),
            wspec((E, 3 * E)), wspec((E, E)), wspec((E, FF)), wspec((FF, E)),
            wspec((8, VEC_LANES)),
            wspec((E, 3 * E)), wspec((E, E)), wspec((E, FF)), wspec((FF, E)),
            wspec((8, VEC_LANES)),
        ],
        out_specs=(pl.BlockSpec((B * Lp, E), lambda l: (0, 0)),
                   pl.BlockSpec((B * Ls, E), lambda l: (0, 0))),
        scratch_shapes=[pltpu.VMEM((B * Lp, E), jnp.float32),
                        pltpu.VMEM((B * Ls, E), jnp.float32)],
        compiler_params=pltpu.CompilerParams(dimension_semantics=("arbitrary",)),
    )(xp_flat, xs_flat, mask_f,
      enc["x_wqkv"], enc["x_wo"], enc["x_w1"], enc["x_w2"], enc["x_vec"],
      enc["s_wqkv"], enc["s_wo"], enc["s_w1"], enc["s_w2"], enc["s_vec"])


# ---------------- kernel 2: patch embedding (Conv3d k=s=patch) + positional add ----------------
def _patch_embed_kernel(x_ref, w_ref, b_ref, pos_ref, o_ref):
    o_ref[...] = (jnp.dot(x_ref[...], w_ref[...], preferred_element_type=jnp.float32)
                  + b_ref[...] + pos_ref[...])


def patch_embed(patches, w, b, pos):
    M, K = patches.shape
    N = w.shape[1]
    return pl.pallas_call(
        _patch_embed_kernel,
        out_shape=jax.ShapeDtypeStruct((M, N), jnp.float32),
        grid=(1,),
        in_specs=[pl.BlockSpec((M, K), lambda i: (0, 0)),
                  pl.BlockSpec((K, N), lambda i: (0, 0)),
                  pl.BlockSpec((1, N), lambda i: (0, 0)),
                  pl.BlockSpec((M, N), lambda i: (0, 0))],
        out_specs=pl.BlockSpec((M, N), lambda i: (0, 0)),
        compiler_params=pltpu.CompilerParams(dimension_semantics=("arbitrary",)),
    )(patches, w, b.reshape(1, N), pos)


# ---------------- kernel 3: cross-attention + to_hV + out head + atom LayerNorm ----------------
def _cross_head_kernel(xs_ref, xp_ref,
                       wq_ref, bq_ref, wkv_ref, bkv_ref, wo_ref, bo_ref,
                       whv_ref, bhv_ref, wout_ref, bout_ref, g_ref, be_ref,
                       hv_out, atoms_out, *, B, Lq, Lk):
    q = jnp.dot(xs_ref[...], wq_ref[...], preferred_element_type=jnp.float32) + bq_ref[...]
    kv = jnp.dot(xp_ref[...], wkv_ref[...], preferred_element_type=jnp.float32) + bkv_ref[...]
    y = _attention_core(q, kv, wo_ref[...], bo_ref[...], None, B, Lq, Lk)
    hv_out[...] = jnp.dot(y, whv_ref[...], preferred_element_type=jnp.float32) + bhv_ref[...]
    atoms = jnp.dot(y, wout_ref[...], preferred_element_type=jnp.float32) + bout_ref[...]
    atoms_out[...] = _layer_norm_v(atoms, g_ref[...], be_ref[...])


def cross_attn_head(xs_flat, xp_flat, ca, to_hv, out_p, atom_ln, B, Lq, Lk):
    E = EMBED_DIM
    kern = functools.partial(_cross_head_kernel, B=B, Lq=Lq, Lk=Lk)

    def full2d(shape):
        return pl.BlockSpec(shape, lambda i: (0, 0))

    return pl.pallas_call(
        kern,
        out_shape=(jax.ShapeDtypeStruct((B * Lq, DEC_DIM), jnp.float32),
                   jax.ShapeDtypeStruct((B * Lq, OUT_ATOMS), jnp.float32)),
        grid=(1,),
        in_specs=[full2d((B * Lq, E)), full2d((B * Lk, E)),
                  full2d((E, E)), full2d((1, E)),
                  full2d((E, 2 * E)), full2d((1, 2 * E)),
                  full2d((E, E)), full2d((1, E)),
                  full2d((E, DEC_DIM)), full2d((1, DEC_DIM)),
                  full2d((E, OUT_ATOMS)), full2d((1, OUT_ATOMS)),
                  full2d((1, OUT_ATOMS)), full2d((1, OUT_ATOMS))],
        out_specs=(full2d((B * Lq, DEC_DIM)), full2d((B * Lq, OUT_ATOMS))),
        compiler_params=pltpu.CompilerParams(dimension_semantics=("arbitrary",)),
    )(xs_flat, xp_flat,
      ca["wq"]["w"], ca["wq"]["b"].reshape(1, E),
      ca["wkv"]["w"], ca["wkv"]["b"].reshape(1, 2 * E),
      ca["wo"]["w"], ca["wo"]["b"].reshape(1, E),
      to_hv["w"], to_hv["b"].reshape(1, DEC_DIM),
      out_p["w"], out_p["b"].reshape(1, OUT_ATOMS),
      atom_ln["g"].reshape(1, OUT_ATOMS), atom_ln["b"].reshape(1, OUT_ATOMS))


# ---------------- kernel 4: 30-step structure refinement, single launch ----------------
def _decoder_kernel(hv_ref, x0_ref, w_ref, b_ref, xpred_ref, preds_ref, *, n_steps):
    hv = hv_ref[...]                                          # (N, DEC_DIM)
    w = w_ref[...]                                            # (DEC_DIM+12, 12)
    w_h = w[0:DEC_DIM, :]
    w_x = w[DEC_DIM:DEC_DIM + OUT_ATOMS, :]
    # concat([h_V, X]) @ W  ==  h_V @ W_h + X @ W_x ; the h_V part is loop-invariant.
    base = jnp.dot(hv, w_h, preferred_element_type=jnp.float32) + b_ref[...]

    def body(i, x):
        delta = base + jnp.dot(x, w_x, preferred_element_type=jnp.float32)
        x_new = x + 0.1 * delta
        preds_ref[i] = x_new
        return x_new

    xpred_ref[...] = lax.fori_loop(0, n_steps, body, x0_ref[...])


@functools.partial(jax.jit, static_argnames=("n_steps",))
def _decode(hv, x0, w, b, *, n_steps):
    N = x0.shape[0]
    kern = functools.partial(_decoder_kernel, n_steps=n_steps)
    return pl.pallas_call(
        kern,
        out_shape=(jax.ShapeDtypeStruct((N, OUT_ATOMS), jnp.float32),
                   jax.ShapeDtypeStruct((n_steps, N, OUT_ATOMS), jnp.float32)),
        grid=(1,),
        in_specs=[pl.BlockSpec((N, DEC_DIM), lambda i: (0, 0)),
                  pl.BlockSpec((N, OUT_ATOMS), lambda i: (0, 0)),
                  pl.BlockSpec((DEC_DIM + OUT_ATOMS, OUT_ATOMS), lambda i: (0, 0)),
                  pl.BlockSpec((1, OUT_ATOMS), lambda i: (0, 0))],
        out_specs=(pl.BlockSpec((N, OUT_ATOMS), lambda i: (0, 0)),
                   pl.BlockSpec((n_steps, N, OUT_ATOMS), lambda i: (0, 0, 0))),
        compiler_params=pltpu.CompilerParams(dimension_semantics=("arbitrary",)),
    )(hv, x0, w, b.reshape(1, OUT_ATOMS))


def infer_X(params, X, h_V, batch_id, chain_encoding, n_steps=30, virtual_frame_num=3):
    # TODO(synk): StructDecoder source not provided; minimal iterative coordinate refinement
    # stand-in, executed as a single Pallas kernel with the step loop resident in VMEM.
    del batch_id, chain_encoding, virtual_frame_num
    N = X.shape[0]
    x_pred, preds = _decode(h_V, X.reshape(N, OUT_ATOMS),
                            params["decoder"]["w"], params["decoder"]["b"], n_steps=n_steps)
    return x_pred.reshape(N, 4, 3), preds.reshape(n_steps, N, 4, 3)


# ---------------- static-shape portion of the forward (jitted) ----------------
@jax.jit
def _encode(params, x, seq, seq_pos, chain_encoding, mask):
    B, C = x.shape[0], x.shape[1]
    L = seq.shape[1]
    E = EMBED_DIM
    p = PATCH

    # Conv3d(kernel=stride=patch) patch embedding as one Pallas matmul (dropout = identity)
    patches = x.reshape(B, C, IMG // p, p, IMG // p, p, IMG // p, p)
    patches = patches.transpose(0, 2, 4, 6, 1, 3, 5, 7).reshape(B * N_PATCH, C * p * p * p)
    pos = jnp.tile(params["patch_pos"], (B, 1))                       # (B*P, E)
    xp = patch_embed(patches, params["patch_proj"]["w"], params["patch_proj"]["b"], pos)

    # TODO(synk): pretrained ESM-2 (esm2_t12_35M_UR50D) has no Pallas equivalent;
    # replaced by the module's own token embedding table.
    seq_repr = (jnp.take(params["token_embed"], seq, axis=0)
                + jnp.take(params["chain_embed"], chain_encoding, axis=0)
                + jnp.take(params["position_emb"], seq_pos, axis=0))   # (B, L, E)
    xs = seq_repr.reshape(B * L, E).astype(jnp.float32)

    mask_f = mask.astype(jnp.float32)                                  # (B, L); bias built in-kernel

    xp, xs = transformer_encoder(xp, xs, mask_f, params["enc"], B, N_PATCH, L)

    hv, atoms = cross_attn_head(xs, xp, params["cross_attn"], params["to_hV"],
                                params["out"], params["atom_norm"], B, L, N_PATCH)
    return atoms.reshape(B, L, 4, 3), hv.reshape(B, L, DEC_DIM)


def cryofold_forward(params, x, seq, seq_pos, chain_encoding, mask):
    atoms, h_V = _encode(params, x, seq, seq_pos, chain_encoding, mask)
    B, L = mask.shape
    # Boolean-mask gathers are data-dependent shapes, so they stay outside jit (as in the
    # original eager PyTorch forward).
    X = atoms[mask]                                                    # (N, 4, 3)
    hv = h_V[mask]                                                     # (N, DEC_DIM)
    batch_id = jnp.broadcast_to(jnp.arange(B)[:, None], (B, L))[mask]
    chain_m = chain_encoding[mask]
    return infer_X(params, X, hv, batch_id, chain_m, 30, virtual_frame_num=3)


# ---------------- deterministic parameter init ----------------
def _dense(key, d_in, d_out):
    return {"w": jax.random.normal(key, (d_in, d_out), jnp.float32) * 0.02,
            "b": jnp.zeros((d_out,), jnp.float32)}


def _pack_vec(bqkv, bo, b1, b2, g1, be1, g2, be2):
    def row(v):
        return jnp.pad(v.astype(jnp.float32), (0, VEC_LANES - v.shape[0]))
    return jnp.stack([row(bqkv), row(bo), row(b1), row(b2),
                      row(g1), row(be1), row(g2), row(be2)], axis=0)    # (8, 128)


def _init_encoder(key):
    E, FF, NL = EMBED_DIM, DIM_FF, NUM_LAYERS
    ks = jax.random.split(key, 8)

    def stk(k, shape):
        return jax.random.normal(k, (NL,) + shape, jnp.float32) * 0.02

    ones_e = jnp.ones((E,), jnp.float32)
    zeros_e = jnp.zeros((E,), jnp.float32)
    vec = _pack_vec(jnp.zeros((3 * E,), jnp.float32), zeros_e,
                    jnp.zeros((FF,), jnp.float32), zeros_e,
                    ones_e, zeros_e, ones_e, zeros_e)
    vecs = jnp.broadcast_to(vec, (NL, 8, VEC_LANES))
    return {
        "x_wqkv": stk(ks[0], (E, 3 * E)), "x_wo": stk(ks[1], (E, E)),
        "x_w1": stk(ks[2], (E, FF)), "x_w2": stk(ks[3], (FF, E)), "x_vec": vecs,
        "s_wqkv": stk(ks[4], (E, 3 * E)), "s_wo": stk(ks[5], (E, E)),
        "s_w1": stk(ks[6], (E, FF)), "s_w2": stk(ks[7], (FF, E)), "s_vec": vecs,
    }


def init_params(key):
    keys = jax.random.split(key, 12)
    E = EMBED_DIM
    tok = jax.random.normal(keys[0], (33, E), jnp.float32) * 0.02
    tok = tok.at[1].set(0.0)      # ESM alphabet padding_idx = 1
    chain = jax.random.normal(keys[1], (1000, E), jnp.float32) * 0.02
    chain = chain.at[0].set(0.0)  # chain_embed padding_idx = 0
    pos = jax.random.normal(keys[2], (30000, E), jnp.float32) * 0.02
    ca_keys = jax.random.split(keys[7], 3)
    return {
        "patch_proj": _dense(keys[3], PATCH_VOL, E),
        "patch_pos": jax.random.normal(keys[4], (N_PATCH, E), jnp.float32) * 0.02,
        "token_embed": tok,
        "chain_embed": chain,
        "position_emb": pos,
        "enc": _init_encoder(keys[10]),
        "out": _dense(keys[5], E, OUT_ATOMS),
        "to_hV": _dense(keys[6], E, DEC_DIM),
        "atom_norm": {"g": jnp.ones((OUT_ATOMS,), jnp.float32),
                      "b": jnp.zeros((OUT_ATOMS,), jnp.float32)},
        "cross_attn": {"wq": _dense(ca_keys[0], E, E),
                       "wkv": _dense(ca_keys[1], E, 2 * E),
                       "wo": _dense(ca_keys[2], E, E)},
        "decoder": _dense(keys[8], DEC_DIM + OUT_ATOMS, OUT_ATOMS),
    }


if __name__ == "__main__":
    key = jax.random.PRNGKey(0)
    pkey, xkey, skey, ckey = jax.random.split(key, 4)
    params = init_params(pkey)

    B, L = 2, 8
    x = jax.random.normal(xkey, (B, IN_DIM, IMG, IMG, IMG), jnp.float32)   # NCDHW volume
    seq = jax.random.randint(skey, (B, L), 4, 25)                          # ESM token ids
    seq_pos = jnp.broadcast_to(jnp.arange(L), (B, L))
    chain_encoding = jax.random.randint(ckey, (B, L), 1, 5)
    mask = jnp.ones((B, L), dtype=bool).at[1, L - 1].set(False)            # one padded position

    X_pred, all_preds = cryofold_forward(params, x, seq, seq_pos, chain_encoding, mask)
    jax.block_until_ready((X_pred, all_preds))
    assert X_pred.shape == (int(mask.sum()), 4, 3)
    assert all_preds.shape == (30, int(mask.sum()), 4, 3)
    print("KERNEL_OK")
</pallas_src>

<mosaic_0001>
module attributes {stable_mosaic.version = 11 : i64} {
  func.func @_patch_embed_kernel(%arg0: i32, %arg1: memref<16x512xf32, #tpu.memory_space<vmem>>, %arg2: memref<512x32xf32, #tpu.memory_space<vmem>>, %arg3: memref<1x32xf32, #tpu.memory_space<vmem>>, %arg4: memref<16x32xf32, #tpu.memory_space<vmem>>, %arg5: memref<16x32xf32, #tpu.memory_space<vmem>>) attributes {dimension_semantics = [#tpu.dimension_semantics<arbitrary>], iteration_bounds = array<i64: 1>, scalar_prefetch = 0 : i64, scratch_operands = 0 : i64, tpu.core_type = #tpu.core_type<tc>, window_params = [{pipeline_mode = #tpu.pipeline_mode<synchronous>, transform_indices = @transform_0, window_bounds = array<i64: 16, 512>}, {pipeline_mode = #tpu.pipeline_mode<synchronous>, transform_indices = @transform_1, window_bounds = array<i64: 512, 32>}, {pipeline_mode = #tpu.pipeline_mode<synchronous>, transform_indices = @transform_2, window_bounds = array<i64: 1, 32>}, {pipeline_mode = #tpu.pipeline_mode<synchronous>, transform_indices = @transform_3, window_bounds = array<i64: 16, 32>}, {pipeline_mode = #tpu.pipeline_mode<synchronous>, transform_indices = @transform_4, window_bounds = array<i64: 16, 32>}]} {
    %c0 = arith.constant 0 : index
    %c0_0 = arith.constant 0 : index
    %0 = vector.load %arg1[%c0, %c0_0] : memref<16x512xf32, #tpu.memory_space<vmem>>, vector<16x512xf32>
    %c0_1 = arith.constant 0 : index
    %c0_2 = arith.constant 0 : index
    %1 = vector.load %arg2[%c0_1, %c0_2] : memref<512x32xf32, #tpu.memory_space<vmem>>, vector<512x32xf32>
    %cst = arith.constant dense<0.000000e+00> : vector<16x32xf32>
    %2 = tpu.matmul %0, %1, %cst {dimension_numbers = #tpu.dot_dimension_numbers<[1], [0], [0], [1], [0, 0, 1, 1], [], []>} : vector<16x512xf32>, vector<512x32xf32>, vector<16x32xf32> -> vector<16x32xf32>
    %c0_3 = arith.constant 0 : index
    %c0_4 = arith.constant 0 : index
    %3 = vector.load %arg3[%c0_3, %c0_4] : memref<1x32xf32, #tpu.memory_space<vmem>>, vector<1x32xf32>
    %4 = vector.broadcast %3 : vector<1x32xf32> to vector<16x32xf32>
    %5 = arith.addf %2, %4 : vector<16x32xf32>
    %c0_5 = arith.constant 0 : index
    %c0_6 = arith.constant 0 : index
    %6 = vector.load %arg4[%c0_5, %c0_6] : memref<16x32xf32, #tpu.memory_space<vmem>>, vector<16x32xf32>
    %7 = arith.addf %5, %6 : vector<16x32xf32>
    %c0_7 = arith.constant 0 : index
    %c0_8 = arith.constant 0 : index
    %8 = vector.load %arg5[%c0_7, %c0_8] : memref<16x32xf32, #tpu.memory_space<vmem>>, vector<16x32xf32>
    tpu.vector_store %arg5[%c0_7, %c0_8], %7 {strides = array<i32>} : memref<16x32xf32, #tpu.memory_space<vmem>>, vector<16x32xf32>,
    return
  }
  func.func @transform_0(%arg0: i32) -> (i32, i32) {
    %c0_i32 = arith.constant 0 : i32
    %c0_i32_0 = arith.constant 0 : i32
    %c0_i32_1 = arith.constant 0 : i32
    return %c0_i32, %c0_i32_0 : i32, i32
  }
  func.func @transform_1(%arg0: i32) -> (i32, i32) {
    %c0_i32 = arith.constant 0 : i32
    %c0_i32_0 = arith.constant 0 : i32
    %c0_i32_1 = arith.constant 0 : i32
    return %c0_i32, %c0_i32_0 : i32, i32
  }
  func.func @transform_2(%arg0: i32) -> (i32, i32) {
    %c0_i32 = arith.constant 0 : i32
    %c0_i32_0 = arith.constant 0 : i32
    %c0_i32_1 = arith.constant 0 : i32
    return %c0_i32, %c0_i32_0 : i32, i32
  }
  func.func @transform_3(%arg0: i32) -> (i32, i32) {
    %c0_i32 = arith.constant 0 : i32
    %c0_i32_0 = arith.constant 0 : i32
    %c0_i32_1 = arith.constant 0 : i32
    return %c0_i32, %c0_i32_0 : i32, i32
  }
  func.func @transform_4(%arg0: i32) -> (i32, i32) {
    %c0_i32 = arith.constant 0 : i32
    %c0_i32_0 = arith.constant 0 : i32
    %c0_i32_1 = arith.constant 0 : i32
    return %c0_i32, %c0_i32_0 : i32, i32
  }
}

module attributes {stable_mosaic.version = 11 : i64} {
  func.func @_encoder_kernel(%arg0: i32, %arg1: memref<16x32xf32, #tpu.memory_space<vmem>>, %arg2: memref<16x32xf32, #tpu.memory_space<vmem>>, %arg3: memref<2x8xf32, #tpu.memory_space<vmem>>, %arg4: memref<1x32x96xf32, #tpu.memory_space<vmem>>, %arg5: memref<1x32x32xf32, #tpu.memory_space<vmem>>, %arg6: memref<1x32x64xf32, #tpu.memory_space<vmem>>, %arg7: memref<1x64x32xf32, #tpu.memory_space<vmem>>, %arg8: memref<1x8x128xf32, #tpu.memory_space<vmem>>, %arg9: memref<1x32x96xf32, #tpu.memory_space<vmem>>, %arg10: memref<1x32x32xf32, #tpu.memory_space<vmem>>, %arg11: memref<1x32x64xf32, #tpu.memory_space<vmem>>, %arg12: memref<1x64x32xf32, #tpu.memory_space<vmem>>, %arg13: memref<1x8x128xf32, #tpu.memory_space<vmem>>, %arg14: memref<16x32xf32, #tpu.memory_space<vmem>>, %arg15: memref<16x32xf32, #tpu.memory_space<vmem>>, %arg16: memref<16x32xf32, #tpu.memory_space<vmem>>, %arg17: memref<16x32xf32, #tpu.memory_space<vmem>>) attributes {dimension_semantics = [#tpu.dimension_semantics<arbitrary>], iteration_bounds = array<i64: 8>, scalar_prefetch = 0 : i64, scratch_operands = 2 : i64, tpu.core_type = #tpu.core_type<tc>, window_params = [{pipeline_mode = #tpu.pipeline_mode<synchronous>, transform_indices = @transform_0, window_bounds = array<i64: 16, 32>}, {pipeline_mode = #tpu.pipeline_mode<synchronous>, transform_indices = @transform_1, window_bounds = array<i64: 16, 32>}, {pipeline_mode = #tpu.pipeline_mode<synchronous>, transform_indices = @transform_2, window_bounds = array<i64: 2, 8>}, {transform_indices = @transform_3, window_bounds = array<i64: 1, 32, 96>}, {transform_indices = @transform_4, window_bounds = array<i64: 1, 32, 32>}, {transform_indices = @transform_5, window_bounds = array<i64: 1, 32, 64>}, {transform_indices = @transform_6, window_bounds = array<i64: 1, 64, 32>}, {transform_indices = @transform_7, window_bounds = array<i64: 1, 8, 128>}, {transform_indices = @transform_8, window_bounds = array<i64: 1, 32, 96>}, {transform_indices = @transform_9, window_bounds = array<i64: 1, 32, 32>}, {transform_indices = @transform_10, window_bounds = array<i64: 1, 32, 64>}, {transform_indices = @transform_11, window_bounds = array<i64: 1, 64, 32>}, {transform_indices = @transform_12, window_bounds = array<i64: 1, 8, 128>}, {pipeline_mode = #tpu.pipeline_mode<synchronous>, transform_indices = @transform_13, window_bounds = array<i64: 16, 32>}, {pipeline_mode = #tpu.pipeline_mode<synchronous>, transform_indices = @transform_14, window_bounds = array<i64: 16, 32>}]} {
    %c0_i32 = arith.constant 0 : i32
    %0 = arith.cmpi eq, %arg0, %c0_i32 : i32
    %1 = arith.extui %0 : i1 to i32
    %c0_i32_0 = arith.constant 0 : i32
    %2 = arith.cmpi ne, %1, %c0_i32_0 : i32
    scf.if %2 {
      %c0_160 = arith.constant 0 : index
      %c0_161 = arith.constant 0 : index
      %505 = vector.load %arg1[%c0_160, %c0_161] : memref<16x32xf32, #tpu.memory_space<vmem>>, vector<16x32xf32>
      %c0_162 = arith.constant 0 : index
      %c0_163 = arith.constant 0 : index
      %506 = vector.load %arg16[%c0_162, %c0_163] : memref<16x32xf32, #tpu.memory_space<vmem>>, vector<16x32xf32>
      tpu.vector_store %arg16[%c0_162, %c0_163], %505 {strides = array<i32>} : memref<16x32xf32, #tpu.memory_space<vmem>>, vector<16x32xf32>,
      %c0_164 = arith.constant 0 : index
      %c0_165 = arith.constant 0 : index
      %507 = vector.load %arg2[%c0_164, %c0_165] : memref<16x32xf32, #tpu.memory_space<vmem>>, vector<16x32xf32>
      %c0_166 = arith.constant 0 : index
      %c0_167 = arith.constant 0 : index
      %508 = vector.load %arg17[%c0_166, %c0_167] : memref<16x32xf32, #tpu.memory_space<vmem>>, vector<16x32xf32>
      tpu.vector_store %arg17[%c0_166, %c0_167], %507 {strides = array<i32>} : memref<16x32xf32, #tpu.memory_space<vmem>>, vector<16x32xf32>,
    } else {
    }
    %c0 = arith.constant 0 : index
    %c0_1 = arith.constant 0 : index
    %3 = vector.load %arg16[%c0, %c0_1] : memref<16x32xf32, #tpu.memory_space<vmem>>, vector<16x32xf32>
    %c0_2 = arith.constant 0 : index
    %c0_3 = arith.constant 0 : index
    %c0_4 = arith.constant 0 : index
    %4 = vector.load %arg4[%c0_2, %c0_3, %c0_4] : memref<1x32x96xf32, #tpu.memory_space<vmem>>, vector<1x32x96xf32>
    %5 = vector.shape_cast %4 : vector<1x32x96xf32> to vector<32x96xf32>
    %c0_5 = arith.constant 0 : index
    %c0_6 = arith.constant 0 : index
    %c0_7 = arith.constant 0 : index
    %6 = vector.load %arg5[%c0_5, %c0_6, %c0_7] : memref<1x32x32xf32, #tpu.memory_space<vmem>>, vector<1x32x32xf32>
    %7 = vector.shape_cast %6 : vector<1x32x32xf32> to vector<32x32xf32>
    %c0_8 = arith.constant 0 : index
    %c0_9 = arith.constant 0 : index
    %c0_10 = arith.constant 0 : index
    %8 = vector.load %arg6[%c0_8, %c0_9, %c0_10] : memref<1x32x64xf32, #tpu.memory_space<vmem>>, vector<1x32x64xf32>
    %9 = vector.shape_cast %8 : vector<1x32x64xf32> to vector<32x64xf32>
    %c0_11 = arith.constant 0 : index
    %c0_12 = arith.constant 0 : index
    %c0_13 = arith.constant 0 : index
    %10 = vector.load %arg7[%c0_11, %c0_12, %c0_13] : memref<1x64x32xf32, #tpu.memory_space<vmem>>, vector<1x64x32xf32>
    %11 = vector.shape_cast %10 : vector<1x64x32xf32> to vector<64x32xf32>
    %c0_14 = arith.constant 0 : index
    %c0_15 = arith.constant 0 : index
    %c0_16 = arith.constant 0 : index
    %12 = vector.load %arg8[%c0_14, %c0_15, %c0_16] : memref<1x8x128xf32, #tpu.memory_space<vmem>>, vector<1x8x128xf32>
    %13 = vector.shape_cast %12 : vector<1x8x128xf32> to vector<8x128xf32>
    %14 = vector.extract_strided_slice %13 {offsets = [0, 0], sizes = [1, 96], strides = [1, 1]} : vector<8x128xf32> to vector<1x96xf32>
    %15 = vector.extract_strided_slice %13 {offsets = [1, 0], sizes = [1, 32], strides = [1, 1]} : vector<8x128xf32> to vector<1x32xf32>
    %16 = vector.extract_strided_slice %13 {offsets = [2, 0], sizes = [1, 64], strides = [1, 1]} : vector<8x128xf32> to vector<1x64xf32>
    %17 = vector.extract_strided_slice %13 {offsets = [3, 0], sizes = [1, 32], strides = [1, 1]} : vector<8x128xf32> to vector<1x32xf32>
    %18 = vector.extract_strided_slice %13 {offsets = [4, 0], sizes = [1, 32], strides = [1, 1]} : vector<8x128xf32> to vector<1x32xf32>
    %19 = vector.extract_strided_slice %13 {offsets = [5, 0], sizes = [1, 32], strides = [1, 1]} : vector<8x128xf32> to vector<1x32xf32>
    %20 = vector.extract_strided_slice %13 {offsets = [6, 0], sizes = [1, 32], strides = [1, 1]} : vector<8x128xf32> to vector<1x32xf32>
    %21 = vector.extract_strided_slice %13 {offsets = [7, 0], sizes = [1, 32], strides = [1, 1]} : vector<8x128xf32> to vector<1x32xf32>
    %cst = arith.constant dense<0.000000e+00> : vector<16x96xf32>
    %22 = tpu.matmul %3, %5, %cst {dimension_numbers = #tpu.dot_dimension_numbers<[1], [0], [0], [1], [0, 0, 1, 1], [], []>} : vector<16x32xf32>, vector<32x96xf32>, vector<16x96xf32> -> vector<16x96xf32>
    %23 = vector.broadcast %14 : vector<1x96xf32> to vector<16x96xf32>
    %24 = arith.addf %22, %23 : vector<16x96xf32>
    %25 = vector.extract_strided_slice %24 {offsets = [0, 0], sizes = [16, 32], strides = [1, 1]} : vector<16x96xf32> to vector<16x32xf32>
    %26 = vector.extract_strided_slice %24 {offsets = [0, 32], sizes = [16, 64], strides = [1, 1]} : vector<16x96xf32> to vector<16x64xf32>
    %27 = vector.extract_strided_slice %25 {offsets = [0, 0], sizes = [8, 32], strides = [1, 1]} : vector<16x32xf32> to vector<8x32xf32>
    %28 = vector.extract_strided_slice %26 {offsets = [0, 0], sizes = [8, 64], strides = [1, 1]} : vector<16x64xf32> to vector<8x64xf32>
    %29 = vector.extract_strided_slice %27 {offsets = [0, 0], sizes = [8, 8], strides = [1, 1]} : vector<8x32xf32> to vector<8x8xf32>
    %30 = vector.extract_strided_slice %28 {offsets = [0, 0], sizes = [8, 8], strides = [1, 1]} : vector<8x64xf32> to vector<8x8xf32>
    %31 = vector.extract_strided_slice %28 {offsets = [0, 32], sizes = [8, 8], strides = [1, 1]} : vector<8x64xf32> to vector<8x8xf32>
    %cst_17 = arith.constant dense<0.000000e+00> : vector<8x8xf32>
    %32 = tpu.matmul %29, %30, %cst_17 {dimension_numbers = #tpu.dot_dimension_numbers<[1], [1], [0], [0], [0, 0, 1, 0], [], []>} : vector<8x8xf32>, vector<8x8xf32>, vector<8x8xf32> -> vector<8x8xf32>
    %cst_18 = arith.constant 0.353553385 : f32
    %33 = vector.broadcast %cst_18 : f32 to vector<8x8xf32>
    %34 = arith.mulf %32, %33 : vector<8x8xf32>
    %cst_19 = arith.constant dense<0xFF800000> : vector<8xf32>
    %35 = vector.multi_reduction <maximumf>, %34, %cst_19 [1] : vector<8x8xf32> to vector<8xf32>
    %36 = vector.shape_cast %35 : vector<8xf32> to vector<8x1xf32>
    %37 = vector.broadcast %36 : vector<8x1xf32> to vector<8x8xf32>
    %38 = arith.subf %34, %37 : vector<8x8xf32>
    %39 = math.exp %38 : vector<8x8xf32>
    %cst_20 = arith.constant dense<0.000000e+00> : vector<8xf32>
    %40 = vector.multi_reduction <add>, %39, %cst_20 [1] : vector<8x8xf32> to vector<8xf32>
    %41 = vector.shape_cast %40 : vector<8xf32> to vector<8x1xf32>
    %42 = tpu.reciprocal %41 {approx = true} : vector<8x1xf32> -> vector<8x1xf32>
    %43 = vector.broadcast %42 : vector<8x1xf32> to vector<8x8xf32>
    %44 = arith.mulf %39, %43 : vector<8x8xf32>
    %cst_21 = arith.constant dense<0.000000e+00> : vector<8x8xf32>
    %45 = tpu.matmul %44, %31, %cst_21 {dimension_numbers = #tpu.dot_dimension_numbers<[1], [0], [0], [1], [0, 0, 1, 1], [], []>} : vector<8x8xf32>, vector<8x8xf32>, vector<8x8xf32> -> vector<8x8xf32>
    %46 = vector.extract_strided_slice %27 {offsets = [0, 8], sizes = [8, 8], strides = [1, 1]} : vector<8x32xf32> to vector<8x8xf32>
    %47 = vector.extract_strided_slice %28 {offsets = [0, 8], sizes = [8, 8], strides = [1, 1]} : vector<8x64xf32> to vector<8x8xf32>
    %48 = vector.extract_strided_slice %28 {offsets = [0, 40], sizes = [8, 8], strides = [1, 1]} : vector<8x64xf32> to vector<8x8xf32>
    %cst_22 = arith.constant dense<0.000000e+00> : vector<8x8xf32>
    %49 = tpu.matmul %46, %47, %cst_22 {dimension_numbers = #tpu.dot_dimension_numbers<[1], [1], [0], [0], [0, 0, 1, 0], [], []>} : vector<8x8xf32>, vector<8x8xf32>, vector<8x8xf32> -> vector<8x8xf32>
    %cst_23 = arith.constant 0.353553385 : f32
    %50 = vector.broadcast %cst_23 : f32 to vector<8x8xf32>
    %51 = arith.mulf %49, %50 : vector<8x8xf32>
    %cst_24 = arith.constant dense<0xFF800000> : vector<8xf32>
    %52 = vector.multi_reduction <maximumf>, %51, %cst_24 [1] : vector<8x8xf32> to vector<8xf32>
    %53 = vector.shape_cast %52 : vector<8xf32> to vector<8x1xf32>
    %54 = vector.broadcast %53 : vector<8x1xf32> to vector<8x8xf32>
    %55 = arith.subf %51, %54 : vector<8x8xf32>
    %56 = math.exp %55 : vector<8x8xf32>
    %cst_25 = arith.constant dense<0.000000e+00> : vector<8xf32>
    %57 = vector.multi_reduction <add>, %56, %cst_25 [1] : vector<8x8xf32> to vector<8xf32>
    %58 = vector.shape_cast %57 : vector<8xf32> to vector<8x1xf32>
    %59 = tpu.reciprocal %58 {approx = true} : vector<8x1xf32> -> vector<8x1xf32>
    %60 = vector.broadcast %59 : vector<8x1xf32> to vector<8x8xf32>
    %61 = arith.mulf %56, %60 : vector<8x8xf32>
    %cst_26 = arith.constant dense<0.000000e+00> : vector<8x8xf32>
    %62 = tpu.matmul %61, %48, %cst_26 {dimension_numbers = #tpu.dot_dimension_numbers<[1], [0], [0], [1], [0, 0, 1, 1], [], []>} : vector<8x8xf32>, vector<8x8xf32>, vector<8x8xf32> -> vector<8x8xf32>
    %63 = vector.extract_strided_slice %27 {offsets = [0, 16], sizes = [8, 8], strides = [1, 1]} : vector<8x32xf32> to vector<8x8xf32>
    %64 = vector.extract_strided_slice %28 {offsets = [0, 16], sizes = [8, 8], strides = [1, 1]} : vector<8x64xf32> to vector<8x8xf32>
    %65 = vector.extract_strided_slice %28 {offsets = [0, 48], sizes = [8, 8], strides = [1, 1]} : vector<8x64xf32> to vector<8x8xf32>
    %cst_27 = arith.constant dense<0.000000e+00> : vector<8x8xf32>
    %66 = tpu.matmul %63, %64, %cst_27 {dimension_numbers = #tpu.dot_dimension_numbers<[1], [1], [0], [0], [0, 0, 1, 0], [], []>} : vector<8x8xf32>, vector<8x8xf32>, vector<8x8xf32> -> vector<8x8xf32>
    %cst_28 = arith.constant 0.353553385 : f32
    %67 = vector.broadcast %cst_28 : f32 to vector<8x8xf32>
    %68 = arith.mulf %66, %67 : vector<8x8xf32>
    %cst_29 = arith.constant dense<0xFF800000> : vector<8xf32>
    %69 = vector.multi_reduction <maximumf>, %68, %cst_29 [1] : vector<8x8xf32> to vector<8xf32>
    %70 = vector.shape_cast %69 : vector<8xf32> to vector<8x1xf32>
    %71 = vector.broadcast %70 : vector<8x1xf32> to vector<8x8xf32>
    %72 = arith.subf %68, %71 : vector<8x8xf32>
    %73 = math.exp %72 : vector<8x8xf32>
    %cst_30 = arith.constant dense<0.000000e+00> : vector<8xf32>
    %74 = vector.multi_reduction <add>, %73, %cst_30 [1] : vector<8x8xf32> to vector<8xf32>
    %75 = vector.shape_cast %74 : vector<8xf32> to vector<8x1xf32>
    %76 = tpu.reciprocal %75 {approx = true} : vector<8x1xf32> -> vector<8x1xf32>
    %77 = vector.broadcast %76 : vector<8x1xf32> to vector<8x8xf32>
    %78 = arith.mulf %73, %77 : vector<8x8xf32>
    %cst_31 = arith.constant dense<0.000000e+00> : vector<8x8xf32>
    %79 = tpu.matmul %78, %65, %cst_31 {dimension_numbers = #tpu.dot_dimension_numbers<[1], [0], [0], [1], [0, 0, 1, 1], [], []>} : vector<8x8xf32>, vector<8x8xf32>, vector<8x8xf32> -> vector<8x8xf32>
    %80 = vector.extract_strided_slice %27 {offsets = [0, 24], sizes = [8, 8], strides = [1, 1]} : vector<8x32xf32> to vector<8x8xf32>
    %81 = vector.extract_strided_slice %28 {offsets = [0, 24], sizes = [8, 8], strides = [1, 1]} : vector<8x64xf32> to vector<8x8xf32>
    %82 = vector.extract_strided_slice %28 {offsets = [0, 56], sizes = [8, 8], strides = [1, 1]} : vector<8x64xf32> to vector<8x8xf32>
    %cst_32 = arith.constant dense<0.000000e+00> : vector<8x8xf32>
    %83 = tpu.matmul %80, %81, %cst_32 {dimension_numbers = #tpu.dot_dimension_numbers<[1], [1], [0], [0], [0, 0, 1, 0], [], []>} : vector<8x8xf32>, vector<8x8xf32>, vector<8x8xf32> -> vector<8x8xf32>
    %cst_33 = arith.constant 0.353553385 : f32
    %84 = vector.broadcast %cst_33 : f32 to vector<8x8xf32>
    %85 = arith.mulf %83, %84 : vector<8x8xf32>
    %cst_34 = arith.constant dense<0xFF800000> : vector<8xf32>
    %86 = vector.multi_reduction <maximumf>, %85, %cst_34 [1] : vector<8x8xf32> to vector<8xf32>
    %87 = vector.shape_cast %86 : vector<8xf32> to vector<8x1xf32>
    %88 = vector.broadcast %87 : vector<8x1xf32> to vector<8x8xf32>
    %89 = arith.subf %85, %88 : vector<8x8xf32>
    %90 = math.exp %89 : vector<8x8xf32>
    %cst_35 = arith.constant dense<0.000000e+00> : vector<8xf32>
    %91 = vector.multi_reduction <add>, %90, %cst_35 [1] : vector<8x8xf32> to vector<8xf32>
    %92 = vector.shape_cast %91 : vector<8xf32> to vector<8x1xf32>
    %93 = tpu.reciprocal %92 {approx = true} : vector<8x1xf32> -> vector<8x1xf32>
    %94 = vector.broadcast %93 : vector<8x1xf32> to vector<8x8xf32>
    %95 = arith.mulf %90, %94 : vector<8x8xf32>
    %cst_36 = arith.constant dense<0.000000e+00> : vector<8x8xf32>
    %96 = tpu.matmul %95, %82, %cst_36 {dimension_numbers = #tpu.dot_dimension_numbers<[1], [0], [0], [1], [0, 0, 1, 1], [], []>} : vector<8x8xf32>, vector<8x8xf32>, vector<8x8xf32> -> vector<8x8xf32>
    %97 = tpu.concatenate %45, %62, %79, %96 in 1 : vector<8x8xf32>, vector<8x8xf32>, vector<8x8xf32>, vector<8x8xf32> -> vector<8x32xf32>
    %98 = vector.extract_strided_slice %25 {offsets = [8, 0], sizes = [8, 32], strides = [1, 1]} : vector<16x32xf32> to vector<8x32xf32>
    %99 = vector.extract_strided_slice %26 {offsets = [8, 0], sizes = [8, 64], strides = [1, 1]} : vector<16x64xf32> to vector<8x64xf32>
    %100 = vector.extract_strided_slice %98 {offsets = [0, 0], sizes = [8, 8], strides = [1, 1]} : vector<8x32xf32> to vector<8x8xf32>
    %101 = vector.extract_strided_slice %99 {offsets = [0, 0], sizes = [8, 8], strides = [1, 1]} : vector<8x64xf32> to vector<8x8xf32>
    %102 = vector.extract_strided_slice %99 {offsets = [0, 32], sizes = [8, 8], strides = [1, 1]} : vector<8x64xf32> to vector<8x8xf32>
    %cst_37 = arith.constant dense<0.000000e+00> : vector<8x8xf32>
    %103 = tpu.matmul %100, %101, %cst_37 {dimension_numbers = #tpu.dot_dimension_numbers<[1], [1], [0], [0], [0, 0, 1, 0], [], []>} : vector<8x8xf32>, vector<8x8xf32>, vector<8x8xf32> -> vector<8x8xf32>
    %cst_38 = arith.constant 0.353553385 : f32
    %104 = vector.broadcast %cst_38 : f32 to vector<8x8xf32>
    %105 = arith.mulf %103, %104 : vector<8x8xf32>
    %cst_39 = arith.constant dense<0xFF800000> : vector<8xf32>
    %106 = vector.multi_reduction <maximumf>, %105, %cst_39 [1] : vector<8x8xf32> to vector<8xf32>
    %107 = vector.shape_cast %106 : vector<8xf32> to vector<8x1xf32>
    %108 = vector.broadcast %107 : vector<8x1xf32> to vector<8x8xf32>
    %109 = arith.subf %105, %108 : vector<8x8xf32>
    %110 = math.exp %109 : vector<8x8xf32>
    %cst_40 = arith.constant dense<0.000000e+00> : vector<8xf32>
    %111 = vector.multi_reduction <add>, %110, %cst_40 [1] : vector<8x8xf32> to vector<8xf32>
    %112 = vector.shape_cast %111 : vector<8xf32> to vector<8x1xf32>
    %113 = tpu.reciprocal %112 {approx = true} : vector<8x1xf32> -> vector<8x1xf32>
    %114 = vector.broadcast %113 : vector<8x1xf32> to vector<8x8xf32>
    %115 = arith.mulf %110, %114 : vector<8x8xf32>
    %cst_41 = arith.constant dense<0.000000e+00> : vector<8x8xf32>
    %116 = tpu.matmul %115, %102, %cst_41 {dimension_numbers = #tpu.dot_dimension_numbers<[1], [0], [0], [1], [0, 0, 1, 1], [], []>} : vector<8x8xf32>, vector<8x8xf32>, vector<8x8xf32> -> vector<8x8xf32>
    %117 = vector.extract_strided_slice %98 {offsets = [0, 8], sizes = [8, 8], strides = [1, 1]} : vector<8x32xf32> to vector<8x8xf32>
    %118 = vector.extract_strided_slice %99 {offsets = [0, 8], sizes = [8, 8], strides = [1, 1]} : vector<8x64xf32> to vector<8x8xf32>
    %119 = vector.extract_strided_slice %99 {offsets = [0, 40], sizes = [8, 8], strides = [1, 1]} : vector<8x64xf32> to vector<8x8xf32>
    %cst_42 = arith.constant dense<0.000000e+00> : vector<8x8xf32>
    %120 = tpu.matmul %117, %118, %cst_42 {dimension_numbers = #tpu.dot_dimension_numbers<[1], [1], [0], [0], [0, 0, 1, 0], [], []>} : vector<8x8xf32>, vector<8x8xf32>, vector<8x8xf32> -> vector<8x8xf32>
    %cst_43 = arith.constant 0.353553385 : f32
    %121 = vector.broadcast %cst_43 : f32 to vector<8x8xf32>
    %122 = arith.mulf %120, %121 : vector<8x8xf32>
    %cst_44 = arith.constant dense<0xFF800000> : vector<8xf32>
    %123 = vector.multi_reduction <maximumf>, %122, %cst_44 [1] : vector<8x8xf32> to vector<8xf32>
    %124 = vector.shape_cast %123 : vector<8xf32> to vector<8x1xf32>
    %125 = vector.broadcast %124 : vector<8x1xf32> to vector<8x8xf32>
    %126 = arith.subf %122, %125 : vector<8x8xf32>
    %127 = math.exp %126 : vector<8x8xf32>
    %cst_45 = arith.constant dense<0.000000e+00> : vector<8xf32>
    %128 = vector.multi_reduction <add>, %127, %cst_45 [1] : vector<8x8xf32> to vector<8xf32>
    %129 = vector.shape_cast %128 : vector<8xf32> to vector<8x1xf32>
    %130 = tpu.reciprocal %129 {approx = true} : vector<8x1xf32> -> vector<8x1xf32>
    %131 = vector.broadcast %130 : vector<8x1xf32> to vector<8x8xf32>
    %132 = arith.mulf %127, %131 : vector<8x8xf32>
    %cst_46 = arith.constant dense<0.000000e+00> : vector<8x8xf32>
    %133 = tpu.matmul %132, %119, %cst_46 {dimension_numbers = #tpu.dot_dimension_numbers<[1], [0], [0], [1], [0, 0, 1, 1], [], []>} : vector<8x8xf32>, vector<8x8xf32>, vector<8x8xf32> -> vector<8x8xf32>
    %134 = vector.extract_strided_slice %98 {offsets = [0, 16], sizes = [8, 8], strides = [1, 1]} : vector<8x32xf32> to vector<8x8xf32>
    %135 = vector.extract_strided_slice %99 {offsets = [0, 16], sizes = [8, 8], strides = [1, 1]} : vector<8x64xf32> to vector<8x8xf32>
    %136 = vector.extract_strided_slice %99 {offsets = [0, 48], sizes = [8, 8], strides = [1, 1]} : vector<8x64xf32> to vector<8x8xf32>
    %cst_47 = arith.constant dense<0.000000e+00> : vector<8x8xf32>
    %137 = tpu.matmul %134, %135, %cst_47 {dimension_numbers = #tpu.dot_dimension_numbers<[1], [1], [0], [0], [0, 0, 1, 0], [], []>} : vector<8x8xf32>, vector<8x8xf32>, vector<8x8xf32> -> vector<8x8xf32>
    %cst_48 = arith.constant 0.353553385 : f32
    %138 = vector.broadcast %cst_48 : f32 to vector<8x8xf32>
    %139 = arith.mulf %137, %138 : vector<8x8xf32>
    %cst_49 = arith.constant dense<0xFF800000> : vector<8xf32>
    %140 = vector.multi_reduction <maximumf>, %139, %cst_49 [1] : vector<8x8xf32> to vector<8xf32>
    %141 = vector.shape_cast %140 : vector<8xf32> to vector<8x1xf32>
    %142 = vector.broadcast %141 : vector<8x1xf32> to vector<8x8xf32>
    %143 = arith.subf %139, %142 : vector<8x8xf32>
    %144 = math.exp %143 : vector<8x8xf32>
    %cst_50 = arith.constant dense<0.000000e+00> : vector<8xf32>
    %145 = vector.multi_reduction <add>, %144, %cst_50 [1] : vector<8x8xf32> to vector<8xf32>
    %146 = vector.shape_cast %145 : vector<8xf32> to vector<8x1xf32>
    %147 = tpu.reciprocal %146 {approx = true} : vector<8x1xf32> -> vector<8x1xf32>
    %148 = vector.broadcast %147 : vector<8x1xf32> to vector<8x8xf32>
    %149 = arith.mulf %144, %148 : vector<8x8xf32>
    %cst_51 = arith.constant dense<0.000000e+00> : vector<8x8xf32>
    %150 = tpu.matmul %149, %136, %cst_51 {dimension_numbers = #tpu.dot_dimension_numbers<[1], [0], [0], [1], [0, 0, 1, 1], [], []>} : vector<8x8xf32>, vector<8x8xf32>, vector<8x8xf32> -> vector<8x8xf32>
    %151 = vector.extract_strided_slice %98 {offsets = [0, 24], sizes = [8, 8], strides = [1, 1]} : vector<8x32xf32> to vector<8x8xf32>
    %152 = vector.extract_strided_slice %99 {offsets = [0, 24], sizes = [8, 8], strides = [1, 1]} : vector<8x64xf32> to vector<8x8xf32>
    %153 = vector.extract_strided_slice %99 {offsets = [0, 56], sizes = [8, 8], strides = [1, 1]} : vector<8x64xf32> to vector<8x8xf32>
    %cst_52 = arith.constant dense<0.000000e+00> : vector<8x8xf32>
    %154 = tpu.matmul %151, %152, %cst_52 {dimension_numbers = #tpu.dot_dimension_numbers<[1], [1], [0], [0], [0, 0, 1, 0], [], []>} : vector<8x8xf32>, vector<8x8xf32>, vector<8x8xf32> -> vector<8x8xf32>
    %cst_53 = arith.constant 0.353553385 : f32
    %155 = vector.broadcast %cst_53 : f32 to vector<8x8xf32>
    %156 = arith.mulf %154, %155 : vector<8x8xf32>
    %cst_54 = arith.constant dense<0xFF800000> : vector<8xf32>
    %157 = vector.multi_reduction <maximumf>, %156, %cst_54 [1] : vector<8x8xf32> to vector<8xf32>
    %158 = vector.shape_cast %157 : vector<8xf32> to vector<8x1xf32>
    %159 = vector.broadcast %158 : vector<8x1xf32> to vector<8x8xf32>
    %160 = arith.subf %156, %159 : vector<8x8xf32>
    %161 = math.exp %160 : vector<8x8xf32>
    %cst_55 = arith.constant dense<0.000000e+00> : vector<8xf32>
    %162 = vector.multi_reduction <add>, %161, %cst_55 [1] : vector<8x8xf32> to vector<8xf32>
    %163 = vector.shape_cast %162 : vector<8xf32> to vector<8x1xf32>
    %164 = tpu.reciprocal %163 {approx = true} : vector<8x1xf32> -> vector<8x1xf32>
    %165 = vector.broadcast %164 : vector<8x1xf32> to vector<8x8xf32>
    %166 = arith.mulf %161, %165 : vector<8x8xf32>
    %cst_56 = arith.constant dense<0.000000e+00> : vector<8x8xf32>
    %167 = tpu.matmul %166, %153, %cst_56 {dimension_numbers = #tpu.dot_dimension_numbers<[1], [0], [0], [1], [0, 0, 1, 1], [], []>} : vector<8x8xf32>, vector<8x8xf32>, vector<8x8xf32> -> vector<8x8xf32>
    %168 = tpu.concatenate %116, %133, %150, %167 in 1 : vector<8x8xf32>, vector<8x8xf32>, vector<8x8xf32>, vector<8x8xf32> -> vector<8x32xf32>
    %169 = tpu.concatenate %97, %168 in 0 : vector<8x32xf32>, vector<8x32xf32> -> vector<16x32xf32>
    %cst_57 = arith.constant dense<0.000000e+00> : vector<16x32xf32>
    %170 = tpu.matmul %169, %7, %cst_57 {dimension_numbers = #tpu.dot_dimension_numbers<[1], [0], [0], [1], [0, 0, 1, 1], [], []>} : vector<16x32xf32>, vector<32x32xf32>, vector<16x32xf32> -> vector<16x32xf32>
    %171 = vector.broadcast %15 : vector<1x32xf32> to vector<16x32xf32>
    %172 = arith.addf %170, %171 : vector<16x32xf32>
    %173 = arith.addf %3, %172 : vector<16x32xf32>
    %cst_58 = arith.constant dense<0.000000e+00> : vector<16xf32>
    %174 = vector.multi_reduction <add>, %173, %cst_58 [1] : vector<16x32xf32> to vector<16xf32>
    %175 = vector.shape_cast %174 : vector<16xf32> to vector<16x1xf32>
    %cst_59 = arith.constant 3.200000e+01 : f32
    %176 = vector.broadcast %cst_59 : f32 to vector<16x1xf32>
    %177 = arith.divf %175, %176 : vector<16x1xf32>
    %178 = vector.broadcast %177 : vector<16x1xf32> to vector<16x32xf32>
    %179 = arith.subf %173, %178 : vector<16x32xf32>
    %180 = arith.mulf %179, %179 : vector<16x32xf32>
    %cst_60 = arith.constant dense<0.000000e+00> : vector<16xf32>
    %181 = vector.multi_reduction <add>, %180, %cst_60 [1] : vector<16x32xf32> to vector<16xf32>
    %182 = vector.shape_cast %181 : vector<16xf32> to vector<16x1xf32>
    %cst_61 = arith.constant 3.200000e+01 : f32
    %183 = vector.broadcast %cst_61 : f32 to vector<16x1xf32>
    %184 = arith.divf %182, %183 : vector<16x1xf32>
    %185 = vector.broadcast %177 : vector<16x1xf32> to vector<16x32xf32>
    %186 = arith.subf %173, %185 : vector<16x32xf32>
    %cst_62 = arith.constant 9.99999974E-6 : f32
    %187 = vector.broadcast %cst_62 : f32 to vector<16x1xf32>
    %188 = arith.addf %184, %187 : vector<16x1xf32>
    %189 = math.rsqrt %188 : vector<16x1xf32>
    %190 = vector.broadcast %189 : vector<16x1xf32> to vector<16x32xf32>
    %191 = arith.mulf %186, %190 : vector<16x32xf32>
    %192 = vector.broadcast %18 : vector<1x32xf32> to vector<16x32xf32>
    %193 = arith.mulf %191, %192 : vector<16x32xf32>
    %194 = vector.broadcast %19 : vector<1x32xf32> to vector<16x32xf32>
    %195 = arith.addf %193, %194 : vector<16x32xf32>
    %cst_63 = arith.constant dense<0.000000e+00> : vector<16x64xf32>
    %196 = tpu.matmul %195, %9, %cst_63 {dimension_numbers = #tpu.dot_dimension_numbers<[1], [0], [0], [1], [0, 0, 1, 1], [], []>} : vector<16x32xf32>, vector<32x64xf32>, vector<16x64xf32> -> vector<16x64xf32>
    %197 = vector.broadcast %16 : vector<1x64xf32> to vector<16x64xf32>
    %198 = arith.addf %196, %197 : vector<16x64xf32>
    %199 = arith.mulf %198, %198 : vector<16x64xf32>
    %200 = arith.mulf %198, %199 : vector<16x64xf32>
    %cst_64 = arith.constant 4.471500e-02 : f32
    %201 = vector.broadcast %cst_64 : f32 to vector<16x64xf32>
    %202 = arith.mulf %201, %200 : vector<16x64xf32>
    %203 = arith.addf %198, %202 : vector<16x64xf32>
    %cst_65 = arith.constant 0.797884583 : f32
    %204 = vector.broadcast %cst_65 : f32 to vector<16x64xf32>
    %205 = arith.mulf %204, %203 : vector<16x64xf32>
    %206 = math.tanh %205 : vector<16x64xf32>
    %cst_66 = arith.constant 1.000000e+00 : f32
    %207 = vector.broadcast %cst_66 : f32 to vector<16x64xf32>
    %208 = arith.addf %207, %206 : vector<16x64xf32>
    %cst_67 = arith.constant 5.000000e-01 : f32
    %209 = vector.broadcast %cst_67 : f32 to vector<16x64xf32>
    %210 = arith.mulf %209, %208 : vector<16x64xf32>
    %211 = arith.mulf %198, %210 : vector<16x64xf32>
    %cst_68 = arith.constant dense<0.000000e+00> : vector<16x32xf32>
    %212 = tpu.matmul %211, %11, %cst_68 {dimension_numbers = #tpu.dot_dimension_numbers<[1], [0], [0], [1], [0, 0, 1, 1], [], []>} : vector<16x64xf32>, vector<64x32xf32>, vector<16x32xf32> -> vector<16x32xf32>
    %213 = vector.broadcast %17 : vector<1x32xf32> to vector<16x32xf32>
    %214 = arith.addf %212, %213 : vector<16x32xf32>
    %215 = arith.addf %195, %214 : vector<16x32xf32>
    %cst_69 = arith.constant dense<0.000000e+00> : vector<16xf32>
    %216 = vector.multi_reduction <add>, %215, %cst_69 [1] : vector<16x32xf32> to vector<16xf32>
    %217 = vector.shape_cast %216 : vector<16xf32> to vector<16x1xf32>
    %cst_70 = arith.constant 3.200000e+01 : f32
    %218 = vector.broadcast %cst_70 : f32 to vector<16x1xf32>
    %219 = arith.divf %217, %218 : vector<16x1xf32>
    %220 = vector.broadcast %219 : vector<16x1xf32> to vector<16x32xf32>
    %221 = arith.subf %215, %220 : vector<16x32xf32>
    %222 = arith.mulf %221, %221 : vector<16x32xf32>
    %cst_71 = arith.constant dense<0.000000e+00> : vector<16xf32>
    %223 = vector.multi_reduction <add>, %222, %cst_71 [1] : vector<16x32xf32> to vector<16xf32>
    %224 = vector.shape_cast %223 : vector<16xf32> to vector<16x1xf32>
    %cst_72 = arith.constant 3.200000e+01 : f32
    %225 = vector.broadcast %cst_72 : f32 to vector<16x1xf32>
    %226 = arith.divf %224, %225 : vector<16x1xf32>
    %227 = vector.broadcast %219 : vector<16x1xf32> to vector<16x32xf32>
    %228 = arith.subf %215, %227 : vector<16x32xf32>
    %cst_73 = arith.constant 9.99999974E-6 : f32
    %229 = vector.broadcast %cst_73 : f32 to vector<16x1xf32>
    %230 = arith.addf %226, %229 : vector<16x1xf32>
    %231 = math.rsqrt %230 : vector<16x1xf32>
    %232 = vector.broadcast %231 : vector<16x1xf32> to vector<16x32xf32>
    %233 = arith.mulf %228, %232 : vector<16x32xf32>
    %234 = vector.broadcast %20 : vector<1x32xf32> to vector<16x32xf32>
    %235 = arith.mulf %233, %234 : vector<16x32xf32>
    %236 = vector.broadcast %21 : vector<1x32xf32> to vector<16x32xf32>
    %237 = arith.addf %235, %236 : vector<16x32xf32>
    %c0_74 = arith.constant 0 : index
    %c0_75 = arith.constant 0 : index
    %238 = vector.load %arg16[%c0_74, %c0_75] : memref<16x32xf32, #tpu.memory_space<vmem>>, vector<16x32xf32>
    tpu.vector_store %arg16[%c0_74, %c0_75], %237 {strides = array<i32>} : memref<16x32xf32, #tpu.memory_space<vmem>>, vector<16x32xf32>,
    %c0_76 = arith.constant 0 : index
    %c0_77 = arith.constant 0 : index
    %239 = vector.load %arg17[%c0_76, %c0_77] : memref<16x32xf32, #tpu.memory_space<vmem>>, vector<16x32xf32>
    %c0_78 = arith.constant 0 : index
    %c0_79 = arith.constant 0 : index
    %c0_80 = arith.constant 0 : index
    %240 = vector.load %arg9[%c0_78, %c0_79, %c0_80] : memref<1x32x96xf32, #tpu.memory_space<vmem>>, vector<1x32x96xf32>
    %241 = vector.shape_cast %240 : vector<1x32x96xf32> to vector<32x96xf32>
    %c0_81 = arith.constant 0 : index
    %c0_82 = arith.constant 0 : index
    %c0_83 = arith.constant 0 : index
    %242 = vector.load %arg10[%c0_81, %c0_82, %c0_83] : memref<1x32x32xf32, #tpu.memory_space<vmem>>, vector<1x32x32xf32>
    %243 = vector.shape_cast %242 : vector<1x32x32xf32> to vector<32x32xf32>
    %c0_84 = arith.constant 0 : index
    %c0_85 = arith.constant 0 : index
    %c0_86 = arith.constant 0 : index
    %244 = vector.load %arg11[%c0_84, %c0_85, %c0_86] : memref<1x32x64xf32, #tpu.memory_space<vmem>>, vector<1x32x64xf32>
    %245 = vector.shape_cast %244 : vector<1x32x64xf32> to vector<32x64xf32>
    %c0_87 = arith.constant 0 : index
    %c0_88 = arith.constant 0 : index
    %c0_89 = arith.constant 0 : index
    %246 = vector.load %arg12[%c0_87, %c0_88, %c0_89] : memref<1x64x32xf32, #tpu.memory_space<vmem>>, vector<1x64x32xf32>
    %247 = vector.shape_cast %246 : vector<1x64x32xf32> to vector<64x32xf32>
    %c0_90 = arith.constant 0 : index
    %c0_91 = arith.constant 0 : index
    %c0_92 = arith.constant 0 : index
    %248 = vector.load %arg13[%c0_90, %c0_91, %c0_92] : memref<1x8x128xf32, #tpu.memory_space<vmem>>, vector<1x8x128xf32>
    %249 = vector.shape_cast %248 : vector<1x8x128xf32> to vector<8x128xf32>
    %c0_93 = arith.constant 0 : index
    %c0_94 = arith.constant 0 : index
    %250 = vector.load %arg3[%c0_93, %c0_94] : memref<2x8xf32, #tpu.memory_space<vmem>>, vector<2x8xf32>
    %251 = vector.extract_strided_slice %249 {offsets = [0, 0], sizes = [1, 96], strides = [1, 1]} : vector<8x128xf32> to vector<1x96xf32>
    %252 = vector.extract_strided_slice %249 {offsets = [1, 0], sizes = [1, 32], strides = [1, 1]} : vector<8x128xf32> to vector<1x32xf32>
    %253 = vector.extract_strided_slice %249 {offsets = [2, 0], sizes = [1, 64], strides = [1, 1]} : vector<8x128xf32> to vector<1x64xf32>
    %254 = vector.extract_strided_slice %249 {offsets = [3, 0], sizes = [1, 32], strides = [1, 1]} : vector<8x128xf32> to vector<1x32xf32>
    %255 = vector.extract_strided_slice %249 {offsets = [4, 0], sizes = [1, 32], strides = [1, 1]} : vector<8x128xf32> to vector<1x32xf32>
    %256 = vector.extract_strided_slice %249 {offsets = [5, 0], sizes = [1, 32], strides = [1, 1]} : vector<8x128xf32> to vector<1x32xf32>
    %257 = vector.extract_strided_slice %249 {offsets = [6, 0], sizes = [1, 32], strides = [1, 1]} : vector<8x128xf32> to vector<1x32xf32>
    %258 = vector.extract_strided_slice %249 {offsets = [7, 0], sizes = [1, 32], strides = [1, 1]} : vector<8x128xf32> to vector<1x32xf32>
    %cst_95 = arith.constant dense<0.000000e+00> : vector<16x96xf32>
    %259 = tpu.matmul %239, %241, %cst_95 {dimension_numbers = #tpu.dot_dimension_numbers<[1], [0], [0], [1], [0, 0, 1, 1], [], []>} : vector<16x32xf32>, vector<32x96xf32>, vector<16x96xf32> -> vector<16x96xf32>
    %260 = vector.broadcast %251 : vector<1x96xf32> to vector<16x96xf32>
    %261 = arith.addf %259, %260 : vector<16x96xf32>
    %262 = vector.extract_strided_slice %261 {offsets = [0, 0], sizes = [16, 32], strides = [1, 1]} : vector<16x96xf32> to vector<16x32xf32>
    %263 = vector.extract_strided_slice %261 {offsets = [0, 32], sizes = [16, 64], strides = [1, 1]} : vector<16x96xf32> to vector<16x64xf32>
    %264 = vector.extract_strided_slice %262 {offsets = [0, 0], sizes = [8, 32], strides = [1, 1]} : vector<16x32xf32> to vector<8x32xf32>
    %265 = vector.extract_strided_slice %263 {offsets = [0, 0], sizes = [8, 64], strides = [1, 1]} : vector<16x64xf32> to vector<8x64xf32>
    %266 = vector.extract_strided_slice %250 {offsets = [0, 0], sizes = [1, 8], strides = [1, 1]} : vector<2x8xf32> to vector<1x8xf32>
    %cst_96 = arith.constant 1.000000e+00 : f32
    %267 = vector.broadcast %cst_96 : f32 to vector<1x8xf32>
    %268 = arith.subf %267, %266 : vector<1x8xf32>
    %cst_97 = arith.constant -1.000000e+09 : f32
    %269 = vector.broadcast %cst_97 : f32 to vector<1x8xf32>
    %270 = arith.mulf %268, %269 : vector<1x8xf32>
    %271 = vector.extract_strided_slice %264 {offsets = [0, 0], sizes = [8, 8], strides = [1, 1]} : vector<8x32xf32> to vector<8x8xf32>
    %272 = vector.extract_strided_slice %265 {offsets = [0, 0], sizes = [8, 8], strides = [1, 1]} : vector<8x64xf32> to vector<8x8xf32>
    %273 = vector.extract_strided_slice %265 {offsets = [0, 32], sizes = [8, 8], strides = [1, 1]} : vector<8x64xf32> to vector<8x8xf32>
    %cst_98 = arith.constant dense<0.000000e+00> : vector<8x8xf32>
    %274 = tpu.matmul %271, %272, %cst_98 {dimension_numbers = #tpu.dot_dimension_numbers<[1], [1], [0], [0], [0, 0, 1, 0], [], []>} : vector<8x8xf32>, vector<8x8xf32>, vector<8x8xf32> -> vector<8x8xf32>
    %cst_99 = arith.constant 0.353553385 : f32
    %275 = vector.broadcast %cst_99 : f32 to vector<8x8xf32>
    %276 = arith.mulf %274, %275 : vector<8x8xf32>
    %277 = vector.broadcast %270 : vector<1x8xf32> to vector<8x8xf32>
    %278 = arith.addf %276, %277 : vector<8x8xf32>
    %cst_100 = arith.constant dense<0xFF800000> : vector<8xf32>
    %279 = vector.multi_reduction <maximumf>, %278, %cst_100 [1] : vector<8x8xf32> to vector<8xf32>
    %280 = vector.shape_cast %279 : vector<8xf32> to vector<8x1xf32>
    %281 = vector.broadcast %280 : vector<8x1xf32> to vector<8x8xf32>
    %282 = arith.subf %278, %281 : vector<8x8xf32>
    %283 = math.exp %282 : vector<8x8xf32>
    %cst_101 = arith.constant dense<0.000000e+00> : vector<8xf32>
    %284 = vector.multi_reduction <add>, %283, %cst_101 [1] : vector<8x8xf32> to vector<8xf32>
    %285 = vector.shape_cast %284 : vector<8xf32> to vector<8x1xf32>
    %286 = tpu.reciprocal %285 {approx = true} : vector<8x1xf32> -> vector<8x1xf32>
    %287 = vector.broadcast %286 : vector<8x1xf32> to vector<8x8xf32>
    %288 = arith.mulf %283, %287 : vector<8x8xf32>
    %cst_102 = arith.constant dense<0.000000e+00> : vector<8x8xf32>
    %289 = tpu.matmul %288, %273, %cst_102 {dimension_numbers = #tpu.dot_dimension_numbers<[1], [0], [0], [1], [0, 0, 1, 1], [], []>} : vector<8x8xf32>, vector<8x8xf32>, vector<8x8xf32> -> vector<8x8xf32>
    %290 = vector.extract_strided_slice %264 {offsets = [0, 8], sizes = [8, 8], strides = [1, 1]} : vector<8x32xf32> to vector<8x8xf32>
    %291 = vector.extract_strided_slice %265 {offsets = [0, 8], sizes = [8, 8], strides = [1, 1]} : vector<8x64xf32> to vector<8x8xf32>
    %292 = vector.extract_strided_slice %265 {offsets = [0, 40], sizes = [8, 8], strides = [1, 1]} : vector<8x64xf32> to vector<8x8xf32>
    %cst_103 = arith.constant dense<0.000000e+00> : vector<8x8xf32>
    %293 = tpu.matmul %290, %291, %cst_103 {dimension_numbers = #tpu.dot_dimension_numbers<[1], [1], [0], [0], [0, 0, 1, 0], [], []>} : vector<8x8xf32>, vector<8x8xf32>, vector<8x8xf32> -> vector<8x8xf32>
    %cst_104 = arith.constant 0.353553385 : f32
    %294 = vector.broadcast %cst_104 : f32 to vector<8x8xf32>
    %295 = arith.mulf %293, %294 : vector<8x8xf32>
    %296 = vector.broadcast %270 : vector<1x8xf32> to vector<8x8xf32>
    %297 = arith.addf %295, %296 : vector<8x8xf32>
    %cst_105 = arith.constant dense<0xFF800000> : vector<8xf32>
    %298 = vector.multi_reduction <maximumf>, %297, %cst_105 [1] : vector<8x8xf32> to vector<8xf32>
    %299 = vector.shape_cast %298 : vector<8xf32> to vector<8x1xf32>
    %300 = vector.broadcast %299 : vector<8x1xf32> to vector<8x8xf32>
    %301 = arith.subf %297, %300 : vector<8x8xf32>
    %302 = math.exp %301 : vector<8x8xf32>
    %cst_106 = arith.constant dense<0.000000e+00> : vector<8xf32>
    %303 = vector.multi_reduction <add>, %302, %cst_106 [1] : vector<8x8xf32> to vector<8xf32>
    %304 = vector.shape_cast %303 : vector<8xf32> to vector<8x1xf32>
    %305 = tpu.reciprocal %304 {approx = true} : vector<8x1xf32> -> vector<8x1xf32>
    %306 = vector.broadcast %305 : vector<8x1xf32> to vector<8x8xf32>
    %307 = arith.mulf %302, %306 : vector<8x8xf32>
    %cst_107 = arith.constant dense<0.000000e+00> : vector<8x8xf32>
    %308 = tpu.matmul %307, %292, %cst_107 {dimension_numbers = #tpu.dot_dimension_numbers<[1], [0], [0], [1], [0, 0, 1, 1], [], []>} : vector<8x8xf32>, vector<8x8xf32>, vector<8x8xf32> -> vector<8x8xf32>
    %309 = vector.extract_strided_slice %264 {offsets = [0, 16], sizes = [8, 8], strides = [1, 1]} : vector<8x32xf32> to vector<8x8xf32>
    %310 = vector.extract_strided_slice %265 {offsets = [0, 16], sizes = [8, 8], strides = [1, 1]} : vector<8x64xf32> to vector<8x8xf32>
    %311 = vector.extract_strided_slice %265 {offsets = [0, 48], sizes = [8, 8], strides = [1, 1]} : vector<8x64xf32> to vector<8x8xf32>
    %cst_108 = arith.constant dense<0.000000e+00> : vector<8x8xf32>
    %312 = tpu.matmul %309, %310, %cst_108 {dimension_numbers = #tpu.dot_dimension_numbers<[1], [1], [0], [0], [0, 0, 1, 0], [], []>} : vector<8x8xf32>, vector<8x8xf32>, vector<8x8xf32> -> vector<8x8xf32>
    %cst_109 = arith.constant 0.353553385 : f32
    %313 = vector.broadcast %cst_109 : f32 to vector<8x8xf32>
    %314 = arith.mulf %312, %313 : vector<8x8xf32>
    %315 = vector.broadcast %270 : vector<1x8xf32> to vector<8x8xf32>
    %316 = arith.addf %314, %315 : vector<8x8xf32>
    %cst_110 = arith.constant dense<0xFF800000> : vector<8xf32>
    %317 = vector.multi_reduction <maximumf>, %316, %cst_110 [1] : vector<8x8xf32> to vector<8xf32>
    %318 = vector.shape_cast %317 : vector<8xf32> to vector<8x1xf32>
    %319 = vector.broadcast %318 : vector<8x1xf32> to vector<8x8xf32>
    %320 = arith.subf %316, %319 : vector<8x8xf32>
    %321 = math.exp %320 : vector<8x8xf32>
    %cst_111 = arith.constant dense<0.000000e+00> : vector<8xf32>
    %322 = vector.multi_reduction <add>, %321, %cst_111 [1] : vector<8x8xf32> to vector<8xf32>
    %323 = vector.shape_cast %322 : vector<8xf32> to vector<8x1xf32>
    %324 = tpu.reciprocal %323 {approx = true} : vector<8x1xf32> -> vector<8x1xf32>
    %325 = vector.broadcast %324 : vector<8x1xf32> to vector<8x8xf32>
    %326 = arith.mulf %321, %325 : vector<8x8xf32>
    %cst_112 = arith.constant dense<0.000000e+00> : vector<8x8xf32>
    %327 = tpu.matmul %326, %311, %cst_112 {dimension_numbers = #tpu.dot_dimension_numbers<[1], [0], [0], [1], [0, 0, 1, 1], [], []>} : vector<8x8xf32>, vector<8x8xf32>, vector<8x8xf32> -> vector<8x8xf32>
    %328 = vector.extract_strided_slice %264 {offsets = [0, 24], sizes = [8, 8], strides = [1, 1]} : vector<8x32xf32> to vector<8x8xf32>
    %329 = vector.extract_strided_slice %265 {offsets = [0, 24], sizes = [8, 8], strides = [1, 1]} : vector<8x64xf32> to vector<8x8xf32>
    %330 = vector.extract_strided_slice %265 {offsets = [0, 56], sizes = [8, 8], strides = [1, 1]} : vector<8x64xf32> to vector<8x8xf32>
    %cst_113 = arith.constant dense<0.000000e+00> : vector<8x8xf32>
    %331 = tpu.matmul %328, %329, %cst_113 {dimension_numbers = #tpu.dot_dimension_numbers<[1], [1], [0], [0], [0, 0, 1, 0], [], []>} : vector<8x8xf32>, vector<8x8xf32>, vector<8x8xf32> -> vector<8x8xf32>
    %cst_114 = arith.constant 0.353553385 : f32
    %332 = vector.broadcast %cst_114 : f32 to vector<8x8xf32>
    %333 = arith.mulf %331, %332 : vector<8x8xf32>
    %334 = vector.broadcast %270 : vector<1x8xf32> to vector<8x8xf32>
    %335 = arith.addf %333, %334 : vector<8x8xf32>
    %cst_115 = arith.constant dense<0xFF800000> : vector<8xf32>
    %336 = vector.multi_reduction <maximumf>, %335, %cst_115 [1] : vector<8x8xf32> to vector<8xf32>
    %337 = vector.shape_cast %336 : vector<8xf32> to vector<8x1xf32>
    %338 = vector.broadcast %337 : vector<8x1xf32> to vector<8x8xf32>
    %339 = arith.subf %335, %338 : vector<8x8xf32>
    %340 = math.exp %339 : vector<8x8xf32>
    %cst_116 = arith.constant dense<0.000000e+00> : vector<8xf32>
    %341 = vector.multi_reduction <add>, %340, %cst_116 [1] : vector<8x8xf32> to vector<8xf32>
    %342 = vector.shape_cast %341 : vector<8xf32> to vector<8x1xf32>
    %343 = tpu.reciprocal %342 {approx = true} : vector<8x1xf32> -> vector<8x1xf32>
    %344 = vector.broadcast %343 : vector<8x1xf32> to vector<8x8xf32>
    %345 = arith.mulf %340, %344 : vector<8x8xf32>
    %cst_117 = arith.constant dense<0.000000e+00> : vector<8x8xf32>
    %346 = tpu.matmul %345, %330, %cst_117 {dimension_numbers = #tpu.dot_dimension_numbers<[1], [0], [0], [1], [0, 0, 1, 1], [], []>} : vector<8x8xf32>, vector<8x8xf32>, vector<8x8xf32> -> vector<8x8xf32>
    %347 = tpu.concatenate %289, %308, %327, %346 in 1 : vector<8x8xf32>, vector<8x8xf32>, vector<8x8xf32>, vector<8x8xf32> -> vector<8x32xf32>
    %348 = vector.extract_strided_slice %262 {offsets = [8, 0], sizes = [8, 32], strides = [1, 1]} : vector<16x32xf32> to vector<8x32xf32>
    %349 = vector.extract_strided_slice %263 {offsets = [8, 0], sizes = [8, 64], strides = [1, 1]} : vector<16x64xf32> to vector<8x64xf32>
    %350 = vector.extract_strided_slice %250 {offsets = [1, 0], sizes = [1, 8], strides = [1, 1]} : vector<2x8xf32> to vector<1x8xf32>
    %cst_118 = arith.constant 1.000000e+00 : f32
    %351 = vector.broadcast %cst_118 : f32 to vector<1x8xf32>
    %352 = arith.subf %351, %350 : vector<1x8xf32>
    %cst_119 = arith.constant -1.000000e+09 : f32
    %353 = vector.broadcast %cst_119 : f32 to vector<1x8xf32>
    %354 = arith.mulf %352, %353 : vector<1x8xf32>
    %355 = vector.extract_strided_slice %348 {offsets = [0, 0], sizes = [8, 8], strides = [1, 1]} : vector<8x32xf32> to vector<8x8xf32>
    %356 = vector.extract_strided_slice %349 {offsets = [0, 0], sizes = [8, 8], strides = [1, 1]} : vector<8x64xf32> to vector<8x8xf32>
    %357 = vector.extract_strided_slice %349 {offsets = [0, 32], sizes = [8, 8], strides = [1, 1]} : vector<8x64xf32> to vector<8x8xf32>
    %cst_120 = arith.constant dense<0.000000e+00> : vector<8x8xf32>
    %358 = tpu.matmul %355, %356, %cst_120 {dimension_numbers = #tpu.dot_dimension_numbers<[1], [1], [0], [0], [0, 0, 1, 0], [], []>} : vector<8x8xf32>, vector<8x8xf32>, vector<8x8xf32> -> vector<8x8xf32>
    %cst_121 = arith.constant 0.353553385 : f32
    %359 = vector.broadcast %cst_121 : f32 to vector<8x8xf32>
    %360 = arith.mulf %358, %359 : vector<8x8xf32>
    %361 = vector.broadcast %354 : vector<1x8xf32> to vector<8x8xf32>
    %362 = arith.addf %360, %361 : vector<8x8xf32>
    %cst_122 = arith.constant dense<0xFF800000> : vector<8xf32>
    %363 = vector.multi_reduction <maximumf>, %362, %cst_122 [1] : vector<8x8xf32> to vector<8xf32>
    %364 = vector.shape_cast %363 : vector<8xf32> to vector<8x1xf32>
    %365 = vector.broadcast %364 : vector<8x1xf32> to vector<8x8xf32>
    %366 = arith.subf %362, %365 : vector<8x8xf32>
    %367 = math.exp %366 : vector<8x8xf32>
    %cst_123 = arith.constant dense<0.000000e+00> : vector<8xf32>
    %368 = vector.multi_reduction <add>, %367, %cst_123 [1] : vector<8x8xf32> to vector<8xf32>
    %369 = vector.shape_cast %368 : vector<8xf32> to vector<8x1xf32>
    %370 = tpu.reciprocal %369 {approx = true} : vector<8x1xf32> -> vector<8x1xf32>
    %371 = vector.broadcast %370 : vector<8x1xf32> to vector<8x8xf32>
    %372 = arith.mulf %367, %371 : vector<8x8xf32>
    %cst_124 = arith.constant dense<0.000000e+00> : vector<8x8xf32>
    %373 = tpu.matmul %372, %357, %cst_124 {dimension_numbers = #tpu.dot_dimension_numbers<[1], [0], [0], [1], [0, 0, 1, 1], [], []>} : vector<8x8xf32>, vector<8x8xf32>, vector<8x8xf32> -> vector<8x8xf32>
    %374 = vector.extract_strided_slice %348 {offsets = [0, 8], sizes = [8, 8], strides = [1, 1]} : vector<8x32xf32> to vector<8x8xf32>
    %375 = vector.extract_strided_slice %349 {offsets = [0, 8], sizes = [8, 8], strides = [1, 1]} : vector<8x64xf32> to vector<8x8xf32>
    %376 = vector.extract_strided_slice %349 {offsets = [0, 40], sizes = [8, 8], strides = [1, 1]} : vector<8x64xf32> to vector<8x8xf32>
    %cst_125 = arith.constant dense<0.000000e+00> : vector<8x8xf32>
    %377 = tpu.matmul %374, %375, %cst_125 {dimension_numbers = #tpu.dot_dimension_numbers<[1], [1], [0], [0], [0, 0, 1, 0], [], []>} : vector<8x8xf32>, vector<8x8xf32>, vector<8x8xf32> -> vector<8x8xf32>
    %cst_126 = arith.constant 0.353553385 : f32
    %378 = vector.broadcast %cst_126 : f32 to vector<8x8xf32>
    %379 = arith.mulf %377, %378 : vector<8x8xf32>
    %380 = vector.broadcast %354 : vector<1x8xf32> to vector<8x8xf32>
    %381 = arith.addf %379, %380 : vector<8x8xf32>
    %cst_127 = arith.constant dense<0xFF800000> : vector<8xf32>
    %382 = vector.multi_reduction <maximumf>, %381, %cst_127 [1] : vector<8x8xf32> to vector<8xf32>
    %383 = vector.shape_cast %382 : vector<8xf32> to vector<8x1xf32>
    %384 = vector.broadcast %383 : vector<8x1xf32> to vector<8x8xf32>
    %385 = arith.subf %381, %384 : vector<8x8xf32>
    %386 = math.exp %385 : vector<8x8xf32>
    %cst_128 = arith.constant dense<0.000000e+00> : vector<8xf32>
    %387 = vector.multi_reduction <add>, %386, %cst_128 [1] : vector<8x8xf32> to vector<8xf32>
    %388 = vector.shape_cast %387 : vector<8xf32> to vector<8x1xf32>
    %389 = tpu.reciprocal %388 {approx = true} : vector<8x1xf32> -> vector<8x1xf32>
    %390 = vector.broadcast %389 : vector<8x1xf32> to vector<8x8xf32>
    %391 = arith.mulf %386, %390 : vector<8x8xf32>
    %cst_129 = arith.constant dense<0.000000e+00> : vector<8x8xf32>
    %392 = tpu.matmul %391, %376, %cst_129 {dimension_numbers = #tpu.dot_dimension_numbers<[1], [0], [0], [1], [0, 0, 1, 1], [], []>} : vector<8x8xf32>, vector<8x8xf32>, vector<8x8xf32> -> vector<8x8xf32>
    %393 = vector.extract_strided_slice %348 {offsets = [0, 16], sizes = [8, 8], strides = [1, 1]} : vector<8x32xf32> to vector<8x8xf32>
    %394 = vector.extract_strided_slice %349 {offsets = [0, 16], sizes = [8, 8], strides = [1, 1]} : vector<8x64xf32> to vector<8x8xf32>
    %395 = vector.extract_strided_slice %349 {offsets = [0, 48], sizes = [8, 8], strides = [1, 1]} : vector<8x64xf32> to vector<8x8xf32>
    %cst_130 = arith.constant dense<0.000000e+00> : vector<8x8xf32>
    %396 = tpu.matmul %393, %394, %cst_130 {dimension_numbers = #tpu.dot_dimension_numbers<[1], [1], [0], [0], [0, 0, 1, 0], [], []>} : vector<8x8xf32>, vector<8x8xf32>, vector<8x8xf32> -> vector<8x8xf32>
    %cst_131 = arith.constant 0.353553385 : f32
    %397 = vector.broadcast %cst_131 : f32 to vector<8x8xf32>
    %398 = arith.mulf %396, %397 : vector<8x8xf32>
    %399 = vector.broadcast %354 : vector<1x8xf32> to vector<8x8xf32>
    %400 = arith.addf %398, %399 : vector<8x8xf32>
    %cst_132 = arith.constant dense<0xFF800000> : vector<8xf32>
    %401 = vector.multi_reduction <maximumf>, %400, %cst_132 [1] : vector<8x8xf32> to vector<8xf32>
    %402 = vector.shape_cast %401 : vector<8xf32> to vector<8x1xf32>
    %403 = vector.broadcast %402 : vector<8x1xf32> to vector<8x8xf32>
    %404 = arith.subf %400, %403 : vector<8x8xf32>
    %405 = math.exp %404 : vector<8x8xf32>
    %cst_133 = arith.constant dense<0.000000e+00> : vector<8xf32>
    %406 = vector.multi_reduction <add>, %405, %cst_133 [1] : vector<8x8xf32> to vector<8xf32>
    %407 = vector.shape_cast %406 : vector<8xf32> to vector<8x1xf32>
    %408 = tpu.reciprocal %407 {approx = true} : vector<8x1xf32> -> vector<8x1xf32>
    %409 = vector.broadcast %408 : vector<8x1xf32> to vector<8x8xf32>
    %410 = arith.mulf %405, %409 : vector<8x8xf32>
    %cst_134 = arith.constant dense<0.000000e+00> : vector<8x8xf32>
    %411 = tpu.matmul %410, %395, %cst_134 {dimension_numbers = #tpu.dot_dimension_numbers<[1], [0], [0], [1], [0, 0, 1, 1], [], []>} : vector<8x8xf32>, vector<8x8xf32>, vector<8x8xf32> -> vector<8x8xf32>
    %412 = vector.extract_strided_slice %348 {offsets = [0, 24], sizes = [8, 8], strides = [1, 1]} : vector<8x32xf32> to vector<8x8xf32>
    %413 = vector.extract_strided_slice %349 {offsets = [0, 24], sizes = [8, 8], strides = [1, 1]} : vector<8x64xf32> to vector<8x8xf32>
    %414 = vector.extract_strided_slice %349 {offsets = [0, 56], sizes = [8, 8], strides = [1, 1]} : vector<8x64xf32> to vector<8x8xf32>
    %cst_135 = arith.constant dense<0.000000e+00> : vector<8x8xf32>
    %415 = tpu.matmul %412, %413, %cst_135 {dimension_numbers = #tpu.dot_dimension_numbers<[1], [1], [0], [0], [0, 0, 1, 0], [], []>} : vector<8x8xf32>, vector<8x8xf32>, vector<8x8xf32> -> vector<8x8xf32>
    %cst_136 = arith.constant 0.353553385 : f32
    %416 = vector.broadcast %cst_136 : f32 to vector<8x8xf32>
    %417 = arith.mulf %415, %416 : vector<8x8xf32>
    %418 = vector.broadcast %354 : vector<1x8xf32> to vector<8x8xf32>
    %419 = arith.addf %417, %418 : vector<8x8xf32>
    %cst_137 = arith.constant dense<0xFF800000> : vector<8xf32>
    %420 = vector.multi_reduction <maximumf>, %419, %cst_137 [1] : vector<8x8xf32> to vector<8xf32>
    %421 = vector.shape_cast %420 : vector<8xf32> to vector<8x1xf32>
    %422 = vector.broadcast %421 : vector<8x1xf32> to vector<8x8xf32>
    %423 = arith.subf %419, %422 : vector<8x8xf32>
    %424 = math.exp %423 : vector<8x8xf32>
    %cst_138 = arith.constant dense<0.000000e+00> : vector<8xf32>
    %425 = vector.multi_reduction <add>, %424, %cst_138 [1] : vector<8x8xf32> to vector<8xf32>
    %426 = vector.shape_cast %425 : vector<8xf32> to vector<8x1xf32>
    %427 = tpu.reciprocal %426 {approx = true} : vector<8x1xf32> -> vector<8x1xf32>
    %428 = vector.broadcast %427 : vector<8x1xf32> to vector<8x8xf32>
    %429 = arith.mulf %424, %428 : vector<8x8xf32>
    %cst_139 = arith.constant dense<0.000000e+00> : vector<8x8xf32>
    %430 = tpu.matmul %429, %414, %cst_139 {dimension_numbers = #tpu.dot_dimension_numbers<[1], [0], [0], [1], [0, 0, 1, 1], [], []>} : vector<8x8xf32>, vector<8x8xf32>, vector<8x8xf32> -> vector<8x8xf32>
    %431 = tpu.concatenate %373, %392, %411, %430 in 1 : vector<8x8xf32>, vector<8x8xf32>, vector<8x8xf32>, vector<8x8xf32> -> vector<8x32xf32>
    %432 = tpu.concatenate %347, %431 in 0 : vector<8x32xf32>, vector<8x32xf32> -> vector<16x32xf32>
    %cst_140 = arith.constant dense<0.000000e+00> : vector<16x32xf32>
    %433 = tpu.matmul %432, %243, %cst_140 {dimension_numbers = #tpu.dot_dimension_numbers<[1], [0], [0], [1], [0, 0, 1, 1], [], []>} : vector<16x32xf32>, vector<32x32xf32>, vector<16x32xf32> -> vector<16x32xf32>
    %434 = vector.broadcast %252 : vector<1x32xf32> to vector<16x32xf32>
    %435 = arith.addf %433, %434 : vector<16x32xf32>
    %436 = arith.addf %239, %435 : vector<16x32xf32>
    %cst_141 = arith.constant dense<0.000000e+00> : vector<16xf32>
    %437 = vector.multi_reduction <add>, %436, %cst_141 [1] : vector<16x32xf32> to vector<16xf32>
    %438 = vector.shape_cast %437 : vector<16xf32> to vector<16x1xf32>
    %cst_142 = arith.constant 3.200000e+01 : f32
    %439 = vector.broadcast %cst_142 : f32 to vector<16x1xf32>
    %440 = arith.divf %438, %439 : vector<16x1xf32>
    %441 = vector.broadcast %440 : vector<16x1xf32> to vector<16x32xf32>
    %442 = arith.subf %436, %441 : vector<16x32xf32>
    %443 = arith.mulf %442, %442 : vector<16x32xf32>
    %cst_143 = arith.constant dense<0.000000e+00> : vector<16xf32>
    %444 = vector.multi_reduction <add>, %443, %cst_143 [1] : vector<16x32xf32> to vector<16xf32>
    %445 = vector.shape_cast %444 : vector<16xf32> to vector<16x1xf32>
    %cst_144 = arith.constant 3.200000e+01 : f32
    %446 = vector.broadcast %cst_144 : f32 to vector<16x1xf32>
    %447 = arith.divf %445, %446 : vector<16x1xf32>
    %448 = vector.broadcast %440 : vector<16x1xf32> to vector<16x32xf32>
    %449 = arith.subf %436, %448 : vector<16x32xf32>
    %cst_145 = arith.constant 9.99999974E-6 : f32
    %450 = vector.broadcast %cst_145 : f32 to vector<16x1xf32>
    %451 = arith.addf %447, %450 : vector<16x1xf32>
    %452 = math.rsqrt %451 : vector<16x1xf32>
    %453 = vector.broadcast %452 : vector<16x1xf32> to vector<16x32xf32>
    %454 = arith.mulf %449, %453 : vector<16x32xf32>
    %455 = vector.broadcast %255 : vector<1x32xf32> to vector<16x32xf32>
    %456 = arith.mulf %454, %455 : vector<16x32xf32>
    %457 = vector.broadcast %256 : vector<1x32xf32> to vector<16x32xf32>
    %458 = arith.addf %456, %457 : vector<16x32xf32>
    %cst_146 = arith.constant dense<0.000000e+00> : vector<16x64xf32>
    %459 = tpu.matmul %458, %245, %cst_146 {dimension_numbers = #tpu.dot_dimension_numbers<[1], [0], [0], [1], [0, 0, 1, 1], [], []>} : vector<16x32xf32>, vector<32x64xf32>, vector<16x64xf32> -> vector<16x64xf32>
    %460 = vector.broadcast %253 : vector<1x64xf32> to vector<16x64xf32>
    %461 = arith.addf %459, %460 : vector<16x64xf32>
    %462 = arith.mulf %461, %461 : vector<16x64xf32>
    %463 = arith.mulf %461, %462 : vector<16x64xf32>
    %cst_147 = arith.constant 4.471500e-02 : f32
    %464 = vector.broadcast %cst_147 : f32 to vector<16x64xf32>
    %465 = arith.mulf %464, %463 : vector<16x64xf32>
    %466 = arith.addf %461, %465 : vector<16x64xf32>
    %cst_148 = arith.constant 0.797884583 : f32
    %467 = vector.broadcast %cst_148 : f32 to vector<16x64xf32>
    %468 = arith.mulf %467, %466 : vector<16x64xf32>
    %469 = math.tanh %468 : vector<16x64xf32>
    %cst_149 = arith.constant 1.000000e+00 : f32
    %470 = vector.broadcast %cst_149 : f32 to vector<16x64xf32>
    %471 = arith.addf %470, %469 : vector<16x64xf32>
    %cst_150 = arith.constant 5.000000e-01 : f32
    %472 = vector.broadcast %cst_150 : f32 to vector<16x64xf32>
    %473 = arith.mulf %472, %471 : vector<16x64xf32>
    %474 = arith.mulf %461, %473 : vector<16x64xf32>
    %cst_151 = arith.constant dense<0.000000e+00> : vector<16x32xf32>
    %475 = tpu.matmul %474, %247, %cst_151 {dimension_numbers = #tpu.dot_dimension_numbers<[1], [0], [0], [1], [0, 0, 1, 1], [], []>} : vector<16x64xf32>, vector<64x32xf32>, vector<16x32xf32> -> vector<16x32xf32>
    %476 = vector.broadcast %254 : vector<1x32xf32> to vector<16x32xf32>
    %477 = arith.addf %475, %476 : vector<16x32xf32>
    %478 = arith.addf %458, %477 : vector<16x32xf32>
    %cst_152 = arith.constant dense<0.000000e+00> : vector<16xf32>
    %479 = vector.multi_reduction <add>, %478, %cst_152 [1] : vector<16x32xf32> to vector<16xf32>
    %480 = vector.shape_cast %479 : vector<16xf32> to vector<16x1xf32>
    %cst_153 = arith.constant 3.200000e+01 : f32
    %481 = vector.broadcast %cst_153 : f32 to vector<16x1xf32>
    %482 = arith.divf %480, %481 : vector<16x1xf32>
    %483 = vector.broadcast %482 : vector<16x1xf32> to vector<16x32xf32>
    %484 = arith.subf %478, %483 : vector<16x32xf32>
    %485 = arith.mulf %484, %484 : vector<16x32xf32>
    %cst_154 = arith.constant dense<0.000000e+00> : vector<16xf32>
    %486 = vector.multi_reduction <add>, %485, %cst_154 [1] : vector<16x32xf32> to vector<16xf32>
    %487 = vector.shape_cast %486 : vector<16xf32> to vector<16x1xf32>
    %cst_155 = arith.constant 3.200000e+01 : f32
    %488 = vector.broadcast %cst_155 : f32 to vector<16x1xf32>
    %489 = arith.divf %487, %488 : vector<16x1xf32>
    %490 = vector.broadcast %482 : vector<16x1xf32> to vector<16x32xf32>
    %491 = arith.subf %478, %490 : vector<16x32xf32>
    %cst_156 = arith.constant 9.99999974E-6 : f32
    %492 = vector.broadcast %cst_156 : f32 to vector<16x1xf32>
    %493 = arith.addf %489, %492 : vector<16x1xf32>
    %494 = math.rsqrt %493 : vector<16x1xf32>
    %495 = vector.broadcast %494 : vector<16x1xf32> to vector<16x32xf32>
    %496 = arith.mulf %491, %495 : vector<16x32xf32>
    %497 = vector.broadcast %257 : vector<1x32xf32> to vector<16x32xf32>
    %498 = arith.mulf %496, %497 : vector<16x32xf32>
    %499 = vector.broadcast %258 : vector<1x32xf32> to vector<16x32xf32>
    %500 = arith.addf %498, %499 : vector<16x32xf32>
    %c0_157 = arith.constant 0 : index
    %c0_158 = arith.constant 0 : index
    %501 = vector.load %arg17[%c0_157, %c0_158] : memref<16x32xf32, #tpu.memory_space<vmem>>, vector<16x32xf32>
    tpu.vector_store %arg17[%c0_157, %c0_158], %500 {strides = array<i32>} : memref<16x32xf32, #tpu.memory_space<vmem>>, vector<16x32xf32>,
    %c7_i32 = arith.constant 7 : i32
    %502 = arith.cmpi eq, %arg0, %c7_i32 : i32
    %503 = arith.extui %502 : i1 to i32
    %c0_i32_159 = arith.constant 0 : i32
    %504 = arith.cmpi ne, %503, %c0_i32_159 : i32
    scf.if %504 {
      %c0_160 = arith.constant 0 : index
      %c0_161 = arith.constant 0 : index
      %505 = vector.load %arg16[%c0_160, %c0_161] : memref<16x32xf32, #tpu.memory_space<vmem>>, vector<16x32xf32>
      %c0_162 = arith.constant 0 : index
      %c0_163 = arith.constant 0 : index
      %506 = vector.load %arg14[%c0_162, %c0_163] : memref<16x32xf32, #tpu.memory_space<vmem>>, vector<16x32xf32>
      tpu.vector_store %arg14[%c0_162, %c0_163], %505 {strides = array<i32>} : memref<16x32xf32, #tpu.memory_space<vmem>>, vector<16x32xf32>,
      %c0_164 = arith.constant 0 : index
      %c0_165 = arith.constant 0 : index
      %507 = vector.load %arg17[%c0_164, %c0_165] : memref<16x32xf32, #tpu.memory_space<vmem>>, vector<16x32xf32>
      %c0_166 = arith.constant 0 : index
      %c0_167 = arith.constant 0 : index
      %508 = vector.load %arg15[%c0_166, %c0_167] : memref<16x32xf32, #tpu.memory_space<vmem>>, vector<16x32xf32>
      tpu.vector_store %arg15[%c0_166, %c0_167], %507 {strides = array<i32>} : memref<16x32xf32, #tpu.memory_space<vmem>>, vector<16x32xf32>,
    } else {
    }
    return
  }
  func.func @transform_0(%arg0: i32) -> (i32, i32) {
    %c0_i32 = arith.constant 0 : i32
    %c0_i32_0 = arith.constant 0 : i32
    %c0_i32_1 = arith.constant 0 : i32
    return %c0_i32, %c0_i32_0 : i32, i32
  }
  func.func @transform_1(%arg0: i32) -> (i32, i32) {
    %c0_i32 = arith.constant 0 : i32
    %c0_i32_0 = arith.constant 0 : i32
    %c0_i32_1 = arith.constant 0 : i32
    return %c0_i32, %c0_i32_0 : i32, i32
  }
  func.func @transform_2(%arg0: i32) -> (i32, i32) {
    %c0_i32 = arith.constant 0 : i32
    %c0_i32_0 = arith.constant 0 : i32
    %c0_i32_1 = arith.constant 0 : i32
    return %c0_i32, %c0_i32_0 : i32, i32
  }
  func.func @transform_3(%arg0: i32) -> (i32, i32, i32) {
    %c0_i32 = arith.constant 0 : i32
    %c0_i32_0 = arith.constant 0 : i32
    %c0_i32_1 = arith.constant 0 : i32
    return %arg0, %c0_i32, %c0_i32_0 : i32, i32, i32
  }
  func.func @transform_4(%arg0: i32) -> (i32, i32, i32) {
    %c0_i32 = arith.constant 0 : i32
    %c0_i32_0 = arith.constant 0 : i32
    %c0_i32_1 = arith.constant 0 : i32
    return %arg0, %c0_i32, %c0_i32_0 : i32, i32, i32
  }
  func.func @transform_5(%arg0: i32) -> (i32, i32, i32) {
    %c0_i32 = arith.constant 0 : i32
    %c0_i32_0 = arith.constant 0 : i32
    %c0_i32_1 = arith.constant 0 : i32
    return %arg0, %c0_i32, %c0_i32_0 : i32, i32, i32
  }
  func.func @transform_6(%arg0: i32) -> (i32, i32, i32) {
    %c0_i32 = arith.constant 0 : i32
    %c0_i32_0 = arith.constant 0 : i32
    %c0_i32_1 = arith.constant 0 : i32
    return %arg0, %c0_i32, %c0_i32_0 : i32, i32, i32
  }
  func.func @transform_7(%arg0: i32) -> (i32, i32, i32) {
    %c0_i32 = arith.constant 0 : i32
    %c0_i32_0 = arith.constant 0 : i32
    %c0_i32_1 = arith.constant 0 : i32
    return %arg0, %c0_i32, %c0_i32_0 : i32, i32, i32
  }
  func.func @transform_8(%arg0: i32) -> (i32, i32, i32) {
    %c0_i32 = arith.constant 0 : i32
    %c0_i32_0 = arith.constant 0 : i32
    %c0_i32_1 = arith.constant 0 : i32
    return %arg0, %c0_i32, %c0_i32_0 : i32, i32, i32
  }
  func.func @transform_9(%arg0: i32) -> (i32, i32, i32) {
    %c0_i32 = arith.constant 0 : i32
    %c0_i32_0 = arith.constant 0 : i32
    %c0_i32_1 = arith.constant 0 : i32
    return %arg0, %c0_i32, %c0_i32_0 : i32, i32, i32
  }
  func.func @transform_10(%arg0: i32) -> (i32, i32, i32) {
    %c0_i32 = arith.constant 0 : i32
    %c0_i32_0 = arith.constant 0 : i32
    %c0_i32_1 = arith.constant 0 : i32
    return %arg0, %c0_i32, %c0_i32_0 : i32, i32, i32
  }
  func.func @transform_11(%arg0: i32) -> (i32, i32, i32) {
    %c0_i32 = arith.constant 0 : i32
    %c0_i32_0 = arith.constant 0 : i32
    %c0_i32_1 = arith.constant 0 : i32
    return %arg0, %c0_i32, %c0_i32_0 : i32, i32, i32
  }
  func.func @transform_12(%arg0: i32) -> (i32, i32, i32) {
    %c0_i32 = arith.constant 0 : i32
    %c0_i32_0 = arith.constant 0 : i32
    %c0_i32_1 = arith.constant 0 : i32
    return %arg0, %c0_i32, %c0_i32_0 : i32, i32, i32
  }
  func.func @transform_13(%arg0: i32) -> (i32, i32) {
    %c0_i32 = arith.constant 0 : i32
    %c0_i32_0 = arith.constant 0 : i32
    %c0_i32_1 = arith.constant 0 : i32
    return %c0_i32, %c0_i32_0 : i32, i32
  }
  func.func @transform_14(%arg0: i32) -> (i32, i32) {
    %c0_i32 = arith.constant 0 : i32
    %c0_i32_0 = arith.constant 0 : i32
    %c0_i32_1 = arith.constant 0 : i32
    return %c0_i32, %c0_i32_0 : i32, i32
  }
}

module attributes {stable_mosaic.version = 11 : i64} {
  func.func @_cross_head_kernel(%arg0: i32, %arg1: memref<16x32xf32, #tpu.memory_space<vmem>>, %arg2: memref<16x32xf32, #tpu.memory_space<vmem>>, %arg3: memref<32x32xf32, #tpu.memory_space<vmem>>, %arg4: memref<1x32xf32, #tpu.memory_space<vmem>>, %arg5: memref<32x64xf32, #tpu.memory_space<vmem>>, %arg6: memref<1x64xf32, #tpu.memory_space<vmem>>, %arg7: memref<32x32xf32, #tpu.memory_space<vmem>>, %arg8: memref<1x32xf32, #tpu.memory_space<vmem>>, %arg9: memref<32x16xf32, #tpu.memory_space<vmem>>, %arg10: memref<1x16xf32, #tpu.memory_space<vmem>>, %arg11: memref<32x12xf32, #tpu.memory_space<vmem>>, %arg12: memref<1x12xf32, #tpu.memory_space<vmem>>, %arg13: memref<1x12xf32, #tpu.memory_space<vmem>>, %arg14: memref<1x12xf32, #tpu.memory_space<vmem>>, %arg15: memref<16x16xf32, #tpu.memory_space<vmem>>, %arg16: memref<16x12xf32, #tpu.memory_space<vmem>>) attributes {dimension_semantics = [#tpu.dimension_semantics<arbitrary>], iteration_bounds = array<i64: 1>, scalar_prefetch = 0 : i64, scratch_operands = 0 : i64, tpu.core_type = #tpu.core_type<tc>, window_params = [{pipeline_mode = #tpu.pipeline_mode<synchronous>, transform_indices = @transform_0, window_bounds = array<i64: 16, 32>}, {pipeline_mode = #tpu.pipeline_mode<synchronous>, transform_indices = @transform_1, window_bounds = array<i64: 16, 32>}, {pipeline_mode = #tpu.pipeline_mode<synchronous>, transform_indices = @transform_2, window_bounds = array<i64: 32, 32>}, {pipeline_mode = #tpu.pipeline_mode<synchronous>, transform_indices = @transform_3, window_bounds = array<i64: 1, 32>}, {pipeline_mode = #tpu.pipeline_mode<synchronous>, transform_indices = @transform_4, window_bounds = array<i64: 32, 64>}, {pipeline_mode = #tpu.pipeline_mode<synchronous>, transform_indices = @transform_5, window_bounds = array<i64: 1, 64>}, {pipeline_mode = #tpu.pipeline_mode<synchronous>, transform_indices = @transform_6, window_bounds = array<i64: 32, 32>}, {pipeline_mode = #tpu.pipeline_mode<synchronous>, transform_indices = @transform_7, window_bounds = array<i64: 1, 32>}, {pipeline_mode = #tpu.pipeline_mode<synchronous>, transform_indices = @transform_8, window_bounds = array<i64: 32, 16>}, {pipeline_mode = #tpu.pipeline_mode<synchronous>, transform_indices = @transform_9, window_bounds = array<i64: 1, 16>}, {pipeline_mode = #tpu.pipeline_mode<synchronous>, transform_indices = @transform_10, window_bounds = array<i64: 32, 12>}, {pipeline_mode = #tpu.pipeline_mode<synchronous>, transform_indices = @transform_11, window_bounds = array<i64: 1, 12>}, {pipeline_mode = #tpu.pipeline_mode<synchronous>, transform_indices = @transform_12, window_bounds = array<i64: 1, 12>}, {pipeline_mode = #tpu.pipeline_mode<synchronous>, transform_indices = @transform_13, window_bounds = array<i64: 1, 12>}, {pipeline_mode = #tpu.pipeline_mode<synchronous>, transform_indices = @transform_14, window_bounds = array<i64: 16, 16>}, {pipeline_mode = #tpu.pipeline_mode<synchronous>, transform_indices = @transform_15, window_bounds = array<i64: 16, 12>}]} {
    %c0 = arith.constant 0 : index
    %c0_0 = arith.constant 0 : index
    %0 = vector.load %arg1[%c0, %c0_0] : memref<16x32xf32, #tpu.memory_space<vmem>>, vector<16x32xf32>
    %c0_1 = arith.constant 0 : index
    %c0_2 = arith.constant 0 : index
    %1 = vector.load %arg3[%c0_1, %c0_2] : memref<32x32xf32, #tpu.memory_space<vmem>>, vector<32x32xf32>
    %cst = arith.constant dense<0.000000e+00> : vector<16x32xf32>
    %2 = tpu.matmul %0, %1, %cst {dimension_numbers = #tpu.dot_dimension_numbers<[1], [0], [0], [1], [0, 0, 1, 1], [], []>} : vector<16x32xf32>, vector<32x32xf32>, vector<16x32xf32> -> vector<16x32xf32>
    %c0_3 = arith.constant 0 : index
    %c0_4 = arith.constant 0 : index
    %3 = vector.load %arg4[%c0_3, %c0_4] : memref<1x32xf32, #tpu.memory_space<vmem>>, vector<1x32xf32>
    %4 = vector.broadcast %3 : vector<1x32xf32> to vector<16x32xf32>
    %5 = arith.addf %2, %4 : vector<16x32xf32>
    %c0_5 = arith.constant 0 : index
    %c0_6 = arith.constant 0 : index
    %6 = vector.load %arg2[%c0_5, %c0_6] : memref<16x32xf32, #tpu.memory_space<vmem>>, vector<16x32xf32>
    %c0_7 = arith.constant 0 : index
    %c0_8 = arith.constant 0 : index
    %7 = vector.load %arg5[%c0_7, %c0_8] : memref<32x64xf32, #tpu.memory_space<vmem>>, vector<32x64xf32>
    %cst_9 = arith.constant dense<0.000000e+00> : vector<16x64xf32>
    %8 = tpu.matmul %6, %7, %cst_9 {dimension_numbers = #tpu.dot_dimension_numbers<[1], [0], [0], [1], [0, 0, 1, 1], [], []>} : vector<16x32xf32>, vector<32x64xf32>, vector<16x64xf32> -> vector<16x64xf32>
    %c0_10 = arith.constant 0 : index
    %c0_11 = arith.constant 0 : index
    %9 = vector.load %arg6[%c0_10, %c0_11] : memref<1x64xf32, #tpu.memory_space<vmem>>, vector<1x64xf32>
    %10 = vector.broadcast %9 : vector<1x64xf32> to vector<16x64xf32>
    %11 = arith.addf %8, %10 : vector<16x64xf32>
    %c0_12 = arith.constant 0 : index
    %c0_13 = arith.constant 0 : index
    %12 = vector.load %arg7[%c0_12, %c0_13] : memref<32x32xf32, #tpu.memory_space<vmem>>, vector<32x32xf32>
    %c0_14 = arith.constant 0 : index
    %c0_15 = arith.constant 0 : index
    %13 = vector.load %arg8[%c0_14, %c0_15] : memref<1x32xf32, #tpu.memory_space<vmem>>, vector<1x32xf32>
    %14 = vector.extract_strided_slice %5 {offsets = [0, 0], sizes = [8, 32], strides = [1, 1]} : vector<16x32xf32> to vector<8x32xf32>
    %15 = vector.extract_strided_slice %11 {offsets = [0, 0], sizes = [8, 64], strides = [1, 1]} : vector<16x64xf32> to vector<8x64xf32>
    %16 = vector.extract_strided_slice %14 {offsets = [0, 0], sizes = [8, 8], strides = [1, 1]} : vector<8x32xf32> to vector<8x8xf32>
    %17 = vector.extract_strided_slice %15 {offsets = [0, 0], sizes = [8, 8], strides = [1, 1]} : vector<8x64xf32> to vector<8x8xf32>
    %18 = vector.extract_strided_slice %15 {offsets = [0, 32], sizes = [8, 8], strides = [1, 1]} : vector<8x64xf32> to vector<8x8xf32>
    %cst_16 = arith.constant dense<0.000000e+00> : vector<8x8xf32>
    %19 = tpu.matmul %16, %17, %cst_16 {dimension_numbers = #tpu.dot_dimension_numbers<[1], [1], [0], [0], [0, 0, 1, 0], [], []>} : vector<8x8xf32>, vector<8x8xf32>, vector<8x8xf32> -> vector<8x8xf32>
    %cst_17 = arith.constant 0.353553385 : f32
    %20 = vector.broadcast %cst_17 : f32 to vector<8x8xf32>
    %21 = arith.mulf %19, %20 : vector<8x8xf32>
    %cst_18 = arith.constant dense<0xFF800000> : vector<8xf32>
    %22 = vector.multi_reduction <maximumf>, %21, %cst_18 [1] : vector<8x8xf32> to vector<8xf32>
    %23 = vector.shape_cast %22 : vector<8xf32> to vector<8x1xf32>
    %24 = vector.broadcast %23 : vector<8x1xf32> to vector<8x8xf32>
    %25 = arith.subf %21, %24 : vector<8x8xf32>
    %26 = math.exp %25 : vector<8x8xf32>
    %cst_19 = arith.constant dense<0.000000e+00> : vector<8xf32>
    %27 = vector.multi_reduction <add>, %26, %cst_19 [1] : vector<8x8xf32> to vector<8xf32>
    %28 = vector.shape_cast %27 : vector<8xf32> to vector<8x1xf32>
    %29 = tpu.reciprocal %28 {approx = true} : vector<8x1xf32> -> vector<8x1xf32>
    %30 = vector.broadcast %29 : vector<8x1xf32> to vector<8x8xf32>
    %31 = arith.mulf %26, %30 : vector<8x8xf32>
    %cst_20 = arith.constant dense<0.000000e+00> : vector<8x8xf32>
    %32 = tpu.matmul %31, %18, %cst_20 {dimension_numbers = #tpu.dot_dimension_numbers<[1], [0], [0], [1], [0, 0, 1, 1], [], []>} : vector<8x8xf32>, vector<8x8xf32>, vector<8x8xf32> -> vector<8x8xf32>
    %33 = vector.extract_strided_slice %14 {offsets = [0, 8], sizes = [8, 8], strides = [1, 1]} : vector<8x32xf32> to vector<8x8xf32>
    %34 = vector.extract_strided_slice %15 {offsets = [0, 8], sizes = [8, 8], strides = [1, 1]} : vector<8x64xf32> to vector<8x8xf32>
    %35 = vector.extract_strided_slice %15 {offsets = [0, 40], sizes = [8, 8], strides = [1, 1]} : vector<8x64xf32> to vector<8x8xf32>
    %cst_21 = arith.constant dense<0.000000e+00> : vector<8x8xf32>
    %36 = tpu.matmul %33, %34, %cst_21 {dimension_numbers = #tpu.dot_dimension_numbers<[1], [1], [0], [0], [0, 0, 1, 0], [], []>} : vector<8x8xf32>, vector<8x8xf32>, vector<8x8xf32> -> vector<8x8xf32>
    %cst_22 = arith.constant 0.353553385 : f32
    %37 = vector.broadcast %cst_22 : f32 to vector<8x8xf32>
    %38 = arith.mulf %36, %37 : vector<8x8xf32>
    %cst_23 = arith.constant dense<0xFF800000> : vector<8xf32>
    %39 = vector.multi_reduction <maximumf>, %38, %cst_23 [1] : vector<8x8xf32> to vector<8xf32>
    %40 = vector.shape_cast %39 : vector<8xf32> to vector<8x1xf32>
    %41 = vector.broadcast %40 : vector<8x1xf32> to vector<8x8xf32>
    %42 = arith.subf %38, %41 : vector<8x8xf32>
    %43 = math.exp %42 : vector<8x8xf32>
    %cst_24 = arith.constant dense<0.000000e+00> : vector<8xf32>
    %44 = vector.multi_reduction <add>, %43, %cst_24 [1] : vector<8x8xf32> to vector<8xf32>
    %45 = vector.shape_cast %44 : vector<8xf32> to vector<8x1xf32>
    %46 = tpu.reciprocal %45 {approx = true} : vector<8x1xf32> -> vector<8x1xf32>
    %47 = vector.broadcast %46 : vector<8x1xf32> to vector<8x8xf32>
    %48 = arith.mulf %43, %47 : vector<8x8xf32>
    %cst_25 = arith.constant dense<0.000000e+00> : vector<8x8xf32>
    %49 = tpu.matmul %48, %35, %cst_25 {dimension_numbers = #tpu.dot_dimension_numbers<[1], [0], [0], [1], [0, 0, 1, 1], [], []>} : vector<8x8xf32>, vector<8x8xf32>, vector<8x8xf32> -> vector<8x8xf32>
    %50 = vector.extract_strided_slice %14 {offsets = [0, 16], sizes = [8, 8], strides = [1, 1]} : vector<8x32xf32> to vector<8x8xf32>
    %51 = vector.extract_strided_slice %15 {offsets = [0, 16], sizes = [8, 8], strides = [1, 1]} : vector<8x64xf32> to vector<8x8xf32>
    %52 = vector.extract_strided_slice %15 {offsets = [0, 48], sizes = [8, 8], strides = [1, 1]} : vector<8x64xf32> to vector<8x8xf32>
    %cst_26 = arith.constant dense<0.000000e+00> : vector<8x8xf32>
    %53 = tpu.matmul %50, %51, %cst_26 {dimension_numbers = #tpu.dot_dimension_numbers<[1], [1], [0], [0], [0, 0, 1, 0], [], []>} : vector<8x8xf32>, vector<8x8xf32>, vector<8x8xf32> -> vector<8x8xf32>
    %cst_27 = arith.constant 0.353553385 : f32
    %54 = vector.broadcast %cst_27 : f32 to vector<8x8xf32>
    %55 = arith.mulf %53, %54 : vector<8x8xf32>
    %cst_28 = arith.constant dense<0xFF800000> : vector<8xf32>
    %56 = vector.multi_reduction <maximumf>, %55, %cst_28 [1] : vector<8x8xf32> to vector<8xf32>
    %57 = vector.shape_cast %56 : vector<8xf32> to vector<8x1xf32>
    %58 = vector.broadcast %57 : vector<8x1xf32> to vector<8x8xf32>
    %59 = arith.subf %55, %58 : vector<8x8xf32>
    %60 = math.exp %59 : vector<8x8xf32>
    %cst_29 = arith.constant dense<0.000000e+00> : vector<8xf32>
    %61 = vector.multi_reduction <add>, %60, %cst_29 [1] : vector<8x8xf32> to vector<8xf32>
    %62 = vector.shape_cast %61 : vector<8xf32> to vector<8x1xf32>
    %63 = tpu.reciprocal %62 {approx = true} : vector<8x1xf32> -> vector<8x1xf32>
    %64 = vector.broadcast %63 : vector<8x1xf32> to vector<8x8xf32>
    %65 = arith.mulf %60, %64 : vector<8x8xf32>
    %cst_30 = arith.constant dense<0.000000e+00> : vector<8x8xf32>
    %66 = tpu.matmul %65, %52, %cst_30 {dimension_numbers = #tpu.dot_dimension_numbers<[1], [0], [0], [1], [0, 0, 1, 1], [], []>} : vector<8x8xf32>, vector<8x8xf32>, vector<8x8xf32> -> vector<8x8xf32>
    %67 = vector.extract_strided_slice %14 {offsets = [0, 24], sizes = [8, 8], strides = [1, 1]} : vector<8x32xf32> to vector<8x8xf32>
    %68 = vector.extract_strided_slice %15 {offsets = [0, 24], sizes = [8, 8], strides = [1, 1]} : vector<8x64xf32> to vector<8x8xf32>
    %69 = vector.extract_strided_slice %15 {offsets = [0, 56], sizes = [8, 8], strides = [1, 1]} : vector<8x64xf32> to vector<8x8xf32>
    %cst_31 = arith.constant dense<0.000000e+00> : vector<8x8xf32>
    %70 = tpu.matmul %67, %68, %cst_31 {dimension_numbers = #tpu.dot_dimension_numbers<[1], [1], [0], [0], [0, 0, 1, 0], [], []>} : vector<8x8xf32>, vector<8x8xf32>, vector<8x8xf32> -> vector<8x8xf32>
    %cst_32 = arith.constant 0.353553385 : f32
    %71 = vector.broadcast %cst_32 : f32 to vector<8x8xf32>
    %72 = arith.mulf %70, %71 : vector<8x8xf32>
    %cst_33 = arith.constant dense<0xFF800000> : vector<8xf32>
    %73 = vector.multi_reduction <maximumf>, %72, %cst_33 [1] : vector<8x8xf32> to vector<8xf32>
    %74 = vector.shape_cast %73 : vector<8xf32> to vector<8x1xf32>
    %75 = vector.broadcast %74 : vector<8x1xf32> to vector<8x8xf32>
    %76 = arith.subf %72, %75 : vector<8x8xf32>
    %77 = math.exp %76 : vector<8x8xf32>
    %cst_34 = arith.constant dense<0.000000e+00> : vector<8xf32>
    %78 = vector.multi_reduction <add>, %77, %cst_34 [1] : vector<8x8xf32> to vector<8xf32>
    %79 = vector.shape_cast %78 : vector<8xf32> to vector<8x1xf32>
    %80 = tpu.reciprocal %79 {approx = true} : vector<8x1xf32> -> vector<8x1xf32>
    %81 = vector.broadcast %80 : vector<8x1xf32> to vector<8x8xf32>
    %82 = arith.mulf %77, %81 : vector<8x8xf32>
    %cst_35 = arith.constant dense<0.000000e+00> : vector<8x8xf32>
    %83 = tpu.matmul %82, %69, %cst_35 {dimension_numbers = #tpu.dot_dimension_numbers<[1], [0], [0], [1], [0, 0, 1, 1], [], []>} : vector<8x8xf32>, vector<8x8xf32>, vector<8x8xf32> -> vector<8x8xf32>
    %84 = tpu.concatenate %32, %49, %66, %83 in 1 : vector<8x8xf32>, vector<8x8xf32>, vector<8x8xf32>, vector<8x8xf32> -> vector<8x32xf32>
    %85 = vector.extract_strided_slice %5 {offsets = [8, 0], sizes = [8, 32], strides = [1, 1]} : vector<16x32xf32> to vector<8x32xf32>
    %86 = vector.extract_strided_slice %11 {offsets = [8, 0], sizes = [8, 64], strides = [1, 1]} : vector<16x64xf32> to vector<8x64xf32>
    %87 = vector.extract_strided_slice %85 {offsets = [0, 0], sizes = [8, 8], strides = [1, 1]} : vector<8x32xf32> to vector<8x8xf32>
    %88 = vector.extract_strided_slice %86 {offsets = [0, 0], sizes = [8, 8], strides = [1, 1]} : vector<8x64xf32> to vector<8x8xf32>
    %89 = vector.extract_strided_slice %86 {offsets = [0, 32], sizes = [8, 8], strides = [1, 1]} : vector<8x64xf32> to vector<8x8xf32>
    %cst_36 = arith.constant dense<0.000000e+00> : vector<8x8xf32>
    %90 = tpu.matmul %87, %88, %cst_36 {dimension_numbers = #tpu.dot_dimension_numbers<[1], [1], [0], [0], [0, 0, 1, 0], [], []>} : vector<8x8xf32>, vector<8x8xf32>, vector<8x8xf32> -> vector<8x8xf32>
    %cst_37 = arith.constant 0.353553385 : f32
    %91 = vector.broadcast %cst_37 : f32 to vector<8x8xf32>
    %92 = arith.mulf %90, %91 : vector<8x8xf32>
    %cst_38 = arith.constant dense<0xFF800000> : vector<8xf32>
    %93 = vector.multi_reduction <maximumf>, %92, %cst_38 [1] : vector<8x8xf32> to vector<8xf32>
    %94 = vector.shape_cast %93 : vector<8xf32> to vector<8x1xf32>
    %95 = vector.broadcast %94 : vector<8x1xf32> to vector<8x8xf32>
    %96 = arith.subf %92, %95 : vector<8x8xf32>
    %97 = math.exp %96 : vector<8x8xf32>
    %cst_39 = arith.constant dense<0.000000e+00> : vector<8xf32>
    %98 = vector.multi_reduction <add>, %97, %cst_39 [1] : vector<8x8xf32> to vector<8xf32>
    %99 = vector.shape_cast %98 : vector<8xf32> to vector<8x1xf32>
    %100 = tpu.reciprocal %99 {approx = true} : vector<8x1xf32> -> vector<8x1xf32>
    %101 = vector.broadcast %100 : vector<8x1xf32> to vector<8x8xf32>
    %102 = arith.mulf %97, %101 : vector<8x8xf32>
    %cst_40 = arith.constant dense<0.000000e+00> : vector<8x8xf32>
    %103 = tpu.matmul %102, %89, %cst_40 {dimension_numbers = #tpu.dot_dimension_numbers<[1], [0], [0], [1], [0, 0, 1, 1], [], []>} : vector<8x8xf32>, vector<8x8xf32>, vector<8x8xf32> -> vector<8x8xf32>
    %104 = vector.extract_strided_slice %85 {offsets = [0, 8], sizes = [8, 8], strides = [1, 1]} : vector<8x32xf32> to vector<8x8xf32>
    %105 = vector.extract_strided_slice %86 {offsets = [0, 8], sizes = [8, 8], strides = [1, 1]} : vector<8x64xf32> to vector<8x8xf32>
    %106 = vector.extract_strided_slice %86 {offsets = [0, 40], sizes = [8, 8], strides = [1, 1]} : vector<8x64xf32> to vector<8x8xf32>
    %cst_41 = arith.constant dense<0.000000e+00> : vector<8x8xf32>
    %107 = tpu.matmul %104, %105, %cst_41 {dimension_numbers = #tpu.dot_dimension_numbers<[1], [1], [0], [0], [0, 0, 1, 0], [], []>} : vector<8x8xf32>, vector<8x8xf32>, vector<8x8xf32> -> vector<8x8xf32>
    %cst_42 = arith.constant 0.353553385 : f32
    %108 = vector.broadcast %cst_42 : f32 to vector<8x8xf32>
    %109 = arith.mulf %107, %108 : vector<8x8xf32>
    %cst_43 = arith.constant dense<0xFF800000> : vector<8xf32>
    %110 = vector.multi_reduction <maximumf>, %109, %cst_43 [1] : vector<8x8xf32> to vector<8xf32>
    %111 = vector.shape_cast %110 : vector<8xf32> to vector<8x1xf32>
    %112 = vector.broadcast %111 : vector<8x1xf32> to vector<8x8xf32>
    %113 = arith.subf %109, %112 : vector<8x8xf32>
    %114 = math.exp %113 : vector<8x8xf32>
    %cst_44 = arith.constant dense<0.000000e+00> : vector<8xf32>
    %115 = vector.multi_reduction <add>, %114, %cst_44 [1] : vector<8x8xf32> to vector<8xf32>
    %116 = vector.shape_cast %115 : vector<8xf32> to vector<8x1xf32>
    %117 = tpu.reciprocal %116 {approx = true} : vector<8x1xf32> -> vector<8x1xf32>
    %118 = vector.broadcast %117 : vector<8x1xf32> to vector<8x8xf32>
    %119 = arith.mulf %114, %118 : vector<8x8xf32>
    %cst_45 = arith.constant dense<0.000000e+00> : vector<8x8xf32>
    %120 = tpu.matmul %119, %106, %cst_45 {dimension_numbers = #tpu.dot_dimension_numbers<[1], [0], [0], [1], [0, 0, 1, 1], [], []>} : vector<8x8xf32>, vector<8x8xf32>, vector<8x8xf32> -> vector<8x8xf32>
    %121 = vector.extract_strided_slice %85 {offsets = [0, 16], sizes = [8, 8], strides = [1, 1]} : vector<8x32xf32> to vector<8x8xf32>
    %122 = vector.extract_strided_slice %86 {offsets = [0, 16], sizes = [8, 8], strides = [1, 1]} : vector<8x64xf32> to vector<8x8xf32>
    %123 = vector.extract_strided_slice %86 {offsets = [0, 48], sizes = [8, 8], strides = [1, 1]} : vector<8x64xf32> to vector<8x8xf32>
    %cst_46 = arith.constant dense<0.000000e+00> : vector<8x8xf32>
    %124 = tpu.matmul %121, %122, %cst_46 {dimension_numbers = #tpu.dot_dimension_numbers<[1], [1], [0], [0], [0, 0, 1, 0], [], []>} : vector<8x8xf32>, vector<8x8xf32>, vector<8x8xf32> -> vector<8x8xf32>
    %cst_47 = arith.constant 0.353553385 : f32
    %125 = vector.broadcast %cst_47 : f32 to vector<8x8xf32>
    %126 = arith.mulf %124, %125 : vector<8x8xf32>
    %cst_48 = arith.constant dense<0xFF800000> : vector<8xf32>
    %127 = vector.multi_reduction <maximumf>, %126, %cst_48 [1] : vector<8x8xf32> to vector<8xf32>
    %128 = vector.shape_cast %127 : vector<8xf32> to vector<8x1xf32>
    %129 = vector.broadcast %128 : vector<8x1xf32> to vector<8x8xf32>
    %130 = arith.subf %126, %129 : vector<8x8xf32>
    %131 = math.exp %130 : vector<8x8xf32>
    %cst_49 = arith.constant dense<0.000000e+00> : vector<8xf32>
    %132 = vector.multi_reduction <add>, %131, %cst_49 [1] : vector<8x8xf32> to vector<8xf32>
    %133 = vector.shape_cast %132 : vector<8xf32> to vector<8x1xf32>
    %134 = tpu.reciprocal %133 {approx = true} : vector<8x1xf32> -> vector<8x1xf32>
    %135 = vector.broadcast %134 : vector<8x1xf32> to vector<8x8xf32>
    %136 = arith.mulf %131, %135 : vector<8x8xf32>
    %cst_50 = arith.constant dense<0.000000e+00> : vector<8x8xf32>
    %137 = tpu.matmul %136, %123, %cst_50 {dimension_numbers = #tpu.dot_dimension_numbers<[1], [0], [0], [1], [0, 0, 1, 1], [], []>} : vector<8x8xf32>, vector<8x8xf32>, vector<8x8xf32> -> vector<8x8xf32>
    %138 = vector.extract_strided_slice %85 {offsets = [0, 24], sizes = [8, 8], strides = [1, 1]} : vector<8x32xf32> to vector<8x8xf32>
    %139 = vector.extract_strided_slice %86 {offsets = [0, 24], sizes = [8, 8], strides = [1, 1]} : vector<8x64xf32> to vector<8x8xf32>
    %140 = vector.extract_strided_slice %86 {offsets = [0, 56], sizes = [8, 8], strides = [1, 1]} : vector<8x64xf32> to vector<8x8xf32>
    %cst_51 = arith.constant dense<0.000000e+00> : vector<8x8xf32>
    %141 = tpu.matmul %138, %139, %cst_51 {dimension_numbers = #tpu.dot_dimension_numbers<[1], [1], [0], [0], [0, 0, 1, 0], [], []>} : vector<8x8xf32>, vector<8x8xf32>, vector<8x8xf32> -> vector<8x8xf32>
    %cst_52 = arith.constant 0.353553385 : f32
    %142 = vector.broadcast %cst_52 : f32 to vector<8x8xf32>
    %143 = arith.mulf %141, %142 : vector<8x8xf32>
    %cst_53 = arith.constant dense<0xFF800000> : vector<8xf32>
    %144 = vector.multi_reduction <maximumf>, %143, %cst_53 [1] : vector<8x8xf32> to vector<8xf32>
    %145 = vector.shape_cast %144 : vector<8xf32> to vector<8x1xf32>
    %146 = vector.broadcast %145 : vector<8x1xf32> to vector<8x8xf32>
    %147 = arith.subf %143, %146 : vector<8x8xf32>
    %148 = math.exp %147 : vector<8x8xf32>
    %cst_54 = arith.constant dense<0.000000e+00> : vector<8xf32>
    %149 = vector.multi_reduction <add>, %148, %cst_54 [1] : vector<8x8xf32> to vector<8xf32>
    %150 = vector.shape_cast %149 : vector<8xf32> to vector<8x1xf32>
    %151 = tpu.reciprocal %150 {approx = true} : vector<8x1xf32> -> vector<8x1xf32>
    %152 = vector.broadcast %151 : vector<8x1xf32> to vector<8x8xf32>
    %153 = arith.mulf %148, %152 : vector<8x8xf32>
    %cst_55 = arith.constant dense<0.000000e+00> : vector<8x8xf32>
    %154 = tpu.matmul %153, %140, %cst_55 {dimension_numbers = #tpu.dot_dimension_numbers<[1], [0], [0], [1], [0, 0, 1, 1], [], []>} : vector<8x8xf32>, vector<8x8xf32>, vector<8x8xf32> -> vector<8x8xf32>
    %155 = tpu.concatenate %103, %120, %137, %154 in 1 : vector<8x8xf32>, vector<8x8xf32>, vector<8x8xf32>, vector<8x8xf32> -> vector<8x32xf32>
    %156 = tpu.concatenate %84, %155 in 0 : vector<8x32xf32>, vector<8x32xf32> -> vector<16x32xf32>
    %cst_56 = arith.constant dense<0.000000e+00> : vector<16x32xf32>
    %157 = tpu.matmul %156, %12, %cst_56 {dimension_numbers = #tpu.dot_dimension_numbers<[1], [0], [0], [1], [0, 0, 1, 1], [], []>} : vector<16x32xf32>, vector<32x32xf32>, vector<16x32xf32> -> vector<16x32xf32>
    %158 = vector.broadcast %13 : vector<1x32xf32> to vector<16x32xf32>
    %159 = arith.addf %157, %158 : vector<16x32xf32>
    %c0_57 = arith.constant 0 : index
    %c0_58 = arith.constant 0 : index
    %160 = vector.load %arg9[%c0_57, %c0_58] : memref<32x16xf32, #tpu.memory_space<vmem>>, vector<32x16xf32>
    %cst_59 = arith.constant dense<0.000000e+00> : vector<16x16xf32>
    %161 = tpu.matmul %159, %160, %cst_59 {dimension_numbers = #tpu.dot_dimension_numbers<[1], [0], [0], [1], [0, 0, 1, 1], [], []>} : vector<16x32xf32>, vector<32x16xf32>, vector<16x16xf32> -> vector<16x16xf32>
    %c0_60 = arith.constant 0 : index
    %c0_61 = arith.constant 0 : index
    %162 = vector.load %arg10[%c0_60, %c0_61] : memref<1x16xf32, #tpu.memory_space<vmem>>, vector<1x16xf32>
    %163 = vector.broadcast %162 : vector<1x16xf32> to vector<16x16xf32>
    %164 = arith.addf %161, %163 : vector<16x16xf32>
    %c0_62 = arith.constant 0 : index
    %c0_63 = arith.constant 0 : index
    %165 = vector.load %arg15[%c0_62, %c0_63] : memref<16x16xf32, #tpu.memory_space<vmem>>, vector<16x16xf32>
    tpu.vector_store %arg15[%c0_62, %c0_63], %164 {strides = array<i32>} : memref<16x16xf32, #tpu.memory_space<vmem>>, vector<16x16xf32>,
    %c0_64 = arith.constant 0 : index
    %c0_65 = arith.constant 0 : index
    %166 = vector.load %arg11[%c0_64, %c0_65] : memref<32x12xf32, #tpu.memory_space<vmem>>, vector<32x12xf32>
    %cst_66 = arith.constant dense<0.000000e+00> : vector<16x12xf32>
    %167 = tpu.matmul %159, %166, %cst_66 {dimension_numbers = #tpu.dot_dimension_numbers<[1], [0], [0], [1], [0, 0, 1, 1], [], []>} : vector<16x32xf32>, vector<32x12xf32>, vector<16x12xf32> -> vector<16x12xf32>
    %c0_67 = arith.constant 0 : index
    %c0_68 = arith.constant 0 : index
    %168 = vector.load %arg12[%c0_67, %c0_68] : memref<1x12xf32, #tpu.memory_space<vmem>>, vector<1x12xf32>
    %169 = vector.broadcast %168 : vector<1x12xf32> to vector<16x12xf32>
    %170 = arith.addf %167, %169 : vector<16x12xf32>
    %c0_69 = arith.constant 0 : index
    %c0_70 = arith.constant 0 : index
    %171 = vector.load %arg13[%c0_69, %c0_70] : memref<1x12xf32, #tpu.memory_space<vmem>>, vector<1x12xf32>
    %c0_71 = arith.constant 0 : index
    %c0_72 = arith.constant 0 : index
    %172 = vector.load %arg14[%c0_71, %c0_72] : memref<1x12xf32, #tpu.memory_space<vmem>>, vector<1x12xf32>
    %cst_73 = arith.constant dense<0.000000e+00> : vector<16xf32>
    %173 = vector.multi_reduction <add>, %170, %cst_73 [1] : vector<16x12xf32> to vector<16xf32>
    %174 = vector.shape_cast %173 : vector<16xf32> to vector<16x1xf32>
    %cst_74 = arith.constant 1.200000e+01 : f32
    %175 = vector.broadcast %cst_74 : f32 to vector<16x1xf32>
    %176 = arith.divf %174, %175 : vector<16x1xf32>
    %177 = vector.broadcast %176 : vector<16x1xf32> to vector<16x12xf32>
    %178 = arith.subf %170, %177 : vector<16x12xf32>
    %179 = arith.mulf %178, %178 : vector<16x12xf32>
    %cst_75 = arith.constant dense<0.000000e+00> : vector<16xf32>
    %180 = vector.multi_reduction <add>, %179, %cst_75 [1] : vector<16x12xf32> to vector<16xf32>
    %181 = vector.shape_cast %180 : vector<16xf32> to vector<16x1xf32>
    %cst_76 = arith.constant 1.200000e+01 : f32
    %182 = vector.broadcast %cst_76 : f32 to vector<16x1xf32>
    %183 = arith.divf %181, %182 : vector<16x1xf32>
    %184 = vector.broadcast %176 : vector<16x1xf32> to vector<16x12xf32>
    %185 = arith.subf %170, %184 : vector<16x12xf32>
    %cst_77 = arith.constant 9.99999974E-6 : f32
    %186 = vector.broadcast %cst_77 : f32 to vector<16x1xf32>
    %187 = arith.addf %183, %186 : vector<16x1xf32>
    %188 = math.rsqrt %187 : vector<16x1xf32>
    %189 = vector.broadcast %188 : vector<16x1xf32> to vector<16x12xf32>
    %190 = arith.mulf %185, %189 : vector<16x12xf32>
    %191 = vector.broadcast %171 : vector<1x12xf32> to vector<16x12xf32>
    %192 = arith.mulf %190, %191 : vector<16x12xf32>
    %193 = vector.broadcast %172 : vector<1x12xf32> to vector<16x12xf32>
    %194 = arith.addf %192, %193 : vector<16x12xf32>
    %c0_78 = arith.constant 0 : index
    %c0_79 = arith.constant 0 : index
    %195 = vector.load %arg16[%c0_78, %c0_79] : memref<16x12xf32, #tpu.memory_space<vmem>>, vector<16x12xf32>
    tpu.vector_store %arg16[%c0_78, %c0_79], %194 {strides = array<i32>} : memref<16x12xf32, #tpu.memory_space<vmem>>, vector<16x12xf32>,
    return
  }
  func.func @transform_0(%arg0: i32) -> (i32, i32) {
    %c0_i32 = arith.constant 0 : i32
    %c0_i32_0 = arith.constant 0 : i32
    %c0_i32_1 = arith.constant 0 : i32
    return %c0_i32, %c0_i32_0 : i32, i32
  }
  func.func @transform_1(%arg0: i32) -> (i32, i32) {
    %c0_i32 = arith.constant 0 : i32
    %c0_i32_0 = arith.constant 0 : i32
    %c0_i32_1 = arith.constant 0 : i32
    return %c0_i32, %c0_i32_0 : i32, i32
  }
  func.func @transform_2(%arg0: i32) -> (i32, i32) {
    %c0_i32 = arith.constant 0 : i32
    %c0_i32_0 = arith.constant 0 : i32
    %c0_i32_1 = arith.constant 0 : i32
    return %c0_i32, %c0_i32_0 : i32, i32
  }
  func.func @transform_3(%arg0: i32) -> (i32, i32) {
    %c0_i32 = arith.constant 0 : i32
    %c0_i32_0 = arith.constant 0 : i32
    %c0_i32_1 = arith.constant 0 : i32
    return %c0_i32, %c0_i32_0 : i32, i32
  }
  func.func @transform_4(%arg0: i32) -> (i32, i32) {
    %c0_i32 = arith.constant 0 : i32
    %c0_i32_0 = arith.constant 0 : i32
    %c0_i32_1 = arith.constant 0 : i32
    return %c0_i32, %c0_i32_0 : i32, i32
  }
  func.func @transform_5(%arg0: i32) -> (i32, i32) {
    %c0_i32 = arith.constant 0 : i32
    %c0_i32_0 = arith.constant 0 : i32
    %c0_i32_1 = arith.constant 0 : i32
    return %c0_i32, %c0_i32_0 : i32, i32
  }
  func.func @transform_6(%arg0: i32) -> (i32, i32) {
    %c0_i32 = arith.constant 0 : i32
    %c0_i32_0 = arith.constant 0 : i32
    %c0_i32_1 = arith.constant 0 : i32
    return %c0_i32, %c0_i32_0 : i32, i32
  }
  func.func @transform_7(%arg0: i32) -> (i32, i32) {
    %c0_i32 = arith.constant 0 : i32
    %c0_i32_0 = arith.constant 0 : i32
    %c0_i32_1 = arith.constant 0 : i32
    return %c0_i32, %c0_i32_0 : i32, i32
  }
  func.func @transform_8(%arg0: i32) -> (i32, i32) {
    %c0_i32 = arith.constant 0 : i32
    %c0_i32_0 = arith.constant 0 : i32
    %c0_i32_1 = arith.constant 0 : i32
    return %c0_i32, %c0_i32_0 : i32, i32
  }
  func.func @transform_9(%arg0: i32) -> (i32, i32) {
    %c0_i32 = arith.constant 0 : i32
    %c0_i32_0 = arith.constant 0 : i32
    %c0_i32_1 = arith.constant 0 : i32
    return %c0_i32, %c0_i32_0 : i32, i32
  }
  func.func @transform_10(%arg0: i32) -> (i32, i32) {
    %c0_i32 = arith.constant 0 : i32
    %c0_i32_0 = arith.constant 0 : i32
    %c0_i32_1 = arith.constant 0 : i32
    return %c0_i32, %c0_i32_0 : i32, i32
  }
  func.func @transform_11(%arg0: i32) -> (i32, i32) {
    %c0_i32 = arith.constant 0 : i32
    %c0_i32_0 = arith.constant 0 : i32
    %c0_i32_1 = arith.constant 0 : i32
    return %c0_i32, %c0_i32_0 : i32, i32
  }
  func.func @transform_12(%arg0: i32) -> (i32, i32) {
    %c0_i32 = arith.constant 0 : i32
    %c0_i32_0 = arith.constant 0 : i32
    %c0_i32_1 = arith.constant 0 : i32
    return %c0_i32, %c0_i32_0 : i32, i32
  }
  func.func @transform_13(%arg0: i32) -> (i32, i32) {
    %c0_i32 = arith.constant 0 : i32
    %c0_i32_0 = arith.constant 0 : i32
    %c0_i32_1 = arith.constant 0 : i32
    return %c0_i32, %c0_i32_0 : i32, i32
  }
  func.func @transform_14(%arg0: i32) -> (i32, i32) {
    %c0_i32 = arith.constant 0 : i32
    %c0_i32_0 = arith.constant 0 : i32
    %c0_i32_1 = arith.constant 0 : i32
    return %c0_i32, %c0_i32_0 : i32, i32
  }
  func.func @transform_15(%arg0: i32) -> (i32, i32) {
    %c0_i32 = arith.constant 0 : i32
    %c0_i32_0 = arith.constant 0 : i32
    %c0_i32_1 = arith.constant 0 : i32
    return %c0_i32, %c0_i32_0 : i32, i32
  }
}

</mosaic_0001>

<llo_original>
// kernel: _encode.3
$region0: #{_encode.3}
  #allocation0 [shape = 'u32[]', space=smem, size = 0x4, offset = 0x4, fixed_abs, tag = 'smem constant byte address 0x4 - core index']
  #allocation1 [shape = 'u32[144,128]{1,0:T(1,128)}', space=vmem, size = 0x12000, scoped, tag = 'internal scratch']
  %s0 = inlined_call_operand.vmem [shape: f32[16,512], index: 0, kind: input, shape index: {}]
  %s1 = inlined_call_operand.vmem [shape: f32[512,32], index: 1, kind: input, shape index: {}]
  %s2 = inlined_call_operand.vmem [shape: f32[1,32], index: 2, kind: input, shape index: {}]
  %s3 = inlined_call_operand.vmem [shape: f32[16,32], index: 3, kind: input, shape index: {}]
  %s4 = inlined_call_operand.vmem [shape: f32[16,32], index: 4, kind: output, shape index: {}]
  %s5 = sld [smem:[#allocation0]]
  $region26: #{_encode.3} parent=0
    _
  %s7 = ssub.s32 1, %s5
  %s8 = scalar_select 0, %s7, %s5
  // Predicated region
  $region2: #{_encode.3} parent=0 // pred_check
    _
  $region3: #{_encode.3} parent=0 // pred_check_branch
    %10 = sbr.rel (0) target = $region5
  $region4: #{_encode.3} parent=0 // pred_region
    _
  $region5: #{_encode.3} parent=0 // pred_fallthru
    _
  // Predicated region
  $region6: #{_encode.3} parent=0 // pred_check
    _
  $region7: #{_encode.3} parent=0 // pred_check_branch
    %12 = sbr.rel (0) target = $region9
  $region8: #{_encode.3} parent=0 // pred_region
    _
  $region9: #{_encode.3} parent=0 // pred_fallthru
    _
  // Predicated region
  $region10: #{_encode.3} parent=0 // pred_check
    _
  $region11: #{_encode.3} parent=0 // pred_check_branch
    %14 = sbr.rel (0) target = $region13
  $region12: #{_encode.3} parent=0 // pred_region
    _
  $region13: #{_encode.3} parent=0 // pred_fallthru
    _
  // Predicated region
  $region14: #{_encode.3} parent=0 // pred_check
    _
  $region15: #{_encode.3} parent=0 // pred_check_branch
    %16 = sbr.rel (0) target = $region17
  $region16: #{_encode.3} parent=0 // pred_region
    _
  $region17: #{_encode.3} parent=0 // pred_fallthru
    _
  %v17 = vld [vmem:[%s0] sm:$0xff]
  %v18 = vld [vmem:[%s0 + $0x8] sm:$0xff]
  %v19 = vld [vmem:[%s0 + $0x10] sm:$0xff]
  %v20 = vld [vmem:[%s0 + $0x18] sm:$0xff]
  %v21 = vld [vmem:[%s0 + $0x20] sm:$0xff]
  %v22 = vld [vmem:[%s0 + $0x28] sm:$0xff]
  %v23 = vld [vmem:[%s0 + $0x30] sm:$0xff]
  %v24 = vld [vmem:[%s0 + $0x38] sm:$0xff]
  %v25 = vld [vmem:[%s1] sm:$0xff]
  %v26 = vld [vmem:[%s1 + $0x8] sm:$0xff]
  %v27 = vld [vmem:[%s1 + $0x10] sm:$0xff]
  %v28 = vld [vmem:[%s1 + $0x18] sm:$0xff]
  %v29 = vld [vmem:[%s1 + $0x20] sm:$0xff]
  %v30 = vld [vmem:[%s1 + $0x28] sm:$0xff]
  %v31 = vld [vmem:[%s1 + $0x30] sm:$0xff]
  %v32 = vld [vmem:[%s1 + $0x38] sm:$0xff]
  %v33 = vld [vmem:[%s1 + $0x40] sm:$0xff]
  %v34 = vld [vmem:[%s1 + $0x48] sm:$0xff]
  %v35 = vld [vmem:[%s1 + $0x50] sm:$0xff]
  %v36 = vld [vmem:[%s1 + $0x58] sm:$0xff]
  %v37 = vld [vmem:[%s1 + $0x60] sm:$0xff]
  %v38 = vld [vmem:[%s1 + $0x68] sm:$0xff]
  %v39 = vld [vmem:[%s1 + $0x70] sm:$0xff]
  %v40 = vld [vmem:[%s1 + $0x78] sm:$0xff]
  %v41 = vld [vmem:[%s1 + $0x80] sm:$0xff]
  %v42 = vld [vmem:[%s1 + $0x88] sm:$0xff]
  %v43 = vld [vmem:[%s1 + $0x90] sm:$0xff]
  %v44 = vld [vmem:[%s1 + $0x98] sm:$0xff]
  %v45 = vld [vmem:[%s1 + $0xa0] sm:$0xff]
  %v46 = vld [vmem:[%s1 + $0xa8] sm:$0xff]
  %v47 = vld [vmem:[%s1 + $0xb0] sm:$0xff]
  %v48 = vld [vmem:[%s1 + $0xb8] sm:$0xff]
  %v49 = vld [vmem:[%s1 + $0xc0] sm:$0xff]
  %v50 = vld [vmem:[%s1 + $0xc8] sm:$0xff]
  %v51 = vld [vmem:[%s1 + $0xd0] sm:$0xff]
  %v52 = vld [vmem:[%s1 + $0xd8] sm:$0xff]
  %v53 = vld [vmem:[%s1 + $0xe0] sm:$0xff]
  %v54 = vld [vmem:[%s1 + $0xe8] sm:$0xff]
  %v55 = vld [vmem:[%s1 + $0xf0] sm:$0xff]
  %v56 = vld [vmem:[%s1 + $0xf8] sm:$0xff]
  %v57 = vld [vmem:[%s1 + $0x100] sm:$0xff]
  %v58 = vld [vmem:[%s1 + $0x108] sm:$0xff]
  %v59 = vld [vmem:[%s1 + $0x110] sm:$0xff]
  %v60 = vld [vmem:[%s1 + $0x118] sm:$0xff]
  %v61 = vld [vmem:[%s1 + $0x120] sm:$0xff]
  %v62 = vld [vmem:[%s1 + $0x128] sm:$0xff]
  %v63 = vld [vmem:[%s1 + $0x130] sm:$0xff]
  %v64 = vld [vmem:[%s1 + $0x138] sm:$0xff]
  %v65 = vld [vmem:[%s1 + $0x140] sm:$0xff]
  %v66 = vld [vmem:[%s1 + $0x148] sm:$0xff]
  %v67 = vld [vmem:[%s1 + $0x150] sm:$0xff]
  %v68 = vld [vmem:[%s1 + $0x158] sm:$0xff]
  %v69 = vld [vmem:[%s1 + $0x160] sm:$0xff]
  %v70 = vld [vmem:[%s1 + $0x168] sm:$0xff]
  %v71 = vld [vmem:[%s1 + $0x170] sm:$0xff]
  %v72 = vld [vmem:[%s1 + $0x178] sm:$0xff]
  %v73 = vld [vmem:[%s1 + $0x180] sm:$0xff]
  %v74 = vld [vmem:[%s1 + $0x188] sm:$0xff]
  %v75 = vld [vmem:[%s1 + $0x190] sm:$0xff]
  %v76 = vld [vmem:[%s1 + $0x198] sm:$0xff]
  %v77 = vld [vmem:[%s1 + $0x1a0] sm:$0xff]
  %v78 = vld [vmem:[%s1 + $0x1a8] sm:$0xff]
  %v79 = vld [vmem:[%s1 + $0x1b0] sm:$0xff]
  %v80 = vld [vmem:[%s1 + $0x1b8] sm:$0xff]
  %v81 = vld [vmem:[%s1 + $0x1c0] sm:$0xff]
  %v82 = vld [vmem:[%s1 + $0x1c8] sm:$0xff]
  %v83 = vld [vmem:[%s1 + $0x1d0] sm:$0xff]
  %v84 = vld [vmem:[%s1 + $0x1d8] sm:$0xff]
  %v85 = vld [vmem:[%s1 + $0x1e0] sm:$0xff]
  %v86 = vld [vmem:[%s1 + $0x1e8] sm:$0xff]
  %v87 = vld [vmem:[%s1 + $0x1f0] sm:$0xff]
  %v88 = vld [vmem:[%s1 + $0x1f8] sm:$0xff]
  %v89 = vld [vmem:[%s2] sm:$0x1]
  %v91 = vlaneseq
  %v92 = vshrl.u32 %v91, 7
  %v93 = vsub.s32 0, %v92
  %v94 = vrot.slane %v89, %v93
  %96 = vmatprep.subr.mxu0 0.0
  %97 = vmatpush1.msra.mxu0 %v25
  %98 = vmatprep.subr.mxu0 0.0
  %99 = vmatpush1.msra.mxu0 %v26
  %100 = vmatprep.subr.mxu0 0.0
  %101 = vmatpush1.msra.mxu0 %v27
  %102 = vmatprep.subr.mxu0 0.0
  %103 = vmatpush1.msra.mxu0 %v28
  %104 = vmatprep.subr.mxu0 0.0
  %105 = vmatpush1.msra.mxu0 %v29
  %106 = vmatprep.subr.mxu0 0.0
  %107 = vmatpush1.msra.mxu0 %v30
  %108 = vmatprep.subr.mxu0 0.0
  %109 = vmatpush1.msra.mxu0 %v31
  %110 = vmatprep.subr.mxu0 0.0
  %111 = vmatpush1.msra.mxu0 %v32
  %112 = vmatprep.subr.mxu0 0.0
  %113 = vmatpush1.msra.mxu0 %v33
  %114 = vmatprep.subr.mxu0 0.0
  %115 = vmatpush1.msra.mxu0 %v34
  %116 = vmatprep.subr.mxu0 0.0
  %117 = vmatpush1.msra.mxu0 %v35
  %118 = vmatprep.subr.mxu0 0.0
  %119 = vmatpush1.msra.mxu0 %v36
  %120 = vmatprep.subr.mxu0 0.0
  %121 = vmatpush1.msra.mxu0 %v37
  %122 = vmatprep.subr.mxu0 0.0
  %123 = vmatpush1.msra.mxu0 %v38
  %124 = vmatprep.subr.mxu0 0.0
  %125 = vmatpush1.msra.mxu0 %v39
  %126 = vmatprep.subr.mxu0 0.0
  %127 = vmatpush1.msra.mxu0 %v40
  %128 = vmatprep.subr.mxu0 0.0
  %129 = vmatpush1.msra.mxu0 %v41
  %130 = vmatprep.subr.mxu0 0.0
  %131 = vmatpush1.msra.mxu0 %v42
  %132 = vmatprep.subr.mxu0 0.0
  %133 = vmatpush1.msra.mxu0 %v43
  %134 = vmatprep.subr.mxu0 0.0
  %135 = vmatpush1.msra.mxu0 %v44
  %136 = vmatprep.subr.mxu0 0.0
  %137 = vmatpush1.msra.mxu0 %v45
  %138 = vmatprep.subr.mxu0 0.0
  %139 = vmatpush1.msra.mxu0 %v46
  %140 = vmatprep.subr.mxu0 0.0
  %141 = vmatpush1.msra.mxu0 %v47
  %142 = vmatprep.subr.mxu0 0.0
  %143 = vmatpush1.msra.mxu0 %v48
  %144 = vmatprep.subr.mxu0 0.0
  %145 = vmatpush1.msra.mxu0 %v49
  %146 = vmatprep.subr.mxu0 0.0
  %147 = vmatpush1.msra.mxu0 %v50
  %148 = vmatprep.subr.mxu0 0.0
  %149 = vmatpush1.msra.mxu0 %v51
  %150 = vmatprep.subr.mxu0 0.0
  %151 = vmatpush1.msra.mxu0 %v52
  %152 = vmatprep.subr.mxu0 0.0
  %153 = vmatpush1.msra.mxu0 %v53
  %154 = vmatprep.subr.mxu0 0.0
  %155 = vmatpush1.msra.mxu0 %v54
  %156 = vmatprep.subr.mxu0 0.0
  %157 = vmatpush1.msra.mxu0 %v55
  %158 = vmatprep.subr.mxu0 0.0
  %159 = vmatpush1.msra.mxu0 %v56
  %160 = vmatprep.mubr.f32.mxu0 %v18
  %161 = vmatmul.mubr.f32.gmra.mrb[0].mxu0 %v17
  %v162 = vpop.f32.mrb[0].mxu0
  %v163 = vadd.f32 %v94, %v162
  %v164 = vpop.f32.mrb[0].mxu0
  %165 = vmatprep.mubr.f32.mxu0 %v22
  %166 = vmatmul.mubr.f32.gmra.mrb[0].mxu0 %v21
  %v167 = vpop.f32.mrb[0].mxu0
  %v168 = vadd.f32 %v94, %v167
  %v169 = vpop.f32.mrb[0].mxu0
  %170 = vdwg.mxu0
  %171 = vmatprep.subr.mxu0 0.0
  %172 = vmatpush1.msra.mxu0 %v57
  %173 = vmatprep.subr.mxu0 0.0
  %174 = vmatpush1.msra.mxu0 %v58
  %175 = vmatprep.subr.mxu0 0.0
  %176 = vmatpush1.msra.mxu0 %v59
  %177 = vmatprep.subr.mxu0 0.0
  %178 = vmatpush1.msra.mxu0 %v60
  %179 = vmatprep.subr.mxu0 0.0
  %180 = vmatpush1.msra.mxu0 %v61
  %181 = vmatprep.subr.mxu0 0.0
  %182 = vmatpush1.msra.mxu0 %v62
  %183 = vmatprep.subr.mxu0 0.0
  %184 = vmatpush1.msra.mxu0 %v63
  %185 = vmatprep.subr.mxu0 0.0
  %186 = vmatpush1.msra.mxu0 %v64
  %187 = vmatprep.subr.mxu0 0.0
  %188 = vmatpush1.msra.mxu0 %v65
  %189 = vmatprep.subr.mxu0 0.0
  %190 = vmatpush1.msra.mxu0 %v66
  %191 = vmatprep.subr.mxu0 0.0
  %192 = vmatpush1.msra.mxu0 %v67
  %193 = vmatprep.subr.mxu0 0.0
  %194 = vmatpush1.msra.mxu0 %v68
  %195 = vmatprep.subr.mxu0 0.0
  %196 = vmatpush1.msra.mxu0 %v69
  %197 = vmatprep.subr.mxu0 0.0
  %198 = vmatpush1.msra.mxu0 %v70
  %199 = vmatprep.subr.mxu0 0.0
  %200 = vmatpush1.msra.mxu0 %v71
  %201 = vmatprep.subr.mxu0 0.0
  %202 = vmatpush1.msra.mxu0 %v72
  %203 = vmatprep.subr.mxu0 0.0
  %204 = vmatpush1.msra.mxu0 %v73
  %205 = vmatprep.subr.mxu0 0.0
  %206 = vmatpush1.msra.mxu0 %v74
  %207 = vmatprep.subr.mxu0 0.0
  %208 = vmatpush1.msra.mxu0 %v75
  %209 = vmatprep.subr.mxu0 0.0
  %210 = vmatpush1.msra.mxu0 %v76
  %211 = vmatprep.subr.mxu0 0.0
  %212 = vmatpush1.msra.mxu0 %v77
  %213 = vmatprep.subr.mxu0 0.0
  %214 = vmatpush1.msra.mxu0 %v78
  %215 = vmatprep.subr.mxu0 0.0
  %216 = vmatpush1.msra.mxu0 %v79
  %217 = vmatprep.subr.mxu0 0.0
  %218 = vmatpush1.msra.mxu0 %v80
  %219 = vmatprep.subr.mxu0 0.0
  %220 = vmatpush1.msra.mxu0 %v81
  %221 = vmatprep.subr.mxu0 0.0
  %222 = vmatpush1.msra.mxu0 %v82
  %223 = vmatprep.subr.mxu0 0.0
  %224 = vmatpush1.msra.mxu0 %v83
  %225 = vmatprep.subr.mxu0 0.0
  %226 = vmatpush1.msra.mxu0 %v84
  %227 = vmatprep.subr.mxu0 0.0
  %228 = vmatpush1.msra.mxu0 %v85
  %229 = vmatprep.subr.mxu0 0.0
  %230 = vmatpush1.msra.mxu0 %v86
  %231 = vmatprep.subr.mxu0 0.0
  %232 = vmatpush1.msra.mxu0 %v87
  %233 = vmatprep.subr.mxu0 0.0
  %234 = vmatpush1.msra.mxu0 %v88
  %235 = vmatprep.mubr.f32.mxu0 %v20
  %236 = vmatmul.mubr.f32.gmra.mrb[0].mxu0 %v19
  %v237 = vpop.f32.mrb[0].mxu0
  %v238 = vadd.f32 %v163, %v237
  %v239 = vpop.f32.mrb[0].mxu0
  %240 = vmatprep.mubr.f32.mxu0 %v24
  %241 = vmatmul.mubr.f32.gmra.mrb[0].mxu0 %v23
  %v242 = vpop.f32.mrb[0].mxu0
  %v243 = vadd.f32 %v168, %v242
  %v244 = vpop.f32.mrb[0].mxu0
  %245 = vdwg.mxu0
  %v246 = vld [vmem:[%s3] sm:$0xff]
  %v247 = vld [vmem:[%s3 + $0x8] sm:$0xff]
  %v248 = vadd.f32 %v238, %v246
  %v249 = vadd.f32 %v243, %v247
  %vm250 = vcmask 261120
  %251 = vst.msk [vmem:[%s4] sm:$0xff] %vm250, %v248
  %252 = vst.msk [vmem:[%s4 + $0x8] sm:$0xff] %vm250, %v249
  // Predicated region
  $region18: #{_encode.3} parent=0 // pred_check
    _
  $region19: #{_encode.3} parent=0 // pred_check_branch
    %254 = sbr.rel (0) target = $region21
  $region20: #{_encode.3} parent=0 // pred_region
    _
  $region21: #{_encode.3} parent=0 // pred_fallthru
    _
  // Predicated region
  $region22: #{_encode.3} parent=0 // pred_check
    _
  $region23: #{_encode.3} parent=0 // pred_check_branch
    %256 = sbr.rel (0) target = $region25
  $region24: #{_encode.3} parent=0 // pred_region
    _
  $region25: #{_encode.3} parent=0 // pred_fallthru
    _

// kernel: _encode.5
$region0: #{_encode.5}
  #allocation0 [shape = 'u32[]', space=smem, size = 0x4, offset = 0x4, fixed_abs, tag = 'smem constant byte address 0x4 - core index']
  #allocation1 [shape = 'u32[144,128]{1,0:T(1,128)}', space=vmem, size = 0x12000, scoped, tag = 'internal scratch']
  %s0 = inlined_call_operand.vmem [shape: f32[16,32], index: 0, kind: input, shape index: {}]
  %s1 = inlined_call_operand.vmem [shape: f32[16,32], index: 1, kind: input, shape index: {}]
  %s2 = inlined_call_operand.vmem [shape: f32[32,32], index: 2, kind: input, shape index: {}]
  %s3 = inlined_call_operand.vmem [shape: f32[1,32], index: 3, kind: input, shape index: {}]
  %s4 = inlined_call_operand.vmem [shape: f32[32,64], index: 4, kind: input, shape index: {}]
  %s5 = inlined_call_operand.vmem [shape: f32[1,64], index: 5, kind: input, shape index: {}]
  %s6 = inlined_call_operand.vmem [shape: f32[32,32], index: 6, kind: input, shape index: {}]
  %s7 = inlined_call_operand.vmem [shape: f32[1,32], index: 7, kind: input, shape index: {}]
  %s8 = inlined_call_operand.vmem [shape: f32[32,16], index: 8, kind: input, shape index: {}]
  %s9 = inlined_call_operand.vmem [shape: f32[1,16], index: 9, kind: input, shape index: {}]
  %s10 = inlined_call_operand.vmem [shape: f32[32,12], index: 10, kind: input, shape index: {}]
  %s11 = inlined_call_operand.vmem [shape: f32[1,12], index: 11, kind: input, shape index: {}]
  %s12 = inlined_call_operand.vmem [shape: f32[1,12], index: 12, kind: input, shape index: {}]
  %s13 = inlined_call_operand.vmem [shape: f32[1,12], index: 13, kind: input, shape index: {}]
  %s14 = inlined_call_operand.hbm [shape: f32[16,16], index: 14, kind: output, shape index: {0}]
  %s15 = inlined_call_operand.vmem [shape: f32[16,12], index: 15, kind: output, shape index: {1}]
  %16 = xla_tuple %s14, %s15
  %s17 = sld [smem:[#allocation0]]
  $region74: #{_encode.5} parent=0
    _
  %s19 = ssub.s32 1, %s17
  %s20 = scalar_select 0, %s19, %s17
  $region1: #{_encode.5} parent=0
    #allocation2 [shape = 'u8[8192]{0}', space=vmem, size = 0x2000, scoped, tag = 'output window, operand 0, single buffered']
    #allocation3 [shape = 's32[1]{0}', space=sflag, size = 0x4, scoped, tag = 'scoped memory for _encode.5']
    %21 = vsyncpa [#allocation3], 0
    // Predicated region
    $region2: #{_encode.5} parent=1 // pred_check
      _
    $region3: #{_encode.5} parent=1 // pred_check_branch
      %23 = sbr.rel (0) target = $region5
    $region4: #{_encode.5} parent=1 // pred_region
      _
    $region5: #{_encode.5} parent=1 // pred_fallthru
      _
    // Predicated region
    $region6: #{_encode.5} parent=1 // pred_check
      _
    $region7: #{_encode.5} parent=1 // pred_check_branch
      %25 = sbr.rel (0) target = $region9
    $region8: #{_encode.5} parent=1 // pred_region
      _
    $region9: #{_encode.5} parent=1 // pred_fallthru
      _
    // Predicated region
    $region10: #{_encode.5} parent=1 // pred_check
      _
    $region11: #{_encode.5} parent=1 // pred_check_branch
      %27 = sbr.rel (0) target = $region13
    $region12: #{_encode.5} parent=1 // pred_region
      _
    $region13: #{_encode.5} parent=1 // pred_fallthru
      _
    // Predicated region
    $region14: #{_encode.5} parent=1 // pred_check
      _
    $region15: #{_encode.5} parent=1 // pred_check_branch
      %29 = sbr.rel (0) target = $region17
    $region16: #{_encode.5} parent=1 // pred_region
      _
    $region17: #{_encode.5} parent=1 // pred_fallthru
      _
    // Predicated region
    $region18: #{_encode.5} parent=1 // pred_check
      _
    $region19: #{_encode.5} parent=1 // pred_check_branch
      %31 = sbr.rel (0) target = $region21
    $region20: #{_encode.5} parent=1 // pred_region
      _
    $region21: #{_encode.5} parent=1 // pred_fallthru
      _
    // Predicated region
    $region22: #{_encode.5} parent=1 // pred_check
      _
    $region23: #{_encode.5} parent=1 // pred_check_branch
      %33 = sbr.rel (0) target = $region25
    $region24: #{_encode.5} parent=1 // pred_region
      _
    $region25: #{_encode.5} parent=1 // pred_fallthru
      _
    // Predicated region
    $region26: #{_encode.5} parent=1 // pred_check
      _
    $region27: #{_encode.5} parent=1 // pred_check_branch
      %35 = sbr.rel (0) target = $region29
    $region28: #{_encode.5} parent=1 // pred_region
      _
    $region29: #{_encode.5} parent=1 // pred_fallthru
      _
    // Predicated region
    $region30: #{_encode.5} parent=1 // pred_check
      _
    $region31: #{_encode.5} parent=1 // pred_check_branch
      %37 = sbr.rel (0) target = $region33
    $region32: #{_encode.5} parent=1 // pred_region
      _
    $region33: #{_encode.5} parent=1 // pred_fallthru
      _
    // Predicated region
    $region34: #{_encode.5} parent=1 // pred_check
      _
    $region35: #{_encode.5} parent=1 // pred_check_branch
      %39 = sbr.rel (0) target = $region37
    $region36: #{_encode.5} parent=1 // pred_region
      _
    $region37: #{_encode.5} parent=1 // pred_fallthru
      _
    // Predicated region
    $region38: #{_encode.5} parent=1 // pred_check
      _
    $region39: #{_encode.5} parent=1 // pred_check_branch
      %41 = sbr.rel (0) target = $region41
    $region40: #{_encode.5} parent=1 // pred_region
      _
    $region41: #{_encode.5} parent=1 // pred_fallthru
      _
    // Predicated region
    $region42: #{_encode.5} parent=1 // pred_check
      _
    $region43: #{_encode.5} parent=1 // pred_check_branch
      %43 = sbr.rel (0) target = $region45
    $region44: #{_encode.5} parent=1 // pred_region
      _
    $region45: #{_encode.5} parent=1 // pred_fallthru
      _
    // Predicated region
    $region46: #{_encode.5} parent=1 // pred_check
      _
    $region47: #{_encode.5} parent=1 // pred_check_branch
      %45 = sbr.rel (0) target = $region49
    $region48: #{_encode.5} parent=1 // pred_region
      _
    $region49: #{_encode.5} parent=1 // pred_fallthru
      _
    // Predicated region
    $region50: #{_encode.5} parent=1 // pred_check
      _
    $region51: #{_encode.5} parent=1 // pred_check_branch
      %47 = sbr.rel (0) target = $region53
    $region52: #{_encode.5} parent=1 // pred_region
      _
    $region53: #{_encode.5} parent=1 // pred_fallthru
      _
    // Predicated region
    $region54: #{_encode.5} parent=1 // pred_check
      _
    $region55: #{_encode.5} parent=1 // pred_check_branch
      %49 = sbr.rel (0) target = $region57
    $region56: #{_encode.5} parent=1 // pred_region
      _
    $region57: #{_encode.5} parent=1 // pred_fallthru
      _
    %v50 = vld [vmem:[%s0] sm:$0xff]
    %v51 = vld [vmem:[%s0 + $0x8] sm:$0xff]
    %v52 = vld [vmem:[%s2] sm:$0xff]
    %v53 = vld [vmem:[%s2 + $0x8] sm:$0xff]
    %v54 = vld [vmem:[%s2 + $0x10] sm:$0xff]
    %v55 = vld [vmem:[%s2 + $0x18] sm:$0xff]
    %v56 = vld [vmem:[%s3] sm:$0x1]
    %v58 = vlaneseq
    %v59 = vshrl.u32 %v58, 7
    %v60 = vsub.s32 0, %v59
    %v61 = vrot.slane %v56, %v60
    %vm63 = vcmask 261120
    %v65 = vsel %vm63, %v50, 0
    %v68 = vsel %vm63, %v51, 0
    %70 = vmatprep.subr.mxu0 0.0
    %71 = vmatpush1.msra.mxu0 %v52
    %72 = vmatprep.subr.mxu0 0.0
    %73 = vmatpush1.msra.mxu0 %v53
    %74 = vmatprep.subr.mxu0 0.0
    %75 = vmatpush1.msra.mxu0 %v54
    %76 = vmatprep.subr.mxu0 0.0
    %77 = vmatpush1.msra.mxu0 %v55
    %78 = vmatprep.subr.mxu0 0.0
    %79 = vmatpush1.msra.mxu0 0.0
    %80 = vmatprep.subr.mxu0 0.0
    %81 = vmatpush1.msra.mxu0 0.0
    %82 = vmatprep.subr.mxu0 0.0
    %83 = vmatpush1.msra.mxu0 0.0
    %84 = vmatprep.subr.mxu0 0.0
    %85 = vmatpush1.msra.mxu0 0.0
    %86 = vmatprep.subr.mxu0 0.0
    %87 = vmatpush1.msra.mxu0 0.0
    %88 = vmatprep.subr.mxu0 0.0
    %89 = vmatpush1.msra.mxu0 0.0
    %90 = vmatprep.subr.mxu0 0.0
    %91 = vmatpush1.msra.mxu0 0.0
    %92 = vmatprep.subr.mxu0 0.0
    %93 = vmatpush1.msra.mxu0 0.0
    %94 = vmatprep.subr.mxu0 0.0
    %95 = vmatpush1.msra.mxu0 0.0
    %96 = vmatprep.subr.mxu0 0.0
    %97 = vmatpush1.msra.mxu0 0.0
    %98 = vmatprep.subr.mxu0 0.0
    %99 = vmatpush1.msra.mxu0 0.0
    %100 = vmatprep.subr.mxu0 0.0
    %101 = vmatpush1.msra.mxu0 0.0
    %102 = vmatprep.subr.mxu0 0.0
    %103 = vmatpush1.msra.mxu0 0.0
    %104 = vmatprep.subr.mxu0 0.0
    %105 = vmatpush1.msra.mxu0 0.0
    %106 = vmatprep.subr.mxu0 0.0
    %107 = vmatpush1.msra.mxu0 0.0
    %108 = vmatprep.subr.mxu0 0.0
    %109 = vmatpush1.msra.mxu0 0.0
    %110 = vmatprep.subr.mxu0 0.0
    %111 = vmatpush1.msra.mxu0 0.0
    %112 = vmatprep.subr.mxu0 0.0
    %113 = vmatpush1.msra.mxu0 0.0
    %114 = vmatprep.subr.mxu0 0.0
    %115 = vmatpush1.msra.mxu0 0.0
    %116 = vmatprep.subr.mxu0 0.0
    %117 = vmatpush1.msra.mxu0 0.0
    %118 = vmatprep.subr.mxu0 0.0
    %119 = vmatpush1.msra.mxu0 0.0
    %120 = vmatprep.subr.mxu0 0.0
    %121 = vmatpush1.msra.mxu0 0.0
    %122 = vmatprep.subr.mxu0 0.0
    %123 = vmatpush1.msra.mxu0 0.0
    %124 = vmatprep.subr.mxu0 0.0
    %125 = vmatpush1.msra.mxu0 0.0
    %126 = vmatprep.subr.mxu0 0.0
    %127 = vmatpush1.msra.mxu0 0.0
    %128 = vmatprep.subr.mxu0 0.0
    %129 = vmatpush1.msra.mxu0 0.0
    %130 = vmatprep.subr.mxu0 0.0
    %131 = vmatpush1.msra.mxu0 0.0
    %132 = vmatprep.subr.mxu0 0.0
    %133 = vmatpush1.msra.mxu0 0.0
    %134 = vmatprep.mubr.f32.mxu0 0.0
    %135 = vmatmul.mubr.f32.gmra.mrb[0].mxu0 %v65
    %v136 = vpop.f32.mrb[0].mxu0
    %v137 = vadd.f32 %v61, %v136
    %v138 = vpop.f32.mrb[0].mxu0
    %139 = vmatprep.mubr.f32.mxu0 0.0
    %140 = vmatmul.mubr.f32.gmra.mrb[0].mxu0 %v68
    %v141 = vpop.f32.mrb[0].mxu0
    %v142 = vadd.f32 %v61, %v141
    %v143 = vpop.f32.mrb[0].mxu0
    %144 = vdwg.mxu0
    %v145 = vld [vmem:[%s1] sm:$0xff]
    %v146 = vld [vmem:[%s1 + $0x8] sm:$0xff]
    %v147 = vld [vmem:[%s4] sm:$0xff]
    %v148 = vld [vmem:[%s4 + $0x8] sm:$0xff]
    %v149 = vld [vmem:[%s4 + $0x10] sm:$0xff]
    %v150 = vld [vmem:[%s4 + $0x18] sm:$0xff]
    %v151 = vld [vmem:[%s5] sm:$0x1]
    %v153 = vlaneseq
    %v154 = vshrl.u32 %v153, 7
    %v155 = vsub.s32 0, %v154
    %v156 = vrot.slane %v151, %v155
    %v159 = vsel %vm63, %v145, 0
    %v162 = vsel %vm63, %v146, 0
    %164 = vmatprep.subr.mxu0 0.0
    %165 = vmatpush1.msra.mxu0 %v147
    %166 = vmatprep.subr.mxu0 0.0
    %167 = vmatpush1.msra.mxu0 %v148
    %168 = vmatprep.subr.mxu0 0.0
    %169 = vmatpush1.msra.mxu0 %v149
    %170 = vmatprep.subr.mxu0 0.0
    %171 = vmatpush1.msra.mxu0 %v150
    %172 = vmatprep.subr.mxu0 0.0
    %173 = vmatpush1.msra.mxu0 0.0
    %174 = vmatprep.subr.mxu0 0.0
    %175 = vmatpush1.msra.mxu0 0.0
    %176 = vmatprep.subr.mxu0 0.0
    %177 = vmatpush1.msra.mxu0 0.0
    %178 = vmatprep.subr.mxu0 0.0
    %179 = vmatpush1.msra.mxu0 0.0
    %180 = vmatprep.subr.mxu0 0.0
    %181 = vmatpush1.msra.mxu0 0.0
    %182 = vmatprep.subr.mxu0 0.0
    %183 = vmatpush1.msra.mxu0 0.0
    %184 = vmatprep.subr.mxu0 0.0
    %185 = vmatpush1.msra.mxu0 0.0
    %186 = vmatprep.subr.mxu0 0.0
    %187 = vmatpush1.msra.mxu0 0.0
    %188 = vmatprep.subr.mxu0 0.0
    %189 = vmatpush1.msra.mxu0 0.0
    %190 = vmatprep.subr.mxu0 0.0
    %191 = vmatpush1.msra.mxu0 0.0
    %192 = vmatprep.subr.mxu0 0.0
    %193 = vmatpush1.msra.mxu0 0.0
    %194 = vmatprep.subr.mxu0 0.0
    %195 = vmatpush1.msra.mxu0 0.0
    %196 = vmatprep.subr.mxu0 0.0
    %197 = vmatpush1.msra.mxu0 0.0
    %198 = vmatprep.subr.mxu0 0.0
    %199 = vmatpush1.msra.mxu0 0.0
    %200 = vmatprep.subr.mxu0 0.0
    %201 = vmatpush1.msra.mxu0 0.0
    %202 = vmatprep.subr.mxu0 0.0
    %203 = vmatpush1.msra.mxu0 0.0
    %204 = vmatprep.subr.mxu0 0.0
    %205 = vmatpush1.msra.mxu0 0.0
    %206 = vmatprep.subr.mxu0 0.0
    %207 = vmatpush1.msra.mxu0 0.0
    %208 = vmatprep.subr.mxu0 0.0
    %209 = vmatpush1.msra.mxu0 0.0
    %210 = vmatprep.subr.mxu0 0.0
    %211 = vmatpush1.msra.mxu0 0.0
    %212 = vmatprep.subr.mxu0 0.0
    %213 = vmatpush1.msra.mxu0 0.0
    %214 = vmatprep.subr.mxu0 0.0
    %215 = vmatpush1.msra.mxu0 0.0
    %216 = vmatprep.subr.mxu0 0.0
    %217 = vmatpush1.msra.mxu0 0.0
    %218 = vmatprep.subr.mxu0 0.0
    %219 = vmatpush1.msra.mxu0 0.0
    %220 = vmatprep.subr.mxu0 0.0
    %221 = vmatpush1.msra.mxu0 0.0
    %222 = vmatprep.subr.mxu0 0.0
    %223 = vmatpush1.msra.mxu0 0.0
    %224 = vmatprep.subr.mxu0 0.0
    %225 = vmatpush1.msra.mxu0 0.0
    %226 = vmatprep.subr.mxu0 0.0
    %227 = vmatpush1.msra.mxu0 0.0
    %228 = vmatprep.mubr.f32.mxu0 0.0
    %229 = vmatmul.mubr.f32.gmra.mrb[0].mxu0 %v159
    %v230 = vpop.f32.mrb[0].mxu0
    %v231 = vadd.f32 %v156, %v230
    %v232 = vpop.f32.mrb[0].mxu0
    %233 = vmatprep.mubr.f32.mxu0 0.0
    %234 = vmatmul.mubr.f32.gmra.mrb[0].mxu0 %v162
    %v235 = vpop.f32.mrb[0].mxu0
    %v236 = vadd.f32 %v156, %v235
    %v237 = vpop.f32.mrb[0].mxu0
    %238 = vdwg.mxu0
    %v239 = vld [vmem:[%s6] sm:$0xff]
    %v240 = vld [vmem:[%s6 + $0x8] sm:$0xff]
    %v241 = vld [vmem:[%s6 + $0x10] sm:$0xff]
    %v242 = vld [vmem:[%s6 + $0x18] sm:$0xff]
    %v243 = vld [vmem:[%s7] sm:$0x1]
    %vm244 = vcmask 64512
    %v246 = vsel %vm244, %v137, 0
    %v249 = vsel %vm244, %v231, 0
    %251 = vmatprep.subr.mxu0 0.0
    %252 = vmatpush1.xpose.msra.mxu0 %v249
    %253 = vmatprep.subr.mxu0 0.0
    %254 = vmatpush1.xpose.msra.mxu0 0.0
    %255 = vmatprep.subr.mxu0 0.0
    %256 = vmatpush1.xpose.msra.mxu0 0.0
    %257 = vmatprep.subr.mxu0 0.0
    %258 = vmatpush1.xpose.msra.mxu0 0.0
    %259 = vmatprep.subr.mxu0 0.0
    %260 = vmatpush1.xpose.msra.mxu0 0.0
    %261 = vmatprep.subr.mxu0 0.0
    %262 = vmatpush1.xpose.msra.mxu0 0.0
    %263 = vmatprep.subr.mxu0 0.0
    %264 = vmatpush1.xpose.msra.mxu0 0.0
    %265 = vmatprep.subr.mxu0 0.0
    %266 = vmatpush1.xpose.msra.mxu0 0.0
    %267 = vmatprep.subr.mxu0 0.0
    %268 = vmatpush1.xpose.msra.mxu0 0.0
    %269 = vmatprep.subr.mxu0 0.0
    %270 = vmatpush1.xpose.msra.mxu0 0.0
    %271 = vmatprep.subr.mxu0 0.0
    %272 = vmatpush1.xpose.msra.mxu0 0.0
    %273 = vmatprep.subr.mxu0 0.0
    %274 = vmatpush1.xpose.msra.mxu0 0.0
    %275 = vmatprep.subr.mxu0 0.0
    %276 = vmatpush1.xpose.msra.mxu0 0.0
    %277 = vmatprep.subr.mxu0 0.0
    %278 = vmatpush1.xpose.msra.mxu0 0.0
    %279 = vmatprep.subr.mxu0 0.0
    %280 = vmatpush1.xpose.msra.mxu0 0.0
    %281 = vmatprep.subr.mxu0 0.0
    %282 = vmatpush1.xpose.msra.mxu0 0.0
    %283 = vmatprep.subr.mxu0 0.0
    %284 = vmatpush1.xpose.msra.mxu0 0.0
    %285 = vmatprep.subr.mxu0 0.0
    %286 = vmatpush1.xpose.msra.mxu0 0.0
    %287 = vmatprep.subr.mxu0 0.0
    %288 = vmatpush1.xpose.msra.mxu0 0.0
    %289 = vmatprep.subr.mxu0 0.0
    %290 = vmatpush1.xpose.msra.mxu0 0.0
    %291 = vmatprep.subr.mxu0 0.0
    %292 = vmatpush1.xpose.msra.mxu0 0.0
    %293 = vmatprep.subr.mxu0 0.0
    %294 = vmatpush1.xpose.msra.mxu0 0.0
    %295 = vmatprep.subr.mxu0 0.0
    %296 = vmatpush1.xpose.msra.mxu0 0.0
    %297 = vmatprep.subr.mxu0 0.0
    %298 = vmatpush1.xpose.msra.mxu0 0.0
    %299 = vmatprep.subr.mxu0 0.0
    %300 = vmatpush1.xpose.msra.mxu0 0.0
    %301 = vmatprep.subr.mxu0 0.0
    %302 = vmatpush1.xpose.msra.mxu0 0.0
    %303 = vmatprep.subr.mxu0 0.0
    %304 = vmatpush1.xpose.msra.mxu0 0.0
    %305 = vmatprep.subr.mxu0 0.0
    %306 = vmatpush1.xpose.msra.mxu0 0.0
    %307 = vmatprep.subr.mxu0 0.0
    %308 = vmatpush1.xpose.msra.mxu0 0.0
    %309 = vmatprep.subr.mxu0 0.0
    %310 = vmatpush1.xpose.msra.mxu0 0.0
    %311 = vmatprep.subr.mxu0 0.0
    %312 = vmatpush1.xpose.msra.mxu0 0.0
    %313 = vmatprep.subr.mxu0 0.0
    %314 = vmatpush1.xpose.msra.mxu0 0.0
    %315 = vmatprep.mubr.f32.mxu0 0.0
    %316 = vmatmul.mubr.f32.gmra.mrb[0].mxu0 %v246
    %v317 = vpop.f32.mrb[0].mxu0
    %v318 = vadd.f32 0.0, %v317
    %v319 = vpop.f32.mrb[0].mxu0
    %320 = vdwg.mxu0
    %v321 = vmul.f32 %v318, 0.35355338
    %v322 = vsel %vm244, %v321, -inf
    %323 = vmax.xlane.f32.xlu0 %v322
    %v324 = vpop.xlane.xlu0 %323
    %v325 = vsub.f32 %v321, %v324
    %v326 = vmul.f32 %v325, 1.442695
    %v327 = vpow.pop %v326
    %v328 = vsel %vm244, %v327, 0.0
    %329 = vadd.xlane.f32.xlu0 %v328
    %v330 = vpop.xlane.xlu0 %329
    %v331 = vrcp.pop %v330
    %v332 = vmul.f32 %v327, %v331
    %333 = vrot.lane.b32.xlu0 %v231, 96
    %v334 = vpop.permute.xlu0 %333
    %v337 = vsel %vm244, %v332, 0
    %339 = vmatprep.subr.mxu0 0.0
    %340 = vmatpush1.msra.mxu0 %v334
    %341 = vmatprep.subr.mxu0 0.0
    %342 = vmatpush1.msra.mxu0 0.0
    %343 = vmatprep.subr.mxu0 0.0
    %344 = vmatpush1.msra.mxu0 0.0
    %345 = vmatprep.subr.mxu0 0.0
    %346 = vmatpush1.msra.mxu0 0.0
    %347 = vmatprep.subr.mxu0 0.0
    %348 = vmatpush1.msra.mxu0 0.0
    %349 = vmatprep.subr.mxu0 0.0
    %350 = vmatpush1.msra.mxu0 0.0
    %351 = vmatprep.subr.mxu0 0.0
    %352 = vmatpush1.msra.mxu0 0.0
    %353 = vmatprep.subr.mxu0 0.0
    %354 = vmatpush1.msra.mxu0 0.0
    %355 = vmatprep.subr.mxu0 0.0
    %356 = vmatpush1.msra.mxu0 0.0
    %357 = vmatprep.subr.mxu0 0.0
    %358 = vmatpush1.msra.mxu0 0.0
    %359 = vmatprep.subr.mxu0 0.0
    %360 = vmatpush1.msra.mxu0 0.0
    %361 = vmatprep.subr.mxu0 0.0
    %362 = vmatpush1.msra.mxu0 0.0
    %363 = vmatprep.subr.mxu0 0.0
    %364 = vmatpush1.msra.mxu0 0.0
    %365 = vmatprep.subr.mxu0 0.0
    %366 = vmatpush1.msra.mxu0 0.0
    %367 = vmatprep.subr.mxu0 0.0
    %368 = vmatpush1.msra.mxu0 0.0
    %369 = vmatprep.subr.mxu0 0.0
    %370 = vmatpush1.msra.mxu0 0.0
    %371 = vmatprep.subr.mxu0 0.0
    %372 = vmatpush1.msra.mxu0 0.0
    %373 = vmatprep.subr.mxu0 0.0
    %374 = vmatpush1.msra.mxu0 0.0
    %375 = vmatprep.subr.mxu0 0.0
    %376 = vmatpush1.msra.mxu0 0.0
    %377 = vmatprep.subr.mxu0 0.0
    %378 = vmatpush1.msra.mxu0 0.0
    %379 = vmatprep.subr.mxu0 0.0
    %380 = vmatpush1.msra.mxu0 0.0
    %381 = vmatprep.subr.mxu0 0.0
    %382 = vmatpush1.msra.mxu0 0.0
    %383 = vmatprep.subr.mxu0 0.0
    %384 = vmatpush1.msra.mxu0 0.0
    %385 = vmatprep.subr.mxu0 0.0
    %386 = vmatpush1.msra.mxu0 0.0
    %387 = vmatprep.subr.mxu0 0.0
    %388 = vmatpush1.msra.mxu0 0.0
    %389 = vmatprep.subr.mxu0 0.0
    %390 = vmatpush1.msra.mxu0 0.0
    %391 = vmatprep.subr.mxu0 0.0
    %392 = vmatpush1.msra.mxu0 0.0
    %393 = vmatprep.subr.mxu0 0.0
    %394 = vmatpush1.msra.mxu0 0.0
    %395 = vmatprep.subr.mxu0 0.0
    %396 = vmatpush1.msra.mxu0 0.0
    %397 = vmatprep.subr.mxu0 0.0
    %398 = vmatpush1.msra.mxu0 0.0
    %399 = vmatprep.subr.mxu0 0.0
    %400 = vmatpush1.msra.mxu0 0.0
    %401 = vmatprep.subr.mxu0 0.0
    %402 = vmatpush1.msra.mxu0 0.0
    %403 = vmatprep.mubr.f32.mxu0 0.0
    %404 = vmatmul.mubr.f32.gmra.mrb[0].mxu0 %v337
    %v405 = vpop.f32.mrb[0].mxu0
    %v406 = vadd.f32 0.0, %v405
    %v407 = vpop.f32.mrb[0].mxu0
    %408 = vdwg.mxu0
    %409 = vrot.lane.b32.xlu0 %v137, 120
    %v410 = vpop.permute.xlu0 %409
    %411 = vrot.lane.b32.xlu0 %v231, 120
    %v412 = vpop.permute.xlu0 %411
    %v413 = vsel %vm244, %v410, 0
    %v415 = vsel %vm244, %v412, 0
    %417 = vmatprep.subr.mxu0 0.0
    %418 = vmatpush1.xpose.msra.mxu0 %v415
    %419 = vmatprep.subr.mxu0 0.0
    %420 = vmatpush1.xpose.msra.mxu0 0.0
    %421 = vmatprep.subr.mxu0 0.0
    %422 = vmatpush1.xpose.msra.mxu0 0.0
    %423 = vmatprep.subr.mxu0 0.0
    %424 = vmatpush1.xpose.msra.mxu0 0.0
    %425 = vmatprep.subr.mxu0 0.0
    %426 = vmatpush1.xpose.msra.mxu0 0.0
    %427 = vmatprep.subr.mxu0 0.0
    %428 = vmatpush1.xpose.msra.mxu0 0.0
    %429 = vmatprep.subr.mxu0 0.0
    %430 = vmatpush1.xpose.msra.mxu0 0.0
    %431 = vmatprep.subr.mxu0 0.0
    %432 = vmatpush1.xpose.msra.mxu0 0.0
    %433 = vmatprep.subr.mxu0 0.0
    %434 = vmatpush1.xpose.msra.mxu0 0.0
    %435 = vmatprep.subr.mxu0 0.0
    %436 = vmatpush1.xpose.msra.mxu0 0.0
    %437 = vmatprep.subr.mxu0 0.0
    %438 = vmatpush1.xpose.msra.mxu0 0.0
    %439 = vmatprep.subr.mxu0 0.0
    %440 = vmatpush1.xpose.msra.mxu0 0.0
    %441 = vmatprep.subr.mxu0 0.0
    %442 = vmatpush1.xpose.msra.mxu0 0.0
    %443 = vmatprep.subr.mxu0 0.0
    %444 = vmatpush1.xpose.msra.mxu0 0.0
    %445 = vmatprep.subr.mxu0 0.0
    %446 = vmatpush1.xpose.msra.mxu0 0.0
    %447 = vmatprep.subr.mxu0 0.0
    %448 = vmatpush1.xpose.msra.mxu0 0.0
    %449 = vmatprep.subr.mxu0 0.0
    %450 = vmatpush1.xpose.msra.mxu0 0.0
    %451 = vmatprep.subr.mxu0 0.0
    %452 = vmatpush1.xpose.msra.mxu0 0.0
    %453 = vmatprep.subr.mxu0 0.0
    %454 = vmatpush1.xpose.msra.mxu0 0.0
    %455 = vmatprep.subr.mxu0 0.0
    %456 = vmatpush1.xpose.msra.mxu0 0.0
    %457 = vmatprep.subr.mxu0 0.0
    %458 = vmatpush1.xpose.msra.mxu0 0.0
    %459 = vmatprep.subr.mxu0 0.0
    %460 = vmatpush1.xpose.msra.mxu0 0.0
    %461 = vmatprep.subr.mxu0 0.0
    %462 = vmatpush1.xpose.msra.mxu0 0.0
    %463 = vmatprep.subr.mxu0 0.0
    %464 = vmatpush1.xpose.msra.mxu0 0.0
    %465 = vmatprep.subr.mxu0 0.0
    %466 = vmatpush1.xpose.msra.mxu0 0.0
    %467 = vmatprep.subr.mxu0 0.0
    %468 = vmatpush1.xpose.msra.mxu0 0.0
    %469 = vmatprep.subr.mxu0 0.0
    %470 = vmatpush1.xpose.msra.mxu0 0.0
    %471 = vmatprep.subr.mxu0 0.0
    %472 = vmatpush1.xpose.msra.mxu0 0.0
    %473 = vmatprep.subr.mxu0 0.0
    %474 = vmatpush1.xpose.msra.mxu0 0.0
    %475 = vmatprep.subr.mxu0 0.0
    %476 = vmatpush1.xpose.msra.mxu0 0.0
    %477 = vmatprep.subr.mxu0 0.0
    %478 = vmatpush1.xpose.msra.mxu0 0.0
    %479 = vmatprep.subr.mxu0 0.0
    %480 = vmatpush1.xpose.msra.mxu0 0.0
    %481 = vmatprep.mubr.f32.mxu0 0.0
    %482 = vmatmul.mubr.f32.gmra.mrb[0].mxu0 %v413
    %v483 = vpop.f32.mrb[0].mxu0
    %v484 = vadd.f32 0.0, %v483
    %v485 = vpop.f32.mrb[0].mxu0
    %486 = vdwg.mxu0
    %v487 = vmul.f32 %v484, 0.35355338
    %v488 = vsel %vm244, %v487, -inf
    %489 = vmax.xlane.f32.xlu0 %v488
    %v490 = vpop.xlane.xlu0 %489
    %v491 = vsub.f32 %v487, %v490
    %v492 = vmul.f32 %v491, 1.442695
    %v493 = vpow.pop %v492
    %v494 = vsel %vm244, %v493, 0.0
    %495 = vadd.xlane.f32.xlu0 %v494
    %v496 = vpop.xlane.xlu0 %495
    %v497 = vrcp.pop %v496
    %v498 = vmul.f32 %v493, %v497
    %499 = vrot.lane.b32.xlu0 %v231, 88
    %v500 = vpop.permute.xlu0 %499
    %v503 = vsel %vm244, %v498, 0
    %505 = vmatprep.subr.mxu0 0.0
    %506 = vmatpush1.msra.mxu0 %v500
    %507 = vmatprep.subr.mxu0 0.0
    %508 = vmatpush1.msra.mxu0 0.0
    %509 = vmatprep.subr.mxu0 0.0
    %510 = vmatpush1.msra.mxu0 0.0
    %511 = vmatprep.subr.mxu0 0.0
    %512 = vmatpush1.msra.mxu0 0.0
    %513 = vmatprep.subr.mxu0 0.0
    %514 = vmatpush1.msra.mxu0 0.0
    %515 = vmatprep.subr.mxu0 0.0
    %516 = vmatpush1.msra.mxu0 0.0
    %517 = vmatprep.subr.mxu0 0.0
    %518 = vmatpush1.msra.mxu0 0.0
    %519 = vmatprep.subr.mxu0 0.0
    %520 = vmatpush1.msra.mxu0 0.0
    %521 = vmatprep.subr.mxu0 0.0
    %522 = vmatpush1.msra.mxu0 0.0
    %523 = vmatprep.subr.mxu0 0.0
    %524 = vmatpush1.msra.mxu0 0.0
    %525 = vmatprep.subr.mxu0 0.0
    %526 = vmatpush1.msra.mxu0 0.0
    %527 = vmatprep.subr.mxu0 0.0
    %528 = vmatpush1.msra.mxu0 0.0
    %529 = vmatprep.subr.mxu0 0.0
    %530 = vmatpush1.msra.mxu0 0.0
    %531 = vmatprep.subr.mxu0 0.0
    %532 = vmatpush1.msra.mxu0 0.0
    %533 = vmatprep.subr.mxu0 0.0
    %534 = vmatpush1.msra.mxu0 0.0
    %535 = vmatprep.subr.mxu0 0.0
    %536 = vmatpush1.msra.mxu0 0.0
    %537 = vmatprep.subr.mxu0 0.0
    %538 = vmatpush1.msra.mxu0 0.0
    %539 = vmatprep.subr.mxu0 0.0
    %540 = vmatpush1.msra.mxu0 0.0
    %541 = vmatprep.subr.mxu0 0.0
    %542 = vmatpush1.msra.mxu0 0.0
    %543 = vmatprep.subr.mxu0 0.0
    %544 = vmatpush1.msra.mxu0 0.0
    %545 = vmatprep.subr.mxu0 0.0
    %546 = vmatpush1.msra.mxu0 0.0
    %547 = vmatprep.subr.mxu0 0.0
    %548 = vmatpush1.msra.mxu0 0.0
    %549 = vmatprep.subr.mxu0 0.0
    %550 = vmatpush1.msra.mxu0 0.0
    %551 = vmatprep.subr.mxu0 0.0
    %552 = vmatpush1.msra.mxu0 0.0
    %553 = vmatprep.subr.mxu0 0.0
    %554 = vmatpush1.msra.mxu0 0.0
    %555 = vmatprep.subr.mxu0 0.0
    %556 = vmatpush1.msra.mxu0 0.0
    %557 = vmatprep.subr.mxu0 0.0
    %558 = vmatpush1.msra.mxu0 0.0
    %559 = vmatprep.subr.mxu0 0.0
    %560 = vmatpush1.msra.mxu0 0.0
    %561 = vmatprep.subr.mxu0 0.0
    %562 = vmatpush1.msra.mxu0 0.0
    %563 = vmatprep.subr.mxu0 0.0
    %564 = vmatpush1.msra.mxu0 0.0
    %565 = vmatprep.subr.mxu0 0.0
    %566 = vmatpush1.msra.mxu0 0.0
    %567 = vmatprep.subr.mxu0 0.0
    %568 = vmatpush1.msra.mxu0 0.0
    %569 = vmatprep.mubr.f32.mxu0 0.0
    %570 = vmatmul.mubr.f32.gmra.mrb[0].mxu0 %v503
    %v571 = vpop.f32.mrb[0].mxu0
    %v572 = vadd.f32 0.0, %v571
    %v573 = vpop.f32.mrb[0].mxu0
    %574 = vdwg.mxu0
    %575 = vrot.lane.b32.xlu0 %v137, 112
    %v576 = vpop.permute.xlu0 %575
    %577 = vrot.lane.b32.xlu0 %v231, 112
    %v578 = vpop.permute.xlu0 %577
    %v579 = vsel %vm244, %v576, 0
    %v581 = vsel %vm244, %v578, 0
    %583 = vmatprep.subr.mxu0 0.0
    %584 = vmatpush1.xpose.msra.mxu0 %v581
    %585 = vmatprep.subr.mxu0 0.0
    %586 = vmatpush1.xpose.msra.mxu0 0.0
    %587 = vmatprep.subr.mxu0 0.0
    %588 = vmatpush1.xpose.msra.mxu0 0.0
    %589 = vmatprep.subr.mxu0 0.0
    %590 = vmatpush1.xpose.msra.mxu0 0.0
    %591 = vmatprep.subr.mxu0 0.0
    %592 = vmatpush1.xpose.msra.mxu0 0.0
    %593 = vmatprep.subr.mxu0 0.0
    %594 = vmatpush1.xpose.msra.mxu0 0.0
    %595 = vmatprep.subr.mxu0 0.0
    %596 = vmatpush1.xpose.msra.mxu0 0.0
    %597 = vmatprep.subr.mxu0 0.0
    %598 = vmatpush1.xpose.msra.mxu0 0.0
    %599 = vmatprep.subr.mxu0 0.0
    %600 = vmatpush1.xpose.msra.mxu0 0.0
    %601 = vmatprep.subr.mxu0 0.0
    %602 = vmatpush1.xpose.msra.mxu0 0.0
    %603 = vmatprep.subr.mxu0 0.0
    %604 = vmatpush1.xpose.msra.mxu0 0.0
    %605 = vmatprep.subr.mxu0 0.0
    %606 = vmatpush1.xpose.msra.mxu0 0.0
    %607 = vmatprep.subr.mxu0 0.0
    %608 = vmatpush1.xpose.msra.mxu0 0.0
    %609 = vmatprep.subr.mxu0 0.0
    %610 = vmatpush1.xpose.msra.mxu0 0.0
    %611 = vmatprep.subr.mxu0 0.0
    %612 = vmatpush1.xpose.msra.mxu0 0.0
    %613 = vmatprep.subr.mxu0 0.0
    %614 = vmatpush1.xpose.msra.mxu0 0.0
    %615 = vmatprep.subr.mxu0 0.0
    %616 = vmatpush1.xpose.msra.mxu0 0.0
    %617 = vmatprep.subr.mxu0 0.0
    %618 = vmatpush1.xpose.msra.mxu0 0.0
    %619 = vmatprep.subr.mxu0 0.0
    %620 = vmatpush1.xpose.msra.mxu0 0.0
    %621 = vmatprep.subr.mxu0 0.0
    %622 = vmatpush1.xpose.msra.mxu0 0.0
    %623 = vmatprep.subr.mxu0 0.0
    %624 = vmatpush1.xpose.msra.mxu0 0.0
    %625 = vmatprep.subr.mxu0 0.0
    %626 = vmatpush1.xpose.msra.mxu0 0.0
    %627 = vmatprep.subr.mxu0 0.0
    %628 = vmatpush1.xpose.msra.mxu0 0.0
    %629 = vmatprep.subr.mxu0 0.0
    %630 = vmatpush1.xpose.msra.mxu0 0.0
    %631 = vmatprep.subr.mxu0 0.0
    %632 = vmatpush1.xpose.msra.mxu0 0.0
    %633 = vmatprep.subr.mxu0 0.0
    %634 = vmatpush1.xpose.msra.mxu0 0.0
    %635 = vmatprep.subr.mxu0 0.0
    %636 = vmatpush1.xpose.msra.mxu0 0.0
    %637 = vmatprep.subr.mxu0 0.0
    %638 = vmatpush1.xpose.msra.mxu0 0.0
    %639 = vmatprep.subr.mxu0 0.0
    %640 = vmatpush1.xpose.msra.mxu0 0.0
    %641 = vmatprep.subr.mxu0 0.0
    %642 = vmatpush1.xpose.msra.mxu0 0.0
    %643 = vmatprep.subr.mxu0 0.0
    %644 = vmatpush1.xpose.msra.mxu0 0.0
    %645 = vmatprep.subr.mxu0 0.0
    %646 = vmatpush1.xpose.msra.mxu0 0.0
    %647 = vmatprep.mubr.f32.mxu0 0.0
    %648 = vmatmul.mubr.f32.gmra.mrb[0].mxu0 %v579
    %v649 = vpop.f32.mrb[0].mxu0
    %v650 = vadd.f32 0.0, %v649
    %v651 = vpop.f32.mrb[0].mxu0
    %652 = vdwg.mxu0
    %v653 = vmul.f32 %v650, 0.35355338
    %v654 = vsel %vm244, %v653, -inf
    %655 = vmax.xlane.f32.xlu0 %v654
    %v656 = vpop.xlane.xlu0 %655
    %v657 = vsub.f32 %v653, %v656
    %v658 = vmul.f32 %v657, 1.442695
    %v659 = vpow.pop %v658
    %v660 = vsel %vm244, %v659, 0.0
    %661 = vadd.xlane.f32.xlu0 %v660
    %v662 = vpop.xlane.xlu0 %661
    %v663 = vrcp.pop %v662
    %v664 = vmul.f32 %v659, %v663
    %665 = vrot.lane.b32.xlu0 %v231, 80
    %v666 = vpop.permute.xlu0 %665
    %v669 = vsel %vm244, %v664, 0
    %671 = vmatprep.subr.mxu0 0.0
    %672 = vmatpush1.msra.mxu0 %v666
    %673 = vmatprep.subr.mxu0 0.0
    %674 = vmatpush1.msra.mxu0 0.0
    %675 = vmatprep.subr.mxu0 0.0
    %676 = vmatpush1.msra.mxu0 0.0
    %677 = vmatprep.subr.mxu0 0.0
    %678 = vmatpush1.msra.mxu0 0.0
    %679 = vmatprep.subr.mxu0 0.0
    %680 = vmatpush1.msra.mxu0 0.0
    %681 = vmatprep.subr.mxu0 0.0
    %682 = vmatpush1.msra.mxu0 0.0
    %683 = vmatprep.subr.mxu0 0.0
    %684 = vmatpush1.msra.mxu0 0.0
    %685 = vmatprep.subr.mxu0 0.0
    %686 = vmatpush1.msra.mxu0 0.0
    %687 = vmatprep.subr.mxu0 0.0
    %688 = vmatpush1.msra.mxu0 0.0
    %689 = vmatprep.subr.mxu0 0.0
    %690 = vmatpush1.msra.mxu0 0.0
    %691 = vmatprep.subr.mxu0 0.0
    %692 = vmatpush1.msra.mxu0 0.0
    %693 = vmatprep.subr.mxu0 0.0
    %694 = vmatpush1.msra.mxu0 0.0
    %695 = vmatprep.subr.mxu0 0.0
    %696 = vmatpush1.msra.mxu0 0.0
    %697 = vmatprep.subr.mxu0 0.0
    %698 = vmatpush1.msra.mxu0 0.0
    %699 = vmatprep.subr.mxu0 0.0
    %700 = vmatpush1.msra.mxu0 0.0
    %701 = vmatprep.subr.mxu0 0.0
    %702 = vmatpush1.msra.mxu0 0.0
    %703 = vmatprep.subr.mxu0 0.0
    %704 = vmatpush1.msra.mxu0 0.0
    %705 = vmatprep.subr.mxu0 0.0
    %706 = vmatpush1.msra.mxu0 0.0
    %707 = vmatprep.subr.mxu0 0.0
    %708 = vmatpush1.msra.mxu0 0.0
    %709 = vmatprep.subr.mxu0 0.0
    %710 = vmatpush1.msra.mxu0 0.0
    %711 = vmatprep.subr.mxu0 0.0
    %712 = vmatpush1.msra.mxu0 0.0
    %713 = vmatprep.subr.mxu0 0.0
    %714 = vmatpush1.msra.mxu0 0.0
    %715 = vmatprep.subr.mxu0 0.0
    %716 = vmatpush1.msra.mxu0 0.0
    %717 = vmatprep.subr.mxu0 0.0
    %718 = vmatpush1.msra.mxu0 0.0
    %719 = vmatprep.subr.mxu0 0.0
    %720 = vmatpush1.msra.mxu0 0.0
    %721 = vmatprep.subr.mxu0 0.0
    %722 = vmatpush1.msra.mxu0 0.0
    %723 = vmatprep.subr.mxu0 0.0
    %724 = vmatpush1.msra.mxu0 0.0
    %725 = vmatprep.subr.mxu0 0.0
    %726 = vmatpush1.msra.mxu0 0.0
    %727 = vmatprep.subr.mxu0 0.0
    %728 = vmatpush1.msra.mxu0 0.0
    %729 = vmatprep.subr.mxu0 0.0
    %730 = vmatpush1.msra.mxu0 0.0
    %731 = vmatprep.subr.mxu0 0.0
    %732 = vmatpush1.msra.mxu0 0.0
    %733 = vmatprep.subr.mxu0 0.0
    %734 = vmatpush1.msra.mxu0 0.0
    %735 = vmatprep.mubr.f32.mxu0 0.0
    %736 = vmatmul.mubr.f32.gmra.mrb[0].mxu0 %v669
    %v737 = vpop.f32.mrb[0].mxu0
    %v738 = vadd.f32 0.0, %v737
    %v739 = vpop.f32.mrb[0].mxu0
    %740 = vdwg.mxu0
    %741 = vrot.lane.b32.xlu0 %v137, 104
    %v742 = vpop.permute.xlu0 %741
    %743 = vrot.lane.b32.xlu0 %v231, 104
    %v744 = vpop.permute.xlu0 %743
    %v745 = vsel %vm244, %v742, 0
    %v747 = vsel %vm244, %v744, 0
    %749 = vmatprep.subr.mxu0 0.0
    %750 = vmatpush1.xpose.msra.mxu0 %v747
    %751 = vmatprep.subr.mxu0 0.0
    %752 = vmatpush1.xpose.msra.mxu0 0.0
    %753 = vmatprep.subr.mxu0 0.0
    %754 = vmatpush1.xpose.msra.mxu0 0.0
    %755 = vmatprep.subr.mxu0 0.0
    %756 = vmatpush1.xpose.msra.mxu0 0.0
    %757 = vmatprep.subr.mxu0 0.0
    %758 = vmatpush1.xpose.msra.mxu0 0.0
    %759 = vmatprep.subr.mxu0 0.0
    %760 = vmatpush1.xpose.msra.mxu0 0.0
    %761 = vmatprep.subr.mxu0 0.0
    %762 = vmatpush1.xpose.msra.mxu0 0.0
    %763 = vmatprep.subr.mxu0 0.0
    %764 = vmatpush1.xpose.msra.mxu0 0.0
    %765 = vmatprep.subr.mxu0 0.0
    %766 = vmatpush1.xpose.msra.mxu0 0.0
    %767 = vmatprep.subr.mxu0 0.0
    %768 = vmatpush1.xpose.msra.mxu0 0.0
    %769 = vmatprep.subr.mxu0 0.0
    %770 = vmatpush1.xpose.msra.mxu0 0.0
    %771 = vmatprep.subr.mxu0 0.0
    %772 = vmatpush1.xpose.msra.mxu0 0.0
    %773 = vmatprep.subr.mxu0 0.0
    %774 = vmatpush1.xpose.msra.mxu0 0.0
    %775 = vmatprep.subr.mxu0 0.0
    %776 = vmatpush1.xpose.msra.mxu0 0.0
    %777 = vmatprep.subr.mxu0 0.0
    %778 = vmatpush1.xpose.msra.mxu0 0.0
    %779 = vmatprep.subr.mxu0 0.0
    %780 = vmatpush1.xpose.msra.mxu0 0.0
    %781 = vmatprep.subr.mxu0 0.0
    %782 = vmatpush1.xpose.msra.mxu0 0.0
    %783 = vmatprep.subr.mxu0 0.0
    %784 = vmatpush1.xpose.msra.mxu0 0.0
    %785 = vmatprep.subr.mxu0 0.0
    %786 = vmatpush1.xpose.msra.mxu0 0.0
    %787 = vmatprep.subr.mxu0 0.0
    %788 = vmatpush1.xpose.msra.mxu0 0.0
    %789 = vmatprep.subr.mxu0 0.0
    %790 = vmatpush1.xpose.msra.mxu0 0.0
    %791 = vmatprep.subr.mxu0 0.0
    %792 = vmatpush1.xpose.msra.mxu0 0.0
    %793 = vmatprep.subr.mxu0 0.0
    %794 = vmatpush1.xpose.msra.mxu0 0.0
    %795 = vmatprep.subr.mxu0 0.0
    %796 = vmatpush1.xpose.msra.mxu0 0.0
    %797 = vmatprep.subr.mxu0 0.0
    %798 = vmatpush1.xpose.msra.mxu0 0.0
    %799 = vmatprep.subr.mxu0 0.0
    %800 = vmatpush1.xpose.msra.mxu0 0.0
    %801 = vmatprep.subr.mxu0 0.0
    %802 = vmatpush1.xpose.msra.mxu0 0.0
    %803 = vmatprep.subr.mxu0 0.0
    %804 = vmatpush1.xpose.msra.mxu0 0.0
    %805 = vmatprep.subr.mxu0 0.0
    %806 = vmatpush1.xpose.msra.mxu0 0.0
    %807 = vmatprep.subr.mxu0 0.0
    %808 = vmatpush1.xpose.msra.mxu0 0.0
    %809 = vmatprep.subr.mxu0 0.0
    %810 = vmatpush1.xpose.msra.mxu0 0.0
    %811 = vmatprep.subr.mxu0 0.0
    %812 = vmatpush1.xpose.msra.mxu0 0.0
    %813 = vmatprep.mubr.f32.mxu0 0.0
    %814 = vmatmul.mubr.f32.gmra.mrb[0].mxu0 %v745
    %v815 = vpop.f32.mrb[0].mxu0
    %v816 = vadd.f32 0.0, %v815
    %v817 = vpop.f32.mrb[0].mxu0
    %818 = vdwg.mxu0
    %v819 = vmul.f32 %v816, 0.35355338
    %v820 = vsel %vm244, %v819, -inf
    %821 = vmax.xlane.f32.xlu0 %v820
    %v822 = vpop.xlane.xlu0 %821
    %v823 = vsub.f32 %v819, %v822
    %v824 = vmul.f32 %v823, 1.442695
    %v825 = vpow.pop %v824
    %v826 = vsel %vm244, %v825, 0.0
    %827 = vadd.xlane.f32.xlu0 %v826
    %v828 = vpop.xlane.xlu0 %827
    %v829 = vrcp.pop %v828
    %v830 = vmul.f32 %v825, %v829
    %831 = vrot.lane.b32.xlu0 %v231, 72
    %v832 = vpop.permute.xlu0 %831
    %v835 = vsel %vm244, %v830, 0
    %837 = vmatprep.subr.mxu0 0.0
    %838 = vmatpush1.msra.mxu0 %v832
    %839 = vmatprep.subr.mxu0 0.0
    %840 = vmatpush1.msra.mxu0 0.0
    %841 = vmatprep.subr.mxu0 0.0
    %842 = vmatpush1.msra.mxu0 0.0
    %843 = vmatprep.subr.mxu0 0.0
    %844 = vmatpush1.msra.mxu0 0.0
    %845 = vmatprep.subr.mxu0 0.0
    %846 = vmatpush1.msra.mxu0 0.0
    %847 = vmatprep.subr.mxu0 0.0
    %848 = vmatpush1.msra.mxu0 0.0
    %849 = vmatprep.subr.mxu0 0.0
    %850 = vmatpush1.msra.mxu0 0.0
    %851 = vmatprep.subr.mxu0 0.0
    %852 = vmatpush1.msra.mxu0 0.0
    %853 = vmatprep.subr.mxu0 0.0
    %854 = vmatpush1.msra.mxu0 0.0
    %855 = vmatprep.subr.mxu0 0.0
    %856 = vmatpush1.msra.mxu0 0.0
    %857 = vmatprep.subr.mxu0 0.0
    %858 = vmatpush1.msra.mxu0 0.0
    %859 = vmatprep.subr.mxu0 0.0
    %860 = vmatpush1.msra.mxu0 0.0
    %861 = vmatprep.subr.mxu0 0.0
    %862 = vmatpush1.msra.mxu0 0.0
    %863 = vmatprep.subr.mxu0 0.0
    %864 = vmatpush1.msra.mxu0 0.0
    %865 = vmatprep.subr.mxu0 0.0
    %866 = vmatpush1.msra.mxu0 0.0
    %867 = vmatprep.subr.mxu0 0.0
    %868 = vmatpush1.msra.mxu0 0.0
    %869 = vmatprep.subr.mxu0 0.0
    %870 = vmatpush1.msra.mxu0 0.0
    %871 = vmatprep.subr.mxu0 0.0
    %872 = vmatpush1.msra.mxu0 0.0
    %873 = vmatprep.subr.mxu0 0.0
    %874 = vmatpush1.msra.mxu0 0.0
    %875 = vmatprep.subr.mxu0 0.0
    %876 = vmatpush1.msra.mxu0 0.0
    %877 = vmatprep.subr.mxu0 0.0
    %878 = vmatpush1.msra.mxu0 0.0
    %879 = vmatprep.subr.mxu0 0.0
    %880 = vmatpush1.msra.mxu0 0.0
    %881 = vmatprep.subr.mxu0 0.0
    %882 = vmatpush1.msra.mxu0 0.0
    %883 = vmatprep.subr.mxu0 0.0
    %884 = vmatpush1.msra.mxu0 0.0
    %885 = vmatprep.subr.mxu0 0.0
    %886 = vmatpush1.msra.mxu0 0.0
    %887 = vmatprep.subr.mxu0 0.0
    %888 = vmatpush1.msra.mxu0 0.0
    %889 = vmatprep.subr.mxu0 0.0
    %890 = vmatpush1.msra.mxu0 0.0
    %891 = vmatprep.subr.mxu0 0.0
    %892 = vmatpush1.msra.mxu0 0.0
    %893 = vmatprep.subr.mxu0 0.0
    %894 = vmatpush1.msra.mxu0 0.0
    %895 = vmatprep.subr.mxu0 0.0
    %896 = vmatpush1.msra.mxu0 0.0
    %897 = vmatprep.subr.mxu0 0.0
    %898 = vmatpush1.msra.mxu0 0.0
    %899 = vmatprep.subr.mxu0 0.0
    %900 = vmatpush1.msra.mxu0 0.0
    %901 = vmatprep.mubr.f32.mxu0 0.0
    %902 = vmatmul.mubr.f32.gmra.mrb[0].mxu0 %v835
    %v903 = vpop.f32.mrb[0].mxu0
    %v904 = vadd.f32 0.0, %v903
    %v905 = vpop.f32.mrb[0].mxu0
    %906 = vdwg.mxu0
    %908 = vrot.lane.b32.xlu0 %v572, 8
    %v909 = vpop.permute.xlu0 %908
    %912 = vrot.lane.b32.xlu0 %v738, 16
    %v913 = vpop.permute.xlu0 %912
    %916 = vrot.lane.b32.xlu0 %v904, 24
    %v917 = vpop.permute.xlu0 %916
    %v919 = vsel %vm244, %v406, %v909
    %vm920 = vcmask 130048
    %v921 = vsel %vm920, %v919, %v913
    %vm922 = vcmask 195584
    %v923 = vsel %vm922, %v921, %v917
    %v925 = vsel %vm244, %v142, 0
    %v928 = vsel %vm244, %v236, 0
    %930 = vmatprep.subr.mxu0 0.0
    %931 = vmatpush1.xpose.msra.mxu0 %v928
    %932 = vmatprep.subr.mxu0 0.0
    %933 = vmatpush1.xpose.msra.mxu0 0.0
    %934 = vmatprep.subr.mxu0 0.0
    %935 = vmatpush1.xpose.msra.mxu0 0.0
    %936 = vmatprep.subr.mxu0 0.0
    %937 = vmatpush1.xpose.msra.mxu0 0.0
    %938 = vmatprep.subr.mxu0 0.0
    %939 = vmatpush1.xpose.msra.mxu0 0.0
    %940 = vmatprep.subr.mxu0 0.0
    %941 = vmatpush1.xpose.msra.mxu0 0.0
    %942 = vmatprep.subr.mxu0 0.0
    %943 = vmatpush1.xpose.msra.mxu0 0.0
    %944 = vmatprep.subr.mxu0 0.0
    %945 = vmatpush1.xpose.msra.mxu0 0.0
    %946 = vmatprep.subr.mxu0 0.0
    %947 = vmatpush1.xpose.msra.mxu0 0.0
    %948 = vmatprep.subr.mxu0 0.0
    %949 = vmatpush1.xpose.msra.mxu0 0.0
    %950 = vmatprep.subr.mxu0 0.0
    %951 = vmatpush1.xpose.msra.mxu0 0.0
    %952 = vmatprep.subr.mxu0 0.0
    %953 = vmatpush1.xpose.msra.mxu0 0.0
    %954 = vmatprep.subr.mxu0 0.0
    %955 = vmatpush1.xpose.msra.mxu0 0.0
    %956 = vmatprep.subr.mxu0 0.0
    %957 = vmatpush1.xpose.msra.mxu0 0.0
    %958 = vmatprep.subr.mxu0 0.0
    %959 = vmatpush1.xpose.msra.mxu0 0.0
    %960 = vmatprep.subr.mxu0 0.0
    %961 = vmatpush1.xpose.msra.mxu0 0.0
    %962 = vmatprep.subr.mxu0 0.0
    %963 = vmatpush1.xpose.msra.mxu0 0.0
    %964 = vmatprep.subr.mxu0 0.0
    %965 = vmatpush1.xpose.msra.mxu0 0.0
    %966 = vmatprep.subr.mxu0 0.0
    %967 = vmatpush1.xpose.msra.mxu0 0.0
    %968 = vmatprep.subr.mxu0 0.0
    %969 = vmatpush1.xpose.msra.mxu0 0.0
    %970 = vmatprep.subr.mxu0 0.0
    %971 = vmatpush1.xpose.msra.mxu0 0.0
    %972 = vmatprep.subr.mxu0 0.0
    %973 = vmatpush1.xpose.msra.mxu0 0.0
    %974 = vmatprep.subr.mxu0 0.0
    %975 = vmatpush1.xpose.msra.mxu0 0.0
    %976 = vmatprep.subr.mxu0 0.0
    %977 = vmatpush1.xpose.msra.mxu0 0.0
    %978 = vmatprep.subr.mxu0 0.0
    %979 = vmatpush1.xpose.msra.mxu0 0.0
    %980 = vmatprep.subr.mxu0 0.0
    %981 = vmatpush1.xpose.msra.mxu0 0.0
    %982 = vmatprep.subr.mxu0 0.0
    %983 = vmatpush1.xpose.msra.mxu0 0.0
    %984 = vmatprep.subr.mxu0 0.0
    %985 = vmatpush1.xpose.msra.mxu0 0.0
    %986 = vmatprep.subr.mxu0 0.0
    %987 = vmatpush1.xpose.msra.mxu0 0.0
    %988 = vmatprep.subr.mxu0 0.0
    %989 = vmatpush1.xpose.msra.mxu0 0.0
    %990 = vmatprep.subr.mxu0 0.0
    %991 = vmatpush1.xpose.msra.mxu0 0.0
    %992 = vmatprep.subr.mxu0 0.0
    %993 = vmatpush1.xpose.msra.mxu0 0.0
    %994 = vmatprep.mubr.f32.mxu0 0.0
    %995 = vmatmul.mubr.f32.gmra.mrb[0].mxu0 %v925
    %v996 = vpop.f32.mrb[0].mxu0
    %v997 = vadd.f32 0.0, %v996
    %v998 = vpop.f32.mrb[0].mxu0
    %999 = vdwg.mxu0
    %v1000 = vmul.f32 %v997, 0.35355338
    %v1001 = vsel %vm244, %v1000, -inf
    %1002 = vmax.xlane.f32.xlu0 %v1001
    %v1003 = vpop.xlane.xlu0 %1002
    %v1004 = vsub.f32 %v1000, %v1003
    %v1005 = vmul.f32 %v1004, 1.442695
    %v1006 = vpow.pop %v1005
    %v1007 = vsel %vm244, %v1006, 0.0
    %1008 = vadd.xlane.f32.xlu0 %v1007
    %v1009 = vpop.xlane.xlu0 %1008
    %v1010 = vrcp.pop %v1009
    %v1011 = vmul.f32 %v1006, %v1010
    %1012 = vrot.lane.b32.xlu0 %v236, 96
    %v1013 = vpop.permute.xlu0 %1012
    %v1016 = vsel %vm244, %v1011, 0
    %1018 = vmatprep.subr.mxu0 0.0
    %1019 = vmatpush1.msra.mxu0 %v1013
    %1020 = vmatprep.subr.mxu0 0.0
    %1021 = vmatpush1.msra.mxu0 0.0
    %1022 = vmatprep.subr.mxu0 0.0
    %1023 = vmatpush1.msra.mxu0 0.0
    %1024 = vmatprep.subr.mxu0 0.0
    %1025 = vmatpush1.msra.mxu0 0.0
    %1026 = vmatprep.subr.mxu0 0.0
    %1027 = vmatpush1.msra.mxu0 0.0
    %1028 = vmatprep.subr.mxu0 0.0
    %1029 = vmatpush1.msra.mxu0 0.0
    %1030 = vmatprep.subr.mxu0 0.0
    %1031 = vmatpush1.msra.mxu0 0.0
    %1032 = vmatprep.subr.mxu0 0.0
    %1033 = vmatpush1.msra.mxu0 0.0
    %1034 = vmatprep.subr.mxu0 0.0
    %1035 = vmatpush1.msra.mxu0 0.0
    %1036 = vmatprep.subr.mxu0 0.0
    %1037 = vmatpush1.msra.mxu0 0.0
    %1038 = vmatprep.subr.mxu0 0.0
    %1039 = vmatpush1.msra.mxu0 0.0
    %1040 = vmatprep.subr.mxu0 0.0
    %1041 = vmatpush1.msra.mxu0 0.0
    %1042 = vmatprep.subr.mxu0 0.0
    %1043 = vmatpush1.msra.mxu0 0.0
    %1044 = vmatprep.subr.mxu0 0.0
    %1045 = vmatpush1.msra.mxu0 0.0
    %1046 = vmatprep.subr.mxu0 0.0
    %1047 = vmatpush1.msra.mxu0 0.0
    %1048 = vmatprep.subr.mxu0 0.0
    %1049 = vmatpush1.msra.mxu0 0.0
    %1050 = vmatprep.subr.mxu0 0.0
    %1051 = vmatpush1.msra.mxu0 0.0
    %1052 = vmatprep.subr.mxu0 0.0
    %1053 = vmatpush1.msra.mxu0 0.0
    %1054 = vmatprep.subr.mxu0 0.0
    %1055 = vmatpush1.msra.mxu0 0.0
    %1056 = vmatprep.subr.mxu0 0.0
    %1057 = vmatpush1.msra.mxu0 0.0
    %1058 = vmatprep.subr.mxu0 0.0
    %1059 = vmatpush1.msra.mxu0 0.0
    %1060 = vmatprep.subr.mxu0 0.0
    %1061 = vmatpush1.msra.mxu0 0.0
    %1062 = vmatprep.subr.mxu0 0.0
    %1063 = vmatpush1.msra.mxu0 0.0
    %1064 = vmatprep.subr.mxu0 0.0
    %1065 = vmatpush1.msra.mxu0 0.0
    %1066 = vmatprep.subr.mxu0 0.0
    %1067 = vmatpush1.msra.mxu0 0.0
    %1068 = vmatprep.subr.mxu0 0.0
    %1069 = vmatpush1.msra.mxu0 0.0
    %1070 = vmatprep.subr.mxu0 0.0
    %1071 = vmatpush1.msra.mxu0 0.0
    %1072 = vmatprep.subr.mxu0 0.0
    %1073 = vmatpush1.msra.mxu0 0.0
    %1074 = vmatprep.subr.mxu0 0.0
    %1075 = vmatpush1.msra.mxu0 0.0
    %1076 = vmatprep.subr.mxu0 0.0
    %1077 = vmatpush1.msra.mxu0 0.0
    %1078 = vmatprep.subr.mxu0 0.0
    %1079 = vmatpush1.msra.mxu0 0.0
    %1080 = vmatprep.subr.mxu0 0.0
    %1081 = vmatpush1.msra.mxu0 0.0
    %1082 = vmatprep.mubr.f32.mxu0 0.0
    %1083 = vmatmul.mubr.f32.gmra.mrb[0].mxu0 %v1016
    %v1084 = vpop.f32.mrb[0].mxu0
    %v1085 = vadd.f32 0.0, %v1084
    %v1086 = vpop.f32.mrb[0].mxu0
    %1087 = vdwg.mxu0
    %1088 = vrot.lane.b32.xlu0 %v142, 120
    %v1089 = vpop.permute.xlu0 %1088
    %1090 = vrot.lane.b32.xlu0 %v236, 120
    %v1091 = vpop.permute.xlu0 %1090
    %v1092 = vsel %vm244, %v1089, 0
    %v1094 = vsel %vm244, %v1091, 0
    %1096 = vmatprep.subr.mxu0 0.0
    %1097 = vmatpush1.xpose.msra.mxu0 %v1094
    %1098 = vmatprep.subr.mxu0 0.0
    %1099 = vmatpush1.xpose.msra.mxu0 0.0
    %1100 = vmatprep.subr.mxu0 0.0
    %1101 = vmatpush1.xpose.msra.mxu0 0.0
    %1102 = vmatprep.subr.mxu0 0.0
    %1103 = vmatpush1.xpose.msra.mxu0 0.0
    %1104 = vmatprep.subr.mxu0 0.0
    %1105 = vmatpush1.xpose.msra.mxu0 0.0
    %1106 = vmatprep.subr.mxu0 0.0
    %1107 = vmatpush1.xpose.msra.mxu0 0.0
    %1108 = vmatprep.subr.mxu0 0.0
    %1109 = vmatpush1.xpose.msra.mxu0 0.0
    %1110 = vmatprep.subr.mxu0 0.0
    %1111 = vmatpush1.xpose.msra.mxu0 0.0
    %1112 = vmatprep.subr.mxu0 0.0
    %1113 = vmatpush1.xpose.msra.mxu0 0.0
    %1114 = vmatprep.subr.mxu0 0.0
    %1115 = vmatpush1.xpose.msra.mxu0 0.0
    %1116 = vmatprep.subr.mxu0 0.0
    %1117 = vmatpush1.xpose.msra.mxu0 0.0
    %1118 = vmatprep.subr.mxu0 0.0
    %1119 = vmatpush1.xpose.msra.mxu0 0.0
    %1120 = vmatprep.subr.mxu0 0.0
    %1121 = vmatpush1.xpose.msra.mxu0 0.0
    %1122 = vmatprep.subr.mxu0 0.0
    %1123 = vmatpush1.xpose.msra.mxu0 0.0
    %1124 = vmatprep.subr.mxu0 0.0
    %1125 = vmatpush1.xpose.msra.mxu0 0.0
    %1126 = vmatprep.subr.mxu0 0.0
    %1127 = vmatpush1.xpose.msra.mxu0 0.0
    %1128 = vmatprep.subr.mxu0 0.0
    %1129 = vmatpush1.xpose.msra.mxu0 0.0
    %1130 = vmatprep.subr.mxu0 0.0
    %1131 = vmatpush1.xpose.msra.mxu0 0.0
    %1132 = vmatprep.subr.mxu0 0.0
    %1133 = vmatpush1.xpose.msra.mxu0 0.0
    %1134 = vmatprep.subr.mxu0 0.0
    %1135 = vmatpush1.xpose.msra.mxu0 0.0
    %1136 = vmatprep.subr.mxu0 0.0
    %1137 = vmatpush1.xpose.msra.mxu0 0.0
    %1138 = vmatprep.subr.mxu0 0.0
    %1139 = vmatpush1.xpose.msra.mxu0 0.0
    %1140 = vmatprep.subr.mxu0 0.0
    %1141 = vmatpush1.xpose.msra.mxu0 0.0
    %1142 = vmatprep.subr.mxu0 0.0
    %1143 = vmatpush1.xpose.msra.mxu0 0.0
    %1144 = vmatprep.subr.mxu0 0.0
    %1145 = vmatpush1.xpose.msra.mxu0 0.0
    %1146 = vmatprep.subr.mxu0 0.0
    %1147 = vmatpush1.xpose.msra.mxu0 0.0
    %1148 = vmatprep.subr.mxu0 0.0
    %1149 = vmatpush1.xpose.msra.mxu0 0.0
    %1150 = vmatprep.subr.mxu0 0.0
    %1151 = vmatpush1.xpose.msra.mxu0 0.0
    %1152 = vmatprep.subr.mxu0 0.0
    %1153 = vmatpush1.xpose.msra.mxu0 0.0
    %1154 = vmatprep.subr.mxu0 0.0
    %1155 = vmatpush1.xpose.msra.mxu0 0.0
    %1156 = vmatprep.subr.mxu0 0.0
    %1157 = vmatpush1.xpose.msra.mxu0 0.0
    %1158 = vmatprep.subr.mxu0 0.0
    %1159 = vmatpush1.xpose.msra.mxu0 0.0
    %1160 = vmatprep.mubr.f32.mxu0 0.0
    %1161 = vmatmul.mubr.f32.gmra.mrb[0].mxu0 %v1092
    %v1162 = vpop.f32.mrb[0].mxu0
    %v1163 = vadd.f32 0.0, %v1162
    %v1164 = vpop.f32.mrb[0].mxu0
    %1165 = vdwg.mxu0
    %v1166 = vmul.f32 %v1163, 0.35355338
    %v1167 = vsel %vm244, %v1166, -inf
    %1168 = vmax.xlane.f32.xlu0 %v1167
    %v1169 = vpop.xlane.xlu0 %1168
    %v1170 = vsub.f32 %v1166, %v1169
    %v1171 = vmul.f32 %v1170, 1.442695
    %v1172 = vpow.pop %v1171
    %v1173 = vsel %vm244, %v1172, 0.0
    %1174 = vadd.xlane.f32.xlu0 %v1173
    %v1175 = vpop.xlane.xlu0 %1174
    %v1176 = vrcp.pop %v1175
    %v1177 = vmul.f32 %v1172, %v1176
    %1178 = vrot.lane.b32.xlu0 %v236, 88
    %v1179 = vpop.permute.xlu0 %1178
    %v1182 = vsel %vm244, %v1177, 0
    %1184 = vmatprep.subr.mxu0 0.0
    %1185 = vmatpush1.msra.mxu0 %v1179
    %1186 = vmatprep.subr.mxu0 0.0
    %1187 = vmatpush1.msra.mxu0 0.0
    %1188 = vmatprep.subr.mxu0 0.0
    %1189 = vmatpush1.msra.mxu0 0.0
    %1190 = vmatprep.subr.mxu0 0.0
    %1191 = vmatpush1.msra.mxu0 0.0
    %1192 = vmatprep.subr.mxu0 0.0
    %1193 = vmatpush1.msra.mxu0 0.0
    %1194 = vmatprep.subr.mxu0 0.0
    %1195 = vmatpush1.msra.mxu0 0.0
    %1196 = vmatprep.subr.mxu0 0.0
    %1197 = vmatpush1.msra.mxu0 0.0
    %1198 = vmatprep.subr.mxu0 0.0
    %1199 = vmatpush1.msra.mxu0 0.0
    %1200 = vmatprep.subr.mxu0 0.0
    %1201 = vmatpush1.msra.mxu0 0.0
    %1202 = vmatprep.subr.mxu0 0.0
    %1203 = vmatpush1.msra.mxu0 0.0
    %1204 = vmatprep.subr.mxu0 0.0
    %1205 = vmatpush1.msra.mxu0 0.0
    %1206 = vmatprep.subr.mxu0 0.0
    %1207 = vmatpush1.msra.mxu0 0.0
    %1208 = vmatprep.subr.mxu0 0.0
    %1209 = vmatpush1.msra.mxu0 0.0
    %1210 = vmatprep.subr.mxu0 0.0
    %1211 = vmatpush1.msra.mxu0 0.0
    %1212 = vmatprep.subr.mxu0 0.0
    %1213 = vmatpush1.msra.mxu0 0.0
    %1214 = vmatprep.subr.mxu0 0.0
    %1215 = vmatpush1.msra.mxu0 0.0
    %1216 = vmatprep.subr.mxu0 0.0
    %1217 = vmatpush1.msra.mxu0 0.0
    %1218 = vmatprep.subr.mxu0 0.0
    %1219 = vmatpush1.msra.mxu0 0.0
    %1220 = vmatprep.subr.mxu0 0.0
    %1221 = vmatpush1.msra.mxu0 0.0
    %1222 = vmatprep.subr.mxu0 0.0
    %1223 = vmatpush1.msra.mxu0 0.0
    %1224 = vmatprep.subr.mxu0 0.0
    %1225 = vmatpush1.msra.mxu0 0.0
    %1226 = vmatprep.subr.mxu0 0.0
    %1227 = vmatpush1.msra.mxu0 0.0
    %1228 = vmatprep.subr.mxu0 0.0
    %1229 = vmatpush1.msra.mxu0 0.0
    %1230 = vmatprep.subr.mxu0 0.0
    %1231 = vmatpush1.msra.mxu0 0.0
    %1232 = vmatprep.subr.mxu0 0.0
    %1233 = vmatpush1.msra.mxu0 0.0
    %1234 = vmatprep.subr.mxu0 0.0
    %1235 = vmatpush1.msra.mxu0 0.0
    %1236 = vmatprep.subr.mxu0 0.0
    %1237 = vmatpush1.msra.mxu0 0.0
    %1238 = vmatprep.subr.mxu0 0.0
    %1239 = vmatpush1.msra.mxu0 0.0
    %1240 = vmatprep.subr.mxu0 0.0
    %1241 = vmatpush1.msra.mxu0 0.0
    %1242 = vmatprep.subr.mxu0 0.0
    %1243 = vmatpush1.msra.mxu0 0.0
    %1244 = vmatprep.subr.mxu0 0.0
    %1245 = vmatpush1.msra.mxu0 0.0
    %1246 = vmatprep.subr.mxu0 0.0
    %1247 = vmatpush1.msra.mxu0 0.0
    %1248 = vmatprep.mubr.f32.mxu0 0.0
    %1249 = vmatmul.mubr.f32.gmra.mrb[0].mxu0 %v1182
    %v1250 = vpop.f32.mrb[0].mxu0
    %v1251 = vadd.f32 0.0, %v1250
    %v1252 = vpop.f32.mrb[0].mxu0
    %1253 = vdwg.mxu0
    %1254 = vrot.lane.b32.xlu0 %v142, 112
    %v1255 = vpop.permute.xlu0 %1254
    %1256 = vrot.lane.b32.xlu0 %v236, 112
    %v1257 = vpop.permute.xlu0 %1256
    %v1258 = vsel %vm244, %v1255, 0
    %v1260 = vsel %vm244, %v1257, 0
    %1262 = vmatprep.subr.mxu0 0.0
    %1263 = vmatpush1.xpose.msra.mxu0 %v1260
    %1264 = vmatprep.subr.mxu0 0.0
    %1265 = vmatpush1.xpose.msra.mxu0 0.0
    %1266 = vmatprep.subr.mxu0 0.0
    %1267 = vmatpush1.xpose.msra.mxu0 0.0
    %1268 = vmatprep.subr.mxu0 0.0
    %1269 = vmatpush1.xpose.msra.mxu0 0.0
    %1270 = vmatprep.subr.mxu0 0.0
    %1271 = vmatpush1.xpose.msra.mxu0 0.0
    %1272 = vmatprep.subr.mxu0 0.0
    %1273 = vmatpush1.xpose.msra.mxu0 0.0
    %1274 = vmatprep.subr.mxu0 0.0
    %1275 = vmatpush1.xpose.msra.mxu0 0.0
    %1276 = vmatprep.subr.mxu0 0.0
    %1277 = vmatpush1.xpose.msra.mxu0 0.0
    %1278 = vmatprep.subr.mxu0 0.0
    %1279 = vmatpush1.xpose.msra.mxu0 0.0
    %1280 = vmatprep.subr.mxu0 0.0
    %1281 = vmatpush1.xpose.msra.mxu0 0.0
    %1282 = vmatprep.subr.mxu0 0.0
    %1283 = vmatpush1.xpose.msra.mxu0 0.0
    %1284 = vmatprep.subr.mxu0 0.0
    %1285 = vmatpush1.xpose.msra.mxu0 0.0
    %1286 = vmatprep.subr.mxu0 0.0
    %1287 = vmatpush1.xpose.msra.mxu0 0.0
    %1288 = vmatprep.subr.mxu0 0.0
    %1289 = vmatpush1.xpose.msra.mxu0 0.0
    %1290 = vmatprep.subr.mxu0 0.0
    %1291 = vmatpush1.xpose.msra.mxu0 0.0
    %1292 = vmatprep.subr.mxu0 0.0
    %1293 = vmatpush1.xpose.msra.mxu0 0.0
    %1294 = vmatprep.subr.mxu0 0.0
    %1295 = vmatpush1.xpose.msra.mxu0 0.0
    %1296 = vmatprep.subr.mxu0 0.0
    %1297 = vmatpush1.xpose.msra.mxu0 0.0
    %1298 = vmatprep.subr.mxu0 0.0
    %1299 = vmatpush1.xpose.msra.mxu0 0.0
    %1300 = vmatprep.subr.mxu0 0.0
    %1301 = vmatpush1.xpose.msra.mxu0 0.0
    %1302 = vmatprep.subr.mxu0 0.0
    %1303 = vmatpush1.xpose.msra.mxu0 0.0
    %1304 = vmatprep.subr.mxu0 0.0
    %1305 = vmatpush1.xpose.msra.mxu0 0.0
    %1306 = vmatprep.subr.mxu0 0.0
    %1307 = vmatpush1.xpose.msra.mxu0 0.0
    %1308 = vmatprep.subr.mxu0 0.0
    %1309 = vmatpush1.xpose.msra.mxu0 0.0
    %1310 = vmatprep.subr.mxu0 0.0
    %1311 = vmatpush1.xpose.msra.mxu0 0.0
    %1312 = vmatprep.subr.mxu0 0.0
    %1313 = vmatpush1.xpose.msra.mxu0 0.0
    %1314 = vmatprep.subr.mxu0 0.0
    %1315 = vmatpush1.xpose.msra.mxu0 0.0
    %1316 = vmatprep.subr.mxu0 0.0
    %1317 = vmatpush1.xpose.msra.mxu0 0.0
    %1318 = vmatprep.subr.mxu0 0.0
    %1319 = vmatpush1.xpose.msra.mxu0 0.0
    %1320 = vmatprep.subr.mxu0 0.0
    %1321 = vmatpush1.xpose.msra.mxu0 0.0
    %1322 = vmatprep.subr.mxu0 0.0
    %1323 = vmatpush1.xpose.msra.mxu0 0.0
    %1324 = vmatprep.subr.mxu0 0.0
    %1325 = vmatpush1.xpose.msra.mxu0 0.0
    %1326 = vmatprep.mubr.f32.mxu0 0.0
    %1327 = vmatmul.mubr.f32.gmra.mrb[0].mxu0 %v1258
    %v1328 = vpop.f32.mrb[0].mxu0
    %v1329 = vadd.f32 0.0, %v1328
    %v1330 = vpop.f32.mrb[0].mxu0
    %1331 = vdwg.mxu0
    %v1332 = vmul.f32 %v1329, 0.35355338
    %v1333 = vsel %vm244, %v1332, -inf
    %1334 = vmax.xlane.f32.xlu0 %v1333
    %v1335 = vpop.xlane.xlu0 %1334
    %v1336 = vsub.f32 %v1332, %v1335
    %v1337 = vmul.f32 %v1336, 1.442695
    %v1338 = vpow.pop %v1337
    %v1339 = vsel %vm244, %v1338, 0.0
    %1340 = vadd.xlane.f32.xlu0 %v1339
    %v1341 = vpop.xlane.xlu0 %1340
    %v1342 = vrcp.pop %v1341
    %v1343 = vmul.f32 %v1338, %v1342
    %1344 = vrot.lane.b32.xlu0 %v236, 80
    %v1345 = vpop.permute.xlu0 %1344
    %v1348 = vsel %vm244, %v1343, 0
    %1350 = vmatprep.subr.mxu0 0.0
    %1351 = vmatpush1.msra.mxu0 %v1345
    %1352 = vmatprep.subr.mxu0 0.0
    %1353 = vmatpush1.msra.mxu0 0.0
    %1354 = vmatprep.subr.mxu0 0.0
    %1355 = vmatpush1.msra.mxu0 0.0
    %1356 = vmatprep.subr.mxu0 0.0
    %1357 = vmatpush1.msra.mxu0 0.0
    %1358 = vmatprep.subr.mxu0 0.0
    %1359 = vmatpush1.msra.mxu0 0.0
    %1360 = vmatprep.subr.mxu0 0.0
    %1361 = vmatpush1.msra.mxu0 0.0
    %1362 = vmatprep.subr.mxu0 0.0
    %1363 = vmatpush1.msra.mxu0 0.0
    %1364 = vmatprep.subr.mxu0 0.0
    %1365 = vmatpush1.msra.mxu0 0.0
    %1366 = vmatprep.subr.mxu0 0.0
    %1367 = vmatpush1.msra.mxu0 0.0
    %1368 = vmatprep.subr.mxu0 0.0
    %1369 = vmatpush1.msra.mxu0 0.0
    %1370 = vmatprep.subr.mxu0 0.0
    %1371 = vmatpush1.msra.mxu0 0.0
    %1372 = vmatprep.subr.mxu0 0.0
    %1373 = vmatpush1.msra.mxu0 0.0
    %1374 = vmatprep.subr.mxu0 0.0
    %1375 = vmatpush1.msra.mxu0 0.0
    %1376 = vmatprep.subr.mxu0 0.0
    %1377 = vmatpush1.msra.mxu0 0.0
    %1378 = vmatprep.subr.mxu0 0.0
    %1379 = vmatpush1.msra.mxu0 0.0
    %1380 = vmatprep.subr.mxu0 0.0
    %1381 = vmatpush1.msra.mxu0 0.0
    %1382 = vmatprep.subr.mxu0 0.0
    %1383 = vmatpush1.msra.mxu0 0.0
    %1384 = vmatprep.subr.mxu0 0.0
    %1385 = vmatpush1.msra.mxu0 0.0
    %1386 = vmatprep.subr.mxu0 0.0
    %1387 = vmatpush1.msra.mxu0 0.0
    %1388 = vmatprep.subr.mxu0 0.0
    %1389 = vmatpush1.msra.mxu0 0.0
    %1390 = vmatprep.subr.mxu0 0.0
    %1391 = vmatpush1.msra.mxu0 0.0
    %1392 = vmatprep.subr.mxu0 0.0
    %1393 = vmatpush1.msra.mxu0 0.0
    %1394 = vmatprep.subr.mxu0 0.0
    %1395 = vmatpush1.msra.mxu0 0.0
    %1396 = vmatprep.subr.mxu0 0.0
    %1397 = vmatpush1.msra.mxu0 0.0
    %1398 = vmatprep.subr.mxu0 0.0
    %1399 = vmatpush1.msra.mxu0 0.0
    %1400 = vmatprep.subr.mxu0 0.0
    %1401 = vmatpush1.msra.mxu0 0.0
    %1402 = vmatprep.subr.mxu0 0.0
    %1403 = vmatpush1.msra.mxu0 0.0
    %1404 = vmatprep.subr.mxu0 0.0
    %1405 = vmatpush1.msra.mxu0 0.0
    %1406 = vmatprep.subr.mxu0 0.0
    %1407 = vmatpush1.msra.mxu0 0.0
    %1408 = vmatprep.subr.mxu0 0.0
    %1409 = vmatpush1.msra.mxu0 0.0
    %1410 = vmatprep.subr.mxu0 0.0
    %1411 = vmatpush1.msra.mxu0 0.0
    %1412 = vmatprep.subr.mxu0 0.0
    %1413 = vmatpush1.msra.mxu0 0.0
    %1414 = vmatprep.mubr.f32.mxu0 0.0
    %1415 = vmatmul.mubr.f32.gmra.mrb[0].mxu0 %v1348
    %v1416 = vpop.f32.mrb[0].mxu0
    %v1417 = vadd.f32 0.0, %v1416
    %v1418 = vpop.f32.mrb[0].mxu0
    %1419 = vdwg.mxu0
    %1420 = vrot.lane.b32.xlu0 %v142, 104
    %v1421 = vpop.permute.xlu0 %1420
    %1422 = vrot.lane.b32.xlu0 %v236, 104
    %v1423 = vpop.permute.xlu0 %1422
    %v1424 = vsel %vm244, %v1421, 0
    %v1426 = vsel %vm244, %v1423, 0
    %1428 = vmatprep.subr.mxu0 0.0
    %1429 = vmatpush1.xpose.msra.mxu0 %v1426
    %1430 = vmatprep.subr.mxu0 0.0
    %1431 = vmatpush1.xpose.msra.mxu0 0.0
    %1432 = vmatprep.subr.mxu0 0.0
    %1433 = vmatpush1.xpose.msra.mxu0 0.0
    %1434 = vmatprep.subr.mxu0 0.0
    %1435 = vmatpush1.xpose.msra.mxu0 0.0
    %1436 = vmatprep.subr.mxu0 0.0
    %1437 = vmatpush1.xpose.msra.mxu0 0.0
    %1438 = vmatprep.subr.mxu0 0.0
    %1439 = vmatpush1.xpose.msra.mxu0 0.0
    %1440 = vmatprep.subr.mxu0 0.0
    %1441 = vmatpush1.xpose.msra.mxu0 0.0
    %1442 = vmatprep.subr.mxu0 0.0
    %1443 = vmatpush1.xpose.msra.mxu0 0.0
    %1444 = vmatprep.subr.mxu0 0.0
    %1445 = vmatpush1.xpose.msra.mxu0 0.0
    %1446 = vmatprep.subr.mxu0 0.0
    %1447 = vmatpush1.xpose.msra.mxu0 0.0
    %1448 = vmatprep.subr.mxu0 0.0
    %1449 = vmatpush1.xpose.msra.mxu0 0.0
    %1450 = vmatprep.subr.mxu0 0.0
    %1451 = vmatpush1.xpose.msra.mxu0 0.0
    %1452 = vmatprep.subr.mxu0 0.0
    %1453 = vmatpush1.xpose.msra.mxu0 0.0
    %1454 = vmatprep.subr.mxu0 0.0
    %1455 = vmatpush1.xpose.msra.mxu0 0.0
    %1456 = vmatprep.subr.mxu0 0.0
    %1457 = vmatpush1.xpose.msra.mxu0 0.0
    %1458 = vmatprep.subr.mxu0 0.0
    %1459 = vmatpush1.xpose.msra.mxu0 0.0
    %1460 = vmatprep.subr.mxu0 0.0
    %1461 = vmatpush1.xpose.msra.mxu0 0.0
    %1462 = vmatprep.subr.mxu0 0.0
    %1463 = vmatpush1.xpose.msra.mxu0 0.0
    %1464 = vmatprep.subr.mxu0 0.0
    %1465 = vmatpush1.xpose.msra.mxu0 0.0
    %1466 = vmatprep.subr.mxu0 0.0
    %1467 = vmatpush1.xpose.msra.mxu0 0.0
    %1468 = vmatprep.subr.mxu0 0.0
    %1469 = vmatpush1.xpose.msra.mxu0 0.0
    %1470 = vmatprep.subr.mxu0 0.0
    %1471 = vmatpush1.xpose.msra.mxu0 0.0
    %1472 = vmatprep.subr.mxu0 0.0
    %1473 = vmatpush1.xpose.msra.mxu0 0.0
    %1474 = vmatprep.subr.mxu0 0.0
    %1475 = vmatpush1.xpose.msra.mxu0 0.0
    %1476 = vmatprep.subr.mxu0 0.0
    %1477 = vmatpush1.xpose.msra.mxu0 0.0
    %1478 = vmatprep.subr.mxu0 0.0
    %1479 = vmatpush1.xpose.msra.mxu0 0.0
    %1480 = vmatprep.subr.mxu0 0.0
    %1481 = vmatpush1.xpose.msra.mxu0 0.0
    %1482 = vmatprep.subr.mxu0 0.0
    %1483 = vmatpush1.xpose.msra.mxu0 0.0
    %1484 = vmatprep.subr.mxu0 0.0
    %1485 = vmatpush1.xpose.msra.mxu0 0.0
    %1486 = vmatprep.subr.mxu0 0.0
    %1487 = vmatpush1.xpose.msra.mxu0 0.0
    %1488 = vmatprep.subr.mxu0 0.0
    %1489 = vmatpush1.xpose.msra.mxu0 0.0
    %1490 = vmatprep.subr.mxu0 0.0
    %1491 = vmatpush1.xpose.msra.mxu0 0.0
    %1492 = vmatprep.mubr.f32.mxu0 0.0
    %1493 = vmatmul.mubr.f32.gmra.mrb[0].mxu0 %v1424
    %v1494 = vpop.f32.mrb[0].mxu0
    %v1495 = vadd.f32 0.0, %v1494
    %v1496 = vpop.f32.mrb[0].mxu0
    %1497 = vdwg.mxu0
    %v1498 = vmul.f32 %v1495, 0.35355338
    %v1499 = vsel %vm244, %v1498, -inf
    %1500 = vmax.xlane.f32.xlu0 %v1499
    %v1501 = vpop.xlane.xlu0 %1500
    %v1502 = vsub.f32 %v1498, %v1501
    %v1503 = vmul.f32 %v1502, 1.442695
    %v1504 = vpow.pop %v1503
    %v1505 = vsel %vm244, %v1504, 0.0
    %1506 = vadd.xlane.f32.xlu0 %v1505
    %v1507 = vpop.xlane.xlu0 %1506
    %v1508 = vrcp.pop %v1507
    %v1509 = vmul.f32 %v1504, %v1508
    %1510 = vrot.lane.b32.xlu0 %v236, 72
    %v1511 = vpop.permute.xlu0 %1510
    %v1514 = vsel %vm244, %v1509, 0
    %1516 = vmatprep.subr.mxu0 0.0
    %1517 = vmatpush1.msra.mxu0 %v1511
    %1518 = vmatprep.subr.mxu0 0.0
    %1519 = vmatpush1.msra.mxu0 0.0
    %1520 = vmatprep.subr.mxu0 0.0
    %1521 = vmatpush1.msra.mxu0 0.0
    %1522 = vmatprep.subr.mxu0 0.0
    %1523 = vmatpush1.msra.mxu0 0.0
    %1524 = vmatprep.subr.mxu0 0.0
    %1525 = vmatpush1.msra.mxu0 0.0
    %1526 = vmatprep.subr.mxu0 0.0
    %1527 = vmatpush1.msra.mxu0 0.0
    %1528 = vmatprep.subr.mxu0 0.0
    %1529 = vmatpush1.msra.mxu0 0.0
    %1530 = vmatprep.subr.mxu0 0.0
    %1531 = vmatpush1.msra.mxu0 0.0
    %1532 = vmatprep.subr.mxu0 0.0
    %1533 = vmatpush1.msra.mxu0 0.0
    %1534 = vmatprep.subr.mxu0 0.0
    %1535 = vmatpush1.msra.mxu0 0.0
    %1536 = vmatprep.subr.mxu0 0.0
    %1537 = vmatpush1.msra.mxu0 0.0
    %1538 = vmatprep.subr.mxu0 0.0
    %1539 = vmatpush1.msra.mxu0 0.0
    %1540 = vmatprep.subr.mxu0 0.0
    %1541 = vmatpush1.msra.mxu0 0.0
    %1542 = vmatprep.subr.mxu0 0.0
    %1543 = vmatpush1.msra.mxu0 0.0
    %1544 = vmatprep.subr.mxu0 0.0
    %1545 = vmatpush1.msra.mxu0 0.0
    %1546 = vmatprep.subr.mxu0 0.0
    %1547 = vmatpush1.msra.mxu0 0.0
    %1548 = vmatprep.subr.mxu0 0.0
    %1549 = vmatpush1.msra.mxu0 0.0
    %1550 = vmatprep.subr.mxu0 0.0
    %1551 = vmatpush1.msra.mxu0 0.0
    %1552 = vmatprep.subr.mxu0 0.0
    %1553 = vmatpush1.msra.mxu0 0.0
    %1554 = vmatprep.subr.mxu0 0.0
    %1555 = vmatpush1.msra.mxu0 0.0
    %1556 = vmatprep.subr.mxu0 0.0
    %1557 = vmatpush1.msra.mxu0 0.0
    %1558 = vmatprep.subr.mxu0 0.0
    %1559 = vmatpush1.msra.mxu0 0.0
    %1560 = vmatprep.subr.mxu0 0.0
    %1561 = vmatpush1.msra.mxu0 0.0
    %1562 = vmatprep.subr.mxu0 0.0
    %1563 = vmatpush1.msra.mxu0 0.0
    %1564 = vmatprep.subr.mxu0 0.0
    %1565 = vmatpush1.msra.mxu0 0.0
    %1566 = vmatprep.subr.mxu0 0.0
    %1567 = vmatpush1.msra.mxu0 0.0
    %1568 = vmatprep.subr.mxu0 0.0
    %1569 = vmatpush1.msra.mxu0 0.0
    %1570 = vmatprep.subr.mxu0 0.0
    %1571 = vmatpush1.msra.mxu0 0.0
    %1572 = vmatprep.subr.mxu0 0.0
    %1573 = vmatpush1.msra.mxu0 0.0
    %1574 = vmatprep.subr.mxu0 0.0
    %1575 = vmatpush1.msra.mxu0 0.0
    %1576 = vmatprep.subr.mxu0 0.0
    %1577 = vmatpush1.msra.mxu0 0.0
    %1578 = vmatprep.subr.mxu0 0.0
    %1579 = vmatpush1.msra.mxu0 0.0
    %1580 = vmatprep.mubr.f32.mxu0 0.0
    %1581 = vmatmul.mubr.f32.gmra.mrb[0].mxu0 %v1514
    %v1582 = vpop.f32.mrb[0].mxu0
    %v1583 = vadd.f32 0.0, %v1582
    %v1584 = vpop.f32.mrb[0].mxu0
    %1585 = vdwg.mxu0
    %1587 = vrot.lane.b32.xlu0 %v1251, 8
    %v1588 = vpop.permute.xlu0 %1587
    %1591 = vrot.lane.b32.xlu0 %v1417, 16
    %v1592 = vpop.permute.xlu0 %1591
    %1595 = vrot.lane.b32.xlu0 %v1583, 24
    %v1596 = vpop.permute.xlu0 %1595
    %v1598 = vsel %vm244, %v1085, %v1588
    %v1599 = vsel %vm920, %v1598, %v1592
    %v1600 = vsel %vm922, %v1599, %v1596
    %v1602 = vlaneseq
    %v1603 = vshrl.u32 %v1602, 7
    %v1604 = vsub.s32 0, %v1603
    %v1605 = vrot.slane %v243, %v1604
    %v1608 = vsel %vm63, %v923, 0
    %v1611 = vsel %vm63, %v1600, 0
    %1613 = vmatprep.subr.mxu0 0.0
    %1614 = vmatpush1.msra.mxu0 %v239
    %1615 = vmatprep.subr.mxu0 0.0
    %1616 = vmatpush1.msra.mxu0 %v240
    %1617 = vmatprep.subr.mxu0 0.0
    %1618 = vmatpush1.msra.mxu0 %v241
    %1619 = vmatprep.subr.mxu0 0.0
    %1620 = vmatpush1.msra.mxu0 %v242
    %1621 = vmatprep.subr.mxu0 0.0
    %1622 = vmatpush1.msra.mxu0 0.0
    %1623 = vmatprep.subr.mxu0 0.0
    %1624 = vmatpush1.msra.mxu0 0.0
    %1625 = vmatprep.subr.mxu0 0.0
    %1626 = vmatpush1.msra.mxu0 0.0
    %1627 = vmatprep.subr.mxu0 0.0
    %1628 = vmatpush1.msra.mxu0 0.0
    %1629 = vmatprep.subr.mxu0 0.0
    %1630 = vmatpush1.msra.mxu0 0.0
    %1631 = vmatprep.subr.mxu0 0.0
    %1632 = vmatpush1.msra.mxu0 0.0
    %1633 = vmatprep.subr.mxu0 0.0
    %1634 = vmatpush1.msra.mxu0 0.0
    %1635 = vmatprep.subr.mxu0 0.0
    %1636 = vmatpush1.msra.mxu0 0.0
    %1637 = vmatprep.subr.mxu0 0.0
    %1638 = vmatpush1.msra.mxu0 0.0
    %1639 = vmatprep.subr.mxu0 0.0
    %1640 = vmatpush1.msra.mxu0 0.0
    %1641 = vmatprep.subr.mxu0 0.0
    %1642 = vmatpush1.msra.mxu0 0.0
    %1643 = vmatprep.subr.mxu0 0.0
    %1644 = vmatpush1.msra.mxu0 0.0
    %1645 = vmatprep.subr.mxu0 0.0
    %1646 = vmatpush1.msra.mxu0 0.0
    %1647 = vmatprep.subr.mxu0 0.0
    %1648 = vmatpush1.msra.mxu0 0.0
    %1649 = vmatprep.subr.mxu0 0.0
    %1650 = vmatpush1.msra.mxu0 0.0
    %1651 = vmatprep.subr.mxu0 0.0
    %1652 = vmatpush1.msra.mxu0 0.0
    %1653 = vmatprep.subr.mxu0 0.0
    %1654 = vmatpush1.msra.mxu0 0.0
    %1655 = vmatprep.subr.mxu0 0.0
    %1656 = vmatpush1.msra.mxu0 0.0
    %1657 = vmatprep.subr.mxu0 0.0
    %1658 = vmatpush1.msra.mxu0 0.0
    %1659 = vmatprep.subr.mxu0 0.0
    %1660 = vmatpush1.msra.mxu0 0.0
    %1661 = vmatprep.subr.mxu0 0.0
    %1662 = vmatpush1.msra.mxu0 0.0
    %1663 = vmatprep.subr.mxu0 0.0
    %1664 = vmatpush1.msra.mxu0 0.0
    %1665 = vmatprep.subr.mxu0 0.0
    %1666 = vmatpush1.msra.mxu0 0.0
    %1667 = vmatprep.subr.mxu0 0.0
    %1668 = vmatpush1.msra.mxu0 0.0
    %1669 = vmatprep.subr.mxu0 0.0
    %1670 = vmatpush1.msra.mxu0 0.0
    %1671 = vmatprep.subr.mxu0 0.0
    %1672 = vmatpush1.msra.mxu0 0.0
    %1673 = vmatprep.subr.mxu0 0.0
    %1674 = vmatpush1.msra.mxu0 0.0
    %1675 = vmatprep.subr.mxu0 0.0
    %1676 = vmatpush1.msra.mxu0 0.0
    %1677 = vmatprep.mubr.f32.mxu0 0.0
    %1678 = vmatmul.mubr.f32.gmra.mrb[0].mxu0 %v1608
    %v1679 = vpop.f32.mrb[0].mxu0
    %v1680 = vadd.f32 %v1605, %v1679
    %v1681 = vpop.f32.mrb[0].mxu0
    %1682 = vmatprep.mubr.f32.mxu0 0.0
    %1683 = vmatmul.mubr.f32.gmra.mrb[0].mxu0 %v1611
    %v1684 = vpop.f32.mrb[0].mxu0
    %v1685 = vadd.f32 %v1605, %v1684
    %v1686 = vpop.f32.mrb[0].mxu0
    %1687 = vdwg.mxu0
    %v1688 = vld [vmem:[%s8] sm:$0xff]
    %v1689 = vld [vmem:[%s8 + $0x8] sm:$0xff]
    %v1690 = vld [vmem:[%s8 + $0x10] sm:$0xff]
    %v1691 = vld [vmem:[%s8 + $0x18] sm:$0xff]
    %v1692 = vld [vmem:[%s9] sm:$0x1]
    %v1694 = vlaneseq
    %v1695 = vshrl.u32 %v1694, 7
    %v1696 = vsub.s32 0, %v1695
    %v1697 = vrot.slane %v1692, %v1696
    %v1700 = vsel %vm63, %v1680, 0
    %v1703 = vsel %vm63, %v1685, 0
    %1705 = vmatprep.subr.mxu0 0.0
    %1706 = vmatpush1.msra.mxu0 %v1688
    %1707 = vmatprep.subr.mxu0 0.0
    %1708 = vmatpush1.msra.mxu0 %v1689
    %1709 = vmatprep.subr.mxu0 0.0
    %1710 = vmatpush1.msra.mxu0 %v1690
    %1711 = vmatprep.subr.mxu0 0.0
    %1712 = vmatpush1.msra.mxu0 %v1691
    %1713 = vmatprep.subr.mxu0 0.0
    %1714 = vmatpush1.msra.mxu0 0.0
    %1715 = vmatprep.subr.mxu0 0.0
    %1716 = vmatpush1.msra.mxu0 0.0
    %1717 = vmatprep.subr.mxu0 0.0
    %1718 = vmatpush1.msra.mxu0 0.0
    %1719 = vmatprep.subr.mxu0 0.0
    %1720 = vmatpush1.msra.mxu0 0.0
    %1721 = vmatprep.subr.mxu0 0.0
    %1722 = vmatpush1.msra.mxu0 0.0
    %1723 = vmatprep.subr.mxu0 0.0
    %1724 = vmatpush1.msra.mxu0 0.0
    %1725 = vmatprep.subr.mxu0 0.0
    %1726 = vmatpush1.msra.mxu0 0.0
    %1727 = vmatprep.subr.mxu0 0.0
    %1728 = vmatpush1.msra.mxu0 0.0
    %1729 = vmatprep.subr.mxu0 0.0
    %1730 = vmatpush1.msra.mxu0 0.0
    %1731 = vmatprep.subr.mxu0 0.0
    %1732 = vmatpush1.msra.mxu0 0.0
    %1733 = vmatprep.subr.mxu0 0.0
    %1734 = vmatpush1.msra.mxu0 0.0
    %1735 = vmatprep.subr.mxu0 0.0
    %1736 = vmatpush1.msra.mxu0 0.0
    %1737 = vmatprep.subr.mxu0 0.0
    %1738 = vmatpush1.msra.mxu0 0.0
    %1739 = vmatprep.subr.mxu0 0.0
    %1740 = vmatpush1.msra.mxu0 0.0
    %1741 = vmatprep.subr.mxu0 0.0
    %1742 = vmatpush1.msra.mxu0 0.0
    %1743 = vmatprep.subr.mxu0 0.0
    %1744 = vmatpush1.msra.mxu0 0.0
    %1745 = vmatprep.subr.mxu0 0.0
    %1746 = vmatpush1.msra.mxu0 0.0
    %1747 = vmatprep.subr.mxu0 0.0
    %1748 = vmatpush1.msra.mxu0 0.0
    %1749 = vmatprep.subr.mxu0 0.0
    %1750 = vmatpush1.msra.mxu0 0.0
    %1751 = vmatprep.subr.mxu0 0.0
    %1752 = vmatpush1.msra.mxu0 0.0
    %1753 = vmatprep.subr.mxu0 0.0
    %1754 = vmatpush1.msra.mxu0 0.0
    %1755 = vmatprep.subr.mxu0 0.0
    %1756 = vmatpush1.msra.mxu0 0.0
    %1757 = vmatprep.subr.mxu0 0.0
    %1758 = vmatpush1.msra.mxu0 0.0
    %1759 = vmatprep.subr.mxu0 0.0
    %1760 = vmatpush1.msra.mxu0 0.0
    %1761 = vmatprep.subr.mxu0 0.0
    %1762 = vmatpush1.msra.mxu0 0.0
    %1763 = vmatprep.subr.mxu0 0.0
    %1764 = vmatpush1.msra.mxu0 0.0
    %1765 = vmatprep.subr.mxu0 0.0
    %1766 = vmatpush1.msra.mxu0 0.0
    %1767 = vmatprep.subr.mxu0 0.0
    %1768 = vmatpush1.msra.mxu0 0.0
    %1769 = vmatprep.mubr.f32.mxu0 0.0
    %1770 = vmatmul.mubr.f32.gmra.mrb[0].mxu0 %v1700
    %v1771 = vpop.f32.mrb[0].mxu0
    %v1772 = vadd.f32 %v1697, %v1771
    %v1773 = vpop.f32.mrb[0].mxu0
    %1774 = vmatprep.mubr.f32.mxu0 0.0
    %1775 = vmatmul.mubr.f32.gmra.mrb[0].mxu0 %v1703
    %v1776 = vpop.f32.mrb[0].mxu0
    %v1777 = vadd.f32 %v1697, %v1776
    %v1778 = vpop.f32.mrb[0].mxu0
    %1779 = vdwg.mxu0
    %1780 = vst.msk [vmem:[#allocation2] sm:$0xff] %vm920, %v1772
    %1781 = vst.msk [vmem:[#allocation2 + $0x8] sm:$0xff] %vm920, %v1777
    %v1782 = vld [vmem:[%s10] sm:$0xff]
    %v1783 = vld [vmem:[%s10 + $0x8] sm:$0xff]
    %v1784 = vld [vmem:[%s10 + $0x10] sm:$0xff]
    %v1785 = vld [vmem:[%s10 + $0x18] sm:$0xff]
    %v1786 = vld [vmem:[%s11] sm:$0x1]
    %v1788 = vlaneseq
    %v1789 = vshrl.u32 %v1788, 7
    %v1790 = vsub.s32 0, %v1789
    %v1791 = vrot.slane %v1786, %v1790
    %1793 = vmatprep.subr.mxu0 0.0
    %1794 = vmatpush1.msra.mxu0 %v1782
    %1795 = vmatprep.subr.mxu0 0.0
    %1796 = vmatpush1.msra.mxu0 %v1783
    %1797 = vmatprep.subr.mxu0 0.0
    %1798 = vmatpush1.msra.mxu0 %v1784
    %1799 = vmatprep.subr.mxu0 0.0
    %1800 = vmatpush1.msra.mxu0 %v1785
    %1801 = vmatprep.subr.mxu0 0.0
    %1802 = vmatpush1.msra.mxu0 0.0
    %1803 = vmatprep.subr.mxu0 0.0
    %1804 = vmatpush1.msra.mxu0 0.0
    %1805 = vmatprep.subr.mxu0 0.0
    %1806 = vmatpush1.msra.mxu0 0.0
    %1807 = vmatprep.subr.mxu0 0.0
    %1808 = vmatpush1.msra.mxu0 0.0
    %1809 = vmatprep.subr.mxu0 0.0
    %1810 = vmatpush1.msra.mxu0 0.0
    %1811 = vmatprep.subr.mxu0 0.0
    %1812 = vmatpush1.msra.mxu0 0.0
    %1813 = vmatprep.subr.mxu0 0.0
    %1814 = vmatpush1.msra.mxu0 0.0
    %1815 = vmatprep.subr.mxu0 0.0
    %1816 = vmatpush1.msra.mxu0 0.0
    %1817 = vmatprep.subr.mxu0 0.0
    %1818 = vmatpush1.msra.mxu0 0.0
    %1819 = vmatprep.subr.mxu0 0.0
    %1820 = vmatpush1.msra.mxu0 0.0
    %1821 = vmatprep.subr.mxu0 0.0
    %1822 = vmatpush1.msra.mxu0 0.0
    %1823 = vmatprep.subr.mxu0 0.0
    %1824 = vmatpush1.msra.mxu0 0.0
    %1825 = vmatprep.subr.mxu0 0.0
    %1826 = vmatpush1.msra.mxu0 0.0
    %1827 = vmatprep.subr.mxu0 0.0
    %1828 = vmatpush1.msra.mxu0 0.0
    %1829 = vmatprep.subr.mxu0 0.0
    %1830 = vmatpush1.msra.mxu0 0.0
    %1831 = vmatprep.subr.mxu0 0.0
    %1832 = vmatpush1.msra.mxu0 0.0
    %1833 = vmatprep.subr.mxu0 0.0
    %1834 = vmatpush1.msra.mxu0 0.0
    %1835 = vmatprep.subr.mxu0 0.0
    %1836 = vmatpush1.msra.mxu0 0.0
    %1837 = vmatprep.subr.mxu0 0.0
    %1838 = vmatpush1.msra.mxu0 0.0
    %1839 = vmatprep.subr.mxu0 0.0
    %1840 = vmatpush1.msra.mxu0 0.0
    %1841 = vmatprep.subr.mxu0 0.0
    %1842 = vmatpush1.msra.mxu0 0.0
    %1843 = vmatprep.subr.mxu0 0.0
    %1844 = vmatpush1.msra.mxu0 0.0
    %1845 = vmatprep.subr.mxu0 0.0
    %1846 = vmatpush1.msra.mxu0 0.0
    %1847 = vmatprep.subr.mxu0 0.0
    %1848 = vmatpush1.msra.mxu0 0.0
    %1849 = vmatprep.subr.mxu0 0.0
    %1850 = vmatpush1.msra.mxu0 0.0
    %1851 = vmatprep.subr.mxu0 0.0
    %1852 = vmatpush1.msra.mxu0 0.0
    %1853 = vmatprep.subr.mxu0 0.0
    %1854 = vmatpush1.msra.mxu0 0.0
    %1855 = vmatprep.subr.mxu0 0.0
    %1856 = vmatpush1.msra.mxu0 0.0
    %1857 = vmatprep.mubr.f32.mxu0 0.0
    %1858 = vmatmul.mubr.f32.gmra.mrb[0].mxu0 %v1700
    %v1859 = vpop.f32.mrb[0].mxu0
    %v1860 = vadd.f32 %v1791, %v1859
    %v1861 = vpop.f32.mrb[0].mxu0
    %1862 = vmatprep.mubr.f32.mxu0 0.0
    %1863 = vmatmul.mubr.f32.gmra.mrb[0].mxu0 %v1703
    %v1864 = vpop.f32.mrb[0].mxu0
    %v1865 = vadd.f32 %v1791, %v1864
    %v1866 = vpop.f32.mrb[0].mxu0
    %1867 = vdwg.mxu0
    %v1868 = vld [vmem:[%s12] sm:$0x1]
    %v1869 = vld [vmem:[%s13] sm:$0x1]
    %vm1870 = vcmask 97280
    %v1871 = vsel %vm1870, %v1860, 0.0
    %1872 = vadd.xlane.f32.xlu0 %v1871
    %v1873 = vpop.xlane.xlu0 %1872
    %v1874 = vsel %vm1870, %v1865, 0.0
    %1875 = vadd.xlane.f32.xlu0 %v1874
    %v1876 = vpop.xlane.xlu0 %1875
    %v1877 = vrcp.pop 12.0
    %v1878 = vmul.f32 %v1873, %v1877
    %v1879 = vmul.f32 %v1876, %v1877
    %v1880 = vsub.f32 %v1860, %v1878
    %v1881 = vsub.f32 %v1865, %v1879
    %v1882 = vmul.f32 %v1880, %v1880
    %v1883 = vmul.f32 %v1881, %v1881
    %v1884 = vsel %vm1870, %v1882, 0.0
    %1885 = vadd.xlane.f32.xlu0 %v1884
    %v1886 = vpop.xlane.xlu0 %1885
    %v1887 = vsel %vm1870, %v1883, 0.0
    %1888 = vadd.xlane.f32.xlu0 %v1887
    %v1889 = vpop.xlane.xlu0 %1888
    %v1890 = vmul.f32 %v1886, %v1877
    %v1891 = vmul.f32 %v1889, %v1877
    %v1892 = vadd.f32 %v1890, 1e-05
    %v1893 = vadd.f32 %v1891, 1e-05
    %v1894 = vrsqrt.pop %v1892
    %v1895 = vrsqrt.pop %v1893
    %v1896 = vmul.f32 %v1880, %v1894
    %v1897 = vmul.f32 %v1881, %v1895
    %v1899 = vlaneseq
    %v1900 = vshrl.u32 %v1899, 7
    %v1901 = vsub.s32 0, %v1900
    %v1902 = vrot.slane %v1868, %v1901
    %v1904 = vmul.f32 %v1896, %v1902
    %v1905 = vmul.f32 %v1897, %v1902
    %v1907 = vlaneseq
    %v1908 = vshrl.u32 %v1907, 7
    %v1909 = vsub.s32 0, %v1908
    %v1910 = vrot.slane %v1869, %v1909
    %v1912 = vadd.f32 %v1904, %v1910
    %v1913 = vadd.f32 %v1905, %v1910
    %1914 = vst.msk [vmem:[%s15] sm:$0xff] %vm1870, %v1912
    %1915 = vst.msk [vmem:[%s15 + $0x8] sm:$0xff] %vm1870, %v1913
    // Predicated region
    $region58: #{_encode.5} parent=1 // pred_check
      _
    $region59: #{_encode.5} parent=1 // pred_check_branch
      %1917 = sbr.rel (0) target = $region61
    $region60: #{_encode.5} parent=1 // pred_region
      %s1919 = ssub.s32 256, 256
      %1920 = vsyncadd [#allocation3], %s1919
      %s1921 = sshll.u32 [#allocation2], 4
      %s1922 = int_to_ptr.vmem [resolvable:$true] %s1921
      %1927 = dma.vmem_to_hbm [thread:$0]  %s1922, 256, %s14, [#allocation3], 128, 128, 8
    $region61: #{_encode.5} parent=1 // pred_fallthru
      _
    // Predicated region
    $region62: #{_encode.5} parent=1 // pred_check
      _
    $region63: #{_encode.5} parent=1 // pred_check_branch
      %1929 = sbr.rel (0) target = $region65
    $region64: #{_encode.5} parent=1 // pred_region
      _
    $region65: #{_encode.5} parent=1 // pred_fallthru
      _
    // Predicated region
    $region66: #{_encode.5} parent=1 // pred_check
      _
    $region67: #{_encode.5} parent=1 // pred_check_branch
      %1931 = sbr.rel (0) target = $region69
    $region68: #{_encode.5} parent=1 // pred_region
      %1932 = dma.done [#allocation3], 256
    $region69: #{_encode.5} parent=1 // pred_fallthru
      _
    // Predicated region
    $region70: #{_encode.5} parent=1 // pred_check
      _
    $region71: #{_encode.5} parent=1 // pred_check_branch
      %1934 = sbr.rel (0) target = $region73
    $region72: #{_encode.5} parent=1 // pred_region
      _
    $region73: #{_encode.5} parent=1 // pred_fallthru
      _
    %1935 = vsyncpa [#allocation3], 1

// kernel: _encode.4
$region0: #{_encode.4}
  #allocation0 [shape = 'u32[]', space=smem, size = 0x4, offset = 0x4, fixed_abs, tag = 'smem constant byte address 0x4 - core index']
  #allocation1 [shape = 'u32[144,128]{1,0:T(1,128)}', space=vmem, size = 0x12000, scoped, tag = 'internal scratch']
  #allocation2 [shape = 'f32[16,32]{1,0:T(8,128)}', space=vmem, size = 0x2000, scoped, tag = 'scratch operand']
  #allocation3 [shape = 'f32[16,32]{1,0:T(8,128)}', space=vmem, size = 0x2000, scoped, tag = 'scratch operand']
  %s0 = inlined_call_operand.vmem [shape: f32[16,32], index: 0, kind: input, shape index: {}]
  %s1 = inlined_call_operand.vmem [shape: f32[16,32], index: 1, kind: input, shape index: {}]
  %s2 = inlined_call_operand.vmem [shape: f32[2,8], index: 2, kind: input, shape index: {}]
  %s3 = inlined_call_operand.vmem [shape: f32[8,32,96], index: 3, kind: input, shape index: {}]
  %s4 = inlined_call_operand.vmem [shape: f32[8,32,32], index: 4, kind: input, shape index: {}]
  %s5 = inlined_call_operand.vmem [shape: f32[8,32,64], index: 5, kind: input, shape index: {}]
  %s6 = inlined_call_operand.vmem [shape: f32[8,64,32], index: 6, kind: input, shape index: {}]
  %s7 = inlined_call_operand.vmem [shape: f32[8,8,128], index: 7, kind: input, shape index: {}]
  %s8 = inlined_call_operand.vmem [shape: f32[8,32,96], index: 8, kind: input, shape index: {}]
  %s9 = inlined_call_operand.vmem [shape: f32[8,32,32], index: 9, kind: input, shape index: {}]
  %s10 = inlined_call_operand.vmem [shape: f32[8,32,64], index: 10, kind: input, shape index: {}]
  %s11 = inlined_call_operand.vmem [shape: f32[8,64,32], index: 11, kind: input, shape index: {}]
  %s12 = inlined_call_operand.vmem [shape: f32[8,8,128], index: 12, kind: input, shape index: {}]
  %s13 = inlined_call_operand.vmem [shape: f32[16,32], index: 13, kind: output, shape index: {0}]
  %s14 = inlined_call_operand.vmem [shape: f32[16,32], index: 14, kind: output, shape index: {1}]
  %15 = xla_tuple %s13, %s14
  %s16 = sld [smem:[#allocation0]]
  $region101: #{_encode.4} parent=0
    _
  %s18 = ssub.s32 1, %s16
  %s19 = scalar_select 0, %s18, %s16
  loop: start=0, step=1, limit=10
  $region2: #{_encode.4} parent=0 // loop_pre_header
    _
  $region3: #{_encode.4} parent=0 // loop_header
    %s21 = sphi 0, %s25
    %p22 = scmp.ge.s32.totalorder %s21, 10
    %s29 = sphi 0, %s29
    %s31 = sphi 0, %s29
    %s32 = sphi 0, %s31
    %s46 = sphi 0, %s32
    %s50 = sphi 0, %s50
    %s52 = sphi 0, %s50
    %s53 = sphi 0, %s52
    %s67 = sphi 0, %s53
    %s71 = sphi 0, %s71
    %s73 = sphi 0, %s71
    %s74 = sphi 0, %s73
    %s88 = sphi 0, %s74
    %s94 = sphi 0, %s96
    %s97 = sphi 0, %s94
    %s98 = sphi 0, %s97
    %s114 = sphi 0, %s98
    %s120 = sphi 0, %s122
    %s123 = sphi 0, %s120
    %s124 = sphi 0, %s123
    %s140 = sphi 0, %s124
    %s146 = sphi 0, %s148
    %s149 = sphi 0, %s146
    %s150 = sphi 0, %s149
    %s166 = sphi 0, %s150
    %s172 = sphi 0, %s174
    %s175 = sphi 0, %s172
    %s176 = sphi 0, %s175
    %s192 = sphi 0, %s176
    %s198 = sphi 0, %s200
    %s201 = sphi 0, %s198
    %s202 = sphi 0, %s201
    %s218 = sphi 0, %s202
    %s224 = sphi 0, %s226
    %s227 = sphi 0, %s224
    %s228 = sphi 0, %s227
    %s244 = sphi 0, %s228
    %s250 = sphi 0, %s252
    %s253 = sphi 0, %s250
    %s254 = sphi 0, %s253
    %s270 = sphi 0, %s254
    %s276 = sphi 0, %s278
    %s279 = sphi 0, %s276
    %s280 = sphi 0, %s279
    %s296 = sphi 0, %s280
    %s302 = sphi 0, %s304
    %s305 = sphi 0, %s302
    %s306 = sphi 0, %s305
    %s322 = sphi 0, %s306
    %s328 = sphi 0, %s330
    %s331 = sphi 0, %s328
    %s332 = sphi 0, %s331
    %s348 = sphi 0, %s332
    %s352 = sphi 0, %s352
    %s354 = sphi 0, %s352
    %s355 = sphi 0, %s354
    %s369 = sphi 0, %s355
    %s373 = sphi 0, %s373
    %s375 = sphi 0, %s373
    %s376 = sphi 0, %s375
    %s390 = sphi 0, %s376
  $region4: #{_encode.4} parent=0 // loop_header_branch
    %24 = sbr.rel (%p22) target = $region8
  $region5: #{_encode.4} parent=0 // loop_body
    %s26 = ssub.s32 %s21, 1
    %s27 = ssub.s32 %s21, 2
    %s28 = sadd.s32 %s21, 1
    %s30 = sadd.s32 %s29, 1
    %p33 = scmp.eq.s32.totalorder %s21, 7
    %p34 = scmp.ne.s32.totalorder %s29, %s31
    %p35 = scmp.eq.s32.totalorder %s21, 0
    %p36 = por %p34, %p35
    %p37 = scmp.ne.s32.totalorder %s29, %s31
    %p38 = scmp.eq.s32.totalorder %s26, 7
    %p39 = por %p37, %p38
    %p40 = scmp.ne.s32.totalorder %s31, %s32
    %p41 = scmp.eq.s32.totalorder %s26, 0
    %p42 = por %p40, %p41
    %p43 = scmp.ne.s32.totalorder %s31, %s32
    %p44 = scmp.eq.s32.totalorder %s27, 7
    %p45 = por %p43, %p44
    %p47 = scmp.ne.s32.totalorder %s32, %s46
    %p48 = scmp.eq.s32.totalorder %s27, 0
    %p49 = por %p47, %p48
    %s51 = sadd.s32 %s50, 1
    %p54 = scmp.eq.s32.totalorder %s21, 7
    %p55 = scmp.ne.s32.totalorder %s50, %s52
    %p56 = scmp.eq.s32.totalorder %s21, 0
    %p57 = por %p55, %p56
    %p58 = scmp.ne.s32.totalorder %s50, %s52
    %p59 = scmp.eq.s32.totalorder %s26, 7
    %p60 = por %p58, %p59
    %p61 = scmp.ne.s32.totalorder %s52, %s53
    %p62 = scmp.eq.s32.totalorder %s26, 0
    %p63 = por %p61, %p62
    %p64 = scmp.ne.s32.totalorder %s52, %s53
    %p65 = scmp.eq.s32.totalorder %s27, 7
    %p66 = por %p64, %p65
    %p68 = scmp.ne.s32.totalorder %s53, %s67
    %p69 = scmp.eq.s32.totalorder %s27, 0
    %p70 = por %p68, %p69
    %s72 = sadd.s32 %s71, 1
    %p75 = scmp.eq.s32.totalorder %s21, 7
    %p76 = scmp.ne.s32.totalorder %s71, %s73
    %p77 = scmp.eq.s32.totalorder %s21, 0
    %p78 = por %p76, %p77
    %p79 = scmp.ne.s32.totalorder %s71, %s73
    %p80 = scmp.eq.s32.totalorder %s26, 7
    %p81 = por %p79, %p80
    %p82 = scmp.ne.s32.totalorder %s73, %s74
    %p83 = scmp.eq.s32.totalorder %s26, 0
    %p84 = por %p82, %p83
    %p85 = scmp.ne.s32.totalorder %s73, %s74
    %p86 = scmp.eq.s32.totalorder %s27, 7
    %p87 = por %p85, %p86
    %p89 = scmp.ne.s32.totalorder %s74, %s88
    %p90 = scmp.eq.s32.totalorder %s27, 0
    %p91 = por %p89, %p90
    %s92 = ssub.s32 %s21, %s28
    %p93 = scmp.eq.s32.totalorder %s92, 0
    %s95 = sadd.s32 %s94, 1
    %s96 = scalar_select %p93, %s94, %s95
    %p99 = pneg %p93
    %p100 = scmp.eq.s32.totalorder %s21, 7
    %p101 = por %p99, %p100
    %p102 = scmp.ne.s32.totalorder %s94, %s97
    %p103 = scmp.eq.s32.totalorder %s21, 0
    %p104 = por %p102, %p103
    %p105 = scmp.ne.s32.totalorder %s94, %s97
    %p106 = scmp.eq.s32.totalorder %s26, 7
    %p107 = por %p105, %p106
    %p108 = scmp.ne.s32.totalorder %s97, %s98
    %p109 = scmp.eq.s32.totalorder %s26, 0
    %p110 = por %p108, %p109
    %p111 = scmp.ne.s32.totalorder %s97, %s98
    %p112 = scmp.eq.s32.totalorder %s27, 7
    %p113 = por %p111, %p112
    %p115 = scmp.ne.s32.totalorder %s98, %s114
    %p116 = scmp.eq.s32.totalorder %s27, 0
    %p117 = por %p115, %p116
    %s118 = ssub.s32 %s21, %s28
    %p119 = scmp.eq.s32.totalorder %s118, 0
    %s121 = sadd.s32 %s120, 1
    %s122 = scalar_select %p119, %s120, %s121
    %p125 = pneg %p119
    %p126 = scmp.eq.s32.totalorder %s21, 7
    %p127 = por %p125, %p126
    %p128 = scmp.ne.s32.totalorder %s120, %s123
    %p129 = scmp.eq.s32.totalorder %s21, 0
    %p130 = por %p128, %p129
    %p131 = scmp.ne.s32.totalorder %s120, %s123
    %p132 = scmp.eq.s32.totalorder %s26, 7
    %p133 = por %p131, %p132
    %p134 = scmp.ne.s32.totalorder %s123, %s124
    %p135 = scmp.eq.s32.totalorder %s26, 0
    %p136 = por %p134, %p135
    %p137 = scmp.ne.s32.totalorder %s123, %s124
    %p138 = scmp.eq.s32.totalorder %s27, 7
    %p139 = por %p137, %p138
    %p141 = scmp.ne.s32.totalorder %s124, %s140
    %p142 = scmp.eq.s32.totalorder %s27, 0
    %p143 = por %p141, %p142
    %s144 = ssub.s32 %s21, %s28
    %p145 = scmp.eq.s32.totalorder %s144, 0
    %s147 = sadd.s32 %s146, 1
    %s148 = scalar_select %p145, %s146, %s147
    %p151 = pneg %p145
    %p152 = scmp.eq.s32.totalorder %s21, 7
    %p153 = por %p151, %p152
    %p154 = scmp.ne.s32.totalorder %s146, %s149
    %p155 = scmp.eq.s32.totalorder %s21, 0
    %p156 = por %p154, %p155
    %p157 = scmp.ne.s32.totalorder %s146, %s149
    %p158 = scmp.eq.s32.totalorder %s26, 7
    %p159 = por %p157, %p158
    %p160 = scmp.ne.s32.totalorder %s149, %s150
    %p161 = scmp.eq.s32.totalorder %s26, 0
    %p162 = por %p160, %p161
    %p163 = scmp.ne.s32.totalorder %s149, %s150
    %p164 = scmp.eq.s32.totalorder %s27, 7
    %p165 = por %p163, %p164
    %p167 = scmp.ne.s32.totalorder %s150, %s166
    %p168 = scmp.eq.s32.totalorder %s27, 0
    %p169 = por %p167, %p168
    %s170 = ssub.s32 %s21, %s28
    %p171 = scmp.eq.s32.totalorder %s170, 0
    %s173 = sadd.s32 %s172, 1
    %s174 = scalar_select %p171, %s172, %s173
    %p177 = pneg %p171
    %p178 = scmp.eq.s32.totalorder %s21, 7
    %p179 = por %p177, %p178
    %p180 = scmp.ne.s32.totalorder %s172, %s175
    %p181 = scmp.eq.s32.totalorder %s21, 0
    %p182 = por %p180, %p181
    %p183 = scmp.ne.s32.totalorder %s172, %s175
    %p184 = scmp.eq.s32.totalorder %s26, 7
    %p185 = por %p183, %p184
    %p186 = scmp.ne.s32.totalorder %s175, %s176
    %p187 = scmp.eq.s32.totalorder %s26, 0
    %p188 = por %p186, %p187
    %p189 = scmp.ne.s32.totalorder %s175, %s176
    %p190 = scmp.eq.s32.totalorder %s27, 7
    %p191 = por %p189, %p190
    %p193 = scmp.ne.s32.totalorder %s176, %s192
    %p194 = scmp.eq.s32.totalorder %s27, 0
    %p195 = por %p193, %p194
    %s196 = ssub.s32 %s21, %s28
    %p197 = scmp.eq.s32.totalorder %s196, 0
    %s199 = sadd.s32 %s198, 1
    %s200 = scalar_select %p197, %s198, %s199
    %p203 = pneg %p197
    %p204 = scmp.eq.s32.totalorder %s21, 7
    %p205 = por %p203, %p204
    %p206 = scmp.ne.s32.totalorder %s198, %s201
    %p207 = scmp.eq.s32.totalorder %s21, 0
    %p208 = por %p206, %p207
    %p209 = scmp.ne.s32.totalorder %s198, %s201
    %p210 = scmp.eq.s32.totalorder %s26, 7
    %p211 = por %p209, %p210
    %p212 = scmp.ne.s32.totalorder %s201, %s202
    %p213 = scmp.eq.s32.totalorder %s26, 0
    %p214 = por %p212, %p213
    %p215 = scmp.ne.s32.totalorder %s201, %s202
    %p216 = scmp.eq.s32.totalorder %s27, 7
    %p217 = por %p215, %p216
    %p219 = scmp.ne.s32.totalorder %s202, %s218
    %p220 = scmp.eq.s32.totalorder %s27, 0
    %p221 = por %p219, %p220
    %s222 = ssub.s32 %s21, %s28
    %p223 = scmp.eq.s32.totalorder %s222, 0
    %s225 = sadd.s32 %s224, 1
    %s226 = scalar_select %p223, %s224, %s225
    %p229 = pneg %p223
    %p230 = scmp.eq.s32.totalorder %s21, 7
    %p231 = por %p229, %p230
    %p232 = scmp.ne.s32.totalorder %s224, %s227
    %p233 = scmp.eq.s32.totalorder %s21, 0
    %p234 = por %p232, %p233
    %p235 = scmp.ne.s32.totalorder %s224, %s227
    %p236 = scmp.eq.s32.totalorder %s26, 7
    %p237 = por %p235, %p236
    %p238 = scmp.ne.s32.totalorder %s227, %s228
    %p239 = scmp.eq.s32.totalorder %s26, 0
    %p240 = por %p238, %p239
    %p241 = scmp.ne.s32.totalorder %s227, %s228
    %p242 = scmp.eq.s32.totalorder %s27, 7
    %p243 = por %p241, %p242
    %p245 = scmp.ne.s32.totalorder %s228, %s244
    %p246 = scmp.eq.s32.totalorder %s27, 0
    %p247 = por %p245, %p246
    %s248 = ssub.s32 %s21, %s28
    %p249 = scmp.eq.s32.totalorder %s248, 0
    %s251 = sadd.s32 %s250, 1
    %s252 = scalar_select %p249, %s250, %s251
    %p255 = pneg %p249
    %p256 = scmp.eq.s32.totalorder %s21, 7
    %p257 = por %p255, %p256
    %p258 = scmp.ne.s32.totalorder %s250, %s253
    %p259 = scmp.eq.s32.totalorder %s21, 0
    %p260 = por %p258, %p259
    %p261 = scmp.ne.s32.totalorder %s250, %s253
    %p262 = scmp.eq.s32.totalorder %s26, 7
    %p263 = por %p261, %p262
    %p264 = scmp.ne.s32.totalorder %s253, %s254
    %p265 = scmp.eq.s32.totalorder %s26, 0
    %p266 = por %p264, %p265
    %p267 = scmp.ne.s32.totalorder %s253, %s254
    %p268 = scmp.eq.s32.totalorder %s27, 7
    %p269 = por %p267, %p268
    %p271 = scmp.ne.s32.totalorder %s254, %s270
    %p272 = scmp.eq.s32.totalorder %s27, 0
    %p273 = por %p271, %p272
    %s274 = ssub.s32 %s21, %s28
    %p275 = scmp.eq.s32.totalorder %s274, 0
    %s277 = sadd.s32 %s276, 1
    %s278 = scalar_select %p275, %s276, %s277
    %p281 = pneg %p275
    %p282 = scmp.eq.s32.totalorder %s21, 7
    %p283 = por %p281, %p282
    %p284 = scmp.ne.s32.totalorder %s276, %s279
    %p285 = scmp.eq.s32.totalorder %s21, 0
    %p286 = por %p284, %p285
    %p287 = scmp.ne.s32.totalorder %s276, %s279
    %p288 = scmp.eq.s32.totalorder %s26, 7
    %p289 = por %p287, %p288
    %p290 = scmp.ne.s32.totalorder %s279, %s280
    %p291 = scmp.eq.s32.totalorder %s26, 0
    %p292 = por %p290, %p291
    %p293 = scmp.ne.s32.totalorder %s279, %s280
    %p294 = scmp.eq.s32.totalorder %s27, 7
    %p295 = por %p293, %p294
    %p297 = scmp.ne.s32.totalorder %s280, %s296
    %p298 = scmp.eq.s32.totalorder %s27, 0
    %p299 = por %p297, %p298
    %s300 = ssub.s32 %s21, %s28
    %p301 = scmp.eq.s32.totalorder %s300, 0
    %s303 = sadd.s32 %s302, 1
    %s304 = scalar_select %p301, %s302, %s303
    %p307 = pneg %p301
    %p308 = scmp.eq.s32.totalorder %s21, 7
    %p309 = por %p307, %p308
    %p310 = scmp.ne.s32.totalorder %s302, %s305
    %p311 = scmp.eq.s32.totalorder %s21, 0
    %p312 = por %p310, %p311
    %p313 = scmp.ne.s32.totalorder %s302, %s305
    %p314 = scmp.eq.s32.totalorder %s26, 7
    %p315 = por %p313, %p314
    %p316 = scmp.ne.s32.totalorder %s305, %s306
    %p317 = scmp.eq.s32.totalorder %s26, 0
    %p318 = por %p316, %p317
    %p319 = scmp.ne.s32.totalorder %s305, %s306
    %p320 = scmp.eq.s32.totalorder %s27, 7
    %p321 = por %p319, %p320
    %p323 = scmp.ne.s32.totalorder %s306, %s322
    %p324 = scmp.eq.s32.totalorder %s27, 0
    %p325 = por %p323, %p324
    %s326 = ssub.s32 %s21, %s28
    %p327 = scmp.eq.s32.totalorder %s326, 0
    %s329 = sadd.s32 %s328, 1
    %s330 = scalar_select %p327, %s328, %s329
    %p333 = pneg %p327
    %p334 = scmp.eq.s32.totalorder %s21, 7
    %p335 = por %p333, %p334
    %p336 = scmp.ne.s32.totalorder %s328, %s331
    %p337 = scmp.eq.s32.totalorder %s21, 0
    %p338 = por %p336, %p337
    %p339 = scmp.ne.s32.totalorder %s328, %s331
    %p340 = scmp.eq.s32.totalorder %s26, 7
    %p341 = por %p339, %p340
    %p342 = scmp.ne.s32.totalorder %s331, %s332
    %p343 = scmp.eq.s32.totalorder %s26, 0
    %p344 = por %p342, %p343
    %p345 = scmp.ne.s32.totalorder %s331, %s332
    %p346 = scmp.eq.s32.totalorder %s27, 7
    %p347 = por %p345, %p346
    %p349 = scmp.ne.s32.totalorder %s332, %s348
    %p350 = scmp.eq.s32.totalorder %s27, 0
    %p351 = por %p349, %p350
    %s353 = sadd.s32 %s352, 1
    %p356 = scmp.eq.s32.totalorder %s21, 7
    %p357 = scmp.ne.s32.totalorder %s352, %s354
    %p358 = scmp.eq.s32.totalorder %s21, 0
    %p359 = por %p357, %p358
    %p360 = scmp.ne.s32.totalorder %s352, %s354
    %p361 = scmp.eq.s32.totalorder %s26, 7
    %p362 = por %p360, %p361
    %p363 = scmp.ne.s32.totalorder %s354, %s355
    %p364 = scmp.eq.s32.totalorder %s26, 0
    %p365 = por %p363, %p364
    %p366 = scmp.ne.s32.totalorder %s354, %s355
    %p367 = scmp.eq.s32.totalorder %s27, 7
    %p368 = por %p366, %p367
    %p370 = scmp.ne.s32.totalorder %s355, %s369
    %p371 = scmp.eq.s32.totalorder %s27, 0
    %p372 = por %p370, %p371
    %s374 = sadd.s32 %s373, 1
    %p377 = scmp.eq.s32.totalorder %s21, 7
    %p378 = scmp.ne.s32.totalorder %s373, %s375
    %p379 = scmp.eq.s32.totalorder %s21, 0
    %p380 = por %p378, %p379
    %p381 = scmp.ne.s32.totalorder %s373, %s375
    %p382 = scmp.eq.s32.totalorder %s26, 7
    %p383 = por %p381, %p382
    %p384 = scmp.ne.s32.totalorder %s375, %s376
    %p385 = scmp.eq.s32.totalorder %s26, 0
    %p386 = por %p384, %p385
    %p387 = scmp.ne.s32.totalorder %s375, %s376
    %p388 = scmp.eq.s32.totalorder %s27, 7
    %p389 = por %p387, %p388
    %p391 = scmp.ne.s32.totalorder %s376, %s390
    %p392 = scmp.eq.s32.totalorder %s27, 0
    %p393 = por %p391, %p392
    %p394 = scmp.le.s32.totalorder 1, %s21
    %p395 = scmp.lt.s32.totalorder %s21, 9
    %p396 = pnand %p394, %p395
    %p397 = pneg %p396
    // Predicated region
    $region9: #{_encode.4} parent=5 // pred_check
      _
    $region10: #{_encode.4} parent=5 // pred_check_branch
      %399 = sbr.rel (%p396) target = $region12
    $region11: #{_encode.4} parent=5 // pred_region
      %s400 = ssub.s32 %s21, 1
      // Predicated region
      $region13: #{_encode.4} parent=11 // pred_check
        %p401 = pneg %p42
      $region14: #{_encode.4} parent=11 // pred_check_branch
        %403 = sbr.rel (%p401) target = $region16
      $region15: #{_encode.4} parent=11 // pred_region
        _
      $region16: #{_encode.4} parent=11 // pred_fallthru
        _
      // Predicated region
      $region17: #{_encode.4} parent=11 // pred_check
        %p404 = pneg %p63
      $region18: #{_encode.4} parent=11 // pred_check_branch
        %406 = sbr.rel (%p404) target = $region20
      $region19: #{_encode.4} parent=11 // pred_region
        _
      $region20: #{_encode.4} parent=11 // pred_fallthru
        _
      // Predicated region
      $region21: #{_encode.4} parent=11 // pred_check
        %p407 = pneg %p84
      $region22: #{_encode.4} parent=11 // pred_check_branch
        %409 = sbr.rel (%p407) target = $region24
      $region23: #{_encode.4} parent=11 // pred_region
        _
      $region24: #{_encode.4} parent=11 // pred_fallthru
        _
    $region12: #{_encode.4} parent=5 // pred_fallthru
      _
    %p410 = scmp.lt.s32.totalorder %s21, 8
    // Predicated region
    $region25: #{_encode.4} parent=5 // pred_check
      %p411 = pneg %p410
    $region26: #{_encode.4} parent=5 // pred_check_branch
      %413 = sbr.rel (%p411) target = $region28
    $region27: #{_encode.4} parent=5 // pred_region
      // Predicated region
      $region29: #{_encode.4} parent=27 // pred_check
        %p414 = pneg %p104
      $region30: #{_encode.4} parent=27 // pred_check_branch
        %416 = sbr.rel (%p414) target = $region32
      $region31: #{_encode.4} parent=27 // pred_region
        %p417 = scmp.lt.s32.totalorder %s21, 7
        %s418 = scalar_select %p417, %s21, 7
        %s419 = smul.addr %s418, 4
        %s420 = smul.addr %s419, 8
        %s421 = scalar_lea.vmem %s3, %s420
      $region32: #{_encode.4} parent=27 // pred_fallthru
        _
      // Predicated region
      $region33: #{_encode.4} parent=27 // pred_check
        %p422 = pneg %p130
      $region34: #{_encode.4} parent=27 // pred_check_branch
        %424 = sbr.rel (%p422) target = $region36
      $region35: #{_encode.4} parent=27 // pred_region
        %p425 = scmp.lt.s32.totalorder %s21, 7
        %s426 = scalar_select %p425, %s21, 7
        %s427 = smul.addr %s426, 4
        %s428 = smul.addr %s427, 8
        %s429 = scalar_lea.vmem %s4, %s428
      $region36: #{_encode.4} parent=27 // pred_fallthru
        _
      // Predicated region
      $region37: #{_encode.4} parent=27 // pred_check
        %p430 = pneg %p156
      $region38: #{_encode.4} parent=27 // pred_check_branch
        %432 = sbr.rel (%p430) target = $region40
      $region39: #{_encode.4} parent=27 // pred_region
        %p433 = scmp.lt.s32.totalorder %s21, 7
        %s434 = scalar_select %p433, %s21, 7
        %s435 = smul.addr %s434, 4
        %s436 = smul.addr %s435, 8
        %s437 = scalar_lea.vmem %s5, %s436
      $region40: #{_encode.4} parent=27 // pred_fallthru
        _
      // Predicated region
      $region41: #{_encode.4} parent=27 // pred_check
        %p438 = pneg %p182
      $region42: #{_encode.4} parent=27 // pred_check_branch
        %440 = sbr.rel (%p438) target = $region44
      $region43: #{_encode.4} parent=27 // pred_region
        %p441 = scmp.lt.s32.totalorder %s21, 7
        %s442 = scalar_select %p441, %s21, 7
        %s443 = smul.addr %s442, 8
        %s444 = smul.addr %s443, 8
        %s445 = scalar_lea.vmem %s6, %s444
      $region44: #{_encode.4} parent=27 // pred_fallthru
        _
      // Predicated region
      $region45: #{_encode.4} parent=27 // pred_check
        %p446 = pneg %p208
      $region46: #{_encode.4} parent=27 // pred_check_branch
        %448 = sbr.rel (%p446) target = $region48
      $region47: #{_encode.4} parent=27 // pred_region
        %p449 = scmp.lt.s32.totalorder %s21, 7
        %s450 = scalar_select %p449, %s21, 7
        %s451 = smul.addr %s450, 8
        %s452 = scalar_lea.vmem %s7, %s451
      $region48: #{_encode.4} parent=27 // pred_fallthru
        _
      // Predicated region
      $region49: #{_encode.4} parent=27 // pred_check
        %p453 = pneg %p234
      $region50: #{_encode.4} parent=27 // pred_check_branch
        %455 = sbr.rel (%p453) target = $region52
      $region51: #{_encode.4} parent=27 // pred_region
        %p456 = scmp.lt.s32.totalorder %s21, 7
        %s457 = scalar_select %p456, %s21, 7
        %s458 = smul.addr %s457, 4
        %s459 = smul.addr %s458, 8
        %s460 = scalar_lea.vmem %s8, %s459
      $region52: #{_encode.4} parent=27 // pred_fallthru
        _
      // Predicated region
      $region53: #{_encode.4} parent=27 // pred_check
        %p461 = pneg %p260
      $region54: #{_encode.4} parent=27 // pred_check_branch
        %463 = sbr.rel (%p461) target = $region56
      $region55: #{_encode.4} parent=27 // pred_region
        %p464 = scmp.lt.s32.totalorder %s21, 7
        %s465 = scalar_select %p464, %s21, 7
        %s466 = smul.addr %s465, 4
        %s467 = smul.addr %s466, 8
        %s468 = scalar_lea.vmem %s9, %s467
      $region56: #{_encode.4} parent=27 // pred_fallthru
        _
      // Predicated region
      $region57: #{_encode.4} parent=27 // pred_check
        %p469 = pneg %p286
      $region58: #{_encode.4} parent=27 // pred_check_branch
        %471 = sbr.rel (%p469) target = $region60
      $region59: #{_encode.4} parent=27 // pred_region
        %p472 = scmp.lt.s32.totalorder %s21, 7
        %s473 = scalar_select %p472, %s21, 7
        %s474 = smul.addr %s473, 4
        %s475 = smul.addr %s474, 8
        %s476 = scalar_lea.vmem %s10, %s475
      $region60: #{_encode.4} parent=27 // pred_fallthru
        _
      // Predicated region
      $region61: #{_encode.4} parent=27 // pred_check
        %p477 = pneg %p312
      $region62: #{_encode.4} parent=27 // pred_check_branch
        %479 = sbr.rel (%p477) target = $region64
      $region63: #{_encode.4} parent=27 // pred_region
        %p480 = scmp.lt.s32.totalorder %s21, 7
        %s481 = scalar_select %p480, %s21, 7
        %s482 = smul.addr %s481, 8
        %s483 = smul.addr %s482, 8
        %s484 = scalar_lea.vmem %s11, %s483
      $region64: #{_encode.4} parent=27 // pred_fallthru
        _
      // Predicated region
      $region65: #{_encode.4} parent=27 // pred_check
        %p485 = pneg %p338
      $region66: #{_encode.4} parent=27 // pred_check_branch
        %487 = sbr.rel (%p485) target = $region68
      $region67: #{_encode.4} parent=27 // pred_region
        %p488 = scmp.lt.s32.totalorder %s21, 7
        %s489 = scalar_select %p488, %s21, 7
        %s490 = smul.addr %s489, 8
        %s491 = scalar_lea.vmem %s12, %s490
      $region68: #{_encode.4} parent=27 // pred_fallthru
        _
    $region28: #{_encode.4} parent=5 // pred_fallthru
      _
    %p492 = scmp.le.s32.totalorder 1, %s21
    %p493 = scmp.lt.s32.totalorder %s21, 9
    %p494 = pnand %p492, %p493
    %p495 = pneg %p494
    // Predicated region
    $region69: #{_encode.4} parent=5 // pred_check
      _
    $region70: #{_encode.4} parent=5 // pred_check_branch
      %497 = sbr.rel (%p494) target = $region72
    $region71: #{_encode.4} parent=5 // pred_region
      %s498 = ssub.s32 %s21, 1
      %p499 = pneg %p42
      %p500 = pneg %p39
      %p501 = pneg %p63
      %p502 = pneg %p60
      %p503 = pneg %p84
      %p504 = pneg %p81
      %p505 = scmp.lt.s32.totalorder %s26, 7
      %s506 = scalar_select %p505, %s26, 7
      %s507 = smul.addr %s506, 4
      %s508 = smul.addr %s507, 8
      %s509 = scalar_lea.vmem %s3, %s508
      %p510 = pneg %p110
      %p511 = pneg %p107
      %p512 = scmp.lt.s32.totalorder %s26, 7
      %s513 = scalar_select %p512, %s26, 7
      %s514 = smul.addr %s513, 4
      %s515 = smul.addr %s514, 8
      %s516 = scalar_lea.vmem %s4, %s515
      %p517 = pneg %p136
      %p518 = pneg %p133
      %p519 = scmp.lt.s32.totalorder %s26, 7
      %s520 = scalar_select %p519, %s26, 7
      %s521 = smul.addr %s520, 4
      %s522 = smul.addr %s521, 8
      %s523 = scalar_lea.vmem %s5, %s522
      %p524 = pneg %p162
      %p525 = pneg %p159
      %p526 = scmp.lt.s32.totalorder %s26, 7
      %s527 = scalar_select %p526, %s26, 7
      %s528 = smul.addr %s527, 8
      %s529 = smul.addr %s528, 8
      %s530 = scalar_lea.vmem %s6, %s529
      %p531 = pneg %p188
      %p532 = pneg %p185
      %p533 = scmp.lt.s32.totalorder %s26, 7
      %s534 = scalar_select %p533, %s26, 7
      %s535 = smul.addr %s534, 8
      %s536 = scalar_lea.vmem %s7, %s535
      %p537 = pneg %p214
      %p538 = pneg %p211
      %p539 = scmp.lt.s32.totalorder %s26, 7
      %s540 = scalar_select %p539, %s26, 7
      %s541 = smul.addr %s540, 4
      %s542 = smul.addr %s541, 8
      %s543 = scalar_lea.vmem %s8, %s542
      %p544 = pneg %p240
      %p545 = pneg %p237
      %p546 = scmp.lt.s32.totalorder %s26, 7
      %s547 = scalar_select %p546, %s26, 7
      %s548 = smul.addr %s547, 4
      %s549 = smul.addr %s548, 8
      %s550 = scalar_lea.vmem %s9, %s549
      %p551 = pneg %p266
      %p552 = pneg %p263
      %p553 = scmp.lt.s32.totalorder %s26, 7
      %s554 = scalar_select %p553, %s26, 7
      %s555 = smul.addr %s554, 4
      %s556 = smul.addr %s555, 8
      %s557 = scalar_lea.vmem %s10, %s556
      %p558 = pneg %p292
      %p559 = pneg %p289
      %p560 = scmp.lt.s32.totalorder %s26, 7
      %s561 = scalar_select %p560, %s26, 7
      %s562 = smul.addr %s561, 8
      %s563 = smul.addr %s562, 8
      %s564 = scalar_lea.vmem %s11, %s563
      %p565 = pneg %p318
      %p566 = pneg %p315
      %p567 = scmp.lt.s32.totalorder %s26, 7
      %s568 = scalar_select %p567, %s26, 7
      %s569 = smul.addr %s568, 8
      %s570 = scalar_lea.vmem %s12, %s569
      %p571 = pneg %p344
      %p572 = pneg %p341
      %p573 = pneg %p365
      %p574 = pneg %p362
      %p575 = pneg %p386
      %p576 = pneg %p383
      %p577 = scmp.lt.s32.totalorder %s26, 7
      %s578 = scalar_select %p577, %s26, 7
      %s579 = smul.addr %s578, 4
      %s580 = smul.addr %s579, 8
      %s581 = scalar_lea.vmem %s3, %s580
      %p582 = scmp.lt.s32.totalorder %s26, 7
      %s583 = scalar_select %p582, %s26, 7
      %s584 = smul.addr %s583, 4
      %s585 = smul.addr %s584, 8
      %s586 = scalar_lea.vmem %s4, %s585
      %p587 = scmp.lt.s32.totalorder %s26, 7
      %s588 = scalar_select %p587, %s26, 7
      %s589 = smul.addr %s588, 4
      %s590 = smul.addr %s589, 8
      %s591 = scalar_lea.vmem %s5, %s590
      %p592 = scmp.lt.s32.totalorder %s26, 7
      %s593 = scalar_select %p592, %s26, 7
      %s594 = smul.addr %s593, 8
      %s595 = smul.addr %s594, 8
      %s596 = scalar_lea.vmem %s6, %s595
      %p597 = scmp.lt.s32.totalorder %s26, 7
      %s598 = scalar_select %p597, %s26, 7
      %s599 = smul.addr %s598, 8
      %s600 = scalar_lea.vmem %s7, %s599
      %p601 = scmp.lt.s32.totalorder %s26, 7
      %s602 = scalar_select %p601, %s26, 7
      %s603 = smul.addr %s602, 4
      %s604 = smul.addr %s603, 8
      %s605 = scalar_lea.vmem %s8, %s604
      %p606 = scmp.lt.s32.totalorder %s26, 7
      %s607 = scalar_select %p606, %s26, 7
      %s608 = smul.addr %s607, 4
      %s609 = smul.addr %s608, 8
      %s610 = scalar_lea.vmem %s9, %s609
      %p611 = scmp.lt.s32.totalorder %s26, 7
      %s612 = scalar_select %p611, %s26, 7
      %s613 = smul.addr %s612, 4
      %s614 = smul.addr %s613, 8
      %s615 = scalar_lea.vmem %s10, %s614
      %p616 = scmp.lt.s32.totalorder %s26, 7
      %s617 = scalar_select %p616, %s26, 7
      %s618 = smul.addr %s617, 8
      %s619 = smul.addr %s618, 8
      %s620 = scalar_lea.vmem %s11, %s619
      %p621 = scmp.lt.s32.totalorder %s26, 7
      %s622 = scalar_select %p621, %s26, 7
      %s623 = smul.addr %s622, 8
      %s624 = scalar_lea.vmem %s12, %s623
      %p625 = scmp.eq.s32.totalorder %s26, 0
      // Predicated region
      $region73: #{_encode.4} parent=71 // pred_check
        %p626 = pneg %p625
      $region74: #{_encode.4} parent=71 // pred_check_branch
        %628 = sbr.rel (%p626) target = $region76
      $region75: #{_encode.4} parent=71 // pred_region
        %v629 = vld [vmem:[%s0] sm:$0xff]
        %v630 = vld [vmem:[%s0 + $0x8] sm:$0xff]
        %vm631 = vcmask 261120
        %632 = vst.msk [vmem:[#allocation2] sm:$0xff] %vm631, %v629
        %633 = vst.msk [vmem:[#allocation2 + $0x8] sm:$0xff] %vm631, %v630
        %v634 = vld [vmem:[%s1] sm:$0xff]
        %v635 = vld [vmem:[%s1 + $0x8] sm:$0xff]
        %636 = vst.msk [vmem:[#allocation3] sm:$0xff] %vm631, %v634
        %637 = vst.msk [vmem:[#allocation3 + $0x8] sm:$0xff] %vm631, %v635
      $region76: #{_encode.4} parent=71 // pred_fallthru
        _
      %v638 = vld [vmem:[#allocation2] sm:$0xff]
      %v639 = vld [vmem:[#allocation2 + $0x8] sm:$0xff]
      %v640 = vld [vmem:[%s581] sm:$0xff]
      %v641 = vld [vmem:[%s581 + $0x8] sm:$0xff]
      %v642 = vld [vmem:[%s581 + $0x10] sm:$0xff]
      %v643 = vld [vmem:[%s581 + $0x18] sm:$0xff]
      %v644 = vld [vmem:[%s586] sm:$0xff]
      %v645 = vld [vmem:[%s586 + $0x8] sm:$0xff]
      %v646 = vld [vmem:[%s586 + $0x10] sm:$0xff]
      %v647 = vld [vmem:[%s586 + $0x18] sm:$0xff]
      %v648 = vld [vmem:[%s591] sm:$0xff]
      %v649 = vld [vmem:[%s591 + $0x8] sm:$0xff]
      %v650 = vld [vmem:[%s591 + $0x10] sm:$0xff]
      %v651 = vld [vmem:[%s591 + $0x18] sm:$0xff]
      %v652 = vld [vmem:[%s596] sm:$0xff]
      %v653 = vld [vmem:[%s596 + $0x8] sm:$0xff]
      %v654 = vld [vmem:[%s596 + $0x10] sm:$0xff]
      %v655 = vld [vmem:[%s596 + $0x18] sm:$0xff]
      %v656 = vld [vmem:[%s596 + $0x20] sm:$0xff]
      %v657 = vld [vmem:[%s596 + $0x28] sm:$0xff]
      %v658 = vld [vmem:[%s596 + $0x30] sm:$0xff]
      %v659 = vld [vmem:[%s596 + $0x38] sm:$0xff]
      %v660 = vld [vmem:[%s600] sm:$0xff]
      %v661 = vlaneseq
      %v662 = vshrl.u32 %v661, 7
      %v663 = vsub.s32 0, %v662
      %v664 = vrot.slane %v660, %v663
      %vm665 = vcmask 261120
      %v667 = vsel %vm665, %v638, 0
      %v670 = vsel %vm665, %v639, 0
      %672 = vmatprep.subr.mxu0 0.0
      %673 = vmatpush1.msra.mxu0 %v640
      %674 = vmatprep.subr.mxu0 0.0
      %675 = vmatpush1.msra.mxu0 %v641
      %676 = vmatprep.subr.mxu0 0.0
      %677 = vmatpush1.msra.mxu0 %v642
      %678 = vmatprep.subr.mxu0 0.0
      %679 = vmatpush1.msra.mxu0 %v643
      %680 = vmatprep.subr.mxu0 0.0
      %681 = vmatpush1.msra.mxu0 0.0
      %682 = vmatprep.subr.mxu0 0.0
      %683 = vmatpush1.msra.mxu0 0.0
      %684 = vmatprep.subr.mxu0 0.0
      %685 = vmatpush1.msra.mxu0 0.0
      %686 = vmatprep.subr.mxu0 0.0
      %687 = vmatpush1.msra.mxu0 0.0
      %688 = vmatprep.subr.mxu0 0.0
      %689 = vmatpush1.msra.mxu0 0.0
      %690 = vmatprep.subr.mxu0 0.0
      %691 = vmatpush1.msra.mxu0 0.0
      %692 = vmatprep.subr.mxu0 0.0
      %693 = vmatpush1.msra.mxu0 0.0
      %694 = vmatprep.subr.mxu0 0.0
      %695 = vmatpush1.msra.mxu0 0.0
      %696 = vmatprep.subr.mxu0 0.0
      %697 = vmatpush1.msra.mxu0 0.0
      %698 = vmatprep.subr.mxu0 0.0
      %699 = vmatpush1.msra.mxu0 0.0
      %700 = vmatprep.subr.mxu0 0.0
      %701 = vmatpush1.msra.mxu0 0.0
      %702 = vmatprep.subr.mxu0 0.0
      %703 = vmatpush1.msra.mxu0 0.0
      %704 = vmatprep.subr.mxu0 0.0
      %705 = vmatpush1.msra.mxu0 0.0
      %706 = vmatprep.subr.mxu0 0.0
      %707 = vmatpush1.msra.mxu0 0.0
      %708 = vmatprep.subr.mxu0 0.0
      %709 = vmatpush1.msra.mxu0 0.0
      %710 = vmatprep.subr.mxu0 0.0
      %711 = vmatpush1.msra.mxu0 0.0
      %712 = vmatprep.subr.mxu0 0.0
      %713 = vmatpush1.msra.mxu0 0.0
      %714 = vmatprep.subr.mxu0 0.0
      %715 = vmatpush1.msra.mxu0 0.0
      %716 = vmatprep.subr.mxu0 0.0
      %717 = vmatpush1.msra.mxu0 0.0
      %718 = vmatprep.subr.mxu0 0.0
      %719 = vmatpush1.msra.mxu0 0.0
      %720 = vmatprep.subr.mxu0 0.0
      %721 = vmatpush1.msra.mxu0 0.0
      %722 = vmatprep.subr.mxu0 0.0
      %723 = vmatpush1.msra.mxu0 0.0
      %724 = vmatprep.subr.mxu0 0.0
      %725 = vmatpush1.msra.mxu0 0.0
      %726 = vmatprep.subr.mxu0 0.0
      %727 = vmatpush1.msra.mxu0 0.0
      %728 = vmatprep.subr.mxu0 0.0
      %729 = vmatpush1.msra.mxu0 0.0
      %730 = vmatprep.subr.mxu0 0.0
      %731 = vmatpush1.msra.mxu0 0.0
      %732 = vmatprep.subr.mxu0 0.0
      %733 = vmatpush1.msra.mxu0 0.0
      %734 = vmatprep.subr.mxu0 0.0
      %735 = vmatpush1.msra.mxu0 0.0
      %736 = vmatprep.mubr.f32.mxu0 0.0
      %737 = vmatmul.mubr.f32.gmra.mrb[0].mxu0 %v667
      %v738 = vpop.f32.mrb[0].mxu0
      %v739 = vadd.f32 %v664, %v738
      %v740 = vpop.f32.mrb[0].mxu0
      %741 = vmatprep.mubr.f32.mxu0 0.0
      %742 = vmatmul.mubr.f32.gmra.mrb[0].mxu0 %v670
      %v743 = vpop.f32.mrb[0].mxu0
      %v744 = vadd.f32 %v664, %v743
      %v745 = vpop.f32.mrb[0].mxu0
      %746 = vdwg.mxu0
      %748 = vrot.lane.b32.xlu0 %v739, 96
      %v749 = vpop.permute.xlu0 %748
      %vm750 = vcmask 64512
      %v751 = vsel %vm750, %v739, 0
      %v753 = vsel %vm750, %v749, 0
      %755 = vmatprep.subr.mxu0 0.0
      %756 = vmatpush1.xpose.msra.mxu0 %v753
      %757 = vmatprep.subr.mxu0 0.0
      %758 = vmatpush1.xpose.msra.mxu0 0.0
      %759 = vmatprep.subr.mxu0 0.0
      %760 = vmatpush1.xpose.msra.mxu0 0.0
      %761 = vmatprep.subr.mxu0 0.0
      %762 = vmatpush1.xpose.msra.mxu0 0.0
      %763 = vmatprep.subr.mxu0 0.0
      %764 = vmatpush1.xpose.msra.mxu0 0.0
      %765 = vmatprep.subr.mxu0 0.0
      %766 = vmatpush1.xpose.msra.mxu0 0.0
      %767 = vmatprep.subr.mxu0 0.0
      %768 = vmatpush1.xpose.msra.mxu0 0.0
      %769 = vmatprep.subr.mxu0 0.0
      %770 = vmatpush1.xpose.msra.mxu0 0.0
      %771 = vmatprep.subr.mxu0 0.0
      %772 = vmatpush1.xpose.msra.mxu0 0.0
      %773 = vmatprep.subr.mxu0 0.0
      %774 = vmatpush1.xpose.msra.mxu0 0.0
      %775 = vmatprep.subr.mxu0 0.0
      %776 = vmatpush1.xpose.msra.mxu0 0.0
      %777 = vmatprep.subr.mxu0 0.0
      %778 = vmatpush1.xpose.msra.mxu0 0.0
      %779 = vmatprep.subr.mxu0 0.0
      %780 = vmatpush1.xpose.msra.mxu0 0.0
      %781 = vmatprep.subr.mxu0 0.0
      %782 = vmatpush1.xpose.msra.mxu0 0.0
      %783 = vmatprep.subr.mxu0 0.0
      %784 = vmatpush1.xpose.msra.mxu0 0.0
      %785 = vmatprep.subr.mxu0 0.0
      %786 = vmatpush1.xpose.msra.mxu0 0.0
      %787 = vmatprep.subr.mxu0 0.0
      %788 = vmatpush1.xpose.msra.mxu0 0.0
      %789 = vmatprep.subr.mxu0 0.0
      %790 = vmatpush1.xpose.msra.mxu0 0.0
      %791 = vmatprep.subr.mxu0 0.0
      %792 = vmatpush1.xpose.msra.mxu0 0.0
      %793 = vmatprep.subr.mxu0 0.0
      %794 = vmatpush1.xpose.msra.mxu0 0.0
      %795 = vmatprep.subr.mxu0 0.0
      %796 = vmatpush1.xpose.msra.mxu0 0.0
      %797 = vmatprep.subr.mxu0 0.0
      %798 = vmatpush1.xpose.msra.mxu0 0.0
      %799 = vmatprep.subr.mxu0 0.0
      %800 = vmatpush1.xpose.msra.mxu0 0.0
      %801 = vmatprep.subr.mxu0 0.0
      %802 = vmatpush1.xpose.msra.mxu0 0.0
      %803 = vmatprep.subr.mxu0 0.0
      %804 = vmatpush1.xpose.msra.mxu0 0.0
      %805 = vmatprep.subr.mxu0 0.0
      %806 = vmatpush1.xpose.msra.mxu0 0.0
      %807 = vmatprep.subr.mxu0 0.0
      %808 = vmatpush1.xpose.msra.mxu0 0.0
      %809 = vmatprep.subr.mxu0 0.0
      %810 = vmatpush1.xpose.msra.mxu0 0.0
      %811 = vmatprep.subr.mxu0 0.0
      %812 = vmatpush1.xpose.msra.mxu0 0.0
      %813 = vmatprep.subr.mxu0 0.0
      %814 = vmatpush1.xpose.msra.mxu0 0.0
      %815 = vmatprep.subr.mxu0 0.0
      %816 = vmatpush1.xpose.msra.mxu0 0.0
      %817 = vmatprep.subr.mxu0 0.0
      %818 = vmatpush1.xpose.msra.mxu0 0.0
      %819 = vmatprep.mubr.f32.mxu0 0.0
      %820 = vmatmul.mubr.f32.gmra.mrb[0].mxu0 %v751
      %v821 = vpop.f32.mrb[0].mxu0
      %v822 = vadd.f32 0.0, %v821
      %v823 = vpop.f32.mrb[0].mxu0
      %824 = vdwg.mxu0
      %v825 = vmul.f32 %v822, 0.35355338
      %v826 = vsel %vm750, %v825, -inf
      %827 = vmax.xlane.f32.xlu0 %v826
      %v828 = vpop.xlane.xlu0 %827
      %v829 = vsub.f32 %v825, %v828
      %v830 = vmul.f32 %v829, 1.442695
      %v831 = vpow.pop %v830
      %v832 = vsel %vm750, %v831, 0.0
      %833 = vadd.xlane.f32.xlu0 %v832
      %v834 = vpop.xlane.xlu0 %833
      %v835 = vrcp.pop %v834
      %v836 = vmul.f32 %v831, %v835
      %837 = vrot.lane.b32.xlu0 %v739, 64
      %v838 = vpop.permute.xlu0 %837
      %v841 = vsel %vm750, %v836, 0
      %843 = vmatprep.subr.mxu0 0.0
      %844 = vmatpush1.msra.mxu0 %v838
      %845 = vmatprep.subr.mxu0 0.0
      %846 = vmatpush1.msra.mxu0 0.0
      %847 = vmatprep.subr.mxu0 0.0
      %848 = vmatpush1.msra.mxu0 0.0
      %849 = vmatprep.subr.mxu0 0.0
      %850 = vmatpush1.msra.mxu0 0.0
      %851 = vmatprep.subr.mxu0 0.0
      %852 = vmatpush1.msra.mxu0 0.0
      %853 = vmatprep.subr.mxu0 0.0
      %854 = vmatpush1.msra.mxu0 0.0
      %855 = vmatprep.subr.mxu0 0.0
      %856 = vmatpush1.msra.mxu0 0.0
      %857 = vmatprep.subr.mxu0 0.0
      %858 = vmatpush1.msra.mxu0 0.0
      %859 = vmatprep.subr.mxu0 0.0
      %860 = vmatpush1.msra.mxu0 0.0
      %861 = vmatprep.subr.mxu0 0.0
      %862 = vmatpush1.msra.mxu0 0.0
      %863 = vmatprep.subr.mxu0 0.0
      %864 = vmatpush1.msra.mxu0 0.0
      %865 = vmatprep.subr.mxu0 0.0
      %866 = vmatpush1.msra.mxu0 0.0
      %867 = vmatprep.subr.mxu0 0.0
      %868 = vmatpush1.msra.mxu0 0.0
      %869 = vmatprep.subr.mxu0 0.0
      %870 = vmatpush1.msra.mxu0 0.0
      %871 = vmatprep.subr.mxu0 0.0
      %872 = vmatpush1.msra.mxu0 0.0
      %873 = vmatprep.subr.mxu0 0.0
      %874 = vmatpush1.msra.mxu0 0.0
      %875 = vmatprep.subr.mxu0 0.0
      %876 = vmatpush1.msra.mxu0 0.0
      %877 = vmatprep.subr.mxu0 0.0
      %878 = vmatpush1.msra.mxu0 0.0
      %879 = vmatprep.subr.mxu0 0.0
      %880 = vmatpush1.msra.mxu0 0.0
      %881 = vmatprep.subr.mxu0 0.0
      %882 = vmatpush1.msra.mxu0 0.0
      %883 = vmatprep.subr.mxu0 0.0
      %884 = vmatpush1.msra.mxu0 0.0
      %885 = vmatprep.subr.mxu0 0.0
      %886 = vmatpush1.msra.mxu0 0.0
      %887 = vmatprep.subr.mxu0 0.0
      %888 = vmatpush1.msra.mxu0 0.0
      %889 = vmatprep.subr.mxu0 0.0
      %890 = vmatpush1.msra.mxu0 0.0
      %891 = vmatprep.subr.mxu0 0.0
      %892 = vmatpush1.msra.mxu0 0.0
      %893 = vmatprep.subr.mxu0 0.0
      %894 = vmatpush1.msra.mxu0 0.0
      %895 = vmatprep.subr.mxu0 0.0
      %896 = vmatpush1.msra.mxu0 0.0
      %897 = vmatprep.subr.mxu0 0.0
      %898 = vmatpush1.msra.mxu0 0.0
      %899 = vmatprep.subr.mxu0 0.0
      %900 = vmatpush1.msra.mxu0 0.0
      %901 = vmatprep.subr.mxu0 0.0
      %902 = vmatpush1.msra.mxu0 0.0
      %903 = vmatprep.subr.mxu0 0.0
      %904 = vmatpush1.msra.mxu0 0.0
      %905 = vmatprep.subr.mxu0 0.0
      %906 = vmatpush1.msra.mxu0 0.0
      %907 = vmatprep.mubr.f32.mxu0 0.0
      %908 = vmatmul.mubr.f32.gmra.mrb[0].mxu0 %v841
      %v909 = vpop.f32.mrb[0].mxu0
      %v910 = vadd.f32 0.0, %v909
      %v911 = vpop.f32.mrb[0].mxu0
      %912 = vdwg.mxu0
      %913 = vrot.lane.b32.xlu0 %v739, 120
      %v914 = vpop.permute.xlu0 %913
      %915 = vrot.lane.b32.xlu0 %v739, 88
      %v916 = vpop.permute.xlu0 %915
      %v917 = vsel %vm750, %v914, 0
      %v919 = vsel %vm750, %v916, 0
      %921 = vmatprep.subr.mxu0 0.0
      %922 = vmatpush1.xpose.msra.mxu0 %v919
      %923 = vmatprep.subr.mxu0 0.0
      %924 = vmatpush1.xpose.msra.mxu0 0.0
      %925 = vmatprep.subr.mxu0 0.0
      %926 = vmatpush1.xpose.msra.mxu0 0.0
      %927 = vmatprep.subr.mxu0 0.0
      %928 = vmatpush1.xpose.msra.mxu0 0.0
      %929 = vmatprep.subr.mxu0 0.0
      %930 = vmatpush1.xpose.msra.mxu0 0.0
      %931 = vmatprep.subr.mxu0 0.0
      %932 = vmatpush1.xpose.msra.mxu0 0.0
      %933 = vmatprep.subr.mxu0 0.0
      %934 = vmatpush1.xpose.msra.mxu0 0.0
      %935 = vmatprep.subr.mxu0 0.0
      %936 = vmatpush1.xpose.msra.mxu0 0.0
      %937 = vmatprep.subr.mxu0 0.0
      %938 = vmatpush1.xpose.msra.mxu0 0.0
      %939 = vmatprep.subr.mxu0 0.0
      %940 = vmatpush1.xpose.msra.mxu0 0.0
      %941 = vmatprep.subr.mxu0 0.0
      %942 = vmatpush1.xpose.msra.mxu0 0.0
      %943 = vmatprep.subr.mxu0 0.0
      %944 = vmatpush1.xpose.msra.mxu0 0.0
      %945 = vmatprep.subr.mxu0 0.0
      %946 = vmatpush1.xpose.msra.mxu0 0.0
      %947 = vmatprep.subr.mxu0 0.0
      %948 = vmatpush1.xpose.msra.mxu0 0.0
      %949 = vmatprep.subr.mxu0 0.0
      %950 = vmatpush1.xpose.msra.mxu0 0.0
      %951 = vmatprep.subr.mxu0 0.0
      %952 = vmatpush1.xpose.msra.mxu0 0.0
      %953 = vmatprep.subr.mxu0 0.0
      %954 = vmatpush1.xpose.msra.mxu0 0.0
      %955 = vmatprep.subr.mxu0 0.0
      %956 = vmatpush1.xpose.msra.mxu0 0.0
      %957 = vmatprep.subr.mxu0 0.0
      %958 = vmatpush1.xpose.msra.mxu0 0.0
      %959 = vmatprep.subr.mxu0 0.0
      %960 = vmatpush1.xpose.msra.mxu0 0.0
      %961 = vmatprep.subr.mxu0 0.0
      %962 = vmatpush1.xpose.msra.mxu0 0.0
      %963 = vmatprep.subr.mxu0 0.0
      %964 = vmatpush1.xpose.msra.mxu0 0.0
      %965 = vmatprep.subr.mxu0 0.0
      %966 = vmatpush1.xpose.msra.mxu0 0.0
      %967 = vmatprep.subr.mxu0 0.0
      %968 = vmatpush1.xpose.msra.mxu0 0.0
      %969 = vmatprep.subr.mxu0 0.0
      %970 = vmatpush1.xpose.msra.mxu0 0.0
      %971 = vmatprep.subr.mxu0 0.0
      %972 = vmatpush1.xpose.msra.mxu0 0.0
      %973 = vmatprep.subr.mxu0 0.0
      %974 = vmatpush1.xpose.msra.mxu0 0.0
      %975 = vmatprep.subr.mxu0 0.0
      %976 = vmatpush1.xpose.msra.mxu0 0.0
      %977 = vmatprep.subr.mxu0 0.0
      %978 = vmatpush1.xpose.msra.mxu0 0.0
      %979 = vmatprep.subr.mxu0 0.0
      %980 = vmatpush1.xpose.msra.mxu0 0.0
      %981 = vmatprep.subr.mxu0 0.0
      %982 = vmatpush1.xpose.msra.mxu0 0.0
      %983 = vmatprep.subr.mxu0 0.0
      %984 = vmatpush1.xpose.msra.mxu0 0.0
      %985 = vmatprep.mubr.f32.mxu0 0.0
      %986 = vmatmul.mubr.f32.gmra.mrb[0].mxu0 %v917
      %v987 = vpop.f32.mrb[0].mxu0
      %v988 = vadd.f32 0.0, %v987
      %v989 = vpop.f32.mrb[0].mxu0
      %990 = vdwg.mxu0
      %v991 = vmul.f32 %v988, 0.35355338
      %v992 = vsel %vm750, %v991, -inf
      %993 = vmax.xlane.f32.xlu0 %v992
      %v994 = vpop.xlane.xlu0 %993
      %v995 = vsub.f32 %v991, %v994
      %v996 = vmul.f32 %v995, 1.442695
      %v997 = vpow.pop %v996
      %v998 = vsel %vm750, %v997, 0.0
      %999 = vadd.xlane.f32.xlu0 %v998
      %v1000 = vpop.xlane.xlu0 %999
      %v1001 = vrcp.pop %v1000
      %v1002 = vmul.f32 %v997, %v1001
      %1003 = vrot.lane.b32.xlu0 %v739, 56
      %v1004 = vpop.permute.xlu0 %1003
      %v1007 = vsel %vm750, %v1002, 0
      %1009 = vmatprep.subr.mxu0 0.0
      %1010 = vmatpush1.msra.mxu0 %v1004
      %1011 = vmatprep.subr.mxu0 0.0
      %1012 = vmatpush1.msra.mxu0 0.0
      %1013 = vmatprep.subr.mxu0 0.0
      %1014 = vmatpush1.msra.mxu0 0.0
      %1015 = vmatprep.subr.mxu0 0.0
      %1016 = vmatpush1.msra.mxu0 0.0
      %1017 = vmatprep.subr.mxu0 0.0
      %1018 = vmatpush1.msra.mxu0 0.0
      %1019 = vmatprep.subr.mxu0 0.0
      %1020 = vmatpush1.msra.mxu0 0.0
      %1021 = vmatprep.subr.mxu0 0.0
      %1022 = vmatpush1.msra.mxu0 0.0
      %1023 = vmatprep.subr.mxu0 0.0
      %1024 = vmatpush1.msra.mxu0 0.0
      %1025 = vmatprep.subr.mxu0 0.0
      %1026 = vmatpush1.msra.mxu0 0.0
      %1027 = vmatprep.subr.mxu0 0.0
      %1028 = vmatpush1.msra.mxu0 0.0
      %1029 = vmatprep.subr.mxu0 0.0
      %1030 = vmatpush1.msra.mxu0 0.0
      %1031 = vmatprep.subr.mxu0 0.0
      %1032 = vmatpush1.msra.mxu0 0.0
      %1033 = vmatprep.subr.mxu0 0.0
      %1034 = vmatpush1.msra.mxu0 0.0
      %1035 = vmatprep.subr.mxu0 0.0
      %1036 = vmatpush1.msra.mxu0 0.0
      %1037 = vmatprep.subr.mxu0 0.0
      %1038 = vmatpush1.msra.mxu0 0.0
      %1039 = vmatprep.subr.mxu0 0.0
      %1040 = vmatpush1.msra.mxu0 0.0
      %1041 = vmatprep.subr.mxu0 0.0
      %1042 = vmatpush1.msra.mxu0 0.0
      %1043 = vmatprep.subr.mxu0 0.0
      %1044 = vmatpush1.msra.mxu0 0.0
      %1045 = vmatprep.subr.mxu0 0.0
      %1046 = vmatpush1.msra.mxu0 0.0
      %1047 = vmatprep.subr.mxu0 0.0
      %1048 = vmatpush1.msra.mxu0 0.0
      %1049 = vmatprep.subr.mxu0 0.0
      %1050 = vmatpush1.msra.mxu0 0.0
      %1051 = vmatprep.subr.mxu0 0.0
      %1052 = vmatpush1.msra.mxu0 0.0
      %1053 = vmatprep.subr.mxu0 0.0
      %1054 = vmatpush1.msra.mxu0 0.0
      %1055 = vmatprep.subr.mxu0 0.0
      %1056 = vmatpush1.msra.mxu0 0.0
      %1057 = vmatprep.subr.mxu0 0.0
      %1058 = vmatpush1.msra.mxu0 0.0
      %1059 = vmatprep.subr.mxu0 0.0
      %1060 = vmatpush1.msra.mxu0 0.0
      %1061 = vmatprep.subr.mxu0 0.0
      %1062 = vmatpush1.msra.mxu0 0.0
      %1063 = vmatprep.subr.mxu0 0.0
      %1064 = vmatpush1.msra.mxu0 0.0
      %1065 = vmatprep.subr.mxu0 0.0
      %1066 = vmatpush1.msra.mxu0 0.0
      %1067 = vmatprep.subr.mxu0 0.0
      %1068 = vmatpush1.msra.mxu0 0.0
      %1069 = vmatprep.subr.mxu0 0.0
      %1070 = vmatpush1.msra.mxu0 0.0
      %1071 = vmatprep.subr.mxu0 0.0
      %1072 = vmatpush1.msra.mxu0 0.0
      %1073 = vmatprep.mubr.f32.mxu0 0.0
      %1074 = vmatmul.mubr.f32.gmra.mrb[0].mxu0 %v1007
      %v1075 = vpop.f32.mrb[0].mxu0
      %v1076 = vadd.f32 0.0, %v1075
      %v1077 = vpop.f32.mrb[0].mxu0
      %1078 = vdwg.mxu0
      %1079 = vrot.lane.b32.xlu0 %v739, 112
      %v1080 = vpop.permute.xlu0 %1079
      %1081 = vrot.lane.b32.xlu0 %v739, 80
      %v1082 = vpop.permute.xlu0 %1081
      %v1083 = vsel %vm750, %v1080, 0
      %v1085 = vsel %vm750, %v1082, 0
      %1087 = vmatprep.subr.mxu0 0.0
      %1088 = vmatpush1.xpose.msra.mxu0 %v1085
      %1089 = vmatprep.subr.mxu0 0.0
      %1090 = vmatpush1.xpose.msra.mxu0 0.0
      %1091 = vmatprep.subr.mxu0 0.0
      %1092 = vmatpush1.xpose.msra.mxu0 0.0
      %1093 = vmatprep.subr.mxu0 0.0
      %1094 = vmatpush1.xpose.msra.mxu0 0.0
      %1095 = vmatprep.subr.mxu0 0.0
      %1096 = vmatpush1.xpose.msra.mxu0 0.0
      %1097 = vmatprep.subr.mxu0 0.0
      %1098 = vmatpush1.xpose.msra.mxu0 0.0
      %1099 = vmatprep.subr.mxu0 0.0
      %1100 = vmatpush1.xpose.msra.mxu0 0.0
      %1101 = vmatprep.subr.mxu0 0.0
      %1102 = vmatpush1.xpose.msra.mxu0 0.0
      %1103 = vmatprep.subr.mxu0 0.0
      %1104 = vmatpush1.xpose.msra.mxu0 0.0
      %1105 = vmatprep.subr.mxu0 0.0
      %1106 = vmatpush1.xpose.msra.mxu0 0.0
      %1107 = vmatprep.subr.mxu0 0.0
      %1108 = vmatpush1.xpose.msra.mxu0 0.0
      %1109 = vmatprep.subr.mxu0 0.0
      %1110 = vmatpush1.xpose.msra.mxu0 0.0
      %1111 = vmatprep.subr.mxu0 0.0
      %1112 = vmatpush1.xpose.msra.mxu0 0.0
      %1113 = vmatprep.subr.mxu0 0.0
      %1114 = vmatpush1.xpose.msra.mxu0 0.0
      %1115 = vmatprep.subr.mxu0 0.0
      %1116 = vmatpush1.xpose.msra.mxu0 0.0
      %1117 = vmatprep.subr.mxu0 0.0
      %1118 = vmatpush1.xpose.msra.mxu0 0.0
      %1119 = vmatprep.subr.mxu0 0.0
      %1120 = vmatpush1.xpose.msra.mxu0 0.0
      %1121 = vmatprep.subr.mxu0 0.0
      %1122 = vmatpush1.xpose.msra.mxu0 0.0
      %1123 = vmatprep.subr.mxu0 0.0
      %1124 = vmatpush1.xpose.msra.mxu0 0.0
      %1125 = vmatprep.subr.mxu0 0.0
      %1126 = vmatpush1.xpose.msra.mxu0 0.0
      %1127 = vmatprep.subr.mxu0 0.0
      %1128 = vmatpush1.xpose.msra.mxu0 0.0
      %1129 = vmatprep.subr.mxu0 0.0
      %1130 = vmatpush1.xpose.msra.mxu0 0.0
      %1131 = vmatprep.subr.mxu0 0.0
      %1132 = vmatpush1.xpose.msra.mxu0 0.0
      %1133 = vmatprep.subr.mxu0 0.0
      %1134 = vmatpush1.xpose.msra.mxu0 0.0
      %1135 = vmatprep.subr.mxu0 0.0
      %1136 = vmatpush1.xpose.msra.mxu0 0.0
      %1137 = vmatprep.subr.mxu0 0.0
      %1138 = vmatpush1.xpose.msra.mxu0 0.0
      %1139 = vmatprep.subr.mxu0 0.0
      %1140 = vmatpush1.xpose.msra.mxu0 0.0
      %1141 = vmatprep.subr.mxu0 0.0
      %1142 = vmatpush1.xpose.msra.mxu0 0.0
      %1143 = vmatprep.subr.mxu0 0.0
      %1144 = vmatpush1.xpose.msra.mxu0 0.0
      %1145 = vmatprep.subr.mxu0 0.0
      %1146 = vmatpush1.xpose.msra.mxu0 0.0
      %1147 = vmatprep.subr.mxu0 0.0
      %1148 = vmatpush1.xpose.msra.mxu0 0.0
      %1149 = vmatprep.subr.mxu0 0.0
      %1150 = vmatpush1.xpose.msra.mxu0 0.0
      %1151 = vmatprep.mubr.f32.mxu0 0.0
      %1152 = vmatmul.mubr.f32.gmra.mrb[0].mxu0 %v1083
      %v1153 = vpop.f32.mrb[0].mxu0
      %v1154 = vadd.f32 0.0, %v1153
      %v1155 = vpop.f32.mrb[0].mxu0
      %1156 = vdwg.mxu0
      %v1157 = vmul.f32 %v1154, 0.35355338
      %v1158 = vsel %vm750, %v1157, -inf
      %1159 = vmax.xlane.f32.xlu0 %v1158
      %v1160 = vpop.xlane.xlu0 %1159
      %v1161 = vsub.f32 %v1157, %v1160
      %v1162 = vmul.f32 %v1161, 1.442695
      %v1163 = vpow.pop %v1162
      %v1164 = vsel %vm750, %v1163, 0.0
      %1165 = vadd.xlane.f32.xlu0 %v1164
      %v1166 = vpop.xlane.xlu0 %1165
      %v1167 = vrcp.pop %v1166
      %v1168 = vmul.f32 %v1163, %v1167
      %1169 = vrot.lane.b32.xlu0 %v739, 48
      %v1170 = vpop.permute.xlu0 %1169
      %v1173 = vsel %vm750, %v1168, 0
      %1175 = vmatprep.subr.mxu0 0.0
      %1176 = vmatpush1.msra.mxu0 %v1170
      %1177 = vmatprep.subr.mxu0 0.0
      %1178 = vmatpush1.msra.mxu0 0.0
      %1179 = vmatprep.subr.mxu0 0.0
      %1180 = vmatpush1.msra.mxu0 0.0
      %1181 = vmatprep.subr.mxu0 0.0
      %1182 = vmatpush1.msra.mxu0 0.0
      %1183 = vmatprep.subr.mxu0 0.0
      %1184 = vmatpush1.msra.mxu0 0.0
      %1185 = vmatprep.subr.mxu0 0.0
      %1186 = vmatpush1.msra.mxu0 0.0
      %1187 = vmatprep.subr.mxu0 0.0
      %1188 = vmatpush1.msra.mxu0 0.0
      %1189 = vmatprep.subr.mxu0 0.0
      %1190 = vmatpush1.msra.mxu0 0.0
      %1191 = vmatprep.subr.mxu0 0.0
      %1192 = vmatpush1.msra.mxu0 0.0
      %1193 = vmatprep.subr.mxu0 0.0
      %1194 = vmatpush1.msra.mxu0 0.0
      %1195 = vmatprep.subr.mxu0 0.0
      %1196 = vmatpush1.msra.mxu0 0.0
      %1197 = vmatprep.subr.mxu0 0.0
      %1198 = vmatpush1.msra.mxu0 0.0
      %1199 = vmatprep.subr.mxu0 0.0
      %1200 = vmatpush1.msra.mxu0 0.0
      %1201 = vmatprep.subr.mxu0 0.0
      %1202 = vmatpush1.msra.mxu0 0.0
      %1203 = vmatprep.subr.mxu0 0.0
      %1204 = vmatpush1.msra.mxu0 0.0
      %1205 = vmatprep.subr.mxu0 0.0
      %1206 = vmatpush1.msra.mxu0 0.0
      %1207 = vmatprep.subr.mxu0 0.0
      %1208 = vmatpush1.msra.mxu0 0.0
      %1209 = vmatprep.subr.mxu0 0.0
      %1210 = vmatpush1.msra.mxu0 0.0
      %1211 = vmatprep.subr.mxu0 0.0
      %1212 = vmatpush1.msra.mxu0 0.0
      %1213 = vmatprep.subr.mxu0 0.0
      %1214 = vmatpush1.msra.mxu0 0.0
      %1215 = vmatprep.subr.mxu0 0.0
      %1216 = vmatpush1.msra.mxu0 0.0
      %1217 = vmatprep.subr.mxu0 0.0
      %1218 = vmatpush1.msra.mxu0 0.0
      %1219 = vmatprep.subr.mxu0 0.0
      %1220 = vmatpush1.msra.mxu0 0.0
      %1221 = vmatprep.subr.mxu0 0.0
      %1222 = vmatpush1.msra.mxu0 0.0
      %1223 = vmatprep.subr.mxu0 0.0
      %1224 = vmatpush1.msra.mxu0 0.0
      %1225 = vmatprep.subr.mxu0 0.0
      %1226 = vmatpush1.msra.mxu0 0.0
      %1227 = vmatprep.subr.mxu0 0.0
      %1228 = vmatpush1.msra.mxu0 0.0
      %1229 = vmatprep.subr.mxu0 0.0
      %1230 = vmatpush1.msra.mxu0 0.0
      %1231 = vmatprep.subr.mxu0 0.0
      %1232 = vmatpush1.msra.mxu0 0.0
      %1233 = vmatprep.subr.mxu0 0.0
      %1234 = vmatpush1.msra.mxu0 0.0
      %1235 = vmatprep.subr.mxu0 0.0
      %1236 = vmatpush1.msra.mxu0 0.0
      %1237 = vmatprep.subr.mxu0 0.0
      %1238 = vmatpush1.msra.mxu0 0.0
      %1239 = vmatprep.mubr.f32.mxu0 0.0
      %1240 = vmatmul.mubr.f32.gmra.mrb[0].mxu0 %v1173
      %v1241 = vpop.f32.mrb[0].mxu0
      %v1242 = vadd.f32 0.0, %v1241
      %v1243 = vpop.f32.mrb[0].mxu0
      %1244 = vdwg.mxu0
      %1245 = vrot.lane.b32.xlu0 %v739, 104
      %v1246 = vpop.permute.xlu0 %1245
      %1247 = vrot.lane.b32.xlu0 %v739, 72
      %v1248 = vpop.permute.xlu0 %1247
      %v1249 = vsel %vm750, %v1246, 0
      %v1251 = vsel %vm750, %v1248, 0
      %1253 = vmatprep.subr.mxu0 0.0
      %1254 = vmatpush1.xpose.msra.mxu0 %v1251
      %1255 = vmatprep.subr.mxu0 0.0
      %1256 = vmatpush1.xpose.msra.mxu0 0.0
      %1257 = vmatprep.subr.mxu0 0.0
      %1258 = vmatpush1.xpose.msra.mxu0 0.0
      %1259 = vmatprep.subr.mxu0 0.0
      %1260 = vmatpush1.xpose.msra.mxu0 0.0
      %1261 = vmatprep.subr.mxu0 0.0
      %1262 = vmatpush1.xpose.msra.mxu0 0.0
      %1263 = vmatprep.subr.mxu0 0.0
      %1264 = vmatpush1.xpose.msra.mxu0 0.0
      %1265 = vmatprep.subr.mxu0 0.0
      %1266 = vmatpush1.xpose.msra.mxu0 0.0
      %1267 = vmatprep.subr.mxu0 0.0
      %1268 = vmatpush1.xpose.msra.mxu0 0.0
      %1269 = vmatprep.subr.mxu0 0.0
      %1270 = vmatpush1.xpose.msra.mxu0 0.0
      %1271 = vmatprep.subr.mxu0 0.0
      %1272 = vmatpush1.xpose.msra.mxu0 0.0
      %1273 = vmatprep.subr.mxu0 0.0
      %1274 = vmatpush1.xpose.msra.mxu0 0.0
      %1275 = vmatprep.subr.mxu0 0.0
      %1276 = vmatpush1.xpose.msra.mxu0 0.0
      %1277 = vmatprep.subr.mxu0 0.0
      %1278 = vmatpush1.xpose.msra.mxu0 0.0
      %1279 = vmatprep.subr.mxu0 0.0
      %1280 = vmatpush1.xpose.msra.mxu0 0.0
      %1281 = vmatprep.subr.mxu0 0.0
      %1282 = vmatpush1.xpose.msra.mxu0 0.0
      %1283 = vmatprep.subr.mxu0 0.0
      %1284 = vmatpush1.xpose.msra.mxu0 0.0
      %1285 = vmatprep.subr.mxu0 0.0
      %1286 = vmatpush1.xpose.msra.mxu0 0.0
      %1287 = vmatprep.subr.mxu0 0.0
      %1288 = vmatpush1.xpose.msra.mxu0 0.0
      %1289 = vmatprep.subr.mxu0 0.0
      %1290 = vmatpush1.xpose.msra.mxu0 0.0
      %1291 = vmatprep.subr.mxu0 0.0
      %1292 = vmatpush1.xpose.msra.mxu0 0.0
      %1293 = vmatprep.subr.mxu0 0.0
      %1294 = vmatpush1.xpose.msra.mxu0 0.0
      %1295 = vmatprep.subr.mxu0 0.0
      %1296 = vmatpush1.xpose.msra.mxu0 0.0
      %1297 = vmatprep.subr.mxu0 0.0
      %1298 = vmatpush1.xpose.msra.mxu0 0.0
      %1299 = vmatprep.subr.mxu0 0.0
      %1300 = vmatpush1.xpose.msra.mxu0 0.0
      %1301 = vmatprep.subr.mxu0 0.0
      %1302 = vmatpush1.xpose.msra.mxu0 0.0
      %1303 = vmatprep.subr.mxu0 0.0
      %1304 = vmatpush1.xpose.msra.mxu0 0.0
      %1305 = vmatprep.subr.mxu0 0.0
      %1306 = vmatpush1.xpose.msra.mxu0 0.0
      %1307 = vmatprep.subr.mxu0 0.0
      %1308 = vmatpush1.xpose.msra.mxu0 0.0
      %1309 = vmatprep.subr.mxu0 0.0
      %1310 = vmatpush1.xpose.msra.mxu0 0.0
      %1311 = vmatprep.subr.mxu0 0.0
      %1312 = vmatpush1.xpose.msra.mxu0 0.0
      %1313 = vmatprep.subr.mxu0 0.0
      %1314 = vmatpush1.xpose.msra.mxu0 0.0
      %1315 = vmatprep.subr.mxu0 0.0
      %1316 = vmatpush1.xpose.msra.mxu0 0.0
      %1317 = vmatprep.mubr.f32.mxu0 0.0
      %1318 = vmatmul.mubr.f32.gmra.mrb[0].mxu0 %v1249
      %v1319 = vpop.f32.mrb[0].mxu0
      %v1320 = vadd.f32 0.0, %v1319
      %v1321 = vpop.f32.mrb[0].mxu0
      %1322 = vdwg.mxu0
      %v1323 = vmul.f32 %v1320, 0.35355338
      %v1324 = vsel %vm750, %v1323, -inf
      %1325 = vmax.xlane.f32.xlu0 %v1324
      %v1326 = vpop.xlane.xlu0 %1325
      %v1327 = vsub.f32 %v1323, %v1326
      %v1328 = vmul.f32 %v1327, 1.442695
      %v1329 = vpow.pop %v1328
      %v1330 = vsel %vm750, %v1329, 0.0
      %1331 = vadd.xlane.f32.xlu0 %v1330
      %v1332 = vpop.xlane.xlu0 %1331
      %v1333 = vrcp.pop %v1332
      %v1334 = vmul.f32 %v1329, %v1333
      %1335 = vrot.lane.b32.xlu0 %v739, 40
      %v1336 = vpop.permute.xlu0 %1335
      %v1339 = vsel %vm750, %v1334, 0
      %1341 = vmatprep.subr.mxu0 0.0
      %1342 = vmatpush1.msra.mxu0 %v1336
      %1343 = vmatprep.subr.mxu0 0.0
      %1344 = vmatpush1.msra.mxu0 0.0
      %1345 = vmatprep.subr.mxu0 0.0
      %1346 = vmatpush1.msra.mxu0 0.0
      %1347 = vmatprep.subr.mxu0 0.0
      %1348 = vmatpush1.msra.mxu0 0.0
      %1349 = vmatprep.subr.mxu0 0.0
      %1350 = vmatpush1.msra.mxu0 0.0
      %1351 = vmatprep.subr.mxu0 0.0
      %1352 = vmatpush1.msra.mxu0 0.0
      %1353 = vmatprep.subr.mxu0 0.0
      %1354 = vmatpush1.msra.mxu0 0.0
      %1355 = vmatprep.subr.mxu0 0.0
      %1356 = vmatpush1.msra.mxu0 0.0
      %1357 = vmatprep.subr.mxu0 0.0
      %1358 = vmatpush1.msra.mxu0 0.0
      %1359 = vmatprep.subr.mxu0 0.0
      %1360 = vmatpush1.msra.mxu0 0.0
      %1361 = vmatprep.subr.mxu0 0.0
      %1362 = vmatpush1.msra.mxu0 0.0
      %1363 = vmatprep.subr.mxu0 0.0
      %1364 = vmatpush1.msra.mxu0 0.0
      %1365 = vmatprep.subr.mxu0 0.0
      %1366 = vmatpush1.msra.mxu0 0.0
      %1367 = vmatprep.subr.mxu0 0.0
      %1368 = vmatpush1.msra.mxu0 0.0
      %1369 = vmatprep.subr.mxu0 0.0
      %1370 = vmatpush1.msra.mxu0 0.0
      %1371 = vmatprep.subr.mxu0 0.0
      %1372 = vmatpush1.msra.mxu0 0.0
      %1373 = vmatprep.subr.mxu0 0.0
      %1374 = vmatpush1.msra.mxu0 0.0
      %1375 = vmatprep.subr.mxu0 0.0
      %1376 = vmatpush1.msra.mxu0 0.0
      %1377 = vmatprep.subr.mxu0 0.0
      %1378 = vmatpush1.msra.mxu0 0.0
      %1379 = vmatprep.subr.mxu0 0.0
      %1380 = vmatpush1.msra.mxu0 0.0
      %1381 = vmatprep.subr.mxu0 0.0
      %1382 = vmatpush1.msra.mxu0 0.0
      %1383 = vmatprep.subr.mxu0 0.0
      %1384 = vmatpush1.msra.mxu0 0.0
      %1385 = vmatprep.subr.mxu0 0.0
      %1386 = vmatpush1.msra.mxu0 0.0
      %1387 = vmatprep.subr.mxu0 0.0
      %1388 = vmatpush1.msra.mxu0 0.0
      %1389 = vmatprep.subr.mxu0 0.0
      %1390 = vmatpush1.msra.mxu0 0.0
      %1391 = vmatprep.subr.mxu0 0.0
      %1392 = vmatpush1.msra.mxu0 0.0
      %1393 = vmatprep.subr.mxu0 0.0
      %1394 = vmatpush1.msra.mxu0 0.0
      %1395 = vmatprep.subr.mxu0 0.0
      %1396 = vmatpush1.msra.mxu0 0.0
      %1397 = vmatprep.subr.mxu0 0.0
      %1398 = vmatpush1.msra.mxu0 0.0
      %1399 = vmatprep.subr.mxu0 0.0
      %1400 = vmatpush1.msra.mxu0 0.0
      %1401 = vmatprep.subr.mxu0 0.0
      %1402 = vmatpush1.msra.mxu0 0.0
      %1403 = vmatprep.subr.mxu0 0.0
      %1404 = vmatpush1.msra.mxu0 0.0
      %1405 = vmatprep.mubr.f32.mxu0 0.0
      %1406 = vmatmul.mubr.f32.gmra.mrb[0].mxu0 %v1339
      %v1407 = vpop.f32.mrb[0].mxu0
      %v1408 = vadd.f32 0.0, %v1407
      %v1409 = vpop.f32.mrb[0].mxu0
      %1410 = vdwg.mxu0
      %1412 = vrot.lane.b32.xlu0 %v1076, 8
      %v1413 = vpop.permute.xlu0 %1412
      %1416 = vrot.lane.b32.xlu0 %v1242, 16
      %v1417 = vpop.permute.xlu0 %1416
      %1420 = vrot.lane.b32.xlu0 %v1408, 24
      %v1421 = vpop.permute.xlu0 %1420
      %v1423 = vsel %vm750, %v910, %v1413
      %vm1424 = vcmask 130048
      %v1425 = vsel %vm1424, %v1423, %v1417
      %vm1426 = vcmask 195584
      %v1427 = vsel %vm1426, %v1425, %v1421
      %1429 = vrot.lane.b32.xlu0 %v744, 96
      %v1430 = vpop.permute.xlu0 %1429
      %v1431 = vsel %vm750, %v744, 0
      %v1433 = vsel %vm750, %v1430, 0
      %1435 = vmatprep.subr.mxu0 0.0
      %1436 = vmatpush1.xpose.msra.mxu0 %v1433
      %1437 = vmatprep.subr.mxu0 0.0
      %1438 = vmatpush1.xpose.msra.mxu0 0.0
      %1439 = vmatprep.subr.mxu0 0.0
      %1440 = vmatpush1.xpose.msra.mxu0 0.0
      %1441 = vmatprep.subr.mxu0 0.0
      %1442 = vmatpush1.xpose.msra.mxu0 0.0
      %1443 = vmatprep.subr.mxu0 0.0
      %1444 = vmatpush1.xpose.msra.mxu0 0.0
      %1445 = vmatprep.subr.mxu0 0.0
      %1446 = vmatpush1.xpose.msra.mxu0 0.0
      %1447 = vmatprep.subr.mxu0 0.0
      %1448 = vmatpush1.xpose.msra.mxu0 0.0
      %1449 = vmatprep.subr.mxu0 0.0
      %1450 = vmatpush1.xpose.msra.mxu0 0.0
      %1451 = vmatprep.subr.mxu0 0.0
      %1452 = vmatpush1.xpose.msra.mxu0 0.0
      %1453 = vmatprep.subr.mxu0 0.0
      %1454 = vmatpush1.xpose.msra.mxu0 0.0
      %1455 = vmatprep.subr.mxu0 0.0
      %1456 = vmatpush1.xpose.msra.mxu0 0.0
      %1457 = vmatprep.subr.mxu0 0.0
      %1458 = vmatpush1.xpose.msra.mxu0 0.0
      %1459 = vmatprep.subr.mxu0 0.0
      %1460 = vmatpush1.xpose.msra.mxu0 0.0
      %1461 = vmatprep.subr.mxu0 0.0
      %1462 = vmatpush1.xpose.msra.mxu0 0.0
      %1463 = vmatprep.subr.mxu0 0.0
      %1464 = vmatpush1.xpose.msra.mxu0 0.0
      %1465 = vmatprep.subr.mxu0 0.0
      %1466 = vmatpush1.xpose.msra.mxu0 0.0
      %1467 = vmatprep.subr.mxu0 0.0
      %1468 = vmatpush1.xpose.msra.mxu0 0.0
      %1469 = vmatprep.subr.mxu0 0.0
      %1470 = vmatpush1.xpose.msra.mxu0 0.0
      %1471 = vmatprep.subr.mxu0 0.0
      %1472 = vmatpush1.xpose.msra.mxu0 0.0
      %1473 = vmatprep.subr.mxu0 0.0
      %1474 = vmatpush1.xpose.msra.mxu0 0.0
      %1475 = vmatprep.subr.mxu0 0.0
      %1476 = vmatpush1.xpose.msra.mxu0 0.0
      %1477 = vmatprep.subr.mxu0 0.0
      %1478 = vmatpush1.xpose.msra.mxu0 0.0
      %1479 = vmatprep.subr.mxu0 0.0
      %1480 = vmatpush1.xpose.msra.mxu0 0.0
      %1481 = vmatprep.subr.mxu0 0.0
      %1482 = vmatpush1.xpose.msra.mxu0 0.0
      %1483 = vmatprep.subr.mxu0 0.0
      %1484 = vmatpush1.xpose.msra.mxu0 0.0
      %1485 = vmatprep.subr.mxu0 0.0
      %1486 = vmatpush1.xpose.msra.mxu0 0.0
      %1487 = vmatprep.subr.mxu0 0.0
      %1488 = vmatpush1.xpose.msra.mxu0 0.0
      %1489 = vmatprep.subr.mxu0 0.0
      %1490 = vmatpush1.xpose.msra.mxu0 0.0
      %1491 = vmatprep.subr.mxu0 0.0
      %1492 = vmatpush1.xpose.msra.mxu0 0.0
      %1493 = vmatprep.subr.mxu0 0.0
      %1494 = vmatpush1.xpose.msra.mxu0 0.0
      %1495 = vmatprep.subr.mxu0 0.0
      %1496 = vmatpush1.xpose.msra.mxu0 0.0
      %1497 = vmatprep.subr.mxu0 0.0
      %1498 = vmatpush1.xpose.msra.mxu0 0.0
      %1499 = vmatprep.mubr.f32.mxu0 0.0
      %1500 = vmatmul.mubr.f32.gmra.mrb[0].mxu0 %v1431
      %v1501 = vpop.f32.mrb[0].mxu0
      %v1502 = vadd.f32 0.0, %v1501
      %v1503 = vpop.f32.mrb[0].mxu0
      %1504 = vdwg.mxu0
      %v1505 = vmul.f32 %v1502, 0.35355338
      %v1506 = vsel %vm750, %v1505, -inf
      %1507 = vmax.xlane.f32.xlu0 %v1506
      %v1508 = vpop.xlane.xlu0 %1507
      %v1509 = vsub.f32 %v1505, %v1508
      %v1510 = vmul.f32 %v1509, 1.442695
      %v1511 = vpow.pop %v1510
      %v1512 = vsel %vm750, %v1511, 0.0
      %1513 = vadd.xlane.f32.xlu0 %v1512
      %v1514 = vpop.xlane.xlu0 %1513
      %v1515 = vrcp.pop %v1514
      %v1516 = vmul.f32 %v1511, %v1515
      %1517 = vrot.lane.b32.xlu0 %v744, 64
      %v1518 = vpop.permute.xlu0 %1517
      %v1521 = vsel %vm750, %v1516, 0
      %1523 = vmatprep.subr.mxu0 0.0
      %1524 = vmatpush1.msra.mxu0 %v1518
      %1525 = vmatprep.subr.mxu0 0.0
      %1526 = vmatpush1.msra.mxu0 0.0
      %1527 = vmatprep.subr.mxu0 0.0
      %1528 = vmatpush1.msra.mxu0 0.0
      %1529 = vmatprep.subr.mxu0 0.0
      %1530 = vmatpush1.msra.mxu0 0.0
      %1531 = vmatprep.subr.mxu0 0.0
      %1532 = vmatpush1.msra.mxu0 0.0
      %1533 = vmatprep.subr.mxu0 0.0
      %1534 = vmatpush1.msra.mxu0 0.0
      %1535 = vmatprep.subr.mxu0 0.0
      %1536 = vmatpush1.msra.mxu0 0.0
      %1537 = vmatprep.subr.mxu0 0.0
      %1538 = vmatpush1.msra.mxu0 0.0
      %1539 = vmatprep.subr.mxu0 0.0
      %1540 = vmatpush1.msra.mxu0 0.0
      %1541 = vmatprep.subr.mxu0 0.0
      %1542 = vmatpush1.msra.mxu0 0.0
      %1543 = vmatprep.subr.mxu0 0.0
      %1544 = vmatpush1.msra.mxu0 0.0
      %1545 = vmatprep.subr.mxu0 0.0
      %1546 = vmatpush1.msra.mxu0 0.0
      %1547 = vmatprep.subr.mxu0 0.0
      %1548 = vmatpush1.msra.mxu0 0.0
      %1549 = vmatprep.subr.mxu0 0.0
      %1550 = vmatpush1.msra.mxu0 0.0
      %1551 = vmatprep.subr.mxu0 0.0
      %1552 = vmatpush1.msra.mxu0 0.0
      %1553 = vmatprep.subr.mxu0 0.0
      %1554 = vmatpush1.msra.mxu0 0.0
      %1555 = vmatprep.subr.mxu0 0.0
      %1556 = vmatpush1.msra.mxu0 0.0
      %1557 = vmatprep.subr.mxu0 0.0
      %1558 = vmatpush1.msra.mxu0 0.0
      %1559 = vmatprep.subr.mxu0 0.0
      %1560 = vmatpush1.msra.mxu0 0.0
      %1561 = vmatprep.subr.mxu0 0.0
      %1562 = vmatpush1.msra.mxu0 0.0
      %1563 = vmatprep.subr.mxu0 0.0
      %1564 = vmatpush1.msra.mxu0 0.0
      %1565 = vmatprep.subr.mxu0 0.0
      %1566 = vmatpush1.msra.mxu0 0.0
      %1567 = vmatprep.subr.mxu0 0.0
      %1568 = vmatpush1.msra.mxu0 0.0
      %1569 = vmatprep.subr.mxu0 0.0
      %1570 = vmatpush1.msra.mxu0 0.0
      %1571 = vmatprep.subr.mxu0 0.0
      %1572 = vmatpush1.msra.mxu0 0.0
      %1573 = vmatprep.subr.mxu0 0.0
      %1574 = vmatpush1.msra.mxu0 0.0
      %1575 = vmatprep.subr.mxu0 0.0
      %1576 = vmatpush1.msra.mxu0 0.0
      %1577 = vmatprep.subr.mxu0 0.0
      %1578 = vmatpush1.msra.mxu0 0.0
      %1579 = vmatprep.subr.mxu0 0.0
      %1580 = vmatpush1.msra.mxu0 0.0
      %1581 = vmatprep.subr.mxu0 0.0
      %1582 = vmatpush1.msra.mxu0 0.0
      %1583 = vmatprep.subr.mxu0 0.0
      %1584 = vmatpush1.msra.mxu0 0.0
      %1585 = vmatprep.subr.mxu0 0.0
      %1586 = vmatpush1.msra.mxu0 0.0
      %1587 = vmatprep.mubr.f32.mxu0 0.0
      %1588 = vmatmul.mubr.f32.gmra.mrb[0].mxu0 %v1521
      %v1589 = vpop.f32.mrb[0].mxu0
      %v1590 = vadd.f32 0.0, %v1589
      %v1591 = vpop.f32.mrb[0].mxu0
      %1592 = vdwg.mxu0
      %1593 = vrot.lane.b32.xlu0 %v744, 120
      %v1594 = vpop.permute.xlu0 %1593
      %1595 = vrot.lane.b32.xlu0 %v744, 88
      %v1596 = vpop.permute.xlu0 %1595
      %v1597 = vsel %vm750, %v1594, 0
      %v1599 = vsel %vm750, %v1596, 0
      %1601 = vmatprep.subr.mxu0 0.0
      %1602 = vmatpush1.xpose.msra.mxu0 %v1599
      %1603 = vmatprep.subr.mxu0 0.0
      %1604 = vmatpush1.xpose.msra.mxu0 0.0
      %1605 = vmatprep.subr.mxu0 0.0
      %1606 = vmatpush1.xpose.msra.mxu0 0.0
      %1607 = vmatprep.subr.mxu0 0.0
      %1608 = vmatpush1.xpose.msra.mxu0 0.0
      %1609 = vmatprep.subr.mxu0 0.0
      %1610 = vmatpush1.xpose.msra.mxu0 0.0
      %1611 = vmatprep.subr.mxu0 0.0
      %1612 = vmatpush1.xpose.msra.mxu0 0.0
      %1613 = vmatprep.subr.mxu0 0.0
      %1614 = vmatpush1.xpose.msra.mxu0 0.0
      %1615 = vmatprep.subr.mxu0 0.0
      %1616 = vmatpush1.xpose.msra.mxu0 0.0
      %1617 = vmatprep.subr.mxu0 0.0
      %1618 = vmatpush1.xpose.msra.mxu0 0.0
      %1619 = vmatprep.subr.mxu0 0.0
      %1620 = vmatpush1.xpose.msra.mxu0 0.0
      %1621 = vmatprep.subr.mxu0 0.0
      %1622 = vmatpush1.xpose.msra.mxu0 0.0
      %1623 = vmatprep.subr.mxu0 0.0
      %1624 = vmatpush1.xpose.msra.mxu0 0.0
      %1625 = vmatprep.subr.mxu0 0.0
      %1626 = vmatpush1.xpose.msra.mxu0 0.0
      %1627 = vmatprep.subr.mxu0 0.0
      %1628 = vmatpush1.xpose.msra.mxu0 0.0
      %1629 = vmatprep.subr.mxu0 0.0
      %1630 = vmatpush1.xpose.msra.mxu0 0.0
      %1631 = vmatprep.subr.mxu0 0.0
      %1632 = vmatpush1.xpose.msra.mxu0 0.0
      %1633 = vmatprep.subr.mxu0 0.0
      %1634 = vmatpush1.xpose.msra.mxu0 0.0
      %1635 = vmatprep.subr.mxu0 0.0
      %1636 = vmatpush1.xpose.msra.mxu0 0.0
      %1637 = vmatprep.subr.mxu0 0.0
      %1638 = vmatpush1.xpose.msra.mxu0 0.0
      %1639 = vmatprep.subr.mxu0 0.0
      %1640 = vmatpush1.xpose.msra.mxu0 0.0
      %1641 = vmatprep.subr.mxu0 0.0
      %1642 = vmatpush1.xpose.msra.mxu0 0.0
      %1643 = vmatprep.subr.mxu0 0.0
      %1644 = vmatpush1.xpose.msra.mxu0 0.0
      %1645 = vmatprep.subr.mxu0 0.0
      %1646 = vmatpush1.xpose.msra.mxu0 0.0
      %1647 = vmatprep.subr.mxu0 0.0
      %1648 = vmatpush1.xpose.msra.mxu0 0.0
      %1649 = vmatprep.subr.mxu0 0.0
      %1650 = vmatpush1.xpose.msra.mxu0 0.0
      %1651 = vmatprep.subr.mxu0 0.0
      %1652 = vmatpush1.xpose.msra.mxu0 0.0
      %1653 = vmatprep.subr.mxu0 0.0
      %1654 = vmatpush1.xpose.msra.mxu0 0.0
      %1655 = vmatprep.subr.mxu0 0.0
      %1656 = vmatpush1.xpose.msra.mxu0 0.0
      %1657 = vmatprep.subr.mxu0 0.0
      %1658 = vmatpush1.xpose.msra.mxu0 0.0
      %1659 = vmatprep.subr.mxu0 0.0
      %1660 = vmatpush1.xpose.msra.mxu0 0.0
      %1661 = vmatprep.subr.mxu0 0.0
      %1662 = vmatpush1.xpose.msra.mxu0 0.0
      %1663 = vmatprep.subr.mxu0 0.0
      %1664 = vmatpush1.xpose.msra.mxu0 0.0
      %1665 = vmatprep.mubr.f32.mxu0 0.0
      %1666 = vmatmul.mubr.f32.gmra.mrb[0].mxu0 %v1597
      %v1667 = vpop.f32.mrb[0].mxu0
      %v1668 = vadd.f32 0.0, %v1667
      %v1669 = vpop.f32.mrb[0].mxu0
      %1670 = vdwg.mxu0
      %v1671 = vmul.f32 %v1668, 0.35355338
      %v1672 = vsel %vm750, %v1671, -inf
      %1673 = vmax.xlane.f32.xlu0 %v1672
      %v1674 = vpop.xlane.xlu0 %1673
      %v1675 = vsub.f32 %v1671, %v1674
      %v1676 = vmul.f32 %v1675, 1.442695
      %v1677 = vpow.pop %v1676
      %v1678 = vsel %vm750, %v1677, 0.0
      %1679 = vadd.xlane.f32.xlu0 %v1678
      %v1680 = vpop.xlane.xlu0 %1679
      %v1681 = vrcp.pop %v1680
      %v1682 = vmul.f32 %v1677, %v1681
      %1683 = vrot.lane.b32.xlu0 %v744, 56
      %v1684 = vpop.permute.xlu0 %1683
      %v1687 = vsel %vm750, %v1682, 0
      %1689 = vmatprep.subr.mxu0 0.0
      %1690 = vmatpush1.msra.mxu0 %v1684
      %1691 = vmatprep.subr.mxu0 0.0
      %1692 = vmatpush1.msra.mxu0 0.0
      %1693 = vmatprep.subr.mxu0 0.0
      %1694 = vmatpush1.msra.mxu0 0.0
      %1695 = vmatprep.subr.mxu0 0.0
      %1696 = vmatpush1.msra.mxu0 0.0
      %1697 = vmatprep.subr.mxu0 0.0
      %1698 = vmatpush1.msra.mxu0 0.0
      %1699 = vmatprep.subr.mxu0 0.0
      %1700 = vmatpush1.msra.mxu0 0.0
      %1701 = vmatprep.subr.mxu0 0.0
      %1702 = vmatpush1.msra.mxu0 0.0
      %1703 = vmatprep.subr.mxu0 0.0
      %1704 = vmatpush1.msra.mxu0 0.0
      %1705 = vmatprep.subr.mxu0 0.0
      %1706 = vmatpush1.msra.mxu0 0.0
      %1707 = vmatprep.subr.mxu0 0.0
      %1708 = vmatpush1.msra.mxu0 0.0
      %1709 = vmatprep.subr.mxu0 0.0
      %1710 = vmatpush1.msra.mxu0 0.0
      %1711 = vmatprep.subr.mxu0 0.0
      %1712 = vmatpush1.msra.mxu0 0.0
      %1713 = vmatprep.subr.mxu0 0.0
      %1714 = vmatpush1.msra.mxu0 0.0
      %1715 = vmatprep.subr.mxu0 0.0
      %1716 = vmatpush1.msra.mxu0 0.0
      %1717 = vmatprep.subr.mxu0 0.0
      %1718 = vmatpush1.msra.mxu0 0.0
      %1719 = vmatprep.subr.mxu0 0.0
      %1720 = vmatpush1.msra.mxu0 0.0
      %1721 = vmatprep.subr.mxu0 0.0
      %1722 = vmatpush1.msra.mxu0 0.0
      %1723 = vmatprep.subr.mxu0 0.0
      %1724 = vmatpush1.msra.mxu0 0.0
      %1725 = vmatprep.subr.mxu0 0.0
      %1726 = vmatpush1.msra.mxu0 0.0
      %1727 = vmatprep.subr.mxu0 0.0
      %1728 = vmatpush1.msra.mxu0 0.0
      %1729 = vmatprep.subr.mxu0 0.0
      %1730 = vmatpush1.msra.mxu0 0.0
      %1731 = vmatprep.subr.mxu0 0.0
      %1732 = vmatpush1.msra.mxu0 0.0
      %1733 = vmatprep.subr.mxu0 0.0
      %1734 = vmatpush1.msra.mxu0 0.0
      %1735 = vmatprep.subr.mxu0 0.0
      %1736 = vmatpush1.msra.mxu0 0.0
      %1737 = vmatprep.subr.mxu0 0.0
      %1738 = vmatpush1.msra.mxu0 0.0
      %1739 = vmatprep.subr.mxu0 0.0
      %1740 = vmatpush1.msra.mxu0 0.0
      %1741 = vmatprep.subr.mxu0 0.0
      %1742 = vmatpush1.msra.mxu0 0.0
      %1743 = vmatprep.subr.mxu0 0.0
      %1744 = vmatpush1.msra.mxu0 0.0
      %1745 = vmatprep.subr.mxu0 0.0
      %1746 = vmatpush1.msra.mxu0 0.0
      %1747 = vmatprep.subr.mxu0 0.0
      %1748 = vmatpush1.msra.mxu0 0.0
      %1749 = vmatprep.subr.mxu0 0.0
      %1750 = vmatpush1.msra.mxu0 0.0
      %1751 = vmatprep.subr.mxu0 0.0
      %1752 = vmatpush1.msra.mxu0 0.0
      %1753 = vmatprep.mubr.f32.mxu0 0.0
      %1754 = vmatmul.mubr.f32.gmra.mrb[0].mxu0 %v1687
      %v1755 = vpop.f32.mrb[0].mxu0
      %v1756 = vadd.f32 0.0, %v1755
      %v1757 = vpop.f32.mrb[0].mxu0
      %1758 = vdwg.mxu0
      %1759 = vrot.lane.b32.xlu0 %v744, 112
      %v1760 = vpop.permute.xlu0 %1759
      %1761 = vrot.lane.b32.xlu0 %v744, 80
      %v1762 = vpop.permute.xlu0 %1761
      %v1763 = vsel %vm750, %v1760, 0
      %v1765 = vsel %vm750, %v1762, 0
      %1767 = vmatprep.subr.mxu0 0.0
      %1768 = vmatpush1.xpose.msra.mxu0 %v1765
      %1769 = vmatprep.subr.mxu0 0.0
      %1770 = vmatpush1.xpose.msra.mxu0 0.0
      %1771 = vmatprep.subr.mxu0 0.0
      %1772 = vmatpush1.xpose.msra.mxu0 0.0
      %1773 = vmatprep.subr.mxu0 0.0
      %1774 = vmatpush1.xpose.msra.mxu0 0.0
      %1775 = vmatprep.subr.mxu0 0.0
      %1776 = vmatpush1.xpose.msra.mxu0 0.0
      %1777 = vmatprep.subr.mxu0 0.0
      %1778 = vmatpush1.xpose.msra.mxu0 0.0
      %1779 = vmatprep.subr.mxu0 0.0
      %1780 = vmatpush1.xpose.msra.mxu0 0.0
      %1781 = vmatprep.subr.mxu0 0.0
      %1782 = vmatpush1.xpose.msra.mxu0 0.0
      %1783 = vmatprep.subr.mxu0 0.0
      %1784 = vmatpush1.xpose.msra.mxu0 0.0
      %1785 = vmatprep.subr.mxu0 0.0
      %1786 = vmatpush1.xpose.msra.mxu0 0.0
      %1787 = vmatprep.subr.mxu0 0.0
      %1788 = vmatpush1.xpose.msra.mxu0 0.0
      %1789 = vmatprep.subr.mxu0 0.0
      %1790 = vmatpush1.xpose.msra.mxu0 0.0
      %1791 = vmatprep.subr.mxu0 0.0
      %1792 = vmatpush1.xpose.msra.mxu0 0.0
      %1793 = vmatprep.subr.mxu0 0.0
      %1794 = vmatpush1.xpose.msra.mxu0 0.0
      %1795 = vmatprep.subr.mxu0 0.0
      %1796 = vmatpush1.xpose.msra.mxu0 0.0
      %1797 = vmatprep.subr.mxu0 0.0
      %1798 = vmatpush1.xpose.msra.mxu0 0.0
      %1799 = vmatprep.subr.mxu0 0.0
      %1800 = vmatpush1.xpose.msra.mxu0 0.0
      %1801 = vmatprep.subr.mxu0 0.0
      %1802 = vmatpush1.xpose.msra.mxu0 0.0
      %1803 = vmatprep.subr.mxu0 0.0
      %1804 = vmatpush1.xpose.msra.mxu0 0.0
      %1805 = vmatprep.subr.mxu0 0.0
      %1806 = vmatpush1.xpose.msra.mxu0 0.0
      %1807 = vmatprep.subr.mxu0 0.0
      %1808 = vmatpush1.xpose.msra.mxu0 0.0
      %1809 = vmatprep.subr.mxu0 0.0
      %1810 = vmatpush1.xpose.msra.mxu0 0.0
      %1811 = vmatprep.subr.mxu0 0.0
      %1812 = vmatpush1.xpose.msra.mxu0 0.0
      %1813 = vmatprep.subr.mxu0 0.0
      %1814 = vmatpush1.xpose.msra.mxu0 0.0
      %1815 = vmatprep.subr.mxu0 0.0
      %1816 = vmatpush1.xpose.msra.mxu0 0.0
      %1817 = vmatprep.subr.mxu0 0.0
      %1818 = vmatpush1.xpose.msra.mxu0 0.0
      %1819 = vmatprep.subr.mxu0 0.0
      %1820 = vmatpush1.xpose.msra.mxu0 0.0
      %1821 = vmatprep.subr.mxu0 0.0
      %1822 = vmatpush1.xpose.msra.mxu0 0.0
      %1823 = vmatprep.subr.mxu0 0.0
      %1824 = vmatpush1.xpose.msra.mxu0 0.0
      %1825 = vmatprep.subr.mxu0 0.0
      %1826 = vmatpush1.xpose.msra.mxu0 0.0
      %1827 = vmatprep.subr.mxu0 0.0
      %1828 = vmatpush1.xpose.msra.mxu0 0.0
      %1829 = vmatprep.subr.mxu0 0.0
      %1830 = vmatpush1.xpose.msra.mxu0 0.0
      %1831 = vmatprep.mubr.f32.mxu0 0.0
      %1832 = vmatmul.mubr.f32.gmra.mrb[0].mxu0 %v1763
      %v1833 = vpop.f32.mrb[0].mxu0
      %v1834 = vadd.f32 0.0, %v1833
      %v1835 = vpop.f32.mrb[0].mxu0
      %1836 = vdwg.mxu0
      %v1837 = vmul.f32 %v1834, 0.35355338
      %v1838 = vsel %vm750, %v1837, -inf
      %1839 = vmax.xlane.f32.xlu0 %v1838
      %v1840 = vpop.xlane.xlu0 %1839
      %v1841 = vsub.f32 %v1837, %v1840
      %v1842 = vmul.f32 %v1841, 1.442695
      %v1843 = vpow.pop %v1842
      %v1844 = vsel %vm750, %v1843, 0.0
      %1845 = vadd.xlane.f32.xlu0 %v1844
      %v1846 = vpop.xlane.xlu0 %1845
      %v1847 = vrcp.pop %v1846
      %v1848 = vmul.f32 %v1843, %v1847
      %1849 = vrot.lane.b32.xlu0 %v744, 48
      %v1850 = vpop.permute.xlu0 %1849
      %v1853 = vsel %vm750, %v1848, 0
      %1855 = vmatprep.subr.mxu0 0.0
      %1856 = vmatpush1.msra.mxu0 %v1850
      %1857 = vmatprep.subr.mxu0 0.0
      %1858 = vmatpush1.msra.mxu0 0.0
      %1859 = vmatprep.subr.mxu0 0.0
      %1860 = vmatpush1.msra.mxu0 0.0
      %1861 = vmatprep.subr.mxu0 0.0
      %1862 = vmatpush1.msra.mxu0 0.0
      %1863 = vmatprep.subr.mxu0 0.0
      %1864 = vmatpush1.msra.mxu0 0.0
      %1865 = vmatprep.subr.mxu0 0.0
      %1866 = vmatpush1.msra.mxu0 0.0
      %1867 = vmatprep.subr.mxu0 0.0
      %1868 = vmatpush1.msra.mxu0 0.0
      %1869 = vmatprep.subr.mxu0 0.0
      %1870 = vmatpush1.msra.mxu0 0.0
      %1871 = vmatprep.subr.mxu0 0.0
      %1872 = vmatpush1.msra.mxu0 0.0
      %1873 = vmatprep.subr.mxu0 0.0
      %1874 = vmatpush1.msra.mxu0 0.0
      %1875 = vmatprep.subr.mxu0 0.0
      %1876 = vmatpush1.msra.mxu0 0.0
      %1877 = vmatprep.subr.mxu0 0.0
      %1878 = vmatpush1.msra.mxu0 0.0
      %1879 = vmatprep.subr.mxu0 0.0
      %1880 = vmatpush1.msra.mxu0 0.0
      %1881 = vmatprep.subr.mxu0 0.0
      %1882 = vmatpush1.msra.mxu0 0.0
      %1883 = vmatprep.subr.mxu0 0.0
      %1884 = vmatpush1.msra.mxu0 0.0
      %1885 = vmatprep.subr.mxu0 0.0
      %1886 = vmatpush1.msra.mxu0 0.0
      %1887 = vmatprep.subr.mxu0 0.0
      %1888 = vmatpush1.msra.mxu0 0.0
      %1889 = vmatprep.subr.mxu0 0.0
      %1890 = vmatpush1.msra.mxu0 0.0
      %1891 = vmatprep.subr.mxu0 0.0
      %1892 = vmatpush1.msra.mxu0 0.0
      %1893 = vmatprep.subr.mxu0 0.0
      %1894 = vmatpush1.msra.mxu0 0.0
      %1895 = vmatprep.subr.mxu0 0.0
      %1896 = vmatpush1.msra.mxu0 0.0
      %1897 = vmatprep.subr.mxu0 0.0
      %1898 = vmatpush1.msra.mxu0 0.0
      %1899 = vmatprep.subr.mxu0 0.0
      %1900 = vmatpush1.msra.mxu0 0.0
      %1901 = vmatprep.subr.mxu0 0.0
      %1902 = vmatpush1.msra.mxu0 0.0
      %1903 = vmatprep.subr.mxu0 0.0
      %1904 = vmatpush1.msra.mxu0 0.0
      %1905 = vmatprep.subr.mxu0 0.0
      %1906 = vmatpush1.msra.mxu0 0.0
      %1907 = vmatprep.subr.mxu0 0.0
      %1908 = vmatpush1.msra.mxu0 0.0
      %1909 = vmatprep.subr.mxu0 0.0
      %1910 = vmatpush1.msra.mxu0 0.0
      %1911 = vmatprep.subr.mxu0 0.0
      %1912 = vmatpush1.msra.mxu0 0.0
      %1913 = vmatprep.subr.mxu0 0.0
      %1914 = vmatpush1.msra.mxu0 0.0
      %1915 = vmatprep.subr.mxu0 0.0
      %1916 = vmatpush1.msra.mxu0 0.0
      %1917 = vmatprep.subr.mxu0 0.0
      %1918 = vmatpush1.msra.mxu0 0.0
      %1919 = vmatprep.mubr.f32.mxu0 0.0
      %1920 = vmatmul.mubr.f32.gmra.mrb[0].mxu0 %v1853
      %v1921 = vpop.f32.mrb[0].mxu0
      %v1922 = vadd.f32 0.0, %v1921
      %v1923 = vpop.f32.mrb[0].mxu0
      %1924 = vdwg.mxu0
      %1925 = vrot.lane.b32.xlu0 %v744, 104
      %v1926 = vpop.permute.xlu0 %1925
      %1927 = vrot.lane.b32.xlu0 %v744, 72
      %v1928 = vpop.permute.xlu0 %1927
      %v1929 = vsel %vm750, %v1926, 0
      %v1931 = vsel %vm750, %v1928, 0
      %1933 = vmatprep.subr.mxu0 0.0
      %1934 = vmatpush1.xpose.msra.mxu0 %v1931
      %1935 = vmatprep.subr.mxu0 0.0
      %1936 = vmatpush1.xpose.msra.mxu0 0.0
      %1937 = vmatprep.subr.mxu0 0.0
      %1938 = vmatpush1.xpose.msra.mxu0 0.0
      %1939 = vmatprep.subr.mxu0 0.0
      %1940 = vmatpush1.xpose.msra.mxu0 0.0
      %1941 = vmatprep.subr.mxu0 0.0
      %1942 = vmatpush1.xpose.msra.mxu0 0.0
      %1943 = vmatprep.subr.mxu0 0.0
      %1944 = vmatpush1.xpose.msra.mxu0 0.0
      %1945 = vmatprep.subr.mxu0 0.0
      %1946 = vmatpush1.xpose.msra.mxu0 0.0
      %1947 = vmatprep.subr.mxu0 0.0
      %1948 = vmatpush1.xpose.msra.mxu0 0.0
      %1949 = vmatprep.subr.mxu0 0.0
      %1950 = vmatpush1.xpose.msra.mxu0 0.0
      %1951 = vmatprep.subr.mxu0 0.0
      %1952 = vmatpush1.xpose.msra.mxu0 0.0
      %1953 = vmatprep.subr.mxu0 0.0
      %1954 = vmatpush1.xpose.msra.mxu0 0.0
      %1955 = vmatprep.subr.mxu0 0.0
      %1956 = vmatpush1.xpose.msra.mxu0 0.0
      %1957 = vmatprep.subr.mxu0 0.0
      %1958 = vmatpush1.xpose.msra.mxu0 0.0
      %1959 = vmatprep.subr.mxu0 0.0
      %1960 = vmatpush1.xpose.msra.mxu0 0.0
      %1961 = vmatprep.subr.mxu0 0.0
      %1962 = vmatpush1.xpose.msra.mxu0 0.0
      %1963 = vmatprep.subr.mxu0 0.0
      %1964 = vmatpush1.xpose.msra.mxu0 0.0
      %1965 = vmatprep.subr.mxu0 0.0
      %1966 = vmatpush1.xpose.msra.mxu0 0.0
      %1967 = vmatprep.subr.mxu0 0.0
      %1968 = vmatpush1.xpose.msra.mxu0 0.0
      %1969 = vmatprep.subr.mxu0 0.0
      %1970 = vmatpush1.xpose.msra.mxu0 0.0
      %1971 = vmatprep.subr.mxu0 0.0
      %1972 = vmatpush1.xpose.msra.mxu0 0.0
      %1973 = vmatprep.subr.mxu0 0.0
      %1974 = vmatpush1.xpose.msra.mxu0 0.0
      %1975 = vmatprep.subr.mxu0 0.0
      %1976 = vmatpush1.xpose.msra.mxu0 0.0
      %1977 = vmatprep.subr.mxu0 0.0
      %1978 = vmatpush1.xpose.msra.mxu0 0.0
      %1979 = vmatprep.subr.mxu0 0.0
      %1980 = vmatpush1.xpose.msra.mxu0 0.0
      %1981 = vmatprep.subr.mxu0 0.0
      %1982 = vmatpush1.xpose.msra.mxu0 0.0
      %1983 = vmatprep.subr.mxu0 0.0
      %1984 = vmatpush1.xpose.msra.mxu0 0.0
      %1985 = vmatprep.subr.mxu0 0.0
      %1986 = vmatpush1.xpose.msra.mxu0 0.0
      %1987 = vmatprep.subr.mxu0 0.0
      %1988 = vmatpush1.xpose.msra.mxu0 0.0
      %1989 = vmatprep.subr.mxu0 0.0
      %1990 = vmatpush1.xpose.msra.mxu0 0.0
      %1991 = vmatprep.subr.mxu0 0.0
      %1992 = vmatpush1.xpose.msra.mxu0 0.0
      %1993 = vmatprep.subr.mxu0 0.0
      %1994 = vmatpush1.xpose.msra.mxu0 0.0
      %1995 = vmatprep.subr.mxu0 0.0
      %1996 = vmatpush1.xpose.msra.mxu0 0.0
      %1997 = vmatprep.mubr.f32.mxu0 0.0
      %1998 = vmatmul.mubr.f32.gmra.mrb[0].mxu0 %v1929
      %v1999 = vpop.f32.mrb[0].mxu0
      %v2000 = vadd.f32 0.0, %v1999
      %v2001 = vpop.f32.mrb[0].mxu0
      %2002 = vdwg.mxu0
      %v2003 = vmul.f32 %v2000, 0.35355338
      %v2004 = vsel %vm750, %v2003, -inf
      %2005 = vmax.xlane.f32.xlu0 %v2004
      %v2006 = vpop.xlane.xlu0 %2005
      %v2007 = vsub.f32 %v2003, %v2006
      %v2008 = vmul.f32 %v2007, 1.442695
      %v2009 = vpow.pop %v2008
      %v2010 = vsel %vm750, %v2009, 0.0
      %2011 = vadd.xlane.f32.xlu0 %v2010
      %v2012 = vpop.xlane.xlu0 %2011
      %v2013 = vrcp.pop %v2012
      %v2014 = vmul.f32 %v2009, %v2013
      %2015 = vrot.lane.b32.xlu0 %v744, 40
      %v2016 = vpop.permute.xlu0 %2015
      %v2019 = vsel %vm750, %v2014, 0
      %2021 = vmatprep.subr.mxu0 0.0
      %2022 = vmatpush1.msra.mxu0 %v2016
      %2023 = vmatprep.subr.mxu0 0.0
      %2024 = vmatpush1.msra.mxu0 0.0
      %2025 = vmatprep.subr.mxu0 0.0
      %2026 = vmatpush1.msra.mxu0 0.0
      %2027 = vmatprep.subr.mxu0 0.0
      %2028 = vmatpush1.msra.mxu0 0.0
      %2029 = vmatprep.subr.mxu0 0.0
      %2030 = vmatpush1.msra.mxu0 0.0
      %2031 = vmatprep.subr.mxu0 0.0
      %2032 = vmatpush1.msra.mxu0 0.0
      %2033 = vmatprep.subr.mxu0 0.0
      %2034 = vmatpush1.msra.mxu0 0.0
      %2035 = vmatprep.subr.mxu0 0.0
      %2036 = vmatpush1.msra.mxu0 0.0
      %2037 = vmatprep.subr.mxu0 0.0
      %2038 = vmatpush1.msra.mxu0 0.0
      %2039 = vmatprep.subr.mxu0 0.0
      %2040 = vmatpush1.msra.mxu0 0.0
      %2041 = vmatprep.subr.mxu0 0.0
      %2042 = vmatpush1.msra.mxu0 0.0
      %2043 = vmatprep.subr.mxu0 0.0
      %2044 = vmatpush1.msra.mxu0 0.0
      %2045 = vmatprep.subr.mxu0 0.0
      %2046 = vmatpush1.msra.mxu0 0.0
      %2047 = vmatprep.subr.mxu0 0.0
      %2048 = vmatpush1.msra.mxu0 0.0
      %2049 = vmatprep.subr.mxu0 0.0
      %2050 = vmatpush1.msra.mxu0 0.0
      %2051 = vmatprep.subr.mxu0 0.0
      %2052 = vmatpush1.msra.mxu0 0.0
      %2053 = vmatprep.subr.mxu0 0.0
      %2054 = vmatpush1.msra.mxu0 0.0
      %2055 = vmatprep.subr.mxu0 0.0
      %2056 = vmatpush1.msra.mxu0 0.0
      %2057 = vmatprep.subr.mxu0 0.0
      %2058 = vmatpush1.msra.mxu0 0.0
      %2059 = vmatprep.subr.mxu0 0.0
      %2060 = vmatpush1.msra.mxu0 0.0
      %2061 = vmatprep.subr.mxu0 0.0
      %2062 = vmatpush1.msra.mxu0 0.0
      %2063 = vmatprep.subr.mxu0 0.0
      %2064 = vmatpush1.msra.mxu0 0.0
      %2065 = vmatprep.subr.mxu0 0.0
      %2066 = vmatpush1.msra.mxu0 0.0
      %2067 = vmatprep.subr.mxu0 0.0
      %2068 = vmatpush1.msra.mxu0 0.0
      %2069 = vmatprep.subr.mxu0 0.0
      %2070 = vmatpush1.msra.mxu0 0.0
      %2071 = vmatprep.subr.mxu0 0.0
      %2072 = vmatpush1.msra.mxu0 0.0
      %2073 = vmatprep.subr.mxu0 0.0
      %2074 = vmatpush1.msra.mxu0 0.0
      %2075 = vmatprep.subr.mxu0 0.0
      %2076 = vmatpush1.msra.mxu0 0.0
      %2077 = vmatprep.subr.mxu0 0.0
      %2078 = vmatpush1.msra.mxu0 0.0
      %2079 = vmatprep.subr.mxu0 0.0
      %2080 = vmatpush1.msra.mxu0 0.0
      %2081 = vmatprep.subr.mxu0 0.0
      %2082 = vmatpush1.msra.mxu0 0.0
      %2083 = vmatprep.subr.mxu0 0.0
      %2084 = vmatpush1.msra.mxu0 0.0
      %2085 = vmatprep.mubr.f32.mxu0 0.0
      %2086 = vmatmul.mubr.f32.gmra.mrb[0].mxu0 %v2019
      %v2087 = vpop.f32.mrb[0].mxu0
      %v2088 = vadd.f32 0.0, %v2087
      %v2089 = vpop.f32.mrb[0].mxu0
      %2090 = vdwg.mxu0
      %2092 = vrot.lane.b32.xlu0 %v1756, 8
      %v2093 = vpop.permute.xlu0 %2092
      %2096 = vrot.lane.b32.xlu0 %v1922, 16
      %v2097 = vpop.permute.xlu0 %2096
      %2100 = vrot.lane.b32.xlu0 %v2088, 24
      %v2101 = vpop.permute.xlu0 %2100
      %v2103 = vsel %vm750, %v1590, %v2093
      %v2104 = vsel %vm1424, %v2103, %v2097
      %v2105 = vsel %vm1426, %v2104, %v2101
      %v2106 = vlaneseq
      %v2107 = vshrl.u32 %v2106, 7
      %v2108 = vsub.s32 1, %v2107
      %v2109 = vrot.slane %v660, %v2108
      %v2111 = vsel %vm665, %v1427, 0
      %v2114 = vsel %vm665, %v2105, 0
      %2116 = vmatprep.subr.mxu0 0.0
      %2117 = vmatpush1.msra.mxu0 %v644
      %2118 = vmatprep.subr.mxu0 0.0
      %2119 = vmatpush1.msra.mxu0 %v645
      %2120 = vmatprep.subr.mxu0 0.0
      %2121 = vmatpush1.msra.mxu0 %v646
      %2122 = vmatprep.subr.mxu0 0.0
      %2123 = vmatpush1.msra.mxu0 %v647
      %2124 = vmatprep.subr.mxu0 0.0
      %2125 = vmatpush1.msra.mxu0 0.0
      %2126 = vmatprep.subr.mxu0 0.0
      %2127 = vmatpush1.msra.mxu0 0.0
      %2128 = vmatprep.subr.mxu0 0.0
      %2129 = vmatpush1.msra.mxu0 0.0
      %2130 = vmatprep.subr.mxu0 0.0
      %2131 = vmatpush1.msra.mxu0 0.0
      %2132 = vmatprep.subr.mxu0 0.0
      %2133 = vmatpush1.msra.mxu0 0.0
      %2134 = vmatprep.subr.mxu0 0.0
      %2135 = vmatpush1.msra.mxu0 0.0
      %2136 = vmatprep.subr.mxu0 0.0
      %2137 = vmatpush1.msra.mxu0 0.0
      %2138 = vmatprep.subr.mxu0 0.0
      %2139 = vmatpush1.msra.mxu0 0.0
      %2140 = vmatprep.subr.mxu0 0.0
      %2141 = vmatpush1.msra.mxu0 0.0
      %2142 = vmatprep.subr.mxu0 0.0
      %2143 = vmatpush1.msra.mxu0 0.0
      %2144 = vmatprep.subr.mxu0 0.0
      %2145 = vmatpush1.msra.mxu0 0.0
      %2146 = vmatprep.subr.mxu0 0.0
      %2147 = vmatpush1.msra.mxu0 0.0
      %2148 = vmatprep.subr.mxu0 0.0
      %2149 = vmatpush1.msra.mxu0 0.0
      %2150 = vmatprep.subr.mxu0 0.0
      %2151 = vmatpush1.msra.mxu0 0.0
      %2152 = vmatprep.subr.mxu0 0.0
      %2153 = vmatpush1.msra.mxu0 0.0
      %2154 = vmatprep.subr.mxu0 0.0
      %2155 = vmatpush1.msra.mxu0 0.0
      %2156 = vmatprep.subr.mxu0 0.0
      %2157 = vmatpush1.msra.mxu0 0.0
      %2158 = vmatprep.subr.mxu0 0.0
      %2159 = vmatpush1.msra.mxu0 0.0
      %2160 = vmatprep.subr.mxu0 0.0
      %2161 = vmatpush1.msra.mxu0 0.0
      %2162 = vmatprep.subr.mxu0 0.0
      %2163 = vmatpush1.msra.mxu0 0.0
      %2164 = vmatprep.subr.mxu0 0.0
      %2165 = vmatpush1.msra.mxu0 0.0
      %2166 = vmatprep.subr.mxu0 0.0
      %2167 = vmatpush1.msra.mxu0 0.0
      %2168 = vmatprep.subr.mxu0 0.0
      %2169 = vmatpush1.msra.mxu0 0.0
      %2170 = vmatprep.subr.mxu0 0.0
      %2171 = vmatpush1.msra.mxu0 0.0
      %2172 = vmatprep.subr.mxu0 0.0
      %2173 = vmatpush1.msra.mxu0 0.0
      %2174 = vmatprep.subr.mxu0 0.0
      %2175 = vmatpush1.msra.mxu0 0.0
      %2176 = vmatprep.subr.mxu0 0.0
      %2177 = vmatpush1.msra.mxu0 0.0
      %2178 = vmatprep.subr.mxu0 0.0
      %2179 = vmatpush1.msra.mxu0 0.0
      %2180 = vmatprep.mubr.f32.mxu0 0.0
      %2181 = vmatmul.mubr.f32.gmra.mrb[0].mxu0 %v2111
      %v2182 = vpop.f32.mrb[0].mxu0
      %v2183 = vadd.f32 %v2109, %v2182
      %v2184 = vpop.f32.mrb[0].mxu0
      %2185 = vmatprep.mubr.f32.mxu0 0.0
      %2186 = vmatmul.mubr.f32.gmra.mrb[0].mxu0 %v2114
      %v2187 = vpop.f32.mrb[0].mxu0
      %v2188 = vadd.f32 %v2109, %v2187
      %v2189 = vpop.f32.mrb[0].mxu0
      %2190 = vdwg.mxu0
      %v2191 = vadd.f32 %v638, %v2183
      %v2192 = vadd.f32 %v639, %v2188
      %v2193 = vsel %vm665, %v2191, 0.0
      %2194 = vadd.xlane.f32.xlu0 %v2193
      %v2195 = vpop.xlane.xlu0 %2194
      %v2196 = vsel %vm665, %v2192, 0.0
      %2197 = vadd.xlane.f32.xlu0 %v2196
      %v2198 = vpop.xlane.xlu0 %2197
      %v2199 = vrcp.pop 32.0
      %v2200 = vmul.f32 %v2195, %v2199
      %v2201 = vmul.f32 %v2198, %v2199
      %v2202 = vsub.f32 %v2191, %v2200
      %v2203 = vsub.f32 %v2192, %v2201
      %v2204 = vmul.f32 %v2202, %v2202
      %v2205 = vmul.f32 %v2203, %v2203
      %v2206 = vsel %vm665, %v2204, 0.0
      %2207 = vadd.xlane.f32.xlu0 %v2206
      %v2208 = vpop.xlane.xlu0 %2207
      %v2209 = vsel %vm665, %v2205, 0.0
      %2210 = vadd.xlane.f32.xlu0 %v2209
      %v2211 = vpop.xlane.xlu0 %2210
      %v2212 = vmul.f32 %v2208, %v2199
      %v2213 = vmul.f32 %v2211, %v2199
      %v2214 = vadd.f32 %v2212, 1e-05
      %v2215 = vadd.f32 %v2213, 1e-05
      %v2216 = vrsqrt.pop %v2214
      %v2217 = vrsqrt.pop %v2215
      %v2218 = vmul.f32 %v2202, %v2216
      %v2219 = vmul.f32 %v2203, %v2217
      %v2220 = vlaneseq
      %v2221 = vshrl.u32 %v2220, 7
      %v2222 = vsub.s32 4, %v2221
      %v2223 = vrot.slane %v660, %v2222
      %v2224 = vmul.f32 %v2218, %v2223
      %v2225 = vmul.f32 %v2219, %v2223
      %v2226 = vlaneseq
      %v2227 = vshrl.u32 %v2226, 7
      %v2228 = vsub.s32 5, %v2227
      %v2229 = vrot.slane %v660, %v2228
      %v2230 = vadd.f32 %v2224, %v2229
      %v2231 = vadd.f32 %v2225, %v2229
      %v2232 = vlaneseq
      %v2233 = vshrl.u32 %v2232, 7
      %v2234 = vsub.s32 2, %v2233
      %v2235 = vrot.slane %v660, %v2234
      %v2237 = vsel %vm665, %v2230, 0
      %v2240 = vsel %vm665, %v2231, 0
      %2242 = vmatprep.subr.mxu0 0.0
      %2243 = vmatpush1.msra.mxu0 %v648
      %2244 = vmatprep.subr.mxu0 0.0
      %2245 = vmatpush1.msra.mxu0 %v649
      %2246 = vmatprep.subr.mxu0 0.0
      %2247 = vmatpush1.msra.mxu0 %v650
      %2248 = vmatprep.subr.mxu0 0.0
      %2249 = vmatpush1.msra.mxu0 %v651
      %2250 = vmatprep.subr.mxu0 0.0
      %2251 = vmatpush1.msra.mxu0 0.0
      %2252 = vmatprep.subr.mxu0 0.0
      %2253 = vmatpush1.msra.mxu0 0.0
      %2254 = vmatprep.subr.mxu0 0.0
      %2255 = vmatpush1.msra.mxu0 0.0
      %2256 = vmatprep.subr.mxu0 0.0
      %2257 = vmatpush1.msra.mxu0 0.0
      %2258 = vmatprep.subr.mxu0 0.0
      %2259 = vmatpush1.msra.mxu0 0.0
      %2260 = vmatprep.subr.mxu0 0.0
      %2261 = vmatpush1.msra.mxu0 0.0
      %2262 = vmatprep.subr.mxu0 0.0
      %2263 = vmatpush1.msra.mxu0 0.0
      %2264 = vmatprep.subr.mxu0 0.0
      %2265 = vmatpush1.msra.mxu0 0.0
      %2266 = vmatprep.subr.mxu0 0.0
      %2267 = vmatpush1.msra.mxu0 0.0
      %2268 = vmatprep.subr.mxu0 0.0
      %2269 = vmatpush1.msra.mxu0 0.0
      %2270 = vmatprep.subr.mxu0 0.0
      %2271 = vmatpush1.msra.mxu0 0.0
      %2272 = vmatprep.subr.mxu0 0.0
      %2273 = vmatpush1.msra.mxu0 0.0
      %2274 = vmatprep.subr.mxu0 0.0
      %2275 = vmatpush1.msra.mxu0 0.0
      %2276 = vmatprep.subr.mxu0 0.0
      %2277 = vmatpush1.msra.mxu0 0.0
      %2278 = vmatprep.subr.mxu0 0.0
      %2279 = vmatpush1.msra.mxu0 0.0
      %2280 = vmatprep.subr.mxu0 0.0
      %2281 = vmatpush1.msra.mxu0 0.0
      %2282 = vmatprep.subr.mxu0 0.0
      %2283 = vmatpush1.msra.mxu0 0.0
      %2284 = vmatprep.subr.mxu0 0.0
      %2285 = vmatpush1.msra.mxu0 0.0
      %2286 = vmatprep.subr.mxu0 0.0
      %2287 = vmatpush1.msra.mxu0 0.0
      %2288 = vmatprep.subr.mxu0 0.0
      %2289 = vmatpush1.msra.mxu0 0.0
      %2290 = vmatprep.subr.mxu0 0.0
      %2291 = vmatpush1.msra.mxu0 0.0
      %2292 = vmatprep.subr.mxu0 0.0
      %2293 = vmatpush1.msra.mxu0 0.0
      %2294 = vmatprep.subr.mxu0 0.0
      %2295 = vmatpush1.msra.mxu0 0.0
      %2296 = vmatprep.subr.mxu0 0.0
      %2297 = vmatpush1.msra.mxu0 0.0
      %2298 = vmatprep.subr.mxu0 0.0
      %2299 = vmatpush1.msra.mxu0 0.0
      %2300 = vmatprep.subr.mxu0 0.0
      %2301 = vmatpush1.msra.mxu0 0.0
      %2302 = vmatprep.subr.mxu0 0.0
      %2303 = vmatpush1.msra.mxu0 0.0
      %2304 = vmatprep.subr.mxu0 0.0
      %2305 = vmatpush1.msra.mxu0 0.0
      %2306 = vmatprep.mubr.f32.mxu0 0.0
      %2307 = vmatmul.mubr.f32.gmra.mrb[0].mxu0 %v2237
      %v2308 = vpop.f32.mrb[0].mxu0
      %v2309 = vadd.f32 %v2235, %v2308
      %v2310 = vpop.f32.mrb[0].mxu0
      %2311 = vmatprep.mubr.f32.mxu0 0.0
      %2312 = vmatmul.mubr.f32.gmra.mrb[0].mxu0 %v2240
      %v2313 = vpop.f32.mrb[0].mxu0
      %v2314 = vadd.f32 %v2235, %v2313
      %v2315 = vpop.f32.mrb[0].mxu0
      %2316 = vdwg.mxu0
      %v2317 = vmul.f32 %v2309, %v2309
      %v2318 = vmul.f32 %v2314, %v2314
      %v2319 = vmul.f32 %v2309, %v2317
      %v2320 = vmul.f32 %v2314, %v2318
      %v2321 = vmul.f32 %v2319, 0.044715
      %v2322 = vmul.f32 %v2320, 0.044715
      %v2323 = vadd.f32 %v2309, %v2321
      %v2324 = vadd.f32 %v2314, %v2322
      %v2325 = vmul.f32 %v2323, 0.7978846
      %v2326 = vmul.f32 %v2324, 0.7978846
      %v2327 = vtanh.pop %v2325
      %v2328 = vtanh.pop %v2326
      %v2329 = vadd.f32 %v2327, 1.0
      %v2330 = vadd.f32 %v2328, 1.0
      %v2331 = vmul.f32 %v2329, 0.5
      %v2332 = vmul.f32 %v2330, 0.5
      %v2333 = vmul.f32 %v2309, %v2331
      %v2334 = vmul.f32 %v2314, %v2332
      %v2335 = vlaneseq
      %v2336 = vshrl.u32 %v2335, 7
      %v2337 = vsub.s32 3, %v2336
      %v2338 = vrot.slane %v660, %v2337
      %vm2339 = vcmask 523264
      %v2341 = vsel %vm2339, %v2333, 0
      %v2344 = vsel %vm2339, %v2334, 0
      %2346 = vmatprep.subr.mxu0 0.0
      %2347 = vmatpush1.msra.mxu0 %v652
      %2348 = vmatprep.subr.mxu0 0.0
      %2349 = vmatpush1.msra.mxu0 %v653
      %2350 = vmatprep.subr.mxu0 0.0
      %2351 = vmatpush1.msra.mxu0 %v654
      %2352 = vmatprep.subr.mxu0 0.0
      %2353 = vmatpush1.msra.mxu0 %v655
      %2354 = vmatprep.subr.mxu0 0.0
      %2355 = vmatpush1.msra.mxu0 %v656
      %2356 = vmatprep.subr.mxu0 0.0
      %2357 = vmatpush1.msra.mxu0 %v657
      %2358 = vmatprep.subr.mxu0 0.0
      %2359 = vmatpush1.msra.mxu0 %v658
      %2360 = vmatprep.subr.mxu0 0.0
      %2361 = vmatpush1.msra.mxu0 %v659
      %2362 = vmatprep.subr.mxu0 0.0
      %2363 = vmatpush1.msra.mxu0 0.0
      %2364 = vmatprep.subr.mxu0 0.0
      %2365 = vmatpush1.msra.mxu0 0.0
      %2366 = vmatprep.subr.mxu0 0.0
      %2367 = vmatpush1.msra.mxu0 0.0
      %2368 = vmatprep.subr.mxu0 0.0
      %2369 = vmatpush1.msra.mxu0 0.0
      %2370 = vmatprep.subr.mxu0 0.0
      %2371 = vmatpush1.msra.mxu0 0.0
      %2372 = vmatprep.subr.mxu0 0.0
      %2373 = vmatpush1.msra.mxu0 0.0
      %2374 = vmatprep.subr.mxu0 0.0
      %2375 = vmatpush1.msra.mxu0 0.0
      %2376 = vmatprep.subr.mxu0 0.0
      %2377 = vmatpush1.msra.mxu0 0.0
      %2378 = vmatprep.subr.mxu0 0.0
      %2379 = vmatpush1.msra.mxu0 0.0
      %2380 = vmatprep.subr.mxu0 0.0
      %2381 = vmatpush1.msra.mxu0 0.0
      %2382 = vmatprep.subr.mxu0 0.0
      %2383 = vmatpush1.msra.mxu0 0.0
      %2384 = vmatprep.subr.mxu0 0.0
      %2385 = vmatpush1.msra.mxu0 0.0
      %2386 = vmatprep.subr.mxu0 0.0
      %2387 = vmatpush1.msra.mxu0 0.0
      %2388 = vmatprep.subr.mxu0 0.0
      %2389 = vmatpush1.msra.mxu0 0.0
      %2390 = vmatprep.subr.mxu0 0.0
      %2391 = vmatpush1.msra.mxu0 0.0
      %2392 = vmatprep.subr.mxu0 0.0
      %2393 = vmatpush1.msra.mxu0 0.0
      %2394 = vmatprep.subr.mxu0 0.0
      %2395 = vmatpush1.msra.mxu0 0.0
      %2396 = vmatprep.subr.mxu0 0.0
      %2397 = vmatpush1.msra.mxu0 0.0
      %2398 = vmatprep.subr.mxu0 0.0
      %2399 = vmatpush1.msra.mxu0 0.0
      %2400 = vmatprep.subr.mxu0 0.0
      %2401 = vmatpush1.msra.mxu0 0.0
      %2402 = vmatprep.subr.mxu0 0.0
      %2403 = vmatpush1.msra.mxu0 0.0
      %2404 = vmatprep.subr.mxu0 0.0
      %2405 = vmatpush1.msra.mxu0 0.0
      %2406 = vmatprep.subr.mxu0 0.0
      %2407 = vmatpush1.msra.mxu0 0.0
      %2408 = vmatprep.subr.mxu0 0.0
      %2409 = vmatpush1.msra.mxu0 0.0
      %2410 = vmatprep.mubr.f32.mxu0 0.0
      %2411 = vmatmul.mubr.f32.gmra.mrb[0].mxu0 %v2341
      %v2412 = vpop.f32.mrb[0].mxu0
      %v2413 = vadd.f32 %v2338, %v2412
      %v2414 = vpop.f32.mrb[0].mxu0
      %2415 = vmatprep.mubr.f32.mxu0 0.0
      %2416 = vmatmul.mubr.f32.gmra.mrb[0].mxu0 %v2344
      %v2417 = vpop.f32.mrb[0].mxu0
      %v2418 = vadd.f32 %v2338, %v2417
      %v2419 = vpop.f32.mrb[0].mxu0
      %2420 = vdwg.mxu0
      %v2421 = vadd.f32 %v2230, %v2413
      %v2422 = vadd.f32 %v2231, %v2418
      %v2423 = vsel %vm665, %v2421, 0.0
      %2424 = vadd.xlane.f32.xlu0 %v2423
      %v2425 = vpop.xlane.xlu0 %2424
      %v2426 = vsel %vm665, %v2422, 0.0
      %2427 = vadd.xlane.f32.xlu0 %v2426
      %v2428 = vpop.xlane.xlu0 %2427
      %v2429 = vmul.f32 %v2425, %v2199
      %v2430 = vmul.f32 %v2428, %v2199
      %v2431 = vsub.f32 %v2421, %v2429
      %v2432 = vsub.f32 %v2422, %v2430
      %v2433 = vmul.f32 %v2431, %v2431
      %v2434 = vmul.f32 %v2432, %v2432
      %v2435 = vsel %vm665, %v2433, 0.0
      %2436 = vadd.xlane.f32.xlu0 %v2435
      %v2437 = vpop.xlane.xlu0 %2436
      %v2438 = vsel %vm665, %v2434, 0.0
      %2439 = vadd.xlane.f32.xlu0 %v2438
      %v2440 = vpop.xlane.xlu0 %2439
      %v2441 = vmul.f32 %v2437, %v2199
      %v2442 = vmul.f32 %v2440, %v2199
      %v2443 = vadd.f32 %v2441, 1e-05
      %v2444 = vadd.f32 %v2442, 1e-05
      %v2445 = vrsqrt.pop %v2443
      %v2446 = vrsqrt.pop %v2444
      %v2447 = vmul.f32 %v2431, %v2445
      %v2448 = vmul.f32 %v2432, %v2446
      %v2449 = vlaneseq
      %v2450 = vshrl.u32 %v2449, 7
      %v2451 = vsub.s32 6, %v2450
      %v2452 = vrot.slane %v660, %v2451
      %v2453 = vmul.f32 %v2447, %v2452
      %v2454 = vmul.f32 %v2448, %v2452
      %v2455 = vlaneseq
      %v2456 = vshrl.u32 %v2455, 7
      %v2457 = vsub.s32 7, %v2456
      %v2458 = vrot.slane %v660, %v2457
      %v2459 = vadd.f32 %v2453, %v2458
      %v2460 = vadd.f32 %v2454, %v2458
      %2461 = vst.msk [vmem:[#allocation2] sm:$0xff] %vm665, %v2459
      %2462 = vst.msk [vmem:[#allocation2 + $0x8] sm:$0xff] %vm665, %v2460
      %v2463 = vld [vmem:[#allocation3] sm:$0xff]
      %v2464 = vld [vmem:[#allocation3 + $0x8] sm:$0xff]
      %v2465 = vld [vmem:[%s605] sm:$0xff]
      %v2466 = vld [vmem:[%s605 + $0x8] sm:$0xff]
      %v2467 = vld [vmem:[%s605 + $0x10] sm:$0xff]
      %v2468 = vld [vmem:[%s605 + $0x18] sm:$0xff]
      %v2469 = vld [vmem:[%s610] sm:$0xff]
      %v2470 = vld [vmem:[%s610 + $0x8] sm:$0xff]
      %v2471 = vld [vmem:[%s610 + $0x10] sm:$0xff]
      %v2472 = vld [vmem:[%s610 + $0x18] sm:$0xff]
      %v2473 = vld [vmem:[%s615] sm:$0xff]
      %v2474 = vld [vmem:[%s615 + $0x8] sm:$0xff]
      %v2475 = vld [vmem:[%s615 + $0x10] sm:$0xff]
      %v2476 = vld [vmem:[%s615 + $0x18] sm:$0xff]
      %v2477 = vld [vmem:[%s620] sm:$0xff]
      %v2478 = vld [vmem:[%s620 + $0x8] sm:$0xff]
      %v2479 = vld [vmem:[%s620 + $0x10] sm:$0xff]
      %v2480 = vld [vmem:[%s620 + $0x18] sm:$0xff]
      %v2481 = vld [vmem:[%s620 + $0x20] sm:$0xff]
      %v2482 = vld [vmem:[%s620 + $0x28] sm:$0xff]
      %v2483 = vld [vmem:[%s620 + $0x30] sm:$0xff]
      %v2484 = vld [vmem:[%s620 + $0x38] sm:$0xff]
      %v2485 = vld [vmem:[%s624] sm:$0xff]
      %v2486 = vld [vmem:[%s2] sm:$0x3]
      %v2487 = vlaneseq
      %v2488 = vshrl.u32 %v2487, 7
      %v2489 = vsub.s32 0, %v2488
      %v2490 = vrot.slane %v2485, %v2489
      %v2492 = vsel %vm665, %v2463, 0
      %v2495 = vsel %vm665, %v2464, 0
      %2497 = vmatprep.subr.mxu0 0.0
      %2498 = vmatpush1.msra.mxu0 %v2465
      %2499 = vmatprep.subr.mxu0 0.0
      %2500 = vmatpush1.msra.mxu0 %v2466
      %2501 = vmatprep.subr.mxu0 0.0
      %2502 = vmatpush1.msra.mxu0 %v2467
      %2503 = vmatprep.subr.mxu0 0.0
      %2504 = vmatpush1.msra.mxu0 %v2468
      %2505 = vmatprep.subr.mxu0 0.0
      %2506 = vmatpush1.msra.mxu0 0.0
      %2507 = vmatprep.subr.mxu0 0.0
      %2508 = vmatpush1.msra.mxu0 0.0
      %2509 = vmatprep.subr.mxu0 0.0
      %2510 = vmatpush1.msra.mxu0 0.0
      %2511 = vmatprep.subr.mxu0 0.0
      %2512 = vmatpush1.msra.mxu0 0.0
      %2513 = vmatprep.subr.mxu0 0.0
      %2514 = vmatpush1.msra.mxu0 0.0
      %2515 = vmatprep.subr.mxu0 0.0
      %2516 = vmatpush1.msra.mxu0 0.0
      %2517 = vmatprep.subr.mxu0 0.0
      %2518 = vmatpush1.msra.mxu0 0.0
      %2519 = vmatprep.subr.mxu0 0.0
      %2520 = vmatpush1.msra.mxu0 0.0
      %2521 = vmatprep.subr.mxu0 0.0
      %2522 = vmatpush1.msra.mxu0 0.0
      %2523 = vmatprep.subr.mxu0 0.0
      %2524 = vmatpush1.msra.mxu0 0.0
      %2525 = vmatprep.subr.mxu0 0.0
      %2526 = vmatpush1.msra.mxu0 0.0
      %2527 = vmatprep.subr.mxu0 0.0
      %2528 = vmatpush1.msra.mxu0 0.0
      %2529 = vmatprep.subr.mxu0 0.0
      %2530 = vmatpush1.msra.mxu0 0.0
      %2531 = vmatprep.subr.mxu0 0.0
      %2532 = vmatpush1.msra.mxu0 0.0
      %2533 = vmatprep.subr.mxu0 0.0
      %2534 = vmatpush1.msra.mxu0 0.0
      %2535 = vmatprep.subr.mxu0 0.0
      %2536 = vmatpush1.msra.mxu0 0.0
      %2537 = vmatprep.subr.mxu0 0.0
      %2538 = vmatpush1.msra.mxu0 0.0
      %2539 = vmatprep.subr.mxu0 0.0
      %2540 = vmatpush1.msra.mxu0 0.0
      %2541 = vmatprep.subr.mxu0 0.0
      %2542 = vmatpush1.msra.mxu0 0.0
      %2543 = vmatprep.subr.mxu0 0.0
      %2544 = vmatpush1.msra.mxu0 0.0
      %2545 = vmatprep.subr.mxu0 0.0
      %2546 = vmatpush1.msra.mxu0 0.0
      %2547 = vmatprep.subr.mxu0 0.0
      %2548 = vmatpush1.msra.mxu0 0.0
      %2549 = vmatprep.subr.mxu0 0.0
      %2550 = vmatpush1.msra.mxu0 0.0
      %2551 = vmatprep.subr.mxu0 0.0
      %2552 = vmatpush1.msra.mxu0 0.0
      %2553 = vmatprep.subr.mxu0 0.0
      %2554 = vmatpush1.msra.mxu0 0.0
      %2555 = vmatprep.subr.mxu0 0.0
      %2556 = vmatpush1.msra.mxu0 0.0
      %2557 = vmatprep.subr.mxu0 0.0
      %2558 = vmatpush1.msra.mxu0 0.0
      %2559 = vmatprep.subr.mxu0 0.0
      %2560 = vmatpush1.msra.mxu0 0.0
      %2561 = vmatprep.mubr.f32.mxu0 0.0
      %2562 = vmatmul.mubr.f32.gmra.mrb[0].mxu0 %v2492
      %v2563 = vpop.f32.mrb[0].mxu0
      %v2564 = vadd.f32 %v2490, %v2563
      %v2565 = vpop.f32.mrb[0].mxu0
      %2566 = vmatprep.mubr.f32.mxu0 0.0
      %2567 = vmatmul.mubr.f32.gmra.mrb[0].mxu0 %v2495
      %v2568 = vpop.f32.mrb[0].mxu0
      %v2569 = vadd.f32 %v2490, %v2568
      %v2570 = vpop.f32.mrb[0].mxu0
      %2571 = vdwg.mxu0
      %v2572 = vsub.f32 1.0, %v2486
      %v2573 = vmul.f32 %v2572, -1e+09
      %2575 = vrot.lane.b32.xlu0 %v2564, 96
      %v2576 = vpop.permute.xlu0 %2575
      %v2577 = vsel %vm750, %v2564, 0
      %v2579 = vsel %vm750, %v2576, 0
      %2581 = vmatprep.subr.mxu0 0.0
      %2582 = vmatpush1.xpose.msra.mxu0 %v2579
      %2583 = vmatprep.subr.mxu0 0.0
      %2584 = vmatpush1.xpose.msra.mxu0 0.0
      %2585 = vmatprep.subr.mxu0 0.0
      %2586 = vmatpush1.xpose.msra.mxu0 0.0
      %2587 = vmatprep.subr.mxu0 0.0
      %2588 = vmatpush1.xpose.msra.mxu0 0.0
      %2589 = vmatprep.subr.mxu0 0.0
      %2590 = vmatpush1.xpose.msra.mxu0 0.0
      %2591 = vmatprep.subr.mxu0 0.0
      %2592 = vmatpush1.xpose.msra.mxu0 0.0
      %2593 = vmatprep.subr.mxu0 0.0
      %2594 = vmatpush1.xpose.msra.mxu0 0.0
      %2595 = vmatprep.subr.mxu0 0.0
      %2596 = vmatpush1.xpose.msra.mxu0 0.0
      %2597 = vmatprep.subr.mxu0 0.0
      %2598 = vmatpush1.xpose.msra.mxu0 0.0
      %2599 = vmatprep.subr.mxu0 0.0
      %2600 = vmatpush1.xpose.msra.mxu0 0.0
      %2601 = vmatprep.subr.mxu0 0.0
      %2602 = vmatpush1.xpose.msra.mxu0 0.0
      %2603 = vmatprep.subr.mxu0 0.0
      %2604 = vmatpush1.xpose.msra.mxu0 0.0
      %2605 = vmatprep.subr.mxu0 0.0
      %2606 = vmatpush1.xpose.msra.mxu0 0.0
      %2607 = vmatprep.subr.mxu0 0.0
      %2608 = vmatpush1.xpose.msra.mxu0 0.0
      %2609 = vmatprep.subr.mxu0 0.0
      %2610 = vmatpush1.xpose.msra.mxu0 0.0
      %2611 = vmatprep.subr.mxu0 0.0
      %2612 = vmatpush1.xpose.msra.mxu0 0.0
      %2613 = vmatprep.subr.mxu0 0.0
      %2614 = vmatpush1.xpose.msra.mxu0 0.0
      %2615 = vmatprep.subr.mxu0 0.0
      %2616 = vmatpush1.xpose.msra.mxu0 0.0
      %2617 = vmatprep.subr.mxu0 0.0
      %2618 = vmatpush1.xpose.msra.mxu0 0.0
      %2619 = vmatprep.subr.mxu0 0.0
      %2620 = vmatpush1.xpose.msra.mxu0 0.0
      %2621 = vmatprep.subr.mxu0 0.0
      %2622 = vmatpush1.xpose.msra.mxu0 0.0
      %2623 = vmatprep.subr.mxu0 0.0
      %2624 = vmatpush1.xpose.msra.mxu0 0.0
      %2625 = vmatprep.subr.mxu0 0.0
      %2626 = vmatpush1.xpose.msra.mxu0 0.0
      %2627 = vmatprep.subr.mxu0 0.0
      %2628 = vmatpush1.xpose.msra.mxu0 0.0
      %2629 = vmatprep.subr.mxu0 0.0
      %2630 = vmatpush1.xpose.msra.mxu0 0.0
      %2631 = vmatprep.subr.mxu0 0.0
      %2632 = vmatpush1.xpose.msra.mxu0 0.0
      %2633 = vmatprep.subr.mxu0 0.0
      %2634 = vmatpush1.xpose.msra.mxu0 0.0
      %2635 = vmatprep.subr.mxu0 0.0
      %2636 = vmatpush1.xpose.msra.mxu0 0.0
      %2637 = vmatprep.subr.mxu0 0.0
      %2638 = vmatpush1.xpose.msra.mxu0 0.0
      %2639 = vmatprep.subr.mxu0 0.0
      %2640 = vmatpush1.xpose.msra.mxu0 0.0
      %2641 = vmatprep.subr.mxu0 0.0
      %2642 = vmatpush1.xpose.msra.mxu0 0.0
      %2643 = vmatprep.subr.mxu0 0.0
      %2644 = vmatpush1.xpose.msra.mxu0 0.0
      %2645 = vmatprep.mubr.f32.mxu0 0.0
      %2646 = vmatmul.mubr.f32.gmra.mrb[0].mxu0 %v2577
      %v2647 = vpop.f32.mrb[0].mxu0
      %v2648 = vadd.f32 0.0, %v2647
      %v2649 = vpop.f32.mrb[0].mxu0
      %2650 = vdwg.mxu0
      %v2651 = vmul.f32 %v2648, 0.35355338
      %v2652 = vlaneseq
      %v2653 = vshrl.u32 %v2652, 7
      %v2654 = vsub.s32 0, %v2653
      %v2655 = vrot.slane %v2573, %v2654
      %v2656 = vadd.f32 %v2651, %v2655
      %v2657 = vsel %vm750, %v2656, -inf
      %2658 = vmax.xlane.f32.xlu0 %v2657
      %v2659 = vpop.xlane.xlu0 %2658
      %v2660 = vsub.f32 %v2656, %v2659
      %v2661 = vmul.f32 %v2660, 1.442695
      %v2662 = vpow.pop %v2661
      %v2663 = vsel %vm750, %v2662, 0.0
      %2664 = vadd.xlane.f32.xlu0 %v2663
      %v2665 = vpop.xlane.xlu0 %2664
      %v2666 = vrcp.pop %v2665
      %v2667 = vmul.f32 %v2662, %v2666
      %2668 = vrot.lane.b32.xlu0 %v2564, 64
      %v2669 = vpop.permute.xlu0 %2668
      %v2672 = vsel %vm750, %v2667, 0
      %2674 = vmatprep.subr.mxu0 0.0
      %2675 = vmatpush1.msra.mxu0 %v2669
      %2676 = vmatprep.subr.mxu0 0.0
      %2677 = vmatpush1.msra.mxu0 0.0
      %2678 = vmatprep.subr.mxu0 0.0
      %2679 = vmatpush1.msra.mxu0 0.0
      %2680 = vmatprep.subr.mxu0 0.0
      %2681 = vmatpush1.msra.mxu0 0.0
      %2682 = vmatprep.subr.mxu0 0.0
      %2683 = vmatpush1.msra.mxu0 0.0
      %2684 = vmatprep.subr.mxu0 0.0
      %2685 = vmatpush1.msra.mxu0 0.0
      %2686 = vmatprep.subr.mxu0 0.0
      %2687 = vmatpush1.msra.mxu0 0.0
      %2688 = vmatprep.subr.mxu0 0.0
      %2689 = vmatpush1.msra.mxu0 0.0
      %2690 = vmatprep.subr.mxu0 0.0
      %2691 = vmatpush1.msra.mxu0 0.0
      %2692 = vmatprep.subr.mxu0 0.0
      %2693 = vmatpush1.msra.mxu0 0.0
      %2694 = vmatprep.subr.mxu0 0.0
      %2695 = vmatpush1.msra.mxu0 0.0
      %2696 = vmatprep.subr.mxu0 0.0
      %2697 = vmatpush1.msra.mxu0 0.0
      %2698 = vmatprep.subr.mxu0 0.0
      %2699 = vmatpush1.msra.mxu0 0.0
      %2700 = vmatprep.subr.mxu0 0.0
      %2701 = vmatpush1.msra.mxu0 0.0
      %2702 = vmatprep.subr.mxu0 0.0
      %2703 = vmatpush1.msra.mxu0 0.0
      %2704 = vmatprep.subr.mxu0 0.0
      %2705 = vmatpush1.msra.mxu0 0.0
      %2706 = vmatprep.subr.mxu0 0.0
      %2707 = vmatpush1.msra.mxu0 0.0
      %2708 = vmatprep.subr.mxu0 0.0
      %2709 = vmatpush1.msra.mxu0 0.0
      %2710 = vmatprep.subr.mxu0 0.0
      %2711 = vmatpush1.msra.mxu0 0.0
      %2712 = vmatprep.subr.mxu0 0.0
      %2713 = vmatpush1.msra.mxu0 0.0
      %2714 = vmatprep.subr.mxu0 0.0
      %2715 = vmatpush1.msra.mxu0 0.0
      %2716 = vmatprep.subr.mxu0 0.0
      %2717 = vmatpush1.msra.mxu0 0.0
      %2718 = vmatprep.subr.mxu0 0.0
      %2719 = vmatpush1.msra.mxu0 0.0
      %2720 = vmatprep.subr.mxu0 0.0
      %2721 = vmatpush1.msra.mxu0 0.0
      %2722 = vmatprep.subr.mxu0 0.0
      %2723 = vmatpush1.msra.mxu0 0.0
      %2724 = vmatprep.subr.mxu0 0.0
      %2725 = vmatpush1.msra.mxu0 0.0
      %2726 = vmatprep.subr.mxu0 0.0
      %2727 = vmatpush1.msra.mxu0 0.0
      %2728 = vmatprep.subr.mxu0 0.0
      %2729 = vmatpush1.msra.mxu0 0.0
      %2730 = vmatprep.subr.mxu0 0.0
      %2731 = vmatpush1.msra.mxu0 0.0
      %2732 = vmatprep.subr.mxu0 0.0
      %2733 = vmatpush1.msra.mxu0 0.0
      %2734 = vmatprep.subr.mxu0 0.0
      %2735 = vmatpush1.msra.mxu0 0.0
      %2736 = vmatprep.subr.mxu0 0.0
      %2737 = vmatpush1.msra.mxu0 0.0
      %2738 = vmatprep.mubr.f32.mxu0 0.0
      %2739 = vmatmul.mubr.f32.gmra.mrb[0].mxu0 %v2672
      %v2740 = vpop.f32.mrb[0].mxu0
      %v2741 = vadd.f32 0.0, %v2740
      %v2742 = vpop.f32.mrb[0].mxu0
      %2743 = vdwg.mxu0
      %2744 = vrot.lane.b32.xlu0 %v2564, 120
      %v2745 = vpop.permute.xlu0 %2744
      %2746 = vrot.lane.b32.xlu0 %v2564, 88
      %v2747 = vpop.permute.xlu0 %2746
      %v2748 = vsel %vm750, %v2745, 0
      %v2750 = vsel %vm750, %v2747, 0
      %2752 = vmatprep.subr.mxu0 0.0
      %2753 = vmatpush1.xpose.msra.mxu0 %v2750
      %2754 = vmatprep.subr.mxu0 0.0
      %2755 = vmatpush1.xpose.msra.mxu0 0.0
      %2756 = vmatprep.subr.mxu0 0.0
      %2757 = vmatpush1.xpose.msra.mxu0 0.0
      %2758 = vmatprep.subr.mxu0 0.0
      %2759 = vmatpush1.xpose.msra.mxu0 0.0
      %2760 = vmatprep.subr.mxu0 0.0
      %2761 = vmatpush1.xpose.msra.mxu0 0.0
      %2762 = vmatprep.subr.mxu0 0.0
      %2763 = vmatpush1.xpose.msra.mxu0 0.0
      %2764 = vmatprep.subr.mxu0 0.0
      %2765 = vmatpush1.xpose.msra.mxu0 0.0
      %2766 = vmatprep.subr.mxu0 0.0
      %2767 = vmatpush1.xpose.msra.mxu0 0.0
      %2768 = vmatprep.subr.mxu0 0.0
      %2769 = vmatpush1.xpose.msra.mxu0 0.0
      %2770 = vmatprep.subr.mxu0 0.0
      %2771 = vmatpush1.xpose.msra.mxu0 0.0
      %2772 = vmatprep.subr.mxu0 0.0
      %2773 = vmatpush1.xpose.msra.mxu0 0.0
      %2774 = vmatprep.subr.mxu0 0.0
      %2775 = vmatpush1.xpose.msra.mxu0 0.0
      %2776 = vmatprep.subr.mxu0 0.0
      %2777 = vmatpush1.xpose.msra.mxu0 0.0
      %2778 = vmatprep.subr.mxu0 0.0
      %2779 = vmatpush1.xpose.msra.mxu0 0.0
      %2780 = vmatprep.subr.mxu0 0.0
      %2781 = vmatpush1.xpose.msra.mxu0 0.0
      %2782 = vmatprep.subr.mxu0 0.0
      %2783 = vmatpush1.xpose.msra.mxu0 0.0
      %2784 = vmatprep.subr.mxu0 0.0
      %2785 = vmatpush1.xpose.msra.mxu0 0.0
      %2786 = vmatprep.subr.mxu0 0.0
      %2787 = vmatpush1.xpose.msra.mxu0 0.0
      %2788 = vmatprep.subr.mxu0 0.0
      %2789 = vmatpush1.xpose.msra.mxu0 0.0
      %2790 = vmatprep.subr.mxu0 0.0
      %2791 = vmatpush1.xpose.msra.mxu0 0.0
      %2792 = vmatprep.subr.mxu0 0.0
      %2793 = vmatpush1.xpose.msra.mxu0 0.0
      %2794 = vmatprep.subr.mxu0 0.0
      %2795 = vmatpush1.xpose.msra.mxu0 0.0
      %2796 = vmatprep.subr.mxu0 0.0
      %2797 = vmatpush1.xpose.msra.mxu0 0.0
      %2798 = vmatprep.subr.mxu0 0.0
      %2799 = vmatpush1.xpose.msra.mxu0 0.0
      %2800 = vmatprep.subr.mxu0 0.0
      %2801 = vmatpush1.xpose.msra.mxu0 0.0
      %2802 = vmatprep.subr.mxu0 0.0
      %2803 = vmatpush1.xpose.msra.mxu0 0.0
      %2804 = vmatprep.subr.mxu0 0.0
      %2805 = vmatpush1.xpose.msra.mxu0 0.0
      %2806 = vmatprep.subr.mxu0 0.0
      %2807 = vmatpush1.xpose.msra.mxu0 0.0
      %2808 = vmatprep.subr.mxu0 0.0
      %2809 = vmatpush1.xpose.msra.mxu0 0.0
      %2810 = vmatprep.subr.mxu0 0.0
      %2811 = vmatpush1.xpose.msra.mxu0 0.0
      %2812 = vmatprep.subr.mxu0 0.0
      %2813 = vmatpush1.xpose.msra.mxu0 0.0
      %2814 = vmatprep.subr.mxu0 0.0
      %2815 = vmatpush1.xpose.msra.mxu0 0.0
      %2816 = vmatprep.mubr.f32.mxu0 0.0
      %2817 = vmatmul.mubr.f32.gmra.mrb[0].mxu0 %v2748
      %v2818 = vpop.f32.mrb[0].mxu0
      %v2819 = vadd.f32 0.0, %v2818
      %v2820 = vpop.f32.mrb[0].mxu0
      %2821 = vdwg.mxu0
      %v2822 = vmul.f32 %v2819, 0.35355338
      %v2823 = vadd.f32 %v2822, %v2655
      %v2824 = vsel %vm750, %v2823, -inf
      %2825 = vmax.xlane.f32.xlu0 %v2824
      %v2826 = vpop.xlane.xlu0 %2825
      %v2827 = vsub.f32 %v2823, %v2826
      %v2828 = vmul.f32 %v2827, 1.442695
      %v2829 = vpow.pop %v2828
      %v2830 = vsel %vm750, %v2829, 0.0
      %2831 = vadd.xlane.f32.xlu0 %v2830
      %v2832 = vpop.xlane.xlu0 %2831
      %v2833 = vrcp.pop %v2832
      %v2834 = vmul.f32 %v2829, %v2833
      %2835 = vrot.lane.b32.xlu0 %v2564, 56
      %v2836 = vpop.permute.xlu0 %2835
      %v2839 = vsel %vm750, %v2834, 0
      %2841 = vmatprep.subr.mxu0 0.0
      %2842 = vmatpush1.msra.mxu0 %v2836
      %2843 = vmatprep.subr.mxu0 0.0
      %2844 = vmatpush1.msra.mxu0 0.0
      %2845 = vmatprep.subr.mxu0 0.0
      %2846 = vmatpush1.msra.mxu0 0.0
      %2847 = vmatprep.subr.mxu0 0.0
      %2848 = vmatpush1.msra.mxu0 0.0
      %2849 = vmatprep.subr.mxu0 0.0
      %2850 = vmatpush1.msra.mxu0 0.0
      %2851 = vmatprep.subr.mxu0 0.0
      %2852 = vmatpush1.msra.mxu0 0.0
      %2853 = vmatprep.subr.mxu0 0.0
      %2854 = vmatpush1.msra.mxu0 0.0
      %2855 = vmatprep.subr.mxu0 0.0
      %2856 = vmatpush1.msra.mxu0 0.0
      %2857 = vmatprep.subr.mxu0 0.0
      %2858 = vmatpush1.msra.mxu0 0.0
      %2859 = vmatprep.subr.mxu0 0.0
      %2860 = vmatpush1.msra.mxu0 0.0
      %2861 = vmatprep.subr.mxu0 0.0
      %2862 = vmatpush1.msra.mxu0 0.0
      %2863 = vmatprep.subr.mxu0 0.0
      %2864 = vmatpush1.msra.mxu0 0.0
      %2865 = vmatprep.subr.mxu0 0.0
      %2866 = vmatpush1.msra.mxu0 0.0
      %2867 = vmatprep.subr.mxu0 0.0
      %2868 = vmatpush1.msra.mxu0 0.0
      %2869 = vmatprep.subr.mxu0 0.0
      %2870 = vmatpush1.msra.mxu0 0.0
      %2871 = vmatprep.subr.mxu0 0.0
      %2872 = vmatpush1.msra.mxu0 0.0
      %2873 = vmatprep.subr.mxu0 0.0
      %2874 = vmatpush1.msra.mxu0 0.0
      %2875 = vmatprep.subr.mxu0 0.0
      %2876 = vmatpush1.msra.mxu0 0.0
      %2877 = vmatprep.subr.mxu0 0.0
      %2878 = vmatpush1.msra.mxu0 0.0
      %2879 = vmatprep.subr.mxu0 0.0
      %2880 = vmatpush1.msra.mxu0 0.0
      %2881 = vmatprep.subr.mxu0 0.0
      %2882 = vmatpush1.msra.mxu0 0.0
      %2883 = vmatprep.subr.mxu0 0.0
      %2884 = vmatpush1.msra.mxu0 0.0
      %2885 = vmatprep.subr.mxu0 0.0
      %2886 = vmatpush1.msra.mxu0 0.0
      %2887 = vmatprep.subr.mxu0 0.0
      %2888 = vmatpush1.msra.mxu0 0.0
      %2889 = vmatprep.subr.mxu0 0.0
      %2890 = vmatpush1.msra.mxu0 0.0
      %2891 = vmatprep.subr.mxu0 0.0
      %2892 = vmatpush1.msra.mxu0 0.0
      %2893 = vmatprep.subr.mxu0 0.0
      %2894 = vmatpush1.msra.mxu0 0.0
      %2895 = vmatprep.subr.mxu0 0.0
      %2896 = vmatpush1.msra.mxu0 0.0
      %2897 = vmatprep.subr.mxu0 0.0
      %2898 = vmatpush1.msra.mxu0 0.0
      %2899 = vmatprep.subr.mxu0 0.0
      %2900 = vmatpush1.msra.mxu0 0.0
      %2901 = vmatprep.subr.mxu0 0.0
      %2902 = vmatpush1.msra.mxu0 0.0
      %2903 = vmatprep.subr.mxu0 0.0
      %2904 = vmatpush1.msra.mxu0 0.0
      %2905 = vmatprep.mubr.f32.mxu0 0.0
      %2906 = vmatmul.mubr.f32.gmra.mrb[0].mxu0 %v2839
      %v2907 = vpop.f32.mrb[0].mxu0
      %v2908 = vadd.f32 0.0, %v2907
      %v2909 = vpop.f32.mrb[0].mxu0
      %2910 = vdwg.mxu0
      %2911 = vrot.lane.b32.xlu0 %v2564, 112
      %v2912 = vpop.permute.xlu0 %2911
      %2913 = vrot.lane.b32.xlu0 %v2564, 80
      %v2914 = vpop.permute.xlu0 %2913
      %v2915 = vsel %vm750, %v2912, 0
      %v2917 = vsel %vm750, %v2914, 0
      %2919 = vmatprep.subr.mxu0 0.0
      %2920 = vmatpush1.xpose.msra.mxu0 %v2917
      %2921 = vmatprep.subr.mxu0 0.0
      %2922 = vmatpush1.xpose.msra.mxu0 0.0
      %2923 = vmatprep.subr.mxu0 0.0
      %2924 = vmatpush1.xpose.msra.mxu0 0.0
      %2925 = vmatprep.subr.mxu0 0.0
      %2926 = vmatpush1.xpose.msra.mxu0 0.0
      %2927 = vmatprep.subr.mxu0 0.0
      %2928 = vmatpush1.xpose.msra.mxu0 0.0
      %2929 = vmatprep.subr.mxu0 0.0
      %2930 = vmatpush1.xpose.msra.mxu0 0.0
      %2931 = vmatprep.subr.mxu0 0.0
      %2932 = vmatpush1.xpose.msra.mxu0 0.0
      %2933 = vmatprep.subr.mxu0 0.0
      %2934 = vmatpush1.xpose.msra.mxu0 0.0
      %2935 = vmatprep.subr.mxu0 0.0
      %2936 = vmatpush1.xpose.msra.mxu0 0.0
      %2937 = vmatprep.subr.mxu0 0.0
      %2938 = vmatpush1.xpose.msra.mxu0 0.0
      %2939 = vmatprep.subr.mxu0 0.0
      %2940 = vmatpush1.xpose.msra.mxu0 0.0
      %2941 = vmatprep.subr.mxu0 0.0
      %2942 = vmatpush1.xpose.msra.mxu0 0.0
      %2943 = vmatprep.subr.mxu0 0.0
      %2944 = vmatpush1.xpose.msra.mxu0 0.0
      %2945 = vmatprep.subr.mxu0 0.0
      %2946 = vmatpush1.xpose.msra.mxu0 0.0
      %2947 = vmatprep.subr.mxu0 0.0
      %2948 = vmatpush1.xpose.msra.mxu0 0.0
      %2949 = vmatprep.subr.mxu0 0.0
      %2950 = vmatpush1.xpose.msra.mxu0 0.0
      %2951 = vmatprep.subr.mxu0 0.0
      %2952 = vmatpush1.xpose.msra.mxu0 0.0
      %2953 = vmatprep.subr.mxu0 0.0
      %2954 = vmatpush1.xpose.msra.mxu0 0.0
      %2955 = vmatprep.subr.mxu0 0.0
      %2956 = vmatpush1.xpose.msra.mxu0 0.0
      %2957 = vmatprep.subr.mxu0 0.0
      %2958 = vmatpush1.xpose.msra.mxu0 0.0
      %2959 = vmatprep.subr.mxu0 0.0
      %2960 = vmatpush1.xpose.msra.mxu0 0.0
      %2961 = vmatprep.subr.mxu0 0.0
      %2962 = vmatpush1.xpose.msra.mxu0 0.0
      %2963 = vmatprep.subr.mxu0 0.0
      %2964 = vmatpush1.xpose.msra.mxu0 0.0
      %2965 = vmatprep.subr.mxu0 0.0
      %2966 = vmatpush1.xpose.msra.mxu0 0.0
      %2967 = vmatprep.subr.mxu0 0.0
      %2968 = vmatpush1.xpose.msra.mxu0 0.0
      %2969 = vmatprep.subr.mxu0 0.0
      %2970 = vmatpush1.xpose.msra.mxu0 0.0
      %2971 = vmatprep.subr.mxu0 0.0
      %2972 = vmatpush1.xpose.msra.mxu0 0.0
      %2973 = vmatprep.subr.mxu0 0.0
      %2974 = vmatpush1.xpose.msra.mxu0 0.0
      %2975 = vmatprep.subr.mxu0 0.0
      %2976 = vmatpush1.xpose.msra.mxu0 0.0
      %2977 = vmatprep.subr.mxu0 0.0
      %2978 = vmatpush1.xpose.msra.mxu0 0.0
      %2979 = vmatprep.subr.mxu0 0.0
      %2980 = vmatpush1.xpose.msra.mxu0 0.0
      %2981 = vmatprep.subr.mxu0 0.0
      %2982 = vmatpush1.xpose.msra.mxu0 0.0
      %2983 = vmatprep.mubr.f32.mxu0 0.0
      %2984 = vmatmul.mubr.f32.gmra.mrb[0].mxu0 %v2915
      %v2985 = vpop.f32.mrb[0].mxu0
      %v2986 = vadd.f32 0.0, %v2985
      %v2987 = vpop.f32.mrb[0].mxu0
      %2988 = vdwg.mxu0
      %v2989 = vmul.f32 %v2986, 0.35355338
      %v2990 = vadd.f32 %v2989, %v2655
      %v2991 = vsel %vm750, %v2990, -inf
      %2992 = vmax.xlane.f32.xlu0 %v2991
      %v2993 = vpop.xlane.xlu0 %2992
      %v2994 = vsub.f32 %v2990, %v2993
      %v2995 = vmul.f32 %v2994, 1.442695
      %v2996 = vpow.pop %v2995
      %v2997 = vsel %vm750, %v2996, 0.0
      %2998 = vadd.xlane.f32.xlu0 %v2997
      %v2999 = vpop.xlane.xlu0 %2998
      %v3000 = vrcp.pop %v2999
      %v3001 = vmul.f32 %v2996, %v3000
      %3002 = vrot.lane.b32.xlu0 %v2564, 48
      %v3003 = vpop.permute.xlu0 %3002
      %v3006 = vsel %vm750, %v3001, 0
      %3008 = vmatprep.subr.mxu0 0.0
      %3009 = vmatpush1.msra.mxu0 %v3003
      %3010 = vmatprep.subr.mxu0 0.0
      %3011 = vmatpush1.msra.mxu0 0.0
      %3012 = vmatprep.subr.mxu0 0.0
      %3013 = vmatpush1.msra.mxu0 0.0
      %3014 = vmatprep.subr.mxu0 0.0
      %3015 = vmatpush1.msra.mxu0 0.0
      %3016 = vmatprep.subr.mxu0 0.0
      %3017 = vmatpush1.msra.mxu0 0.0
      %3018 = vmatprep.subr.mxu0 0.0
      %3019 = vmatpush1.msra.mxu0 0.0
      %3020 = vmatprep.subr.mxu0 0.0
      %3021 = vmatpush1.msra.mxu0 0.0
      %3022 = vmatprep.subr.mxu0 0.0
      %3023 = vmatpush1.msra.mxu0 0.0
      %3024 = vmatprep.subr.mxu0 0.0
      %3025 = vmatpush1.msra.mxu0 0.0
      %3026 = vmatprep.subr.mxu0 0.0
      %3027 = vmatpush1.msra.mxu0 0.0
      %3028 = vmatprep.subr.mxu0 0.0
      %3029 = vmatpush1.msra.mxu0 0.0
      %3030 = vmatprep.subr.mxu0 0.0
      %3031 = vmatpush1.msra.mxu0 0.0
      %3032 = vmatprep.subr.mxu0 0.0
      %3033 = vmatpush1.msra.mxu0 0.0
      %3034 = vmatprep.subr.mxu0 0.0
      %3035 = vmatpush1.msra.mxu0 0.0
      %3036 = vmatprep.subr.mxu0 0.0
      %3037 = vmatpush1.msra.mxu0 0.0
      %3038 = vmatprep.subr.mxu0 0.0
      %3039 = vmatpush1.msra.mxu0 0.0
      %3040 = vmatprep.subr.mxu0 0.0
      %3041 = vmatpush1.msra.mxu0 0.0
      %3042 = vmatprep.subr.mxu0 0.0
      %3043 = vmatpush1.msra.mxu0 0.0
      %3044 = vmatprep.subr.mxu0 0.0
      %3045 = vmatpush1.msra.mxu0 0.0
      %3046 = vmatprep.subr.mxu0 0.0
      %3047 = vmatpush1.msra.mxu0 0.0
      %3048 = vmatprep.subr.mxu0 0.0
      %3049 = vmatpush1.msra.mxu0 0.0
      %3050 = vmatprep.subr.mxu0 0.0
      %3051 = vmatpush1.msra.mxu0 0.0
      %3052 = vmatprep.subr.mxu0 0.0
      %3053 = vmatpush1.msra.mxu0 0.0
      %3054 = vmatprep.subr.mxu0 0.0
      %3055 = vmatpush1.msra.mxu0 0.0
      %3056 = vmatprep.subr.mxu0 0.0
      %3057 = vmatpush1.msra.mxu0 0.0
      %3058 = vmatprep.subr.mxu0 0.0
      %3059 = vmatpush1.msra.mxu0 0.0
      %3060 = vmatprep.subr.mxu0 0.0
      %3061 = vmatpush1.msra.mxu0 0.0
      %3062 = vmatprep.subr.mxu0 0.0
      %3063 = vmatpush1.msra.mxu0 0.0
      %3064 = vmatprep.subr.mxu0 0.0
      %3065 = vmatpush1.msra.mxu0 0.0
      %3066 = vmatprep.subr.mxu0 0.0
      %3067 = vmatpush1.msra.mxu0 0.0
      %3068 = vmatprep.subr.mxu0 0.0
      %3069 = vmatpush1.msra.mxu0 0.0
      %3070 = vmatprep.subr.mxu0 0.0
      %3071 = vmatpush1.msra.mxu0 0.0
      %3072 = vmatprep.mubr.f32.mxu0 0.0
      %3073 = vmatmul.mubr.f32.gmra.mrb[0].mxu0 %v3006
      %v3074 = vpop.f32.mrb[0].mxu0
      %v3075 = vadd.f32 0.0, %v3074
      %v3076 = vpop.f32.mrb[0].mxu0
      %3077 = vdwg.mxu0
      %3078 = vrot.lane.b32.xlu0 %v2564, 104
      %v3079 = vpop.permute.xlu0 %3078
      %3080 = vrot.lane.b32.xlu0 %v2564, 72
      %v3081 = vpop.permute.xlu0 %3080
      %v3082 = vsel %vm750, %v3079, 0
      %v3084 = vsel %vm750, %v3081, 0
      %3086 = vmatprep.subr.mxu0 0.0
      %3087 = vmatpush1.xpose.msra.mxu0 %v3084
      %3088 = vmatprep.subr.mxu0 0.0
      %3089 = vmatpush1.xpose.msra.mxu0 0.0
      %3090 = vmatprep.subr.mxu0 0.0
      %3091 = vmatpush1.xpose.msra.mxu0 0.0
      %3092 = vmatprep.subr.mxu0 0.0
      %3093 = vmatpush1.xpose.msra.mxu0 0.0
      %3094 = vmatprep.subr.mxu0 0.0
      %3095 = vmatpush1.xpose.msra.mxu0 0.0
      %3096 = vmatprep.subr.mxu0 0.0
      %3097 = vmatpush1.xpose.msra.mxu0 0.0
      %3098 = vmatprep.subr.mxu0 0.0
      %3099 = vmatpush1.xpose.msra.mxu0 0.0
      %3100 = vmatprep.subr.mxu0 0.0
      %3101 = vmatpush1.xpose.msra.mxu0 0.0
      %3102 = vmatprep.subr.mxu0 0.0
      %3103 = vmatpush1.xpose.msra.mxu0 0.0
      %3104 = vmatprep.subr.mxu0 0.0
      %3105 = vmatpush1.xpose.msra.mxu0 0.0
      %3106 = vmatprep.subr.mxu0 0.0
      %3107 = vmatpush1.xpose.msra.mxu0 0.0
      %3108 = vmatprep.subr.mxu0 0.0
      %3109 = vmatpush1.xpose.msra.mxu0 0.0
      %3110 = vmatprep.subr.mxu0 0.0
      %3111 = vmatpush1.xpose.msra.mxu0 0.0
      %3112 = vmatprep.subr.mxu0 0.0
      %3113 = vmatpush1.xpose.msra.mxu0 0.0
      %3114 = vmatprep.subr.mxu0 0.0
      %3115 = vmatpush1.xpose.msra.mxu0 0.0
      %3116 = vmatprep.subr.mxu0 0.0
      %3117 = vmatpush1.xpose.msra.mxu0 0.0
      %3118 = vmatprep.subr.mxu0 0.0
      %3119 = vmatpush1.xpose.msra.mxu0 0.0
      %3120 = vmatprep.subr.mxu0 0.0
      %3121 = vmatpush1.xpose.msra.mxu0 0.0
      %3122 = vmatprep.subr.mxu0 0.0
      %3123 = vmatpush1.xpose.msra.mxu0 0.0
      %3124 = vmatprep.subr.mxu0 0.0
      %3125 = vmatpush1.xpose.msra.mxu0 0.0
      %3126 = vmatprep.subr.mxu0 0.0
      %3127 = vmatpush1.xpose.msra.mxu0 0.0
      %3128 = vmatprep.subr.mxu0 0.0
      %3129 = vmatpush1.xpose.msra.mxu0 0.0
      %3130 = vmatprep.subr.mxu0 0.0
      %3131 = vmatpush1.xpose.msra.mxu0 0.0
      %3132 = vmatprep.subr.mxu0 0.0
      %3133 = vmatpush1.xpose.msra.mxu0 0.0
      %3134 = vmatprep.subr.mxu0 0.0
      %3135 = vmatpush1.xpose.msra.mxu0 0.0
      %3136 = vmatprep.subr.mxu0 0.0
      %3137 = vmatpush1.xpose.msra.mxu0 0.0
      %3138 = vmatprep.subr.mxu0 0.0
      %3139 = vmatpush1.xpose.msra.mxu0 0.0
      %3140 = vmatprep.subr.mxu0 0.0
      %3141 = vmatpush1.xpose.msra.mxu0 0.0
      %3142 = vmatprep.subr.mxu0 0.0
      %3143 = vmatpush1.xpose.msra.mxu0 0.0
      %3144 = vmatprep.subr.mxu0 0.0
      %3145 = vmatpush1.xpose.msra.mxu0 0.0
      %3146 = vmatprep.subr.mxu0 0.0
      %3147 = vmatpush1.xpose.msra.mxu0 0.0
      %3148 = vmatprep.subr.mxu0 0.0
      %3149 = vmatpush1.xpose.msra.mxu0 0.0
      %3150 = vmatprep.mubr.f32.mxu0 0.0
      %3151 = vmatmul.mubr.f32.gmra.mrb[0].mxu0 %v3082
      %v3152 = vpop.f32.mrb[0].mxu0
      %v3153 = vadd.f32 0.0, %v3152
      %v3154 = vpop.f32.mrb[0].mxu0
      %3155 = vdwg.mxu0
      %v3156 = vmul.f32 %v3153, 0.35355338
      %v3157 = vadd.f32 %v3156, %v2655
      %v3158 = vsel %vm750, %v3157, -inf
      %3159 = vmax.xlane.f32.xlu0 %v3158
      %v3160 = vpop.xlane.xlu0 %3159
      %v3161 = vsub.f32 %v3157, %v3160
      %v3162 = vmul.f32 %v3161, 1.442695
      %v3163 = vpow.pop %v3162
      %v3164 = vsel %vm750, %v3163, 0.0
      %3165 = vadd.xlane.f32.xlu0 %v3164
      %v3166 = vpop.xlane.xlu0 %3165
      %v3167 = vrcp.pop %v3166
      %v3168 = vmul.f32 %v3163, %v3167
      %3169 = vrot.lane.b32.xlu0 %v2564, 40
      %v3170 = vpop.permute.xlu0 %3169
      %v3173 = vsel %vm750, %v3168, 0
      %3175 = vmatprep.subr.mxu0 0.0
      %3176 = vmatpush1.msra.mxu0 %v3170
      %3177 = vmatprep.subr.mxu0 0.0
      %3178 = vmatpush1.msra.mxu0 0.0
      %3179 = vmatprep.subr.mxu0 0.0
      %3180 = vmatpush1.msra.mxu0 0.0
      %3181 = vmatprep.subr.mxu0 0.0
      %3182 = vmatpush1.msra.mxu0 0.0
      %3183 = vmatprep.subr.mxu0 0.0
      %3184 = vmatpush1.msra.mxu0 0.0
      %3185 = vmatprep.subr.mxu0 0.0
      %3186 = vmatpush1.msra.mxu0 0.0
      %3187 = vmatprep.subr.mxu0 0.0
      %3188 = vmatpush1.msra.mxu0 0.0
      %3189 = vmatprep.subr.mxu0 0.0
      %3190 = vmatpush1.msra.mxu0 0.0
      %3191 = vmatprep.subr.mxu0 0.0
      %3192 = vmatpush1.msra.mxu0 0.0
      %3193 = vmatprep.subr.mxu0 0.0
      %3194 = vmatpush1.msra.mxu0 0.0
      %3195 = vmatprep.subr.mxu0 0.0
      %3196 = vmatpush1.msra.mxu0 0.0
      %3197 = vmatprep.subr.mxu0 0.0
      %3198 = vmatpush1.msra.mxu0 0.0
      %3199 = vmatprep.subr.mxu0 0.0
      %3200 = vmatpush1.msra.mxu0 0.0
      %3201 = vmatprep.subr.mxu0 0.0
      %3202 = vmatpush1.msra.mxu0 0.0
      %3203 = vmatprep.subr.mxu0 0.0
      %3204 = vmatpush1.msra.mxu0 0.0
      %3205 = vmatprep.subr.mxu0 0.0
      %3206 = vmatpush1.msra.mxu0 0.0
      %3207 = vmatprep.subr.mxu0 0.0
      %3208 = vmatpush1.msra.mxu0 0.0
      %3209 = vmatprep.subr.mxu0 0.0
      %3210 = vmatpush1.msra.mxu0 0.0
      %3211 = vmatprep.subr.mxu0 0.0
      %3212 = vmatpush1.msra.mxu0 0.0
      %3213 = vmatprep.subr.mxu0 0.0
      %3214 = vmatpush1.msra.mxu0 0.0
      %3215 = vmatprep.subr.mxu0 0.0
      %3216 = vmatpush1.msra.mxu0 0.0
      %3217 = vmatprep.subr.mxu0 0.0
      %3218 = vmatpush1.msra.mxu0 0.0
      %3219 = vmatprep.subr.mxu0 0.0
      %3220 = vmatpush1.msra.mxu0 0.0
      %3221 = vmatprep.subr.mxu0 0.0
      %3222 = vmatpush1.msra.mxu0 0.0
      %3223 = vmatprep.subr.mxu0 0.0
      %3224 = vmatpush1.msra.mxu0 0.0
      %3225 = vmatprep.subr.mxu0 0.0
      %3226 = vmatpush1.msra.mxu0 0.0
      %3227 = vmatprep.subr.mxu0 0.0
      %3228 = vmatpush1.msra.mxu0 0.0
      %3229 = vmatprep.subr.mxu0 0.0
      %3230 = vmatpush1.msra.mxu0 0.0
      %3231 = vmatprep.subr.mxu0 0.0
      %3232 = vmatpush1.msra.mxu0 0.0
      %3233 = vmatprep.subr.mxu0 0.0
      %3234 = vmatpush1.msra.mxu0 0.0
      %3235 = vmatprep.subr.mxu0 0.0
      %3236 = vmatpush1.msra.mxu0 0.0
      %3237 = vmatprep.subr.mxu0 0.0
      %3238 = vmatpush1.msra.mxu0 0.0
      %3239 = vmatprep.mubr.f32.mxu0 0.0
      %3240 = vmatmul.mubr.f32.gmra.mrb[0].mxu0 %v3173
      %v3241 = vpop.f32.mrb[0].mxu0
      %v3242 = vadd.f32 0.0, %v3241
      %v3243 = vpop.f32.mrb[0].mxu0
      %3244 = vdwg.mxu0
      %3246 = vrot.lane.b32.xlu0 %v2908, 8
      %v3247 = vpop.permute.xlu0 %3246
      %3250 = vrot.lane.b32.xlu0 %v3075, 16
      %v3251 = vpop.permute.xlu0 %3250
      %3254 = vrot.lane.b32.xlu0 %v3242, 24
      %v3255 = vpop.permute.xlu0 %3254
      %v3257 = vsel %vm750, %v2741, %v3247
      %v3258 = vsel %vm1424, %v3257, %v3251
      %v3259 = vsel %vm1426, %v3258, %v3255
      %3261 = vrot.lane.b32.xlu0 %v2569, 96
      %v3262 = vpop.permute.xlu0 %3261
      %v3263 = vsel %vm750, %v2569, 0
      %v3265 = vsel %vm750, %v3262, 0
      %3267 = vmatprep.subr.mxu0 0.0
      %3268 = vmatpush1.xpose.msra.mxu0 %v3265
      %3269 = vmatprep.subr.mxu0 0.0
      %3270 = vmatpush1.xpose.msra.mxu0 0.0
      %3271 = vmatprep.subr.mxu0 0.0
      %3272 = vmatpush1.xpose.msra.mxu0 0.0
      %3273 = vmatprep.subr.mxu0 0.0
      %3274 = vmatpush1.xpose.msra.mxu0 0.0
      %3275 = vmatprep.subr.mxu0 0.0
      %3276 = vmatpush1.xpose.msra.mxu0 0.0
      %3277 = vmatprep.subr.mxu0 0.0
      %3278 = vmatpush1.xpose.msra.mxu0 0.0
      %3279 = vmatprep.subr.mxu0 0.0
      %3280 = vmatpush1.xpose.msra.mxu0 0.0
      %3281 = vmatprep.subr.mxu0 0.0
      %3282 = vmatpush1.xpose.msra.mxu0 0.0
      %3283 = vmatprep.subr.mxu0 0.0
      %3284 = vmatpush1.xpose.msra.mxu0 0.0
      %3285 = vmatprep.subr.mxu0 0.0
      %3286 = vmatpush1.xpose.msra.mxu0 0.0
      %3287 = vmatprep.subr.mxu0 0.0
      %3288 = vmatpush1.xpose.msra.mxu0 0.0
      %3289 = vmatprep.subr.mxu0 0.0
      %3290 = vmatpush1.xpose.msra.mxu0 0.0
      %3291 = vmatprep.subr.mxu0 0.0
      %3292 = vmatpush1.xpose.msra.mxu0 0.0
      %3293 = vmatprep.subr.mxu0 0.0
      %3294 = vmatpush1.xpose.msra.mxu0 0.0
      %3295 = vmatprep.subr.mxu0 0.0
      %3296 = vmatpush1.xpose.msra.mxu0 0.0
      %3297 = vmatprep.subr.mxu0 0.0
      %3298 = vmatpush1.xpose.msra.mxu0 0.0
      %3299 = vmatprep.subr.mxu0 0.0
      %3300 = vmatpush1.xpose.msra.mxu0 0.0
      %3301 = vmatprep.subr.mxu0 0.0
      %3302 = vmatpush1.xpose.msra.mxu0 0.0
      %3303 = vmatprep.subr.mxu0 0.0
      %3304 = vmatpush1.xpose.msra.mxu0 0.0
      %3305 = vmatprep.subr.mxu0 0.0
      %3306 = vmatpush1.xpose.msra.mxu0 0.0
      %3307 = vmatprep.subr.mxu0 0.0
      %3308 = vmatpush1.xpose.msra.mxu0 0.0
      %3309 = vmatprep.subr.mxu0 0.0
      %3310 = vmatpush1.xpose.msra.mxu0 0.0
      %3311 = vmatprep.subr.mxu0 0.0
      %3312 = vmatpush1.xpose.msra.mxu0 0.0
      %3313 = vmatprep.subr.mxu0 0.0
      %3314 = vmatpush1.xpose.msra.mxu0 0.0
      %3315 = vmatprep.subr.mxu0 0.0
      %3316 = vmatpush1.xpose.msra.mxu0 0.0
      %3317 = vmatprep.subr.mxu0 0.0
      %3318 = vmatpush1.xpose.msra.mxu0 0.0
      %3319 = vmatprep.subr.mxu0 0.0
      %3320 = vmatpush1.xpose.msra.mxu0 0.0
      %3321 = vmatprep.subr.mxu0 0.0
      %3322 = vmatpush1.xpose.msra.mxu0 0.0
      %3323 = vmatprep.subr.mxu0 0.0
      %3324 = vmatpush1.xpose.msra.mxu0 0.0
      %3325 = vmatprep.subr.mxu0 0.0
      %3326 = vmatpush1.xpose.msra.mxu0 0.0
      %3327 = vmatprep.subr.mxu0 0.0
      %3328 = vmatpush1.xpose.msra.mxu0 0.0
      %3329 = vmatprep.subr.mxu0 0.0
      %3330 = vmatpush1.xpose.msra.mxu0 0.0
      %3331 = vmatprep.mubr.f32.mxu0 0.0
      %3332 = vmatmul.mubr.f32.gmra.mrb[0].mxu0 %v3263
      %v3333 = vpop.f32.mrb[0].mxu0
      %v3334 = vadd.f32 0.0, %v3333
      %v3335 = vpop.f32.mrb[0].mxu0
      %3336 = vdwg.mxu0
      %v3337 = vmul.f32 %v3334, 0.35355338
      %v3338 = vlaneseq
      %v3339 = vshrl.u32 %v3338, 7
      %v3340 = vsub.s32 1, %v3339
      %v3341 = vrot.slane %v2573, %v3340
      %v3342 = vadd.f32 %v3337, %v3341
      %v3343 = vsel %vm750, %v3342, -inf
      %3344 = vmax.xlane.f32.xlu0 %v3343
      %v3345 = vpop.xlane.xlu0 %3344
      %v3346 = vsub.f32 %v3342, %v3345
      %v3347 = vmul.f32 %v3346, 1.442695
      %v3348 = vpow.pop %v3347
      %v3349 = vsel %vm750, %v3348, 0.0
      %3350 = vadd.xlane.f32.xlu0 %v3349
      %v3351 = vpop.xlane.xlu0 %3350
      %v3352 = vrcp.pop %v3351
      %v3353 = vmul.f32 %v3348, %v3352
      %3354 = vrot.lane.b32.xlu0 %v2569, 64
      %v3355 = vpop.permute.xlu0 %3354
      %v3358 = vsel %vm750, %v3353, 0
      %3360 = vmatprep.subr.mxu0 0.0
      %3361 = vmatpush1.msra.mxu0 %v3355
      %3362 = vmatprep.subr.mxu0 0.0
      %3363 = vmatpush1.msra.mxu0 0.0
      %3364 = vmatprep.subr.mxu0 0.0
      %3365 = vmatpush1.msra.mxu0 0.0
      %3366 = vmatprep.subr.mxu0 0.0
      %3367 = vmatpush1.msra.mxu0 0.0
      %3368 = vmatprep.subr.mxu0 0.0
      %3369 = vmatpush1.msra.mxu0 0.0
      %3370 = vmatprep.subr.mxu0 0.0
      %3371 = vmatpush1.msra.mxu0 0.0
      %3372 = vmatprep.subr.mxu0 0.0
      %3373 = vmatpush1.msra.mxu0 0.0
      %3374 = vmatprep.subr.mxu0 0.0
      %3375 = vmatpush1.msra.mxu0 0.0
      %3376 = vmatprep.subr.mxu0 0.0
      %3377 = vmatpush1.msra.mxu0 0.0
      %3378 = vmatprep.subr.mxu0 0.0
      %3379 = vmatpush1.msra.mxu0 0.0
      %3380 = vmatprep.subr.mxu0 0.0
      %3381 = vmatpush1.msra.mxu0 0.0
      %3382 = vmatprep.subr.mxu0 0.0
      %3383 = vmatpush1.msra.mxu0 0.0
      %3384 = vmatprep.subr.mxu0 0.0
      %3385 = vmatpush1.msra.mxu0 0.0
      %3386 = vmatprep.subr.mxu0 0.0
      %3387 = vmatpush1.msra.mxu0 0.0
      %3388 = vmatprep.subr.mxu0 0.0
      %3389 = vmatpush1.msra.mxu0 0.0
      %3390 = vmatprep.subr.mxu0 0.0
      %3391 = vmatpush1.msra.mxu0 0.0
      %3392 = vmatprep.subr.mxu0 0.0
      %3393 = vmatpush1.msra.mxu0 0.0
      %3394 = vmatprep.subr.mxu0 0.0
      %3395 = vmatpush1.msra.mxu0 0.0
      %3396 = vmatprep.subr.mxu0 0.0
      %3397 = vmatpush1.msra.mxu0 0.0
      %3398 = vmatprep.subr.mxu0 0.0
      %3399 = vmatpush1.msra.mxu0 0.0
      %3400 = vmatprep.subr.mxu0 0.0
      %3401 = vmatpush1.msra.mxu0 0.0
      %3402 = vmatprep.subr.mxu0 0.0
      %3403 = vmatpush1.msra.mxu0 0.0
      %3404 = vmatprep.subr.mxu0 0.0
      %3405 = vmatpush1.msra.mxu0 0.0
      %3406 = vmatprep.subr.mxu0 0.0
      %3407 = vmatpush1.msra.mxu0 0.0
      %3408 = vmatprep.subr.mxu0 0.0
      %3409 = vmatpush1.msra.mxu0 0.0
      %3410 = vmatprep.subr.mxu0 0.0
      %3411 = vmatpush1.msra.mxu0 0.0
      %3412 = vmatprep.subr.mxu0 0.0
      %3413 = vmatpush1.msra.mxu0 0.0
      %3414 = vmatprep.subr.mxu0 0.0
      %3415 = vmatpush1.msra.mxu0 0.0
      %3416 = vmatprep.subr.mxu0 0.0
      %3417 = vmatpush1.msra.mxu0 0.0
      %3418 = vmatprep.subr.mxu0 0.0
      %3419 = vmatpush1.msra.mxu0 0.0
      %3420 = vmatprep.subr.mxu0 0.0
      %3421 = vmatpush1.msra.mxu0 0.0
      %3422 = vmatprep.subr.mxu0 0.0
      %3423 = vmatpush1.msra.mxu0 0.0
      %3424 = vmatprep.mubr.f32.mxu0 0.0
      %3425 = vmatmul.mubr.f32.gmra.mrb[0].mxu0 %v3358
      %v3426 = vpop.f32.mrb[0].mxu0
      %v3427 = vadd.f32 0.0, %v3426
      %v3428 = vpop.f32.mrb[0].mxu0
      %3429 = vdwg.mxu0
      %3430 = vrot.lane.b32.xlu0 %v2569, 120
      %v3431 = vpop.permute.xlu0 %3430
      %3432 = vrot.lane.b32.xlu0 %v2569, 88
      %v3433 = vpop.permute.xlu0 %3432
      %v3434 = vsel %vm750, %v3431, 0
      %v3436 = vsel %vm750, %v3433, 0
      %3438 = vmatprep.subr.mxu0 0.0
      %3439 = vmatpush1.xpose.msra.mxu0 %v3436
      %3440 = vmatprep.subr.mxu0 0.0
      %3441 = vmatpush1.xpose.msra.mxu0 0.0
      %3442 = vmatprep.subr.mxu0 0.0
      %3443 = vmatpush1.xpose.msra.mxu0 0.0
      %3444 = vmatprep.subr.mxu0 0.0
      %3445 = vmatpush1.xpose.msra.mxu0 0.0
      %3446 = vmatprep.subr.mxu0 0.0
      %3447 = vmatpush1.xpose.msra.mxu0 0.0
      %3448 = vmatprep.subr.mxu0 0.0
      %3449 = vmatpush1.xpose.msra.mxu0 0.0
      %3450 = vmatprep.subr.mxu0 0.0
      %3451 = vmatpush1.xpose.msra.mxu0 0.0
      %3452 = vmatprep.subr.mxu0 0.0
      %3453 = vmatpush1.xpose.msra.mxu0 0.0
      %3454 = vmatprep.subr.mxu0 0.0
      %3455 = vmatpush1.xpose.msra.mxu0 0.0
      %3456 = vmatprep.subr.mxu0 0.0
      %3457 = vmatpush1.xpose.msra.mxu0 0.0
      %3458 = vmatprep.subr.mxu0 0.0
      %3459 = vmatpush1.xpose.msra.mxu0 0.0
      %3460 = vmatprep.subr.mxu0 0.0
      %3461 = vmatpush1.xpose.msra.mxu0 0.0
      %3462 = vmatprep.subr.mxu0 0.0
      %3463 = vmatpush1.xpose.msra.mxu0 0.0
      %3464 = vmatprep.subr.mxu0 0.0
      %3465 = vmatpush1.xpose.msra.mxu0 0.0
      %3466 = vmatprep.subr.mxu0 0.0
      %3467 = vmatpush1.xpose.msra.mxu0 0.0
      %3468 = vmatprep.subr.mxu0 0.0
      %3469 = vmatpush1.xpose.msra.mxu0 0.0
      %3470 = vmatprep.subr.mxu0 0.0
      %3471 = vmatpush1.xpose.msra.mxu0 0.0
      %3472 = vmatprep.subr.mxu0 0.0
      %3473 = vmatpush1.xpose.msra.mxu0 0.0
      %3474 = vmatprep.subr.mxu0 0.0
      %3475 = vmatpush1.xpose.msra.mxu0 0.0
      %3476 = vmatprep.subr.mxu0 0.0
      %3477 = vmatpush1.xpose.msra.mxu0 0.0
      %3478 = vmatprep.subr.mxu0 0.0
      %3479 = vmatpush1.xpose.msra.mxu0 0.0
      %3480 = vmatprep.subr.mxu0 0.0
      %3481 = vmatpush1.xpose.msra.mxu0 0.0
      %3482 = vmatprep.subr.mxu0 0.0
      %3483 = vmatpush1.xpose.msra.mxu0 0.0
      %3484 = vmatprep.subr.mxu0 0.0
      %3485 = vmatpush1.xpose.msra.mxu0 0.0
      %3486 = vmatprep.subr.mxu0 0.0
      %3487 = vmatpush1.xpose.msra.mxu0 0.0
      %3488 = vmatprep.subr.mxu0 0.0
      %3489 = vmatpush1.xpose.msra.mxu0 0.0
      %3490 = vmatprep.subr.mxu0 0.0
      %3491 = vmatpush1.xpose.msra.mxu0 0.0
      %3492 = vmatprep.subr.mxu0 0.0
      %3493 = vmatpush1.xpose.msra.mxu0 0.0
      %3494 = vmatprep.subr.mxu0 0.0
      %3495 = vmatpush1.xpose.msra.mxu0 0.0
      %3496 = vmatprep.subr.mxu0 0.0
      %3497 = vmatpush1.xpose.msra.mxu0 0.0
      %3498 = vmatprep.subr.mxu0 0.0
      %3499 = vmatpush1.xpose.msra.mxu0 0.0
      %3500 = vmatprep.subr.mxu0 0.0
      %3501 = vmatpush1.xpose.msra.mxu0 0.0
      %3502 = vmatprep.mubr.f32.mxu0 0.0
      %3503 = vmatmul.mubr.f32.gmra.mrb[0].mxu0 %v3434
      %v3504 = vpop.f32.mrb[0].mxu0
      %v3505 = vadd.f32 0.0, %v3504
      %v3506 = vpop.f32.mrb[0].mxu0
      %3507 = vdwg.mxu0
      %v3508 = vmul.f32 %v3505, 0.35355338
      %v3509 = vadd.f32 %v3508, %v3341
      %v3510 = vsel %vm750, %v3509, -inf
      %3511 = vmax.xlane.f32.xlu0 %v3510
      %v3512 = vpop.xlane.xlu0 %3511
      %v3513 = vsub.f32 %v3509, %v3512
      %v3514 = vmul.f32 %v3513, 1.442695
      %v3515 = vpow.pop %v3514
      %v3516 = vsel %vm750, %v3515, 0.0
      %3517 = vadd.xlane.f32.xlu0 %v3516
      %v3518 = vpop.xlane.xlu0 %3517
      %v3519 = vrcp.pop %v3518
      %v3520 = vmul.f32 %v3515, %v3519
      %3521 = vrot.lane.b32.xlu0 %v2569, 56
      %v3522 = vpop.permute.xlu0 %3521
      %v3525 = vsel %vm750, %v3520, 0
      %3527 = vmatprep.subr.mxu0 0.0
      %3528 = vmatpush1.msra.mxu0 %v3522
      %3529 = vmatprep.subr.mxu0 0.0
      %3530 = vmatpush1.msra.mxu0 0.0
      %3531 = vmatprep.subr.mxu0 0.0
      %3532 = vmatpush1.msra.mxu0 0.0
      %3533 = vmatprep.subr.mxu0 0.0
      %3534 = vmatpush1.msra.mxu0 0.0
      %3535 = vmatprep.subr.mxu0 0.0
      %3536 = vmatpush1.msra.mxu0 0.0
      %3537 = vmatprep.subr.mxu0 0.0
      %3538 = vmatpush1.msra.mxu0 0.0
      %3539 = vmatprep.subr.mxu0 0.0
      %3540 = vmatpush1.msra.mxu0 0.0
      %3541 = vmatprep.subr.mxu0 0.0
      %3542 = vmatpush1.msra.mxu0 0.0
      %3543 = vmatprep.subr.mxu0 0.0
      %3544 = vmatpush1.msra.mxu0 0.0
      %3545 = vmatprep.subr.mxu0 0.0
      %3546 = vmatpush1.msra.mxu0 0.0
      %3547 = vmatprep.subr.mxu0 0.0
      %3548 = vmatpush1.msra.mxu0 0.0
      %3549 = vmatprep.subr.mxu0 0.0
      %3550 = vmatpush1.msra.mxu0 0.0
      %3551 = vmatprep.subr.mxu0 0.0
      %3552 = vmatpush1.msra.mxu0 0.0
      %3553 = vmatprep.subr.mxu0 0.0
      %3554 = vmatpush1.msra.mxu0 0.0
      %3555 = vmatprep.subr.mxu0 0.0
      %3556 = vmatpush1.msra.mxu0 0.0
      %3557 = vmatprep.subr.mxu0 0.0
      %3558 = vmatpush1.msra.mxu0 0.0
      %3559 = vmatprep.subr.mxu0 0.0
      %3560 = vmatpush1.msra.mxu0 0.0
      %3561 = vmatprep.subr.mxu0 0.0
      %3562 = vmatpush1.msra.mxu0 0.0
      %3563 = vmatprep.subr.mxu0 0.0
      %3564 = vmatpush1.msra.mxu0 0.0
      %3565 = vmatprep.subr.mxu0 0.0
      %3566 = vmatpush1.msra.mxu0 0.0
      %3567 = vmatprep.subr.mxu0 0.0
      %3568 = vmatpush1.msra.mxu0 0.0
      %3569 = vmatprep.subr.mxu0 0.0
      %3570 = vmatpush1.msra.mxu0 0.0
      %3571 = vmatprep.subr.mxu0 0.0
      %3572 = vmatpush1.msra.mxu0 0.0
      %3573 = vmatprep.subr.mxu0 0.0
      %3574 = vmatpush1.msra.mxu0 0.0
      %3575 = vmatprep.subr.mxu0 0.0
      %3576 = vmatpush1.msra.mxu0 0.0
      %3577 = vmatprep.subr.mxu0 0.0
      %3578 = vmatpush1.msra.mxu0 0.0
      %3579 = vmatprep.subr.mxu0 0.0
      %3580 = vmatpush1.msra.mxu0 0.0
      %3581 = vmatprep.subr.mxu0 0.0
      %3582 = vmatpush1.msra.mxu0 0.0
      %3583 = vmatprep.subr.mxu0 0.0
      %3584 = vmatpush1.msra.mxu0 0.0
      %3585 = vmatprep.subr.mxu0 0.0
      %3586 = vmatpush1.msra.mxu0 0.0
      %3587 = vmatprep.subr.mxu0 0.0
      %3588 = vmatpush1.msra.mxu0 0.0
      %3589 = vmatprep.subr.mxu0 0.0
      %3590 = vmatpush1.msra.mxu0 0.0
      %3591 = vmatprep.mubr.f32.mxu0 0.0
      %3592 = vmatmul.mubr.f32.gmra.mrb[0].mxu0 %v3525
      %v3593 = vpop.f32.mrb[0].mxu0
      %v3594 = vadd.f32 0.0, %v3593
      %v3595 = vpop.f32.mrb[0].mxu0
      %3596 = vdwg.mxu0
      %3597 = vrot.lane.b32.xlu0 %v2569, 112
      %v3598 = vpop.permute.xlu0 %3597
      %3599 = vrot.lane.b32.xlu0 %v2569, 80
      %v3600 = vpop.permute.xlu0 %3599
      %v3601 = vsel %vm750, %v3598, 0
      %v3603 = vsel %vm750, %v3600, 0
      %3605 = vmatprep.subr.mxu0 0.0
      %3606 = vmatpush1.xpose.msra.mxu0 %v3603
      %3607 = vmatprep.subr.mxu0 0.0
      %3608 = vmatpush1.xpose.msra.mxu0 0.0
      %3609 = vmatprep.subr.mxu0 0.0
      %3610 = vmatpush1.xpose.msra.mxu0 0.0
      %3611 = vmatprep.subr.mxu0 0.0
      %3612 = vmatpush1.xpose.msra.mxu0 0.0
      %3613 = vmatprep.subr.mxu0 0.0
      %3614 = vmatpush1.xpose.msra.mxu0 0.0
      %3615 = vmatprep.subr.mxu0 0.0
      %3616 = vmatpush1.xpose.msra.mxu0 0.0
      %3617 = vmatprep.subr.mxu0 0.0
      %3618 = vmatpush1.xpose.msra.mxu0 0.0
      %3619 = vmatprep.subr.mxu0 0.0
      %3620 = vmatpush1.xpose.msra.mxu0 0.0
      %3621 = vmatprep.subr.mxu0 0.0
      %3622 = vmatpush1.xpose.msra.mxu0 0.0
      %3623 = vmatprep.subr.mxu0 0.0
      %3624 = vmatpush1.xpose.msra.mxu0 0.0
      %3625 = vmatprep.subr.mxu0 0.0
      %3626 = vmatpush1.xpose.msra.mxu0 0.0
      %3627 = vmatprep.subr.mxu0 0.0
      %3628 = vmatpush1.xpose.msra.mxu0 0.0
      %3629 = vmatprep.subr.mxu0 0.0
      %3630 = vmatpush1.xpose.msra.mxu0 0.0
      %3631 = vmatprep.subr.mxu0 0.0
      %3632 = vmatpush1.xpose.msra.mxu0 0.0
      %3633 = vmatprep.subr.mxu0 0.0
      %3634 = vmatpush1.xpose.msra.mxu0 0.0
      %3635 = vmatprep.subr.mxu0 0.0
      %3636 = vmatpush1.xpose.msra.mxu0 0.0
      %3637 = vmatprep.subr.mxu0 0.0
      %3638 = vmatpush1.xpose.msra.mxu0 0.0
      %3639 = vmatprep.subr.mxu0 0.0
      %3640 = vmatpush1.xpose.msra.mxu0 0.0
      %3641 = vmatprep.subr.mxu0 0.0
      %3642 = vmatpush1.xpose.msra.mxu0 0.0
      %3643 = vmatprep.subr.mxu0 0.0
      %3644 = vmatpush1.xpose.msra.mxu0 0.0
      %3645 = vmatprep.subr.mxu0 0.0
      %3646 = vmatpush1.xpose.msra.mxu0 0.0
      %3647 = vmatprep.subr.mxu0 0.0
      %3648 = vmatpush1.xpose.msra.mxu0 0.0
      %3649 = vmatprep.subr.mxu0 0.0
      %3650 = vmatpush1.xpose.msra.mxu0 0.0
      %3651 = vmatprep.subr.mxu0 0.0
      %3652 = vmatpush1.xpose.msra.mxu0 0.0
      %3653 = vmatprep.subr.mxu0 0.0
      %3654 = vmatpush1.xpose.msra.mxu0 0.0
      %3655 = vmatprep.subr.mxu0 0.0
      %3656 = vmatpush1.xpose.msra.mxu0 0.0
      %3657 = vmatprep.subr.mxu0 0.0
      %3658 = vmatpush1.xpose.msra.mxu0 0.0
      %3659 = vmatprep.subr.mxu0 0.0
      %3660 = vmatpush1.xpose.msra.mxu0 0.0
      %3661 = vmatprep.subr.mxu0 0.0
      %3662 = vmatpush1.xpose.msra.mxu0 0.0
      %3663 = vmatprep.subr.mxu0 0.0
      %3664 = vmatpush1.xpose.msra.mxu0 0.0
      %3665 = vmatprep.subr.mxu0 0.0
      %3666 = vmatpush1.xpose.msra.mxu0 0.0
      %3667 = vmatprep.subr.mxu0 0.0
      %3668 = vmatpush1.xpose.msra.mxu0 0.0
      %3669 = vmatprep.mubr.f32.mxu0 0.0
      %3670 = vmatmul.mubr.f32.gmra.mrb[0].mxu0 %v3601
      %v3671 = vpop.f32.mrb[0].mxu0
      %v3672 = vadd.f32 0.0, %v3671
      %v3673 = vpop.f32.mrb[0].mxu0
      %3674 = vdwg.mxu0
      %v3675 = vmul.f32 %v3672, 0.35355338
      %v3676 = vadd.f32 %v3675, %v3341
      %v3677 = vsel %vm750, %v3676, -inf
      %3678 = vmax.xlane.f32.xlu0 %v3677
      %v3679 = vpop.xlane.xlu0 %3678
      %v3680 = vsub.f32 %v3676, %v3679
      %v3681 = vmul.f32 %v3680, 1.442695
      %v3682 = vpow.pop %v3681
      %v3683 = vsel %vm750, %v3682, 0.0
      %3684 = vadd.xlane.f32.xlu0 %v3683
      %v3685 = vpop.xlane.xlu0 %3684
      %v3686 = vrcp.pop %v3685
      %v3687 = vmul.f32 %v3682, %v3686
      %3688 = vrot.lane.b32.xlu0 %v2569, 48
      %v3689 = vpop.permute.xlu0 %3688
      %v3692 = vsel %vm750, %v3687, 0
      %3694 = vmatprep.subr.mxu0 0.0
      %3695 = vmatpush1.msra.mxu0 %v3689
      %3696 = vmatprep.subr.mxu0 0.0
      %3697 = vmatpush1.msra.mxu0 0.0
      %3698 = vmatprep.subr.mxu0 0.0
      %3699 = vmatpush1.msra.mxu0 0.0
      %3700 = vmatprep.subr.mxu0 0.0
      %3701 = vmatpush1.msra.mxu0 0.0
      %3702 = vmatprep.subr.mxu0 0.0
      %3703 = vmatpush1.msra.mxu0 0.0
      %3704 = vmatprep.subr.mxu0 0.0
      %3705 = vmatpush1.msra.mxu0 0.0
      %3706 = vmatprep.subr.mxu0 0.0
      %3707 = vmatpush1.msra.mxu0 0.0
      %3708 = vmatprep.subr.mxu0 0.0
      %3709 = vmatpush1.msra.mxu0 0.0
      %3710 = vmatprep.subr.mxu0 0.0
      %3711 = vmatpush1.msra.mxu0 0.0
      %3712 = vmatprep.subr.mxu0 0.0
      %3713 = vmatpush1.msra.mxu0 0.0
      %3714 = vmatprep.subr.mxu0 0.0
      %3715 = vmatpush1.msra.mxu0 0.0
      %3716 = vmatprep.subr.mxu0 0.0
      %3717 = vmatpush1.msra.mxu0 0.0
      %3718 = vmatprep.subr.mxu0 0.0
      %3719 = vmatpush1.msra.mxu0 0.0
      %3720 = vmatprep.subr.mxu0 0.0
      %3721 = vmatpush1.msra.mxu0 0.0
      %3722 = vmatprep.subr.mxu0 0.0
      %3723 = vmatpush1.msra.mxu0 0.0
      %3724 = vmatprep.subr.mxu0 0.0
      %3725 = vmatpush1.msra.mxu0 0.0
      %3726 = vmatprep.subr.mxu0 0.0
      %3727 = vmatpush1.msra.mxu0 0.0
      %3728 = vmatprep.subr.mxu0 0.0
      %3729 = vmatpush1.msra.mxu0 0.0
      %3730 = vmatprep.subr.mxu0 0.0
      %3731 = vmatpush1.msra.mxu0 0.0
      %3732 = vmatprep.subr.mxu0 0.0
      %3733 = vmatpush1.msra.mxu0 0.0
      %3734 = vmatprep.subr.mxu0 0.0
      %3735 = vmatpush1.msra.mxu0 0.0
      %3736 = vmatprep.subr.mxu0 0.0
      %3737 = vmatpush1.msra.mxu0 0.0
      %3738 = vmatprep.subr.mxu0 0.0
      %3739 = vmatpush1.msra.mxu0 0.0
      %3740 = vmatprep.subr.mxu0 0.0
      %3741 = vmatpush1.msra.mxu0 0.0
      %3742 = vmatprep.subr.mxu0 0.0
      %3743 = vmatpush1.msra.mxu0 0.0
      %3744 = vmatprep.subr.mxu0 0.0
      %3745 = vmatpush1.msra.mxu0 0.0
      %3746 = vmatprep.subr.mxu0 0.0
      %3747 = vmatpush1.msra.mxu0 0.0
      %3748 = vmatprep.subr.mxu0 0.0
      %3749 = vmatpush1.msra.mxu0 0.0
      %3750 = vmatprep.subr.mxu0 0.0
      %3751 = vmatpush1.msra.mxu0 0.0
      %3752 = vmatprep.subr.mxu0 0.0
      %3753 = vmatpush1.msra.mxu0 0.0
      %3754 = vmatprep.subr.mxu0 0.0
      %3755 = vmatpush1.msra.mxu0 0.0
      %3756 = vmatprep.subr.mxu0 0.0
      %3757 = vmatpush1.msra.mxu0 0.0
      %3758 = vmatprep.mubr.f32.mxu0 0.0
      %3759 = vmatmul.mubr.f32.gmra.mrb[0].mxu0 %v3692
      %v3760 = vpop.f32.mrb[0].mxu0
      %v3761 = vadd.f32 0.0, %v3760
      %v3762 = vpop.f32.mrb[0].mxu0
      %3763 = vdwg.mxu0
      %3764 = vrot.lane.b32.xlu0 %v2569, 104
      %v3765 = vpop.permute.xlu0 %3764
      %3766 = vrot.lane.b32.xlu0 %v2569, 72
      %v3767 = vpop.permute.xlu0 %3766
      %v3768 = vsel %vm750, %v3765, 0
      %v3770 = vsel %vm750, %v3767, 0
      %3772 = vmatprep.subr.mxu0 0.0
      %3773 = vmatpush1.xpose.msra.mxu0 %v3770
      %3774 = vmatprep.subr.mxu0 0.0
      %3775 = vmatpush1.xpose.msra.mxu0 0.0
      %3776 = vmatprep.subr.mxu0 0.0
      %3777 = vmatpush1.xpose.msra.mxu0 0.0
      %3778 = vmatprep.subr.mxu0 0.0
      %3779 = vmatpush1.xpose.msra.mxu0 0.0
      %3780 = vmatprep.subr.mxu0 0.0
      %3781 = vmatpush1.xpose.msra.mxu0 0.0
      %3782 = vmatprep.subr.mxu0 0.0
      %3783 = vmatpush1.xpose.msra.mxu0 0.0
      %3784 = vmatprep.subr.mxu0 0.0
      %3785 = vmatpush1.xpose.msra.mxu0 0.0
      %3786 = vmatprep.subr.mxu0 0.0
      %3787 = vmatpush1.xpose.msra.mxu0 0.0
      %3788 = vmatprep.subr.mxu0 0.0
      %3789 = vmatpush1.xpose.msra.mxu0 0.0
      %3790 = vmatprep.subr.mxu0 0.0
      %3791 = vmatpush1.xpose.msra.mxu0 0.0
      %3792 = vmatprep.subr.mxu0 0.0
      %3793 = vmatpush1.xpose.msra.mxu0 0.0
      %3794 = vmatprep.subr.mxu0 0.0
      %3795 = vmatpush1.xpose.msra.mxu0 0.0
      %3796 = vmatprep.subr.mxu0 0.0
      %3797 = vmatpush1.xpose.msra.mxu0 0.0
      %3798 = vmatprep.subr.mxu0 0.0
      %3799 = vmatpush1.xpose.msra.mxu0 0.0
      %3800 = vmatprep.subr.mxu0 0.0
      %3801 = vmatpush1.xpose.msra.mxu0 0.0
      %3802 = vmatprep.subr.mxu0 0.0
      %3803 = vmatpush1.xpose.msra.mxu0 0.0
      %3804 = vmatprep.subr.mxu0 0.0
      %3805 = vmatpush1.xpose.msra.mxu0 0.0
      %3806 = vmatprep.subr.mxu0 0.0
      %3807 = vmatpush1.xpose.msra.mxu0 0.0
      %3808 = vmatprep.subr.mxu0 0.0
      %3809 = vmatpush1.xpose.msra.mxu0 0.0
      %3810 = vmatprep.subr.mxu0 0.0
      %3811 = vmatpush1.xpose.msra.mxu0 0.0
      %3812 = vmatprep.subr.mxu0 0.0
      %3813 = vmatpush1.xpose.msra.mxu0 0.0
      %3814 = vmatprep.subr.mxu0 0.0
      %3815 = vmatpush1.xpose.msra.mxu0 0.0
      %3816 = vmatprep.subr.mxu0 0.0
      %3817 = vmatpush1.xpose.msra.mxu0 0.0
      %3818 = vmatprep.subr.mxu0 0.0
      %3819 = vmatpush1.xpose.msra.mxu0 0.0
      %3820 = vmatprep.subr.mxu0 0.0
      %3821 = vmatpush1.xpose.msra.mxu0 0.0
      %3822 = vmatprep.subr.mxu0 0.0
      %3823 = vmatpush1.xpose.msra.mxu0 0.0
      %3824 = vmatprep.subr.mxu0 0.0
      %3825 = vmatpush1.xpose.msra.mxu0 0.0
      %3826 = vmatprep.subr.mxu0 0.0
      %3827 = vmatpush1.xpose.msra.mxu0 0.0
      %3828 = vmatprep.subr.mxu0 0.0
      %3829 = vmatpush1.xpose.msra.mxu0 0.0
      %3830 = vmatprep.subr.mxu0 0.0
      %3831 = vmatpush1.xpose.msra.mxu0 0.0
      %3832 = vmatprep.subr.mxu0 0.0
      %3833 = vmatpush1.xpose.msra.mxu0 0.0
      %3834 = vmatprep.subr.mxu0 0.0
      %3835 = vmatpush1.xpose.msra.mxu0 0.0
      %3836 = vmatprep.mubr.f32.mxu0 0.0
      %3837 = vmatmul.mubr.f32.gmra.mrb[0].mxu0 %v3768
      %v3838 = vpop.f32.mrb[0].mxu0
      %v3839 = vadd.f32 0.0, %v3838
      %v3840 = vpop.f32.mrb[0].mxu0
      %3841 = vdwg.mxu0
      %v3842 = vmul.f32 %v3839, 0.35355338
      %v3843 = vadd.f32 %v3842, %v3341
      %v3844 = vsel %vm750, %v3843, -inf
      %3845 = vmax.xlane.f32.xlu0 %v3844
      %v3846 = vpop.xlane.xlu0 %3845
      %v3847 = vsub.f32 %v3843, %v3846
      %v3848 = vmul.f32 %v3847, 1.442695
      %v3849 = vpow.pop %v3848
      %v3850 = vsel %vm750, %v3849, 0.0
      %3851 = vadd.xlane.f32.xlu0 %v3850
      %v3852 = vpop.xlane.xlu0 %3851
      %v3853 = vrcp.pop %v3852
      %v3854 = vmul.f32 %v3849, %v3853
      %3855 = vrot.lane.b32.xlu0 %v2569, 40
      %v3856 = vpop.permute.xlu0 %3855
      %v3859 = vsel %vm750, %v3854, 0
      %3861 = vmatprep.subr.mxu0 0.0
      %3862 = vmatpush1.msra.mxu0 %v3856
      %3863 = vmatprep.subr.mxu0 0.0
      %3864 = vmatpush1.msra.mxu0 0.0
      %3865 = vmatprep.subr.mxu0 0.0
      %3866 = vmatpush1.msra.mxu0 0.0
      %3867 = vmatprep.subr.mxu0 0.0
      %3868 = vmatpush1.msra.mxu0 0.0
      %3869 = vmatprep.subr.mxu0 0.0
      %3870 = vmatpush1.msra.mxu0 0.0
      %3871 = vmatprep.subr.mxu0 0.0
      %3872 = vmatpush1.msra.mxu0 0.0
      %3873 = vmatprep.subr.mxu0 0.0
      %3874 = vmatpush1.msra.mxu0 0.0
      %3875 = vmatprep.subr.mxu0 0.0
      %3876 = vmatpush1.msra.mxu0 0.0
      %3877 = vmatprep.subr.mxu0 0.0
      %3878 = vmatpush1.msra.mxu0 0.0
      %3879 = vmatprep.subr.mxu0 0.0
      %3880 = vmatpush1.msra.mxu0 0.0
      %3881 = vmatprep.subr.mxu0 0.0
      %3882 = vmatpush1.msra.mxu0 0.0
      %3883 = vmatprep.subr.mxu0 0.0
      %3884 = vmatpush1.msra.mxu0 0.0
      %3885 = vmatprep.subr.mxu0 0.0
      %3886 = vmatpush1.msra.mxu0 0.0
      %3887 = vmatprep.subr.mxu0 0.0
      %3888 = vmatpush1.msra.mxu0 0.0
      %3889 = vmatprep.subr.mxu0 0.0
      %3890 = vmatpush1.msra.mxu0 0.0
      %3891 = vmatprep.subr.mxu0 0.0
      %3892 = vmatpush1.msra.mxu0 0.0
      %3893 = vmatprep.subr.mxu0 0.0
      %3894 = vmatpush1.msra.mxu0 0.0
      %3895 = vmatprep.subr.mxu0 0.0
      %3896 = vmatpush1.msra.mxu0 0.0
      %3897 = vmatprep.subr.mxu0 0.0
      %3898 = vmatpush1.msra.mxu0 0.0
      %3899 = vmatprep.subr.mxu0 0.0
      %3900 = vmatpush1.msra.mxu0 0.0
      %3901 = vmatprep.subr.mxu0 0.0
      %3902 = vmatpush1.msra.mxu0 0.0
      %3903 = vmatprep.subr.mxu0 0.0
      %3904 = vmatpush1.msra.mxu0 0.0
      %3905 = vmatprep.subr.mxu0 0.0
      %3906 = vmatpush1.msra.mxu0 0.0
      %3907 = vmatprep.subr.mxu0 0.0
      %3908 = vmatpush1.msra.mxu0 0.0
      %3909 = vmatprep.subr.mxu0 0.0
      %3910 = vmatpush1.msra.mxu0 0.0
      %3911 = vmatprep.subr.mxu0 0.0
      %3912 = vmatpush1.msra.mxu0 0.0
      %3913 = vmatprep.subr.mxu0 0.0
      %3914 = vmatpush1.msra.mxu0 0.0
      %3915 = vmatprep.subr.mxu0 0.0
      %3916 = vmatpush1.msra.mxu0 0.0
      %3917 = vmatprep.subr.mxu0 0.0
      %3918 = vmatpush1.msra.mxu0 0.0
      %3919 = vmatprep.subr.mxu0 0.0
      %3920 = vmatpush1.msra.mxu0 0.0
      %3921 = vmatprep.subr.mxu0 0.0
      %3922 = vmatpush1.msra.mxu0 0.0
      %3923 = vmatprep.subr.mxu0 0.0
      %3924 = vmatpush1.msra.mxu0 0.0
      %3925 = vmatprep.mubr.f32.mxu0 0.0
      %3926 = vmatmul.mubr.f32.gmra.mrb[0].mxu0 %v3859
      %v3927 = vpop.f32.mrb[0].mxu0
      %v3928 = vadd.f32 0.0, %v3927
      %v3929 = vpop.f32.mrb[0].mxu0
      %3930 = vdwg.mxu0
      %3932 = vrot.lane.b32.xlu0 %v3594, 8
      %v3933 = vpop.permute.xlu0 %3932
      %3936 = vrot.lane.b32.xlu0 %v3761, 16
      %v3937 = vpop.permute.xlu0 %3936
      %3940 = vrot.lane.b32.xlu0 %v3928, 24
      %v3941 = vpop.permute.xlu0 %3940
      %v3943 = vsel %vm750, %v3427, %v3933
      %v3944 = vsel %vm1424, %v3943, %v3937
      %v3945 = vsel %vm1426, %v3944, %v3941
      %v3946 = vlaneseq
      %v3947 = vshrl.u32 %v3946, 7
      %v3948 = vsub.s32 1, %v3947
      %v3949 = vrot.slane %v2485, %v3948
      %v3951 = vsel %vm665, %v3259, 0
      %v3954 = vsel %vm665, %v3945, 0
      %3956 = vmatprep.subr.mxu0 0.0
      %3957 = vmatpush1.msra.mxu0 %v2469
      %3958 = vmatprep.subr.mxu0 0.0
      %3959 = vmatpush1.msra.mxu0 %v2470
      %3960 = vmatprep.subr.mxu0 0.0
      %3961 = vmatpush1.msra.mxu0 %v2471
      %3962 = vmatprep.subr.mxu0 0.0
      %3963 = vmatpush1.msra.mxu0 %v2472
      %3964 = vmatprep.subr.mxu0 0.0
      %3965 = vmatpush1.msra.mxu0 0.0
      %3966 = vmatprep.subr.mxu0 0.0
      %3967 = vmatpush1.msra.mxu0 0.0
      %3968 = vmatprep.subr.mxu0 0.0
      %3969 = vmatpush1.msra.mxu0 0.0
      %3970 = vmatprep.subr.mxu0 0.0
      %3971 = vmatpush1.msra.mxu0 0.0
      %3972 = vmatprep.subr.mxu0 0.0
      %3973 = vmatpush1.msra.mxu0 0.0
      %3974 = vmatprep.subr.mxu0 0.0
      %3975 = vmatpush1.msra.mxu0 0.0
      %3976 = vmatprep.subr.mxu0 0.0
      %3977 = vmatpush1.msra.mxu0 0.0
      %3978 = vmatprep.subr.mxu0 0.0
      %3979 = vmatpush1.msra.mxu0 0.0
      %3980 = vmatprep.subr.mxu0 0.0
      %3981 = vmatpush1.msra.mxu0 0.0
      %3982 = vmatprep.subr.mxu0 0.0
      %3983 = vmatpush1.msra.mxu0 0.0
      %3984 = vmatprep.subr.mxu0 0.0
      %3985 = vmatpush1.msra.mxu0 0.0
      %3986 = vmatprep.subr.mxu0 0.0
      %3987 = vmatpush1.msra.mxu0 0.0
      %3988 = vmatprep.subr.mxu0 0.0
      %3989 = vmatpush1.msra.mxu0 0.0
      %3990 = vmatprep.subr.mxu0 0.0
      %3991 = vmatpush1.msra.mxu0 0.0
      %3992 = vmatprep.subr.mxu0 0.0
      %3993 = vmatpush1.msra.mxu0 0.0
      %3994 = vmatprep.subr.mxu0 0.0
      %3995 = vmatpush1.msra.mxu0 0.0
      %3996 = vmatprep.subr.mxu0 0.0
      %3997 = vmatpush1.msra.mxu0 0.0
      %3998 = vmatprep.subr.mxu0 0.0
      %3999 = vmatpush1.msra.mxu0 0.0
      %4000 = vmatprep.subr.mxu0 0.0
      %4001 = vmatpush1.msra.mxu0 0.0
      %4002 = vmatprep.subr.mxu0 0.0
      %4003 = vmatpush1.msra.mxu0 0.0
      %4004 = vmatprep.subr.mxu0 0.0
      %4005 = vmatpush1.msra.mxu0 0.0
      %4006 = vmatprep.subr.mxu0 0.0
      %4007 = vmatpush1.msra.mxu0 0.0
      %4008 = vmatprep.subr.mxu0 0.0
      %4009 = vmatpush1.msra.mxu0 0.0
      %4010 = vmatprep.subr.mxu0 0.0
      %4011 = vmatpush1.msra.mxu0 0.0
      %4012 = vmatprep.subr.mxu0 0.0
      %4013 = vmatpush1.msra.mxu0 0.0
      %4014 = vmatprep.subr.mxu0 0.0
      %4015 = vmatpush1.msra.mxu0 0.0
      %4016 = vmatprep.subr.mxu0 0.0
      %4017 = vmatpush1.msra.mxu0 0.0
      %4018 = vmatprep.subr.mxu0 0.0
      %4019 = vmatpush1.msra.mxu0 0.0
      %4020 = vmatprep.mubr.f32.mxu0 0.0
      %4021 = vmatmul.mubr.f32.gmra.mrb[0].mxu0 %v3951
      %v4022 = vpop.f32.mrb[0].mxu0
      %v4023 = vadd.f32 %v3949, %v4022
      %v4024 = vpop.f32.mrb[0].mxu0
      %4025 = vmatprep.mubr.f32.mxu0 0.0
      %4026 = vmatmul.mubr.f32.gmra.mrb[0].mxu0 %v3954
      %v4027 = vpop.f32.mrb[0].mxu0
      %v4028 = vadd.f32 %v3949, %v4027
      %v4029 = vpop.f32.mrb[0].mxu0
      %4030 = vdwg.mxu0
      %v4031 = vadd.f32 %v2463, %v4023
      %v4032 = vadd.f32 %v2464, %v4028
      %v4033 = vsel %vm665, %v4031, 0.0
      %4034 = vadd.xlane.f32.xlu0 %v4033
      %v4035 = vpop.xlane.xlu0 %4034
      %v4036 = vsel %vm665, %v4032, 0.0
      %4037 = vadd.xlane.f32.xlu0 %v4036
      %v4038 = vpop.xlane.xlu0 %4037
      %v4039 = vmul.f32 %v4035, %v2199
      %v4040 = vmul.f32 %v4038, %v2199
      %v4041 = vsub.f32 %v4031, %v4039
      %v4042 = vsub.f32 %v4032, %v4040
      %v4043 = vmul.f32 %v4041, %v4041
      %v4044 = vmul.f32 %v4042, %v4042
      %v4045 = vsel %vm665, %v4043, 0.0
      %4046 = vadd.xlane.f32.xlu0 %v4045
      %v4047 = vpop.xlane.xlu0 %4046
      %v4048 = vsel %vm665, %v4044, 0.0
      %4049 = vadd.xlane.f32.xlu0 %v4048
      %v4050 = vpop.xlane.xlu0 %4049
      %v4051 = vmul.f32 %v4047, %v2199
      %v4052 = vmul.f32 %v4050, %v2199
      %v4053 = vadd.f32 %v4051, 1e-05
      %v4054 = vadd.f32 %v4052, 1e-05
      %v4055 = vrsqrt.pop %v4053
      %v4056 = vrsqrt.pop %v4054
      %v4057 = vmul.f32 %v4041, %v4055
      %v4058 = vmul.f32 %v4042, %v4056
      %v4059 = vlaneseq
      %v4060 = vshrl.u32 %v4059, 7
      %v4061 = vsub.s32 4, %v4060
      %v4062 = vrot.slane %v2485, %v4061
      %v4063 = vmul.f32 %v4057, %v4062
      %v4064 = vmul.f32 %v4058, %v4062
      %v4065 = vlaneseq
      %v4066 = vshrl.u32 %v4065, 7
      %v4067 = vsub.s32 5, %v4066
      %v4068 = vrot.slane %v2485, %v4067
      %v4069 = vadd.f32 %v4063, %v4068
      %v4070 = vadd.f32 %v4064, %v4068
      %v4071 = vlaneseq
      %v4072 = vshrl.u32 %v4071, 7
      %v4073 = vsub.s32 2, %v4072
      %v4074 = vrot.slane %v2485, %v4073
      %v4076 = vsel %vm665, %v4069, 0
      %v4079 = vsel %vm665, %v4070, 0
      %4081 = vmatprep.subr.mxu0 0.0
      %4082 = vmatpush1.msra.mxu0 %v2473
      %4083 = vmatprep.subr.mxu0 0.0
      %4084 = vmatpush1.msra.mxu0 %v2474
      %4085 = vmatprep.subr.mxu0 0.0
      %4086 = vmatpush1.msra.mxu0 %v2475
      %4087 = vmatprep.subr.mxu0 0.0
      %4088 = vmatpush1.msra.mxu0 %v2476
      %4089 = vmatprep.subr.mxu0 0.0
      %4090 = vmatpush1.msra.mxu0 0.0
      %4091 = vmatprep.subr.mxu0 0.0
      %4092 = vmatpush1.msra.mxu0 0.0
      %4093 = vmatprep.subr.mxu0 0.0
      %4094 = vmatpush1.msra.mxu0 0.0
      %4095 = vmatprep.subr.mxu0 0.0
      %4096 = vmatpush1.msra.mxu0 0.0
      %4097 = vmatprep.subr.mxu0 0.0
      %4098 = vmatpush1.msra.mxu0 0.0
      %4099 = vmatprep.subr.mxu0 0.0
      %4100 = vmatpush1.msra.mxu0 0.0
      %4101 = vmatprep.subr.mxu0 0.0
      %4102 = vmatpush1.msra.mxu0 0.0
      %4103 = vmatprep.subr.mxu0 0.0
      %4104 = vmatpush1.msra.mxu0 0.0
      %4105 = vmatprep.subr.mxu0 0.0
      %4106 = vmatpush1.msra.mxu0 0.0
      %4107 = vmatprep.subr.mxu0 0.0
      %4108 = vmatpush1.msra.mxu0 0.0
      %4109 = vmatprep.subr.mxu0 0.0
      %4110 = vmatpush1.msra.mxu0 0.0
      %4111 = vmatprep.subr.mxu0 0.0
      %4112 = vmatpush1.msra.mxu0 0.0
      %4113 = vmatprep.subr.mxu0 0.0
      %4114 = vmatpush1.msra.mxu0 0.0
      %4115 = vmatprep.subr.mxu0 0.0
      %4116 = vmatpush1.msra.mxu0 0.0
      %4117 = vmatprep.subr.mxu0 0.0
      %4118 = vmatpush1.msra.mxu0 0.0
      %4119 = vmatprep.subr.mxu0 0.0
      %4120 = vmatpush1.msra.mxu0 0.0
      %4121 = vmatprep.subr.mxu0 0.0
      %4122 = vmatpush1.msra.mxu0 0.0
      %4123 = vmatprep.subr.mxu0 0.0
      %4124 = vmatpush1.msra.mxu0 0.0
      %4125 = vmatprep.subr.mxu0 0.0
      %4126 = vmatpush1.msra.mxu0 0.0
      %4127 = vmatprep.subr.mxu0 0.0
      %4128 = vmatpush1.msra.mxu0 0.0
      %4129 = vmatprep.subr.mxu0 0.0
      %4130 = vmatpush1.msra.mxu0 0.0
      %4131 = vmatprep.subr.mxu0 0.0
      %4132 = vmatpush1.msra.mxu0 0.0
      %4133 = vmatprep.subr.mxu0 0.0
      %4134 = vmatpush1.msra.mxu0 0.0
      %4135 = vmatprep.subr.mxu0 0.0
      %4136 = vmatpush1.msra.mxu0 0.0
      %4137 = vmatprep.subr.mxu0 0.0
      %4138 = vmatpush1.msra.mxu0 0.0
      %4139 = vmatprep.subr.mxu0 0.0
      %4140 = vmatpush1.msra.mxu0 0.0
      %4141 = vmatprep.subr.mxu0 0.0
      %4142 = vmatpush1.msra.mxu0 0.0
      %4143 = vmatprep.subr.mxu0 0.0
      %4144 = vmatpush1.msra.mxu0 0.0
      %4145 = vmatprep.mubr.f32.mxu0 0.0
      %4146 = vmatmul.mubr.f32.gmra.mrb[0].mxu0 %v4076
      %v4147 = vpop.f32.mrb[0].mxu0
      %v4148 = vadd.f32 %v4074, %v4147
      %v4149 = vpop.f32.mrb[0].mxu0
      %4150 = vmatprep.mubr.f32.mxu0 0.0
      %4151 = vmatmul.mubr.f32.gmra.mrb[0].mxu0 %v4079
      %v4152 = vpop.f32.mrb[0].mxu0
      %v4153 = vadd.f32 %v4074, %v4152
      %v4154 = vpop.f32.mrb[0].mxu0
      %4155 = vdwg.mxu0
      %v4156 = vmul.f32 %v4148, %v4148
      %v4157 = vmul.f32 %v4153, %v4153
      %v4158 = vmul.f32 %v4148, %v4156
      %v4159 = vmul.f32 %v4153, %v4157
      %v4160 = vmul.f32 %v4158, 0.044715
      %v4161 = vmul.f32 %v4159, 0.044715
      %v4162 = vadd.f32 %v4148, %v4160
      %v4163 = vadd.f32 %v4153, %v4161
      %v4164 = vmul.f32 %v4162, 0.7978846
      %v4165 = vmul.f32 %v4163, 0.7978846
      %v4166 = vtanh.pop %v4164
      %v4167 = vtanh.pop %v4165
      %v4168 = vadd.f32 %v4166, 1.0
      %v4169 = vadd.f32 %v4167, 1.0
      %v4170 = vmul.f32 %v4168, 0.5
      %v4171 = vmul.f32 %v4169, 0.5
      %v4172 = vmul.f32 %v4148, %v4170
      %v4173 = vmul.f32 %v4153, %v4171
      %v4174 = vlaneseq
      %v4175 = vshrl.u32 %v4174, 7
      %v4176 = vsub.s32 3, %v4175
      %v4177 = vrot.slane %v2485, %v4176
      %v4179 = vsel %vm2339, %v4172, 0
      %v4182 = vsel %vm2339, %v4173, 0
      %4184 = vmatprep.subr.mxu0 0.0
      %4185 = vmatpush1.msra.mxu0 %v2477
      %4186 = vmatprep.subr.mxu0 0.0
      %4187 = vmatpush1.msra.mxu0 %v2478
      %4188 = vmatprep.subr.mxu0 0.0
      %4189 = vmatpush1.msra.mxu0 %v2479
      %4190 = vmatprep.subr.mxu0 0.0
      %4191 = vmatpush1.msra.mxu0 %v2480
      %4192 = vmatprep.subr.mxu0 0.0
      %4193 = vmatpush1.msra.mxu0 %v2481
      %4194 = vmatprep.subr.mxu0 0.0
      %4195 = vmatpush1.msra.mxu0 %v2482
      %4196 = vmatprep.subr.mxu0 0.0
      %4197 = vmatpush1.msra.mxu0 %v2483
      %4198 = vmatprep.subr.mxu0 0.0
      %4199 = vmatpush1.msra.mxu0 %v2484
      %4200 = vmatprep.subr.mxu0 0.0
      %4201 = vmatpush1.msra.mxu0 0.0
      %4202 = vmatprep.subr.mxu0 0.0
      %4203 = vmatpush1.msra.mxu0 0.0
      %4204 = vmatprep.subr.mxu0 0.0
      %4205 = vmatpush1.msra.mxu0 0.0
      %4206 = vmatprep.subr.mxu0 0.0
      %4207 = vmatpush1.msra.mxu0 0.0
      %4208 = vmatprep.subr.mxu0 0.0
      %4209 = vmatpush1.msra.mxu0 0.0
      %4210 = vmatprep.subr.mxu0 0.0
      %4211 = vmatpush1.msra.mxu0 0.0
      %4212 = vmatprep.subr.mxu0 0.0
      %4213 = vmatpush1.msra.mxu0 0.0
      %4214 = vmatprep.subr.mxu0 0.0
      %4215 = vmatpush1.msra.mxu0 0.0
      %4216 = vmatprep.subr.mxu0 0.0
      %4217 = vmatpush1.msra.mxu0 0.0
      %4218 = vmatprep.subr.mxu0 0.0
      %4219 = vmatpush1.msra.mxu0 0.0
      %4220 = vmatprep.subr.mxu0 0.0
      %4221 = vmatpush1.msra.mxu0 0.0
      %4222 = vmatprep.subr.mxu0 0.0
      %4223 = vmatpush1.msra.mxu0 0.0
      %4224 = vmatprep.subr.mxu0 0.0
      %4225 = vmatpush1.msra.mxu0 0.0
      %4226 = vmatprep.subr.mxu0 0.0
      %4227 = vmatpush1.msra.mxu0 0.0
      %4228 = vmatprep.subr.mxu0 0.0
      %4229 = vmatpush1.msra.mxu0 0.0
      %4230 = vmatprep.subr.mxu0 0.0
      %4231 = vmatpush1.msra.mxu0 0.0
      %4232 = vmatprep.subr.mxu0 0.0
      %4233 = vmatpush1.msra.mxu0 0.0
      %4234 = vmatprep.subr.mxu0 0.0
      %4235 = vmatpush1.msra.mxu0 0.0
      %4236 = vmatprep.subr.mxu0 0.0
      %4237 = vmatpush1.msra.mxu0 0.0
      %4238 = vmatprep.subr.mxu0 0.0
      %4239 = vmatpush1.msra.mxu0 0.0
      %4240 = vmatprep.subr.mxu0 0.0
      %4241 = vmatpush1.msra.mxu0 0.0
      %4242 = vmatprep.subr.mxu0 0.0
      %4243 = vmatpush1.msra.mxu0 0.0
      %4244 = vmatprep.subr.mxu0 0.0
      %4245 = vmatpush1.msra.mxu0 0.0
      %4246 = vmatprep.subr.mxu0 0.0
      %4247 = vmatpush1.msra.mxu0 0.0
      %4248 = vmatprep.mubr.f32.mxu0 0.0
      %4249 = vmatmul.mubr.f32.gmra.mrb[0].mxu0 %v4179
      %v4250 = vpop.f32.mrb[0].mxu0
      %v4251 = vadd.f32 %v4177, %v4250
      %v4252 = vpop.f32.mrb[0].mxu0
      %4253 = vmatprep.mubr.f32.mxu0 0.0
      %4254 = vmatmul.mubr.f32.gmra.mrb[0].mxu0 %v4182
      %v4255 = vpop.f32.mrb[0].mxu0
      %v4256 = vadd.f32 %v4177, %v4255
      %v4257 = vpop.f32.mrb[0].mxu0
      %4258 = vdwg.mxu0
      %v4259 = vadd.f32 %v4069, %v4251
      %v4260 = vadd.f32 %v4070, %v4256
      %v4261 = vsel %vm665, %v4259, 0.0
      %4262 = vadd.xlane.f32.xlu0 %v4261
      %v4263 = vpop.xlane.xlu0 %4262
      %v4264 = vsel %vm665, %v4260, 0.0
      %4265 = vadd.xlane.f32.xlu0 %v4264
      %v4266 = vpop.xlane.xlu0 %4265
      %v4267 = vmul.f32 %v4263, %v2199
      %v4268 = vmul.f32 %v4266, %v2199
      %v4269 = vsub.f32 %v4259, %v4267
      %v4270 = vsub.f32 %v4260, %v4268
      %v4271 = vmul.f32 %v4269, %v4269
      %v4272 = vmul.f32 %v4270, %v4270
      %v4273 = vsel %vm665, %v4271, 0.0
      %4274 = vadd.xlane.f32.xlu0 %v4273
      %v4275 = vpop.xlane.xlu0 %4274
      %v4276 = vsel %vm665, %v4272, 0.0
      %4277 = vadd.xlane.f32.xlu0 %v4276
      %v4278 = vpop.xlane.xlu0 %4277
      %v4279 = vmul.f32 %v4275, %v2199
      %v4280 = vmul.f32 %v4278, %v2199
      %v4281 = vadd.f32 %v4279, 1e-05
      %v4282 = vadd.f32 %v4280, 1e-05
      %v4283 = vrsqrt.pop %v4281
      %v4284 = vrsqrt.pop %v4282
      %v4285 = vmul.f32 %v4269, %v4283
      %v4286 = vmul.f32 %v4270, %v4284
      %v4287 = vlaneseq
      %v4288 = vshrl.u32 %v4287, 7
      %v4289 = vsub.s32 6, %v4288
      %v4290 = vrot.slane %v2485, %v4289
      %v4291 = vmul.f32 %v4285, %v4290
      %v4292 = vmul.f32 %v4286, %v4290
      %v4293 = vlaneseq
      %v4294 = vshrl.u32 %v4293, 7
      %v4295 = vsub.s32 7, %v4294
      %v4296 = vrot.slane %v2485, %v4295
      %v4297 = vadd.f32 %v4291, %v4296
      %v4298 = vadd.f32 %v4292, %v4296
      %4299 = vst.msk [vmem:[#allocation3] sm:$0xff] %vm665, %v4297
      %4300 = vst.msk [vmem:[#allocation3 + $0x8] sm:$0xff] %vm665, %v4298
      %p4301 = scmp.eq.s32.totalorder %s26, 7
      // Predicated region
      $region77: #{_encode.4} parent=71 // pred_check
        %p4302 = pneg %p4301
      $region78: #{_encode.4} parent=71 // pred_check_branch
        %4304 = sbr.rel (%p4302) target = $region80
      $region79: #{_encode.4} parent=71 // pred_region
        %v4305 = vld [vmem:[#allocation2] sm:$0xff]
        %v4306 = vld [vmem:[#allocation2 + $0x8] sm:$0xff]
        %4307 = vst.msk [vmem:[%s13] sm:$0xff] %vm665, %v4305
        %4308 = vst.msk [vmem:[%s13 + $0x8] sm:$0xff] %vm665, %v4306
        %v4309 = vld [vmem:[#allocation3] sm:$0xff]
        %v4310 = vld [vmem:[#allocation3 + $0x8] sm:$0xff]
        %4311 = vst.msk [vmem:[%s14] sm:$0xff] %vm665, %v4309
        %4312 = vst.msk [vmem:[%s14 + $0x8] sm:$0xff] %vm665, %v4310
      $region80: #{_encode.4} parent=71 // pred_fallthru
        _
      // Predicated region
      $region81: #{_encode.4} parent=71 // pred_check
        %p4313 = pneg %p362
      $region82: #{_encode.4} parent=71 // pred_check_branch
        %4315 = sbr.rel (%p4313) target = $region84
      $region83: #{_encode.4} parent=71 // pred_region
        _
      $region84: #{_encode.4} parent=71 // pred_fallthru
        _
      // Predicated region
      $region85: #{_encode.4} parent=71 // pred_check
        %p4316 = pneg %p383
      $region86: #{_encode.4} parent=71 // pred_check_branch
        %4318 = sbr.rel (%p4316) target = $region88
      $region87: #{_encode.4} parent=71 // pred_region
        _
      $region88: #{_encode.4} parent=71 // pred_fallthru
        _
      // Predicated region
      $region89: #{_encode.4} parent=71 // pred_check
        %p4319 = pneg %p362
      $region90: #{_encode.4} parent=71 // pred_check_branch
        %4321 = sbr.rel (%p4319) target = $region92
      $region91: #{_encode.4} parent=71 // pred_region
        _
      $region92: #{_encode.4} parent=71 // pred_fallthru
        _
      // Predicated region
      $region93: #{_encode.4} parent=71 // pred_check
        %p4322 = pneg %p383
      $region94: #{_encode.4} parent=71 // pred_check_branch
        %4324 = sbr.rel (%p4322) target = $region96
      $region95: #{_encode.4} parent=71 // pred_region
        _
      $region96: #{_encode.4} parent=71 // pred_fallthru
        _
    $region72: #{_encode.4} parent=5 // pred_fallthru
      _
    %p4325 = scmp.le.s32.totalorder 2, %s21
    // Predicated region
    $region97: #{_encode.4} parent=5 // pred_check
      %p4326 = pneg %p4325
    $region98: #{_encode.4} parent=5 // pred_check_branch
      %4328 = sbr.rel (%p4326) target = $region100
    $region99: #{_encode.4} parent=5 // pred_region
      %s4329 = ssub.s32 %s21, 2
    $region100: #{_encode.4} parent=5 // pred_fallthru
      _
  $region6: #{_encode.4} parent=0 // loop_footer
    %s25 = sadd.s32 1, %s21
  $region7: #{_encode.4} parent=0 // loop_footer_branch
    %20 = sbr.rel target = $region3
  $region8: #{_encode.4} parent=0 // loop_exit
    _

</llo_original>
